<compile_context>
chip_gen: v7x
topology: tpu7x:2x2x1
jax: 0.10.0
libtpu: 0.0.40
codegen_flags: <defaults>
</compile_context>

<pallas_src>
import functools
import math
from collections import namedtuple

import jax
import jax.numpy as jnp
from jax import lax
from jax.experimental import pallas as pl
from jax.experimental.pallas import tpu as pltpu

_LANE = 128


def _vmem_capacity_bytes():
    try:
        info = pltpu.get_tpu_info()
        cap = getattr(info, "vmem_capacity_bytes", None)
        if cap:
            return int(cap)
    except Exception:
        pass
    return 64 * 1024 * 1024          # conservative (v7x-sized) fallback


_VMEM_CAP = _vmem_capacity_bytes()
_BIG_VMEM = _VMEM_CAP >= 100 * 1024 * 1024          # v5e / v6e (128 MiB)
_VMEM_LIMIT = (100 * 1024 * 1024) if _BIG_VMEM else int(_VMEM_CAP * 11 // 16)
_ROW_TILE = 1024 if _BIG_VMEM else 512


# ----------------------------------------------------------------------------
# Config containers (mirror the PyTorch namedtuples)
# ----------------------------------------------------------------------------
GlobalParams = namedtuple(
    "GlobalParams",
    ["batch_norm_momentum", "batch_norm_epsilon", "dropout_rate", "num_classes",
     "width_coefficient", "depth_coefficient", "depth_divisor", "min_depth",
     "drop_connect_rate", "image_size"])

BlockArgs = namedtuple(
    "BlockArgs",
    ["num_repeat", "kernel_size", "stride", "expand_ratio", "input_filters",
     "output_filters", "se_ratio", "id_skip"])


def round_filters(filters, gp):
    multiplier = gp.width_coefficient
    if not multiplier:
        return filters
    divisor = gp.depth_divisor
    min_depth = gp.min_depth
    filters *= multiplier
    min_depth = min_depth or divisor
    new_filters = max(min_depth, int(filters + divisor / 2) // divisor * divisor)
    if new_filters < 0.9 * filters:
        new_filters += divisor
    return int(new_filters)


def round_repeats(repeats, gp):
    multiplier = gp.depth_coefficient
    if not multiplier:
        return repeats
    return int(math.ceil(multiplier * repeats))


def _pad128(n):
    return ((n + _LANE - 1) // _LANE) * _LANE


# ----------------------------------------------------------------------------
# Matmul kernels (1x1 convs): folded BN affine + swish + residual [+ SE gate]
# ----------------------------------------------------------------------------
def _mm2d_kernel(*refs, act, nk, resid, single_k):
    """Un-gated tiled matmul, batch folded into rows.

    grid = (row_tiles, out_tiles, k_tiles)
    refs = x(tm,tk) bf16, w(tk,tn) bf16, scale(1,tn) f32, bias(1,tn) f32,
           [res(tm,tn) bf16], out(tm,tn) bf16, [acc(tm,tn) f32 scratch]
    """
    x_ref, w_ref, s_ref, b_ref = refs[:4]
    pos = 4
    res_ref = None
    if resid:
        res_ref = refs[pos]
        pos += 1
    o_ref = refs[pos]

    def epilogue(acc):
        y = acc * s_ref[...] + b_ref[...]
        if act == "swish":
            y = y * jax.nn.sigmoid(y)
        if resid:
            y = y + res_ref[...].astype(jnp.float32)
        o_ref[...] = y.astype(o_ref.dtype)

    if single_k:
        epilogue(jnp.dot(x_ref[...], w_ref[...],
                         preferred_element_type=jnp.float32))
    else:
        acc_ref = refs[pos + 1]
        kk = pl.program_id(2)

        @pl.when(kk == 0)
        def _():
            acc_ref[...] = jnp.zeros_like(acc_ref)

        acc_ref[...] += jnp.dot(x_ref[...], w_ref[...],
                                preferred_element_type=jnp.float32)

        @pl.when(kk == nk - 1)
        def _():
            epilogue(acc_ref[...])


def _mmg_kernel(*refs, act, nk, resid, single_k):
    """SE-gated tiled matmul (project conv), batched grid.

    grid = (batch, row_tiles, out_tiles, k_tiles)
    refs = x(1,tm,tk) bf16, w(tk,tn) bf16, scale(1,tn) f32, bias(1,tn) f32,
           gate(1,1,tk) f32, [res(1,tm,tn) bf16], out(1,tm,tn) bf16,
           [acc(tm,tn) f32 scratch]
    """
    x_ref, w_ref, s_ref, b_ref, g_ref = refs[:5]
    pos = 5
    res_ref = None
    if resid:
        res_ref = refs[pos]
        pos += 1
    o_ref = refs[pos]

    def epilogue(acc):
        y = acc * s_ref[...] + b_ref[...]
        if act == "swish":
            y = y * jax.nn.sigmoid(y)
        if resid:
            y = y + res_ref[0].astype(jnp.float32)
        o_ref[0] = y.astype(o_ref.dtype)

    # SE gate applied to the matmul input in bf16 (padded lanes of x are 0).
    x = x_ref[0] * g_ref[0].astype(jnp.bfloat16)

    if single_k:
        epilogue(jnp.dot(x, w_ref[...], preferred_element_type=jnp.float32))
    else:
        acc_ref = refs[pos + 1]
        kk = pl.program_id(3)

        @pl.when(kk == 0)
        def _():
            acc_ref[...] = jnp.zeros_like(acc_ref)

        acc_ref[...] += jnp.dot(x, w_ref[...],
                                preferred_element_type=jnp.float32)

        @pl.when(kk == nk - 1)
        def _():
            epilogue(acc_ref[...])


def matmul_affine(x3, w, scale, bias, *, act="none", gate=None, residual=None):
    """out = act((gate*x) @ w * scale + bias) [+ residual], bf16 in/out."""
    N, HW, K = x3.shape
    Kw, Nout = w.shape
    assert Kw == K and K % _LANE == 0 and Nout % _LANE == 0

    tk = 256 if K % 256 == 0 else 128
    tn = 512 if (_BIG_VMEM and Nout % 512 == 0) else (256 if Nout % 256 == 0 else 128)
    nk = K // tk
    single_k = nk == 1

    flops = 2 * N * HW * K * Nout
    transcendentals = N * HW * Nout if act == "swish" else 0
    bytes_accessed = (N * HW * K * 2 + K * Nout * 2 + N * HW * Nout * 2
                      + (N * HW * Nout * 2 if residual is not None else 0))
    cost = pl.CostEstimate(flops=flops, transcendentals=transcendentals,
                           bytes_accessed=bytes_accessed)

    if gate is None:
        # Fold batch into rows: full MXU row tiles even when HW is small.
        R = N * HW
        x2 = x3.reshape(R, K)
        res2 = residual.reshape(R, Nout) if residual is not None else None
        tm = min(R, _ROW_TILE)
        grid = (pl.cdiv(R, tm), Nout // tn, nk)
        in_specs = [
            pl.BlockSpec((tm, tk), lambda i, j, k: (i, k)),
            pl.BlockSpec((tk, tn), lambda i, j, k: (k, j)),
            pl.BlockSpec((1, tn),  lambda i, j, k: (0, j)),
            pl.BlockSpec((1, tn),  lambda i, j, k: (0, j)),
        ]
        args = [x2, w, scale, bias]
        if res2 is not None:
            in_specs.append(pl.BlockSpec((tm, tn), lambda i, j, k: (i, j)))
            args.append(res2)
        kernel = functools.partial(_mm2d_kernel, act=act, nk=nk,
                                   resid=res2 is not None, single_k=single_k)
        out = pl.pallas_call(
            kernel,
            grid=grid,
            in_specs=in_specs,
            out_specs=pl.BlockSpec((tm, tn), lambda i, j, k: (i, j)),
            out_shape=jax.ShapeDtypeStruct((R, Nout), jnp.bfloat16),
            scratch_shapes=[] if single_k else [pltpu.VMEM((tm, tn), jnp.float32)],
            compiler_params=pltpu.CompilerParams(
                dimension_semantics=("parallel", "parallel", "arbitrary"),
                vmem_limit_bytes=_VMEM_LIMIT),
            cost_estimate=cost,
        )(*args)
        return out.reshape(N, HW, Nout)

    # Gated (SE) path: keep the batch axis so the per-image gate stays a
    # simple (1,1,tk) block.
    tm = min(HW, _ROW_TILE)
    grid = (N, pl.cdiv(HW, tm), Nout // tn, nk)
    in_specs = [
        pl.BlockSpec((1, tm, tk), lambda b, i, j, k: (b, i, k)),
        pl.BlockSpec((tk, tn),    lambda b, i, j, k: (k, j)),
        pl.BlockSpec((1, tn),     lambda b, i, j, k: (0, j)),
        pl.BlockSpec((1, tn),     lambda b, i, j, k: (0, j)),
        pl.BlockSpec((1, 1, tk),  lambda b, i, j, k: (b, 0, k)),
    ]
    args = [x3, w, scale, bias, gate]
    if residual is not None:
        in_specs.append(pl.BlockSpec((1, tm, tn), lambda b, i, j, k: (b, i, j)))
        args.append(residual)
    kernel = functools.partial(_mmg_kernel, act=act, nk=nk,
                               resid=residual is not None, single_k=single_k)
    return pl.pallas_call(
        kernel,
        grid=grid,
        in_specs=in_specs,
        out_specs=pl.BlockSpec((1, tm, tn), lambda b, i, j, k: (b, i, j)),
        out_shape=jax.ShapeDtypeStruct((N, HW, Nout), jnp.bfloat16),
        scratch_shapes=[] if single_k else [pltpu.VMEM((tm, tn), jnp.float32)],
        compiler_params=pltpu.CompilerParams(
            dimension_semantics=("parallel", "parallel", "parallel", "arbitrary"),
            vmem_limit_bytes=_VMEM_LIMIT),
        cost_estimate=cost,
    )(*args)


# ----------------------------------------------------------------------------
# Depthwise conv kernels (fused BN + swish + SE global-sum)
# ----------------------------------------------------------------------------
def _same_pads(size, k, s):
    out = -(-size // s)
    pad = max((out - 1) * s + k - size, 0)
    return pad // 2, pad - pad // 2, out


def _dw_s1_kernel(x_ref, w_ref, s_ref, b_ref, o_ref, sum_ref, xpad_ref, *,
                  k, Ho, Wo, ph0, pw0):
    """Depthwise kxk, stride 1.  SAME padding fused (zero-filled VMEM scratch).

    x block   : (1, H, W, CT)   bf16   (unpadded -- no XLA pad round trip)
    w block   : (k*k, CT)       f32
    scale/b   : (1, CT)         f32
    out block : (1, Ho, Wo, CT) bf16
    sum block : (1, 1, CT)      f32    (per-channel spatial sum, for SE pool)
    xpad      : (Hp, Wp, CT)    bf16 VMEM scratch
    """
    xpad_ref[...] = jnp.zeros_like(xpad_ref)
    xpad_ref[ph0:ph0 + Ho, pw0:pw0 + Wo, :] = x_ref[0]

    acc = None
    for kw in range(k):
        # one sublane-shifted slice per kw (k copies, not k*k)
        xw = xpad_ref[:, kw:kw + Wo, :]                       # (Hp, Wo, CT) bf16
        for kh in range(k):
            win = xw[kh:kh + Ho].astype(jnp.float32)          # cheap outer-dim slice
            tap = win * w_ref[kh * k + kw:kh * k + kw + 1, :]
            acc = tap if acc is None else acc + tap
    y = acc * s_ref[...] + b_ref[...]
    y = y * jax.nn.sigmoid(y)
    o_ref[0] = y.astype(o_ref.dtype)
    sum_ref[...] = jnp.sum(y, axis=(0, 1), keepdims=True)


def _dw_phase_kernel(ph_ref, w_ref, s_ref, b_ref, o_ref, sum_ref, *,
                     k, stride, Ho, Wo):
    """Depthwise kxk, stride > 1, phase-decomposed input.

    ph block : (s*s, 1, Hph, Wph, CT) bf16
    out/sum  : as above
    """
    acc = None
    qmax = (k - 1) // stride
    for rh in range(stride):
        for rw in range(stride):
            p_idx = rh * stride + rw
            for qw in range(qmax + 1):
                kw = qw * stride + rw
                if kw >= k:
                    continue
                # one sublane-shifted slice per (phase, qw)
                xw = ph_ref[p_idx, 0, :, qw:qw + Wo, :]       # (Hph, Wo, CT)
                for qh in range(qmax + 1):
                    kh = qh * stride + rh
                    if kh >= k:
                        continue
                    win = xw[qh:qh + Ho].astype(jnp.float32)
                    tap = win * w_ref[kh * k + kw:kh * k + kw + 1, :]
                    acc = tap if acc is None else acc + tap
    y = acc * s_ref[...] + b_ref[...]
    y = y * jax.nn.sigmoid(y)
    o_ref[0] = y.astype(o_ref.dtype)
    sum_ref[...] = jnp.sum(y, axis=(0, 1), keepdims=True)


def depthwise_conv_same(x4, w_taps, scale, bias, k, stride):
    """Depthwise kxk "SAME" conv, fused BN + swish + SE channel-sum.

    x4: (N, H, W, Cp) bf16.  Returns (out (N,Ho,Wo,Cp) bf16,
    sums (N,1,Cp) f32, Ho, Wo)."""
    N, H, W, Cp = x4.shape
    ph0, ph1, Ho = _same_pads(H, k, stride)
    pw0, pw1, Wo = _same_pads(W, k, stride)

    CT = 256 if (_BIG_VMEM and Cp % 256 == 0) else 128
    grid = (N, Cp // CT)
    out_shapes = [jax.ShapeDtypeStruct((N, Ho, Wo, Cp), jnp.bfloat16),
                  jax.ShapeDtypeStruct((N, 1, Cp), jnp.float32)]
    out_specs = [pl.BlockSpec((1, Ho, Wo, CT), lambda b, c: (b, 0, 0, c)),
                 pl.BlockSpec((1, 1, CT), lambda b, c: (b, 0, c))]
    flops = 2 * N * Ho * Wo * Cp * k * k
    cparams = pltpu.CompilerParams(
        dimension_semantics=("parallel", "parallel"),
        vmem_limit_bytes=_VMEM_LIMIT)

    if stride == 1:
        Hp, Wp = H + ph0 + ph1, W + pw0 + pw1
        kernel = functools.partial(_dw_s1_kernel, k=k, Ho=Ho, Wo=Wo,
                                   ph0=ph0, pw0=pw0)
        bytes_accessed = N * H * W * Cp * 2 + N * Ho * Wo * Cp * 2
        out, sums = pl.pallas_call(
            kernel,
            grid=grid,
            in_specs=[
                pl.BlockSpec((1, H, W, CT), lambda b, c: (b, 0, 0, c)),
                pl.BlockSpec((k * k, CT),   lambda b, c: (0, c)),
                pl.BlockSpec((1, CT),       lambda b, c: (0, c)),
                pl.BlockSpec((1, CT),       lambda b, c: (0, c)),
            ],
            out_specs=out_specs,
            out_shape=out_shapes,
            scratch_shapes=[pltpu.VMEM((Hp, Wp, CT), jnp.bfloat16)],
            compiler_params=cparams,
            cost_estimate=pl.CostEstimate(flops=flops,
                                          transcendentals=N * Ho * Wo * Cp,
                                          bytes_accessed=bytes_accessed),
        )(x4, w_taps, scale, bias)
        return out, sums, Ho, Wo

    # stride > 1: phase decomposition built in XLA.
    # TODO(synk): fuse the pad/phase decomposition in-kernel for strided blocks.
    s = stride
    xp = jnp.pad(x4, ((0, 0), (ph0, ph1), (pw0, pw1), (0, 0)))
    qmax = (k - 1) // s
    Hph, Wph = Ho + qmax, Wo + qmax
    phases = []
    for rh in range(s):
        for rw in range(s):
            p = xp[:, rh::s, rw::s, :]
            p = jnp.pad(p, ((0, 0), (0, Hph - p.shape[1]),
                            (0, Wph - p.shape[2]), (0, 0)))
            phases.append(p)
    ph = jnp.stack(phases, axis=0)                      # (s*s, N, Hph, Wph, Cp)
    P = s * s
    kernel = functools.partial(_dw_phase_kernel, k=k, stride=s, Ho=Ho, Wo=Wo)
    bytes_accessed = P * N * Hph * Wph * Cp * 2 + N * Ho * Wo * Cp * 2
    out, sums = pl.pallas_call(
        kernel,
        grid=grid,
        in_specs=[
            pl.BlockSpec((P, 1, Hph, Wph, CT), lambda b, c: (0, b, 0, 0, c)),
            pl.BlockSpec((k * k, CT),          lambda b, c: (0, c)),
            pl.BlockSpec((1, CT),              lambda b, c: (0, c)),
            pl.BlockSpec((1, CT),              lambda b, c: (0, c)),
        ],
        out_specs=out_specs,
        out_shape=out_shapes,
        compiler_params=cparams,
        cost_estimate=pl.CostEstimate(flops=flops,
                                      transcendentals=N * Ho * Wo * Cp,
                                      bytes_accessed=bytes_accessed),
    )(ph, w_taps, scale, bias)
    return out, sums, Ho, Wo


# ----------------------------------------------------------------------------
# SE gate from the in-kernel channel sums (tiny FCs: plain JAX)
# ----------------------------------------------------------------------------
def se_gate_from_sums(sums, hw, w1, b1, w2, b2):
    pooled = sums[:, 0, :] / float(hw)                          # (N, Cp) f32
    s1 = pooled @ w1 + b1
    s1 = s1 * jax.nn.sigmoid(s1)
    s2 = jax.nn.sigmoid(s1 @ w2 + b2)                           # (N, Cp)
    return s2[:, None, :]                                       # (N, 1, Cp) f32


# ----------------------------------------------------------------------------
# Stem (lax.conv, BN folded into weights; Cin=3 is not MXU-friendly)
# ----------------------------------------------------------------------------
def conv_stem(x_nhwc, params):
    w = params["stem_w"]                                        # (3,3,3,Cout) f32
    b = params["stem_b"]                                        # (Cout,) f32
    y = lax.conv_general_dilated(x_nhwc, w, window_strides=(2, 2),
                                 padding="SAME",
                                 dimension_numbers=("NHWC", "HWIO", "NHWC"))
    y = y + b
    y = y * jax.nn.sigmoid(y)
    N, Ho, Wo, C = y.shape
    Cp = params["stem_out_p"]
    y = jnp.pad(y, ((0, 0), (0, 0), (0, 0), (0, Cp - C))).astype(jnp.bfloat16)
    return y.reshape(N, Ho * Wo, Cp), Ho, Wo


# ----------------------------------------------------------------------------
# Deterministic parameter init (kernel-ready: padded, transposed, BN folded)
# ----------------------------------------------------------------------------
class _Keys:
    def __init__(self, key):
        self._key = key
        self._i = 0

    def next(self):
        self._i += 1
        return jax.random.fold_in(self._key, self._i)


def _conv_weight(kg, cout, cin, k):
    return 0.1 * jax.random.normal(kg.next(), (cout, cin, k, k), dtype=jnp.float32)


def _bn_fold_raw(kg, c, eps):
    gamma = 1.0 + 0.1 * jax.random.normal(kg.next(), (c,), dtype=jnp.float32)
    beta = 0.1 * jax.random.normal(kg.next(), (c,), dtype=jnp.float32)
    running_mean = jnp.zeros((c,), jnp.float32)
    running_var = jnp.ones((c,), jnp.float32)
    scale = gamma * jax.lax.rsqrt(running_var + eps)
    bias = beta - running_mean * scale
    return scale, bias


def _bn_fold(kg, c, c_p, eps):
    scale, bias = _bn_fold_raw(kg, c, eps)
    scale = jnp.pad(scale, (0, c_p - c)).reshape(1, c_p)   # padded lanes -> 0
    bias = jnp.pad(bias, (0, c_p - c)).reshape(1, c_p)
    return scale, bias


def _prep_1x1(w_pt, cin, cout, cin_p, cout_p):
    w2 = w_pt[:, :, 0, 0].T                                 # (cin, cout)
    w2 = jnp.pad(w2, ((0, cin_p - cin), (0, cout_p - cout)))
    return w2.astype(jnp.bfloat16)


def init_efficientnet(blocks_args, gp, key):
    kg = _Keys(key)
    eps = gp.batch_norm_epsilon
    params = {}

    # stem: 3x3 s2 conv, BN folded into HWIO weights
    stem_out = round_filters(32, gp)
    stem_out_p = _pad128(stem_out)
    w = _conv_weight(kg, stem_out, 3, 3)                    # (Cout, 3, 3, 3)
    s_raw, b_raw = _bn_fold_raw(kg, stem_out, eps)
    w_hwio = jnp.transpose(w, (2, 3, 1, 0)) * s_raw[None, None, None, :]
    params["stem_w"] = w_hwio
    params["stem_b"] = b_raw
    params["stem_out_p"] = stem_out_p

    # expand per-stage BlockArgs into the flat block list (as in __init__)
    block_list = []
    for ba in blocks_args:
        ba = ba._replace(input_filters=round_filters(ba.input_filters, gp),
                         output_filters=round_filters(ba.output_filters, gp),
                         num_repeat=round_repeats(ba.num_repeat, gp))
        block_list.append(ba)
        if ba.num_repeat > 1:
            ba = ba._replace(input_filters=ba.output_filters, stride=1)
        for _ in range(ba.num_repeat - 1):
            block_list.append(ba)

    block_params = []
    for ba in block_list:
        bp = {}
        inp = ba.input_filters
        inp_p = _pad128(inp)
        oup = inp * ba.expand_ratio
        oup_p = _pad128(oup)
        if ba.expand_ratio != 1:
            bp["expand_w"] = _prep_1x1(_conv_weight(kg, oup, inp, 1),
                                       inp, oup, inp_p, oup_p)
            bp["bn0_s"], bp["bn0_b"] = _bn_fold(kg, oup, oup_p, eps)
        k = ba.kernel_size
        wdw = _conv_weight(kg, oup, 1, k)                       # (oup,1,k,k)
        wdw2 = jnp.transpose(wdw[:, 0], (1, 2, 0)).reshape(k * k, oup)
        bp["dw_w"] = jnp.pad(wdw2, ((0, 0), (0, oup_p - oup)))  # f32 (k*k, oup_p)
        bp["bn1_s"], bp["bn1_b"] = _bn_fold(kg, oup, oup_p, eps)
        has_se = ba.se_ratio is not None and 0 < ba.se_ratio <= 1
        if has_se:
            cs = max(1, int(inp * ba.se_ratio))
            w_red = _conv_weight(kg, cs, oup, 1)                # (cs, oup,1,1)
            b_red = 0.1 * jax.random.normal(kg.next(), (cs,), dtype=jnp.float32)
            w_exp = _conv_weight(kg, oup, cs, 1)                # (oup, cs,1,1)
            b_exp = 0.1 * jax.random.normal(kg.next(), (oup,), dtype=jnp.float32)
            bp["se_w1"] = jnp.pad(w_red[:, :, 0, 0].T, ((0, oup_p - oup), (0, 0)))
            bp["se_b1"] = b_red.reshape(1, cs)
            bp["se_w2"] = jnp.pad(w_exp[:, :, 0, 0].T, ((0, 0), (0, oup_p - oup)))
            bp["se_b2"] = jnp.pad(b_exp, (0, oup_p - oup)).reshape(1, oup_p)
        out_c = ba.output_filters
        out_p = _pad128(out_c)
        bp["proj_w"] = _prep_1x1(_conv_weight(kg, out_c, oup, 1),
                                 oup, out_c, oup_p, out_p)
        bp["bn2_s"], bp["bn2_b"] = _bn_fold(kg, out_c, out_p, eps)
        block_params.append(bp)
    params["blocks"] = block_params

    head_in = block_list[-1].output_filters
    head_in_p = _pad128(head_in)
    head_out = round_filters(1280, gp)
    head_out_p = _pad128(head_out)
    params["head_w"] = _prep_1x1(_conv_weight(kg, head_out, head_in, 1),
                                 head_in, head_out, head_in_p, head_out_p)
    params["bn1_s"], params["bn1_b"] = _bn_fold(kg, head_out, head_out_p, eps)
    params["head_c"] = head_out
    return params, block_list


# ----------------------------------------------------------------------------
# Forward pass
# ----------------------------------------------------------------------------
def mbconv_forward(ba, bp, x3, H, W):
    inputs = x3
    x = x3
    if ba.expand_ratio != 1:
        x = matmul_affine(x, bp["expand_w"], bp["bn0_s"], bp["bn0_b"], act="swish")
    N = x.shape[0]
    Cp = x.shape[-1]
    x4 = x.reshape(N, H, W, Cp)
    y4, sums, Ho, Wo = depthwise_conv_same(x4, bp["dw_w"], bp["bn1_s"],
                                           bp["bn1_b"], ba.kernel_size, ba.stride)
    x = y4.reshape(N, Ho * Wo, Cp)
    gate = None
    if "se_w1" in bp:
        gate = se_gate_from_sums(sums, Ho * Wo, bp["se_w1"], bp["se_b1"],
                                 bp["se_w2"], bp["se_b2"])
    use_skip = (ba.id_skip and ba.stride == 1
                and ba.input_filters == ba.output_filters)
    residual = inputs if use_skip else None
    x = matmul_affine(x, bp["proj_w"], bp["bn2_s"], bp["bn2_b"], act="none",
                      gate=gate, residual=residual)
    return x, Ho, Wo


def extract_features(params, block_list, x_nchw):
    x = jnp.transpose(x_nchw, (0, 2, 3, 1)).astype(jnp.float32)   # NCHW -> NHWC
    x3, H, W = conv_stem(x, params)
    for ba, bp in zip(block_list, params["blocks"]):
        x3, H, W = mbconv_forward(ba, bp, x3, H, W)
    x3 = matmul_affine(x3, params["head_w"], params["bn1_s"], params["bn1_b"],
                       act="swish")
    N = x3.shape[0]
    head_c = params["head_c"]
    x = x3[:, :, :head_c].astype(jnp.float32).reshape(N, H, W, head_c)
    return {"0": jnp.transpose(x, (0, 3, 1, 2))}                  # back to NCHW


def interpolate_nearest(mask, out_hw):
    N, H, W = mask.shape
    oh, ow = out_hw
    hi = (jnp.arange(oh) * H) // oh
    wi = (jnp.arange(ow) * W) // ow
    m = mask.astype(jnp.float32)[:, hi][:, :, wi]
    return m.astype(jnp.bool_)


def efficientnet_forward(params, block_list, tensors, mask):
    xs = extract_features(params, block_list, tensors)
    out = {}
    for name, x in xs.items():
        m = interpolate_nearest(mask, (x.shape[-2], x.shape[-1]))
        out[name] = (x, m)   # NestedTensor(x, mask) represented as a tuple
    return out


# ----------------------------------------------------------------------------
if __name__ == "__main__":
    gp = GlobalParams(batch_norm_momentum=0.99, batch_norm_epsilon=1e-3,
                      dropout_rate=0.2, num_classes=1000,
                      width_coefficient=None, depth_coefficient=None,
                      depth_divisor=8, min_depth=None,
                      drop_connect_rate=None, image_size=16)
    blocks_args = [
        BlockArgs(num_repeat=1, kernel_size=3, stride=1, expand_ratio=1,
                  input_filters=32, output_filters=16, se_ratio=0.25, id_skip=True),
        BlockArgs(num_repeat=2, kernel_size=3, stride=2, expand_ratio=6,
                  input_filters=16, output_filters=24, se_ratio=0.25, id_skip=True),
        BlockArgs(num_repeat=1, kernel_size=5, stride=2, expand_ratio=6,
                  input_filters=24, output_filters=40, se_ratio=0.25, id_skip=True),
    ]

    key = jax.random.PRNGKey(0)
    pkey, xkey = jax.random.split(key)
    params, block_list = init_efficientnet(blocks_args, gp, pkey)

    x = jax.random.normal(xkey, (2, 3, 16, 16), dtype=jnp.float32)
    mask = jnp.zeros((2, 16, 16), dtype=jnp.bool_)

    fwd = jax.jit(lambda t, m: efficientnet_forward(params, block_list, t, m))
    out = fwd(x, mask)
    feats, m = out["0"]
    feats = jax.block_until_ready(feats)
    m = jax.block_until_ready(m)

    assert feats.shape == (2, 1280, 2, 2), feats.shape
    assert m.shape == (2, 2, 2), m.shape
    assert bool(jnp.all(jnp.isfinite(feats)))
    print("KERNEL_OK")
</pallas_src>

<mosaic_0001>
module attributes {stable_mosaic.version = 11 : i64} {
  func.func @_mmg_kernel(%arg0: i32, %arg1: i32, %arg2: i32, %arg3: i32, %arg4: memref<1x64x128xbf16, #tpu.memory_space<vmem>>, %arg5: memref<128x128xbf16, #tpu.memory_space<vmem>>, %arg6: memref<1x128xf32, #tpu.memory_space<vmem>>, %arg7: memref<1x128xf32, #tpu.memory_space<vmem>>, %arg8: memref<1x1x128xf32, #tpu.memory_space<vmem>>, %arg9: memref<1x64x128xbf16, #tpu.memory_space<vmem>>) attributes {dimension_semantics = [#tpu.dimension_semantics<parallel>, #tpu.dimension_semantics<parallel>, #tpu.dimension_semantics<parallel>, #tpu.dimension_semantics<arbitrary>], iteration_bounds = array<i64: 2, 1, 1, 1>, scalar_prefetch = 0 : i64, scratch_operands = 0 : i64, tpu.core_type = #tpu.core_type<tc>, window_params = [{transform_indices = @transform_0, window_bounds = array<i64: 1, 64, 128>}, {transform_indices = @transform_1, window_bounds = array<i64: 128, 128>}, {transform_indices = @transform_2, window_bounds = array<i64: 1, 128>}, {transform_indices = @transform_3, window_bounds = array<i64: 1, 128>}, {transform_indices = @transform_4, window_bounds = array<i64: 1, 1, 128>}, {transform_indices = @transform_5, window_bounds = array<i64: 1, 64, 128>}]} {
    %c0 = arith.constant 0 : index
    %c0_0 = arith.constant 0 : index
    %c0_1 = arith.constant 0 : index
    %0 = vector.load %arg4[%c0, %c0_0, %c0_1] : memref<1x64x128xbf16, #tpu.memory_space<vmem>>, vector<1x64x128xbf16>
    %1 = vector.shape_cast %0 : vector<1x64x128xbf16> to vector<64x128xbf16>
    %c0_2 = arith.constant 0 : index
    %c0_3 = arith.constant 0 : index
    %c0_4 = arith.constant 0 : index
    %2 = vector.load %arg8[%c0_2, %c0_3, %c0_4] : memref<1x1x128xf32, #tpu.memory_space<vmem>>, vector<1x1x128xf32>
    %3 = vector.shape_cast %2 : vector<1x1x128xf32> to vector<1x128xf32>
    %4 = arith.truncf %3 : vector<1x128xf32> to vector<1x128xbf16>
    %5 = vector.broadcast %4 : vector<1x128xbf16> to vector<64x128xbf16>
    %6 = arith.mulf %1, %5 : vector<64x128xbf16>
    %c0_5 = arith.constant 0 : index
    %c0_6 = arith.constant 0 : index
    %7 = vector.load %arg5[%c0_5, %c0_6] : memref<128x128xbf16, #tpu.memory_space<vmem>>, vector<128x128xbf16>
    %cst = arith.constant dense<0.000000e+00> : vector<64x128xf32>
    %8 = tpu.matmul %6, %7, %cst {dimension_numbers = #tpu.dot_dimension_numbers<[1], [0], [0], [1], [0, 0, 1, 1], [], []>} : vector<64x128xbf16>, vector<128x128xbf16>, vector<64x128xf32> -> vector<64x128xf32>
    %c0_7 = arith.constant 0 : index
    %c0_8 = arith.constant 0 : index
    %9 = vector.load %arg6[%c0_7, %c0_8] : memref<1x128xf32, #tpu.memory_space<vmem>>, vector<1x128xf32>
    %10 = vector.broadcast %9 : vector<1x128xf32> to vector<64x128xf32>
    %11 = arith.mulf %8, %10 : vector<64x128xf32>
    %c0_9 = arith.constant 0 : index
    %c0_10 = arith.constant 0 : index
    %12 = vector.load %arg7[%c0_9, %c0_10] : memref<1x128xf32, #tpu.memory_space<vmem>>, vector<1x128xf32>
    %13 = vector.broadcast %12 : vector<1x128xf32> to vector<64x128xf32>
    %14 = arith.addf %11, %13 : vector<64x128xf32>
    %15 = arith.truncf %14 : vector<64x128xf32> to vector<64x128xbf16>
    %c0_11 = arith.constant 0 : index
    %c0_12 = arith.constant 0 : index
    %c0_13 = arith.constant 0 : index
    %16 = vector.load %arg9[%c0_11, %c0_12, %c0_13] : memref<1x64x128xbf16, #tpu.memory_space<vmem>>, vector<1x64x128xbf16>
    %17 = vector.shape_cast %16 : vector<1x64x128xbf16> to vector<64x128xbf16>
    %18 = vector.shape_cast %15 : vector<64x128xbf16> to vector<1x64x128xbf16>
    tpu.vector_store %arg9[%c0_11, %c0_12, %c0_13], %18 {strides = array<i32>} : memref<1x64x128xbf16, #tpu.memory_space<vmem>>, vector<1x64x128xbf16>,
    return
  }
  func.func @transform_0(%arg0: i32, %arg1: i32, %arg2: i32, %arg3: i32) -> (i32, i32, i32) {
    %c0_i32 = arith.constant 0 : i32
    return %arg0, %arg1, %arg3 : i32, i32, i32
  }
  func.func @transform_1(%arg0: i32, %arg1: i32, %arg2: i32, %arg3: i32) -> (i32, i32) {
    %c0_i32 = arith.constant 0 : i32
    return %arg3, %arg2 : i32, i32
  }
  func.func @transform_2(%arg0: i32, %arg1: i32, %arg2: i32, %arg3: i32) -> (i32, i32) {
    %c0_i32 = arith.constant 0 : i32
    %c0_i32_0 = arith.constant 0 : i32
    return %c0_i32, %arg2 : i32, i32
  }
  func.func @transform_3(%arg0: i32, %arg1: i32, %arg2: i32, %arg3: i32) -> (i32, i32) {
    %c0_i32 = arith.constant 0 : i32
    %c0_i32_0 = arith.constant 0 : i32
    return %c0_i32, %arg2 : i32, i32
  }
  func.func @transform_4(%arg0: i32, %arg1: i32, %arg2: i32, %arg3: i32) -> (i32, i32, i32) {
    %c0_i32 = arith.constant 0 : i32
    %c0_i32_0 = arith.constant 0 : i32
    return %arg0, %c0_i32, %arg3 : i32, i32, i32
  }
  func.func @transform_5(%arg0: i32, %arg1: i32, %arg2: i32, %arg3: i32) -> (i32, i32, i32) {
    %c0_i32 = arith.constant 0 : i32
    return %arg0, %arg1, %arg2 : i32, i32, i32
  }
}

module attributes {stable_mosaic.version = 11 : i64} {
  func.func @_dw_s1_kernel(%arg0: i32, %arg1: i32, %arg2: memref<1x8x8x128xbf16, #tpu.memory_space<vmem>>, %arg3: memref<9x128xf32, #tpu.memory_space<vmem>>, %arg4: memref<1x128xf32, #tpu.memory_space<vmem>>, %arg5: memref<1x128xf32, #tpu.memory_space<vmem>>, %arg6: memref<1x8x8x128xbf16, #tpu.memory_space<vmem>>, %arg7: memref<1x1x128xf32, #tpu.memory_space<vmem>>, %arg8: memref<10x10x128xbf16, #tpu.memory_space<vmem>>) attributes {dimension_semantics = [#tpu.dimension_semantics<parallel>, #tpu.dimension_semantics<parallel>], iteration_bounds = array<i64: 2, 1>, scalar_prefetch = 0 : i64, scratch_operands = 1 : i64, tpu.core_type = #tpu.core_type<tc>, window_params = [{transform_indices = @transform_0, window_bounds = array<i64: 1, 8, 8, 128>}, {transform_indices = @transform_1, window_bounds = array<i64: 9, 128>}, {transform_indices = @transform_2, window_bounds = array<i64: 1, 128>}, {transform_indices = @transform_3, window_bounds = array<i64: 1, 128>}, {transform_indices = @transform_4, window_bounds = array<i64: 1, 8, 8, 128>}, {transform_indices = @transform_5, window_bounds = array<i64: 1, 1, 128>}]} {
    %cst = arith.constant 0.000000e+00 : bf16
    %0 = vector.broadcast %cst : bf16 to vector<10x10x128xbf16>
    %c0 = arith.constant 0 : index
    %c0_0 = arith.constant 0 : index
    %c0_1 = arith.constant 0 : index
    %1 = vector.load %arg8[%c0, %c0_0, %c0_1] : memref<10x10x128xbf16, #tpu.memory_space<vmem>>, vector<10x10x128xbf16>
    tpu.vector_store %arg8[%c0, %c0_0, %c0_1], %0 {strides = array<i32>} : memref<10x10x128xbf16, #tpu.memory_space<vmem>>, vector<10x10x128xbf16>,
    %c0_2 = arith.constant 0 : index
    %c0_3 = arith.constant 0 : index
    %c0_4 = arith.constant 0 : index
    %c0_5 = arith.constant 0 : index
    %2 = vector.load %arg2[%c0_2, %c0_3, %c0_4, %c0_5] : memref<1x8x8x128xbf16, #tpu.memory_space<vmem>>, vector<1x8x8x128xbf16>
    %3 = vector.shape_cast %2 : vector<1x8x8x128xbf16> to vector<8x8x128xbf16>
    %c1 = arith.constant 1 : index
    %c1_6 = arith.constant 1 : index
    %c0_7 = arith.constant 0 : index
    %4 = vector.load %arg8[%c1, %c1_6, %c0_7] : memref<10x10x128xbf16, #tpu.memory_space<vmem>>, vector<8x8x128xbf16>
    tpu.vector_store %arg8[%c1, %c1_6, %c0_7], %3 {strides = array<i32>} : memref<10x10x128xbf16, #tpu.memory_space<vmem>>, vector<8x8x128xbf16>,
    %c0_8 = arith.constant 0 : index
    %c0_9 = arith.constant 0 : index
    %c0_10 = arith.constant 0 : index
    %5 = vector.load %arg8[%c0_8, %c0_9, %c0_10] : memref<10x10x128xbf16, #tpu.memory_space<vmem>>, vector<10x8x128xbf16>
    %6 = vector.extract_strided_slice %5 {offsets = [0, 0, 0], sizes = [8, 8, 128], strides = [1, 1, 1]} : vector<10x8x128xbf16> to vector<8x8x128xbf16>
    %7 = arith.extf %6 : vector<8x8x128xbf16> to vector<8x8x128xf32>
    %c0_11 = arith.constant 0 : index
    %c0_12 = arith.constant 0 : index
    %8 = vector.load %arg3[%c0_11, %c0_12] : memref<9x128xf32, #tpu.memory_space<vmem>>, vector<1x128xf32>
    %9 = vector.shape_cast %8 : vector<1x128xf32> to vector<1x1x128xf32>
    %10 = vector.broadcast %9 : vector<1x1x128xf32> to vector<8x8x128xf32>
    %11 = arith.mulf %7, %10 : vector<8x8x128xf32>
    %12 = vector.extract_strided_slice %5 {offsets = [1, 0, 0], sizes = [8, 8, 128], strides = [1, 1, 1]} : vector<10x8x128xbf16> to vector<8x8x128xbf16>
    %13 = arith.extf %12 : vector<8x8x128xbf16> to vector<8x8x128xf32>
    %c3 = arith.constant 3 : index
    %c0_13 = arith.constant 0 : index
    %14 = vector.load %arg3[%c3, %c0_13] : memref<9x128xf32, #tpu.memory_space<vmem>>, vector<1x128xf32>
    %15 = vector.shape_cast %14 : vector<1x128xf32> to vector<1x1x128xf32>
    %16 = vector.broadcast %15 : vector<1x1x128xf32> to vector<8x8x128xf32>
    %17 = arith.mulf %13, %16 : vector<8x8x128xf32>
    %18 = arith.addf %11, %17 : vector<8x8x128xf32>
    %19 = vector.extract_strided_slice %5 {offsets = [2, 0, 0], sizes = [8, 8, 128], strides = [1, 1, 1]} : vector<10x8x128xbf16> to vector<8x8x128xbf16>
    %20 = arith.extf %19 : vector<8x8x128xbf16> to vector<8x8x128xf32>
    %c6 = arith.constant 6 : index
    %c0_14 = arith.constant 0 : index
    %21 = vector.load %arg3[%c6, %c0_14] : memref<9x128xf32, #tpu.memory_space<vmem>>, vector<1x128xf32>
    %22 = vector.shape_cast %21 : vector<1x128xf32> to vector<1x1x128xf32>
    %23 = vector.broadcast %22 : vector<1x1x128xf32> to vector<8x8x128xf32>
    %24 = arith.mulf %20, %23 : vector<8x8x128xf32>
    %25 = arith.addf %18, %24 : vector<8x8x128xf32>
    %c0_15 = arith.constant 0 : index
    %c1_16 = arith.constant 1 : index
    %c0_17 = arith.constant 0 : index
    %26 = vector.load %arg8[%c0_15, %c1_16, %c0_17] : memref<10x10x128xbf16, #tpu.memory_space<vmem>>, vector<10x8x128xbf16>
    %27 = vector.extract_strided_slice %26 {offsets = [0, 0, 0], sizes = [8, 8, 128], strides = [1, 1, 1]} : vector<10x8x128xbf16> to vector<8x8x128xbf16>
    %28 = arith.extf %27 : vector<8x8x128xbf16> to vector<8x8x128xf32>
    %c1_18 = arith.constant 1 : index
    %c0_19 = arith.constant 0 : index
    %29 = vector.load %arg3[%c1_18, %c0_19] : memref<9x128xf32, #tpu.memory_space<vmem>>, vector<1x128xf32>
    %30 = vector.shape_cast %29 : vector<1x128xf32> to vector<1x1x128xf32>
    %31 = vector.broadcast %30 : vector<1x1x128xf32> to vector<8x8x128xf32>
    %32 = arith.mulf %28, %31 : vector<8x8x128xf32>
    %33 = arith.addf %25, %32 : vector<8x8x128xf32>
    %34 = vector.extract_strided_slice %26 {offsets = [1, 0, 0], sizes = [8, 8, 128], strides = [1, 1, 1]} : vector<10x8x128xbf16> to vector<8x8x128xbf16>
    %35 = arith.extf %34 : vector<8x8x128xbf16> to vector<8x8x128xf32>
    %c4 = arith.constant 4 : index
    %c0_20 = arith.constant 0 : index
    %36 = vector.load %arg3[%c4, %c0_20] : memref<9x128xf32, #tpu.memory_space<vmem>>, vector<1x128xf32>
    %37 = vector.shape_cast %36 : vector<1x128xf32> to vector<1x1x128xf32>
    %38 = vector.broadcast %37 : vector<1x1x128xf32> to vector<8x8x128xf32>
    %39 = arith.mulf %35, %38 : vector<8x8x128xf32>
    %40 = arith.addf %33, %39 : vector<8x8x128xf32>
    %41 = vector.extract_strided_slice %26 {offsets = [2, 0, 0], sizes = [8, 8, 128], strides = [1, 1, 1]} : vector<10x8x128xbf16> to vector<8x8x128xbf16>
    %42 = arith.extf %41 : vector<8x8x128xbf16> to vector<8x8x128xf32>
    %c7 = arith.constant 7 : index
    %c0_21 = arith.constant 0 : index
    %43 = vector.load %arg3[%c7, %c0_21] : memref<9x128xf32, #tpu.memory_space<vmem>>, vector<1x128xf32>
    %44 = vector.shape_cast %43 : vector<1x128xf32> to vector<1x1x128xf32>
    %45 = vector.broadcast %44 : vector<1x1x128xf32> to vector<8x8x128xf32>
    %46 = arith.mulf %42, %45 : vector<8x8x128xf32>
    %47 = arith.addf %40, %46 : vector<8x8x128xf32>
    %c0_22 = arith.constant 0 : index
    %c2 = arith.constant 2 : index
    %c0_23 = arith.constant 0 : index
    %48 = vector.load %arg8[%c0_22, %c2, %c0_23] : memref<10x10x128xbf16, #tpu.memory_space<vmem>>, vector<10x8x128xbf16>
    %49 = vector.extract_strided_slice %48 {offsets = [0, 0, 0], sizes = [8, 8, 128], strides = [1, 1, 1]} : vector<10x8x128xbf16> to vector<8x8x128xbf16>
    %50 = arith.extf %49 : vector<8x8x128xbf16> to vector<8x8x128xf32>
    %c2_24 = arith.constant 2 : index
    %c0_25 = arith.constant 0 : index
    %51 = vector.load %arg3[%c2_24, %c0_25] : memref<9x128xf32, #tpu.memory_space<vmem>>, vector<1x128xf32>
    %52 = vector.shape_cast %51 : vector<1x128xf32> to vector<1x1x128xf32>
    %53 = vector.broadcast %52 : vector<1x1x128xf32> to vector<8x8x128xf32>
    %54 = arith.mulf %50, %53 : vector<8x8x128xf32>
    %55 = arith.addf %47, %54 : vector<8x8x128xf32>
    %56 = vector.extract_strided_slice %48 {offsets = [1, 0, 0], sizes = [8, 8, 128], strides = [1, 1, 1]} : vector<10x8x128xbf16> to vector<8x8x128xbf16>
    %57 = arith.extf %56 : vector<8x8x128xbf16> to vector<8x8x128xf32>
    %c5 = arith.constant 5 : index
    %c0_26 = arith.constant 0 : index
    %58 = vector.load %arg3[%c5, %c0_26] : memref<9x128xf32, #tpu.memory_space<vmem>>, vector<1x128xf32>
    %59 = vector.shape_cast %58 : vector<1x128xf32> to vector<1x1x128xf32>
    %60 = vector.broadcast %59 : vector<1x1x128xf32> to vector<8x8x128xf32>
    %61 = arith.mulf %57, %60 : vector<8x8x128xf32>
    %62 = arith.addf %55, %61 : vector<8x8x128xf32>
    %63 = vector.extract_strided_slice %48 {offsets = [2, 0, 0], sizes = [8, 8, 128], strides = [1, 1, 1]} : vector<10x8x128xbf16> to vector<8x8x128xbf16>
    %64 = arith.extf %63 : vector<8x8x128xbf16> to vector<8x8x128xf32>
    %c8 = arith.constant 8 : index
    %c0_27 = arith.constant 0 : index
    %65 = vector.load %arg3[%c8, %c0_27] : memref<9x128xf32, #tpu.memory_space<vmem>>, vector<1x128xf32>
    %66 = vector.shape_cast %65 : vector<1x128xf32> to vector<1x1x128xf32>
    %67 = vector.broadcast %66 : vector<1x1x128xf32> to vector<8x8x128xf32>
    %68 = arith.mulf %64, %67 : vector<8x8x128xf32>
    %69 = arith.addf %62, %68 : vector<8x8x128xf32>
    %c0_28 = arith.constant 0 : index
    %c0_29 = arith.constant 0 : index
    %70 = vector.load %arg4[%c0_28, %c0_29] : memref<1x128xf32, #tpu.memory_space<vmem>>, vector<1x128xf32>
    %71 = vector.shape_cast %70 : vector<1x128xf32> to vector<1x1x128xf32>
    %72 = vector.broadcast %71 : vector<1x1x128xf32> to vector<8x8x128xf32>
    %73 = arith.mulf %69, %72 : vector<8x8x128xf32>
    %c0_30 = arith.constant 0 : index
    %c0_31 = arith.constant 0 : index
    %74 = vector.load %arg5[%c0_30, %c0_31] : memref<1x128xf32, #tpu.memory_space<vmem>>, vector<1x128xf32>
    %75 = vector.shape_cast %74 : vector<1x128xf32> to vector<1x1x128xf32>
    %76 = vector.broadcast %75 : vector<1x1x128xf32> to vector<8x8x128xf32>
    %77 = arith.addf %73, %76 : vector<8x8x128xf32>
    %78 = arith.negf %77 : vector<8x8x128xf32>
    %79 = math.exp %78 : vector<8x8x128xf32>
    %cst_32 = arith.constant 1.000000e+00 : f32
    %80 = vector.broadcast %cst_32 : f32 to vector<8x8x128xf32>
    %81 = arith.addf %80, %79 : vector<8x8x128xf32>
    %82 = arith.divf %80, %81 : vector<8x8x128xf32>
    %83 = arith.mulf %77, %82 : vector<8x8x128xf32>
    %84 = arith.truncf %83 : vector<8x8x128xf32> to vector<8x8x128xbf16>
    %c0_33 = arith.constant 0 : index
    %c0_34 = arith.constant 0 : index
    %c0_35 = arith.constant 0 : index
    %c0_36 = arith.constant 0 : index
    %85 = vector.load %arg6[%c0_33, %c0_34, %c0_35, %c0_36] : memref<1x8x8x128xbf16, #tpu.memory_space<vmem>>, vector<1x8x8x128xbf16>
    %86 = vector.shape_cast %85 : vector<1x8x8x128xbf16> to vector<8x8x128xbf16>
    %87 = vector.shape_cast %84 : vector<8x8x128xbf16> to vector<1x8x8x128xbf16>
    tpu.vector_store %arg6[%c0_33, %c0_34, %c0_35, %c0_36], %87 {strides = array<i32>} : memref<1x8x8x128xbf16, #tpu.memory_space<vmem>>, vector<1x8x8x128xbf16>,
    %cst_37 = arith.constant dense<0.000000e+00> : vector<128xf32>
    %88 = vector.multi_reduction <add>, %83, %cst_37 [0, 1] : vector<8x8x128xf32> to vector<128xf32>
    %89 = vector.shape_cast %88 : vector<128xf32> to vector<1x1x128xf32>
    %c0_38 = arith.constant 0 : index
    %c0_39 = arith.constant 0 : index
    %c0_40 = arith.constant 0 : index
    %90 = vector.load %arg7[%c0_38, %c0_39, %c0_40] : memref<1x1x128xf32, #tpu.memory_space<vmem>>, vector<1x1x128xf32>
    tpu.vector_store %arg7[%c0_38, %c0_39, %c0_40], %89 {strides = array<i32>} : memref<1x1x128xf32, #tpu.memory_space<vmem>>, vector<1x1x128xf32>,
    return
  }
  func.func @transform_0(%arg0: i32, %arg1: i32) -> (i32, i32, i32, i32) {
    %c0_i32 = arith.constant 0 : i32
    %c0_i32_0 = arith.constant 0 : i32
    %c0_i32_1 = arith.constant 0 : i32
    return %arg0, %c0_i32, %c0_i32_0, %arg1 : i32, i32, i32, i32
  }
  func.func @transform_1(%arg0: i32, %arg1: i32) -> (i32, i32) {
    %c0_i32 = arith.constant 0 : i32
    %c0_i32_0 = arith.constant 0 : i32
    return %c0_i32, %arg1 : i32, i32
  }
  func.func @transform_2(%arg0: i32, %arg1: i32) -> (i32, i32) {
    %c0_i32 = arith.constant 0 : i32
    %c0_i32_0 = arith.constant 0 : i32
    return %c0_i32, %arg1 : i32, i32
  }
  func.func @transform_3(%arg0: i32, %arg1: i32) -> (i32, i32) {
    %c0_i32 = arith.constant 0 : i32
    %c0_i32_0 = arith.constant 0 : i32
    return %c0_i32, %arg1 : i32, i32
  }
  func.func @transform_4(%arg0: i32, %arg1: i32) -> (i32, i32, i32, i32) {
    %c0_i32 = arith.constant 0 : i32
    %c0_i32_0 = arith.constant 0 : i32
    %c0_i32_1 = arith.constant 0 : i32
    return %arg0, %c0_i32, %c0_i32_0, %arg1 : i32, i32, i32, i32
  }
  func.func @transform_5(%arg0: i32, %arg1: i32) -> (i32, i32, i32) {
    %c0_i32 = arith.constant 0 : i32
    %c0_i32_0 = arith.constant 0 : i32
    return %arg0, %c0_i32, %arg1 : i32, i32, i32
  }
}

module attributes {stable_mosaic.version = 11 : i64} {
  func.func @_mm2d_kernel(%arg0: i32, %arg1: i32, %arg2: i32, %arg3: memref<128x128xbf16, #tpu.memory_space<vmem>>, %arg4: memref<128x128xbf16, #tpu.memory_space<vmem>>, %arg5: memref<1x128xf32, #tpu.memory_space<vmem>>, %arg6: memref<1x128xf32, #tpu.memory_space<vmem>>, %arg7: memref<128x128xbf16, #tpu.memory_space<vmem>>) attributes {dimension_semantics = [#tpu.dimension_semantics<parallel>, #tpu.dimension_semantics<parallel>, #tpu.dimension_semantics<arbitrary>], iteration_bounds = array<i64: 1, 1, 1>, scalar_prefetch = 0 : i64, scratch_operands = 0 : i64, tpu.core_type = #tpu.core_type<tc>, window_params = [{transform_indices = @transform_0, window_bounds = array<i64: 128, 128>}, {transform_indices = @transform_1, window_bounds = array<i64: 128, 128>}, {transform_indices = @transform_2, window_bounds = array<i64: 1, 128>}, {transform_indices = @transform_3, window_bounds = array<i64: 1, 128>}, {transform_indices = @transform_4, window_bounds = array<i64: 128, 128>}]} {
    %c0 = arith.constant 0 : index
    %c0_0 = arith.constant 0 : index
    %0 = vector.load %arg3[%c0, %c0_0] : memref<128x128xbf16, #tpu.memory_space<vmem>>, vector<128x128xbf16>
    %c0_1 = arith.constant 0 : index
    %c0_2 = arith.constant 0 : index
    %1 = vector.load %arg4[%c0_1, %c0_2] : memref<128x128xbf16, #tpu.memory_space<vmem>>, vector<128x128xbf16>
    %cst = arith.constant dense<0.000000e+00> : vector<128x128xf32>
    %2 = tpu.matmul %0, %1, %cst {dimension_numbers = #tpu.dot_dimension_numbers<[1], [0], [0], [1], [0, 0, 1, 1], [], []>} : vector<128x128xbf16>, vector<128x128xbf16>, vector<128x128xf32> -> vector<128x128xf32>
    %c0_3 = arith.constant 0 : index
    %c0_4 = arith.constant 0 : index
    %3 = vector.load %arg5[%c0_3, %c0_4] : memref<1x128xf32, #tpu.memory_space<vmem>>, vector<1x128xf32>
    %4 = vector.broadcast %3 : vector<1x128xf32> to vector<128x128xf32>
    %5 = arith.mulf %2, %4 : vector<128x128xf32>
    %c0_5 = arith.constant 0 : index
    %c0_6 = arith.constant 0 : index
    %6 = vector.load %arg6[%c0_5, %c0_6] : memref<1x128xf32, #tpu.memory_space<vmem>>, vector<1x128xf32>
    %7 = vector.broadcast %6 : vector<1x128xf32> to vector<128x128xf32>
    %8 = arith.addf %5, %7 : vector<128x128xf32>
    %9 = arith.negf %8 : vector<128x128xf32>
    %10 = math.exp %9 : vector<128x128xf32>
    %cst_7 = arith.constant 1.000000e+00 : f32
    %11 = vector.broadcast %cst_7 : f32 to vector<128x128xf32>
    %12 = arith.addf %11, %10 : vector<128x128xf32>
    %13 = arith.divf %11, %12 : vector<128x128xf32>
    %14 = arith.mulf %8, %13 : vector<128x128xf32>
    %15 = arith.truncf %14 : vector<128x128xf32> to vector<128x128xbf16>
    %c0_8 = arith.constant 0 : index
    %c0_9 = arith.constant 0 : index
    %16 = vector.load %arg7[%c0_8, %c0_9] : memref<128x128xbf16, #tpu.memory_space<vmem>>, vector<128x128xbf16>
    tpu.vector_store %arg7[%c0_8, %c0_9], %15 {strides = array<i32>} : memref<128x128xbf16, #tpu.memory_space<vmem>>, vector<128x128xbf16>,
    return
  }
  func.func @transform_0(%arg0: i32, %arg1: i32, %arg2: i32) -> (i32, i32) {
    %c0_i32 = arith.constant 0 : i32
    return %arg0, %arg2 : i32, i32
  }
  func.func @transform_1(%arg0: i32, %arg1: i32, %arg2: i32) -> (i32, i32) {
    %c0_i32 = arith.constant 0 : i32
    return %arg2, %arg1 : i32, i32
  }
  func.func @transform_2(%arg0: i32, %arg1: i32, %arg2: i32) -> (i32, i32) {
    %c0_i32 = arith.constant 0 : i32
    %c0_i32_0 = arith.constant 0 : i32
    return %c0_i32, %arg1 : i32, i32
  }
  func.func @transform_3(%arg0: i32, %arg1: i32, %arg2: i32) -> (i32, i32) {
    %c0_i32 = arith.constant 0 : i32
    %c0_i32_0 = arith.constant 0 : i32
    return %c0_i32, %arg1 : i32, i32
  }
  func.func @transform_4(%arg0: i32, %arg1: i32, %arg2: i32) -> (i32, i32) {
    %c0_i32 = arith.constant 0 : i32
    return %arg0, %arg1 : i32, i32
  }
}

module attributes {stable_mosaic.version = 11 : i64} {
  func.func @_dw_phase_kernel(%arg0: i32, %arg1: i32, %arg2: memref<4x1x5x5x128xbf16, #tpu.memory_space<vmem>>, %arg3: memref<9x128xf32, #tpu.memory_space<vmem>>, %arg4: memref<1x128xf32, #tpu.memory_space<vmem>>, %arg5: memref<1x128xf32, #tpu.memory_space<vmem>>, %arg6: memref<1x4x4x128xbf16, #tpu.memory_space<vmem>>, %arg7: memref<1x1x128xf32, #tpu.memory_space<vmem>>) attributes {dimension_semantics = [#tpu.dimension_semantics<parallel>, #tpu.dimension_semantics<parallel>], iteration_bounds = array<i64: 2, 1>, scalar_prefetch = 0 : i64, scratch_operands = 0 : i64, tpu.core_type = #tpu.core_type<tc>, window_params = [{transform_indices = @transform_0, window_bounds = array<i64: 4, 1, 5, 5, 128>}, {transform_indices = @transform_1, window_bounds = array<i64: 9, 128>}, {transform_indices = @transform_2, window_bounds = array<i64: 1, 128>}, {transform_indices = @transform_3, window_bounds = array<i64: 1, 128>}, {transform_indices = @transform_4, window_bounds = array<i64: 1, 4, 4, 128>}, {transform_indices = @transform_5, window_bounds = array<i64: 1, 1, 128>}]} {
    %c0 = arith.constant 0 : index
    %c0_0 = arith.constant 0 : index
    %c0_1 = arith.constant 0 : index
    %c0_2 = arith.constant 0 : index
    %c0_3 = arith.constant 0 : index
    %0 = vector.load %arg2[%c0, %c0_0, %c0_1, %c0_2, %c0_3] : memref<4x1x5x5x128xbf16, #tpu.memory_space<vmem>>, vector<1x1x5x4x128xbf16>
    %1 = vector.shape_cast %0 : vector<1x1x5x4x128xbf16> to vector<5x4x128xbf16>
    %2 = vector.extract_strided_slice %1 {offsets = [0, 0, 0], sizes = [4, 4, 128], strides = [1, 1, 1]} : vector<5x4x128xbf16> to vector<4x4x128xbf16>
    %3 = arith.extf %2 : vector<4x4x128xbf16> to vector<4x4x128xf32>
    %c0_4 = arith.constant 0 : index
    %c0_5 = arith.constant 0 : index
    %4 = vector.load %arg3[%c0_4, %c0_5] : memref<9x128xf32, #tpu.memory_space<vmem>>, vector<1x128xf32>
    %5 = vector.shape_cast %4 : vector<1x128xf32> to vector<1x1x128xf32>
    %6 = vector.broadcast %5 : vector<1x1x128xf32> to vector<4x4x128xf32>
    %7 = arith.mulf %3, %6 : vector<4x4x128xf32>
    %8 = vector.extract_strided_slice %1 {offsets = [1, 0, 0], sizes = [4, 4, 128], strides = [1, 1, 1]} : vector<5x4x128xbf16> to vector<4x4x128xbf16>
    %9 = arith.extf %8 : vector<4x4x128xbf16> to vector<4x4x128xf32>
    %c6 = arith.constant 6 : index
    %c0_6 = arith.constant 0 : index
    %10 = vector.load %arg3[%c6, %c0_6] : memref<9x128xf32, #tpu.memory_space<vmem>>, vector<1x128xf32>
    %11 = vector.shape_cast %10 : vector<1x128xf32> to vector<1x1x128xf32>
    %12 = vector.broadcast %11 : vector<1x1x128xf32> to vector<4x4x128xf32>
    %13 = arith.mulf %9, %12 : vector<4x4x128xf32>
    %14 = arith.addf %7, %13 : vector<4x4x128xf32>
    %c0_7 = arith.constant 0 : index
    %c0_8 = arith.constant 0 : index
    %c0_9 = arith.constant 0 : index
    %c1 = arith.constant 1 : index
    %c0_10 = arith.constant 0 : index
    %15 = vector.load %arg2[%c0_7, %c0_8, %c0_9, %c1, %c0_10] : memref<4x1x5x5x128xbf16, #tpu.memory_space<vmem>>, vector<1x1x5x4x128xbf16>
    %16 = vector.shape_cast %15 : vector<1x1x5x4x128xbf16> to vector<5x4x128xbf16>
    %17 = vector.extract_strided_slice %16 {offsets = [0, 0, 0], sizes = [4, 4, 128], strides = [1, 1, 1]} : vector<5x4x128xbf16> to vector<4x4x128xbf16>
    %18 = arith.extf %17 : vector<4x4x128xbf16> to vector<4x4x128xf32>
    %c2 = arith.constant 2 : index
    %c0_11 = arith.constant 0 : index
    %19 = vector.load %arg3[%c2, %c0_11] : memref<9x128xf32, #tpu.memory_space<vmem>>, vector<1x128xf32>
    %20 = vector.shape_cast %19 : vector<1x128xf32> to vector<1x1x128xf32>
    %21 = vector.broadcast %20 : vector<1x1x128xf32> to vector<4x4x128xf32>
    %22 = arith.mulf %18, %21 : vector<4x4x128xf32>
    %23 = arith.addf %14, %22 : vector<4x4x128xf32>
    %24 = vector.extract_strided_slice %16 {offsets = [1, 0, 0], sizes = [4, 4, 128], strides = [1, 1, 1]} : vector<5x4x128xbf16> to vector<4x4x128xbf16>
    %25 = arith.extf %24 : vector<4x4x128xbf16> to vector<4x4x128xf32>
    %c8 = arith.constant 8 : index
    %c0_12 = arith.constant 0 : index
    %26 = vector.load %arg3[%c8, %c0_12] : memref<9x128xf32, #tpu.memory_space<vmem>>, vector<1x128xf32>
    %27 = vector.shape_cast %26 : vector<1x128xf32> to vector<1x1x128xf32>
    %28 = vector.broadcast %27 : vector<1x1x128xf32> to vector<4x4x128xf32>
    %29 = arith.mulf %25, %28 : vector<4x4x128xf32>
    %30 = arith.addf %23, %29 : vector<4x4x128xf32>
    %c1_13 = arith.constant 1 : index
    %c0_14 = arith.constant 0 : index
    %c0_15 = arith.constant 0 : index
    %c0_16 = arith.constant 0 : index
    %c0_17 = arith.constant 0 : index
    %31 = vector.load %arg2[%c1_13, %c0_14, %c0_15, %c0_16, %c0_17] : memref<4x1x5x5x128xbf16, #tpu.memory_space<vmem>>, vector<1x1x5x4x128xbf16>
    %32 = vector.shape_cast %31 : vector<1x1x5x4x128xbf16> to vector<5x4x128xbf16>
    %33 = vector.extract_strided_slice %32 {offsets = [0, 0, 0], sizes = [4, 4, 128], strides = [1, 1, 1]} : vector<5x4x128xbf16> to vector<4x4x128xbf16>
    %34 = arith.extf %33 : vector<4x4x128xbf16> to vector<4x4x128xf32>
    %c1_18 = arith.constant 1 : index
    %c0_19 = arith.constant 0 : index
    %35 = vector.load %arg3[%c1_18, %c0_19] : memref<9x128xf32, #tpu.memory_space<vmem>>, vector<1x128xf32>
    %36 = vector.shape_cast %35 : vector<1x128xf32> to vector<1x1x128xf32>
    %37 = vector.broadcast %36 : vector<1x1x128xf32> to vector<4x4x128xf32>
    %38 = arith.mulf %34, %37 : vector<4x4x128xf32>
    %39 = arith.addf %30, %38 : vector<4x4x128xf32>
    %40 = vector.extract_strided_slice %32 {offsets = [1, 0, 0], sizes = [4, 4, 128], strides = [1, 1, 1]} : vector<5x4x128xbf16> to vector<4x4x128xbf16>
    %41 = arith.extf %40 : vector<4x4x128xbf16> to vector<4x4x128xf32>
    %c7 = arith.constant 7 : index
    %c0_20 = arith.constant 0 : index
    %42 = vector.load %arg3[%c7, %c0_20] : memref<9x128xf32, #tpu.memory_space<vmem>>, vector<1x128xf32>
    %43 = vector.shape_cast %42 : vector<1x128xf32> to vector<1x1x128xf32>
    %44 = vector.broadcast %43 : vector<1x1x128xf32> to vector<4x4x128xf32>
    %45 = arith.mulf %41, %44 : vector<4x4x128xf32>
    %46 = arith.addf %39, %45 : vector<4x4x128xf32>
    %c2_21 = arith.constant 2 : index
    %c0_22 = arith.constant 0 : index
    %c0_23 = arith.constant 0 : index
    %c0_24 = arith.constant 0 : index
    %c0_25 = arith.constant 0 : index
    %47 = vector.load %arg2[%c2_21, %c0_22, %c0_23, %c0_24, %c0_25] : memref<4x1x5x5x128xbf16, #tpu.memory_space<vmem>>, vector<1x1x5x4x128xbf16>
    %48 = vector.shape_cast %47 : vector<1x1x5x4x128xbf16> to vector<5x4x128xbf16>
    %49 = vector.extract_strided_slice %48 {offsets = [0, 0, 0], sizes = [4, 4, 128], strides = [1, 1, 1]} : vector<5x4x128xbf16> to vector<4x4x128xbf16>
    %50 = arith.extf %49 : vector<4x4x128xbf16> to vector<4x4x128xf32>
    %c3 = arith.constant 3 : index
    %c0_26 = arith.constant 0 : index
    %51 = vector.load %arg3[%c3, %c0_26] : memref<9x128xf32, #tpu.memory_space<vmem>>, vector<1x128xf32>
    %52 = vector.shape_cast %51 : vector<1x128xf32> to vector<1x1x128xf32>
    %53 = vector.broadcast %52 : vector<1x1x128xf32> to vector<4x4x128xf32>
    %54 = arith.mulf %50, %53 : vector<4x4x128xf32>
    %55 = arith.addf %46, %54 : vector<4x4x128xf32>
    %c2_27 = arith.constant 2 : index
    %c0_28 = arith.constant 0 : index
    %c0_29 = arith.constant 0 : index
    %c1_30 = arith.constant 1 : index
    %c0_31 = arith.constant 0 : index
    %56 = vector.load %arg2[%c2_27, %c0_28, %c0_29, %c1_30, %c0_31] : memref<4x1x5x5x128xbf16, #tpu.memory_space<vmem>>, vector<1x1x5x4x128xbf16>
    %57 = vector.shape_cast %56 : vector<1x1x5x4x128xbf16> to vector<5x4x128xbf16>
    %58 = vector.extract_strided_slice %57 {offsets = [0, 0, 0], sizes = [4, 4, 128], strides = [1, 1, 1]} : vector<5x4x128xbf16> to vector<4x4x128xbf16>
    %59 = arith.extf %58 : vector<4x4x128xbf16> to vector<4x4x128xf32>
    %c5 = arith.constant 5 : index
    %c0_32 = arith.constant 0 : index
    %60 = vector.load %arg3[%c5, %c0_32] : memref<9x128xf32, #tpu.memory_space<vmem>>, vector<1x128xf32>
    %61 = vector.shape_cast %60 : vector<1x128xf32> to vector<1x1x128xf32>
    %62 = vector.broadcast %61 : vector<1x1x128xf32> to vector<4x4x128xf32>
    %63 = arith.mulf %59, %62 : vector<4x4x128xf32>
    %64 = arith.addf %55, %63 : vector<4x4x128xf32>
    %c3_33 = arith.constant 3 : index
    %c0_34 = arith.constant 0 : index
    %c0_35 = arith.constant 0 : index
    %c0_36 = arith.constant 0 : index
    %c0_37 = arith.constant 0 : index
    %65 = vector.load %arg2[%c3_33, %c0_34, %c0_35, %c0_36, %c0_37] : memref<4x1x5x5x128xbf16, #tpu.memory_space<vmem>>, vector<1x1x5x4x128xbf16>
    %66 = vector.shape_cast %65 : vector<1x1x5x4x128xbf16> to vector<5x4x128xbf16>
    %67 = vector.extract_strided_slice %66 {offsets = [0, 0, 0], sizes = [4, 4, 128], strides = [1, 1, 1]} : vector<5x4x128xbf16> to vector<4x4x128xbf16>
    %68 = arith.extf %67 : vector<4x4x128xbf16> to vector<4x4x128xf32>
    %c4 = arith.constant 4 : index
    %c0_38 = arith.constant 0 : index
    %69 = vector.load %arg3[%c4, %c0_38] : memref<9x128xf32, #tpu.memory_space<vmem>>, vector<1x128xf32>
    %70 = vector.shape_cast %69 : vector<1x128xf32> to vector<1x1x128xf32>
    %71 = vector.broadcast %70 : vector<1x1x128xf32> to vector<4x4x128xf32>
    %72 = arith.mulf %68, %71 : vector<4x4x128xf32>
    %73 = arith.addf %64, %72 : vector<4x4x128xf32>
    %c0_39 = arith.constant 0 : index
    %c0_40 = arith.constant 0 : index
    %74 = vector.load %arg4[%c0_39, %c0_40] : memref<1x128xf32, #tpu.memory_space<vmem>>, vector<1x128xf32>
    %75 = vector.shape_cast %74 : vector<1x128xf32> to vector<1x1x128xf32>
    %76 = vector.broadcast %75 : vector<1x1x128xf32> to vector<4x4x128xf32>
    %77 = arith.mulf %73, %76 : vector<4x4x128xf32>
    %c0_41 = arith.constant 0 : index
    %c0_42 = arith.constant 0 : index
    %78 = vector.load %arg5[%c0_41, %c0_42] : memref<1x128xf32, #tpu.memory_space<vmem>>, vector<1x128xf32>
    %79 = vector.shape_cast %78 : vector<1x128xf32> to vector<1x1x128xf32>
    %80 = vector.broadcast %79 : vector<1x1x128xf32> to vector<4x4x128xf32>
    %81 = arith.addf %77, %80 : vector<4x4x128xf32>
    %82 = arith.negf %81 : vector<4x4x128xf32>
    %83 = math.exp %82 : vector<4x4x128xf32>
    %cst = arith.constant 1.000000e+00 : f32
    %84 = vector.broadcast %cst : f32 to vector<4x4x128xf32>
    %85 = arith.addf %84, %83 : vector<4x4x128xf32>
    %86 = arith.divf %84, %85 : vector<4x4x128xf32>
    %87 = arith.mulf %81, %86 : vector<4x4x128xf32>
    %88 = arith.truncf %87 : vector<4x4x128xf32> to vector<4x4x128xbf16>
    %c0_43 = arith.constant 0 : index
    %c0_44 = arith.constant 0 : index
    %c0_45 = arith.constant 0 : index
    %c0_46 = arith.constant 0 : index
    %89 = vector.load %arg6[%c0_43, %c0_44, %c0_45, %c0_46] : memref<1x4x4x128xbf16, #tpu.memory_space<vmem>>, vector<1x4x4x128xbf16>
    %90 = vector.shape_cast %89 : vector<1x4x4x128xbf16> to vector<4x4x128xbf16>
    %91 = vector.shape_cast %88 : vector<4x4x128xbf16> to vector<1x4x4x128xbf16>
    tpu.vector_store %arg6[%c0_43, %c0_44, %c0_45, %c0_46], %91 {strides = array<i32>} : memref<1x4x4x128xbf16, #tpu.memory_space<vmem>>, vector<1x4x4x128xbf16>,
    %cst_47 = arith.constant dense<0.000000e+00> : vector<128xf32>
    %92 = vector.multi_reduction <add>, %87, %cst_47 [0, 1] : vector<4x4x128xf32> to vector<128xf32>
    %93 = vector.shape_cast %92 : vector<128xf32> to vector<1x1x128xf32>
    %c0_48 = arith.constant 0 : index
    %c0_49 = arith.constant 0 : index
    %c0_50 = arith.constant 0 : index
    %94 = vector.load %arg7[%c0_48, %c0_49, %c0_50] : memref<1x1x128xf32, #tpu.memory_space<vmem>>, vector<1x1x128xf32>
    tpu.vector_store %arg7[%c0_48, %c0_49, %c0_50], %93 {strides = array<i32>} : memref<1x1x128xf32, #tpu.memory_space<vmem>>, vector<1x1x128xf32>,
    return
  }
  func.func @transform_0(%arg0: i32, %arg1: i32) -> (i32, i32, i32, i32, i32) {
    %c0_i32 = arith.constant 0 : i32
    %c0_i32_0 = arith.constant 0 : i32
    %c0_i32_1 = arith.constant 0 : i32
    %c0_i32_2 = arith.constant 0 : i32
    return %c0_i32, %arg0, %c0_i32_0, %c0_i32_1, %arg1 : i32, i32, i32, i32, i32
  }
  func.func @transform_1(%arg0: i32, %arg1: i32) -> (i32, i32) {
    %c0_i32 = arith.constant 0 : i32
    %c0_i32_0 = arith.constant 0 : i32
    return %c0_i32, %arg1 : i32, i32
  }
  func.func @transform_2(%arg0: i32, %arg1: i32) -> (i32, i32) {
    %c0_i32 = arith.constant 0 : i32
    %c0_i32_0 = arith.constant 0 : i32
    return %c0_i32, %arg1 : i32, i32
  }
  func.func @transform_3(%arg0: i32, %arg1: i32) -> (i32, i32) {
    %c0_i32 = arith.constant 0 : i32
    %c0_i32_0 = arith.constant 0 : i32
    return %c0_i32, %arg1 : i32, i32
  }
  func.func @transform_4(%arg0: i32, %arg1: i32) -> (i32, i32, i32, i32) {
    %c0_i32 = arith.constant 0 : i32
    %c0_i32_0 = arith.constant 0 : i32
    %c0_i32_1 = arith.constant 0 : i32
    return %arg0, %c0_i32, %c0_i32_0, %arg1 : i32, i32, i32, i32
  }
  func.func @transform_5(%arg0: i32, %arg1: i32) -> (i32, i32, i32) {
    %c0_i32 = arith.constant 0 : i32
    %c0_i32_0 = arith.constant 0 : i32
    return %arg0, %c0_i32, %arg1 : i32, i32, i32
  }
}

module attributes {stable_mosaic.version = 11 : i64} {
  func.func @_mmg_kernel(%arg0: i32, %arg1: i32, %arg2: i32, %arg3: i32, %arg4: memref<1x16x128xbf16, #tpu.memory_space<vmem>>, %arg5: memref<128x128xbf16, #tpu.memory_space<vmem>>, %arg6: memref<1x128xf32, #tpu.memory_space<vmem>>, %arg7: memref<1x128xf32, #tpu.memory_space<vmem>>, %arg8: memref<1x1x128xf32, #tpu.memory_space<vmem>>, %arg9: memref<1x16x128xbf16, #tpu.memory_space<vmem>>) attributes {dimension_semantics = [#tpu.dimension_semantics<parallel>, #tpu.dimension_semantics<parallel>, #tpu.dimension_semantics<parallel>, #tpu.dimension_semantics<arbitrary>], iteration_bounds = array<i64: 2, 1, 1, 1>, scalar_prefetch = 0 : i64, scratch_operands = 0 : i64, tpu.core_type = #tpu.core_type<tc>, window_params = [{transform_indices = @transform_0, window_bounds = array<i64: 1, 16, 128>}, {transform_indices = @transform_1, window_bounds = array<i64: 128, 128>}, {transform_indices = @transform_2, window_bounds = array<i64: 1, 128>}, {transform_indices = @transform_3, window_bounds = array<i64: 1, 128>}, {transform_indices = @transform_4, window_bounds = array<i64: 1, 1, 128>}, {transform_indices = @transform_5, window_bounds = array<i64: 1, 16, 128>}]} {
    %c0 = arith.constant 0 : index
    %c0_0 = arith.constant 0 : index
    %c0_1 = arith.constant 0 : index
    %0 = vector.load %arg4[%c0, %c0_0, %c0_1] : memref<1x16x128xbf16, #tpu.memory_space<vmem>>, vector<1x16x128xbf16>
    %1 = vector.shape_cast %0 : vector<1x16x128xbf16> to vector<16x128xbf16>
    %c0_2 = arith.constant 0 : index
    %c0_3 = arith.constant 0 : index
    %c0_4 = arith.constant 0 : index
    %2 = vector.load %arg8[%c0_2, %c0_3, %c0_4] : memref<1x1x128xf32, #tpu.memory_space<vmem>>, vector<1x1x128xf32>
    %3 = vector.shape_cast %2 : vector<1x1x128xf32> to vector<1x128xf32>
    %4 = arith.truncf %3 : vector<1x128xf32> to vector<1x128xbf16>
    %5 = vector.broadcast %4 : vector<1x128xbf16> to vector<16x128xbf16>
    %6 = arith.mulf %1, %5 : vector<16x128xbf16>
    %c0_5 = arith.constant 0 : index
    %c0_6 = arith.constant 0 : index
    %7 = vector.load %arg5[%c0_5, %c0_6] : memref<128x128xbf16, #tpu.memory_space<vmem>>, vector<128x128xbf16>
    %cst = arith.constant dense<0.000000e+00> : vector<16x128xf32>
    %8 = tpu.matmul %6, %7, %cst {dimension_numbers = #tpu.dot_dimension_numbers<[1], [0], [0], [1], [0, 0, 1, 1], [], []>} : vector<16x128xbf16>, vector<128x128xbf16>, vector<16x128xf32> -> vector<16x128xf32>
    %c0_7 = arith.constant 0 : index
    %c0_8 = arith.constant 0 : index
    %9 = vector.load %arg6[%c0_7, %c0_8] : memref<1x128xf32, #tpu.memory_space<vmem>>, vector<1x128xf32>
    %10 = vector.broadcast %9 : vector<1x128xf32> to vector<16x128xf32>
    %11 = arith.mulf %8, %10 : vector<16x128xf32>
    %c0_9 = arith.constant 0 : index
    %c0_10 = arith.constant 0 : index
    %12 = vector.load %arg7[%c0_9, %c0_10] : memref<1x128xf32, #tpu.memory_space<vmem>>, vector<1x128xf32>
    %13 = vector.broadcast %12 : vector<1x128xf32> to vector<16x128xf32>
    %14 = arith.addf %11, %13 : vector<16x128xf32>
    %15 = arith.truncf %14 : vector<16x128xf32> to vector<16x128xbf16>
    %c0_11 = arith.constant 0 : index
    %c0_12 = arith.constant 0 : index
    %c0_13 = arith.constant 0 : index
    %16 = vector.load %arg9[%c0_11, %c0_12, %c0_13] : memref<1x16x128xbf16, #tpu.memory_space<vmem>>, vector<1x16x128xbf16>
    %17 = vector.shape_cast %16 : vector<1x16x128xbf16> to vector<16x128xbf16>
    %18 = vector.shape_cast %15 : vector<16x128xbf16> to vector<1x16x128xbf16>
    tpu.vector_store %arg9[%c0_11, %c0_12, %c0_13], %18 {strides = array<i32>} : memref<1x16x128xbf16, #tpu.memory_space<vmem>>, vector<1x16x128xbf16>,
    return
  }
  func.func @transform_0(%arg0: i32, %arg1: i32, %arg2: i32, %arg3: i32) -> (i32, i32, i32) {
    %c0_i32 = arith.constant 0 : i32
    return %arg0, %arg1, %arg3 : i32, i32, i32
  }
  func.func @transform_1(%arg0: i32, %arg1: i32, %arg2: i32, %arg3: i32) -> (i32, i32) {
    %c0_i32 = arith.constant 0 : i32
    return %arg3, %arg2 : i32, i32
  }
  func.func @transform_2(%arg0: i32, %arg1: i32, %arg2: i32, %arg3: i32) -> (i32, i32) {
    %c0_i32 = arith.constant 0 : i32
    %c0_i32_0 = arith.constant 0 : i32
    return %c0_i32, %arg2 : i32, i32
  }
  func.func @transform_3(%arg0: i32, %arg1: i32, %arg2: i32, %arg3: i32) -> (i32, i32) {
    %c0_i32 = arith.constant 0 : i32
    %c0_i32_0 = arith.constant 0 : i32
    return %c0_i32, %arg2 : i32, i32
  }
  func.func @transform_4(%arg0: i32, %arg1: i32, %arg2: i32, %arg3: i32) -> (i32, i32, i32) {
    %c0_i32 = arith.constant 0 : i32
    %c0_i32_0 = arith.constant 0 : i32
    return %arg0, %c0_i32, %arg3 : i32, i32, i32
  }
  func.func @transform_5(%arg0: i32, %arg1: i32, %arg2: i32, %arg3: i32) -> (i32, i32, i32) {
    %c0_i32 = arith.constant 0 : i32
    return %arg0, %arg1, %arg2 : i32, i32, i32
  }
}

module attributes {stable_mosaic.version = 11 : i64} {
  func.func @_mm2d_kernel(%arg0: i32, %arg1: i32, %arg2: i32, %arg3: memref<32x128xbf16, #tpu.memory_space<vmem>>, %arg4: memref<128x256xbf16, #tpu.memory_space<vmem>>, %arg5: memref<1x256xf32, #tpu.memory_space<vmem>>, %arg6: memref<1x256xf32, #tpu.memory_space<vmem>>, %arg7: memref<32x256xbf16, #tpu.memory_space<vmem>>) attributes {dimension_semantics = [#tpu.dimension_semantics<parallel>, #tpu.dimension_semantics<parallel>, #tpu.dimension_semantics<arbitrary>], iteration_bounds = array<i64: 1, 1, 1>, scalar_prefetch = 0 : i64, scratch_operands = 0 : i64, tpu.core_type = #tpu.core_type<tc>, window_params = [{transform_indices = @transform_0, window_bounds = array<i64: 32, 128>}, {transform_indices = @transform_1, window_bounds = array<i64: 128, 256>}, {transform_indices = @transform_2, window_bounds = array<i64: 1, 256>}, {transform_indices = @transform_3, window_bounds = array<i64: 1, 256>}, {transform_indices = @transform_4, window_bounds = array<i64: 32, 256>}]} {
    %c0 = arith.constant 0 : index
    %c0_0 = arith.constant 0 : index
    %0 = vector.load %arg3[%c0, %c0_0] : memref<32x128xbf16, #tpu.memory_space<vmem>>, vector<32x128xbf16>
    %c0_1 = arith.constant 0 : index
    %c0_2 = arith.constant 0 : index
    %1 = vector.load %arg4[%c0_1, %c0_2] : memref<128x256xbf16, #tpu.memory_space<vmem>>, vector<128x256xbf16>
    %cst = arith.constant dense<0.000000e+00> : vector<32x256xf32>
    %2 = tpu.matmul %0, %1, %cst {dimension_numbers = #tpu.dot_dimension_numbers<[1], [0], [0], [1], [0, 0, 1, 1], [], []>} : vector<32x128xbf16>, vector<128x256xbf16>, vector<32x256xf32> -> vector<32x256xf32>
    %c0_3 = arith.constant 0 : index
    %c0_4 = arith.constant 0 : index
    %3 = vector.load %arg5[%c0_3, %c0_4] : memref<1x256xf32, #tpu.memory_space<vmem>>, vector<1x256xf32>
    %4 = vector.broadcast %3 : vector<1x256xf32> to vector<32x256xf32>
    %5 = arith.mulf %2, %4 : vector<32x256xf32>
    %c0_5 = arith.constant 0 : index
    %c0_6 = arith.constant 0 : index
    %6 = vector.load %arg6[%c0_5, %c0_6] : memref<1x256xf32, #tpu.memory_space<vmem>>, vector<1x256xf32>
    %7 = vector.broadcast %6 : vector<1x256xf32> to vector<32x256xf32>
    %8 = arith.addf %5, %7 : vector<32x256xf32>
    %9 = arith.negf %8 : vector<32x256xf32>
    %10 = math.exp %9 : vector<32x256xf32>
    %cst_7 = arith.constant 1.000000e+00 : f32
    %11 = vector.broadcast %cst_7 : f32 to vector<32x256xf32>
    %12 = arith.addf %11, %10 : vector<32x256xf32>
    %13 = arith.divf %11, %12 : vector<32x256xf32>
    %14 = arith.mulf %8, %13 : vector<32x256xf32>
    %15 = arith.truncf %14 : vector<32x256xf32> to vector<32x256xbf16>
    %c0_8 = arith.constant 0 : index
    %c0_9 = arith.constant 0 : index
    %16 = vector.load %arg7[%c0_8, %c0_9] : memref<32x256xbf16, #tpu.memory_space<vmem>>, vector<32x256xbf16>
    tpu.vector_store %arg7[%c0_8, %c0_9], %15 {strides = array<i32>} : memref<32x256xbf16, #tpu.memory_space<vmem>>, vector<32x256xbf16>,
    return
  }
  func.func @transform_0(%arg0: i32, %arg1: i32, %arg2: i32) -> (i32, i32) {
    %c0_i32 = arith.constant 0 : i32
    return %arg0, %arg2 : i32, i32
  }
  func.func @transform_1(%arg0: i32, %arg1: i32, %arg2: i32) -> (i32, i32) {
    %c0_i32 = arith.constant 0 : i32
    return %arg2, %arg1 : i32, i32
  }
  func.func @transform_2(%arg0: i32, %arg1: i32, %arg2: i32) -> (i32, i32) {
    %c0_i32 = arith.constant 0 : i32
    %c0_i32_0 = arith.constant 0 : i32
    return %c0_i32, %arg1 : i32, i32
  }
  func.func @transform_3(%arg0: i32, %arg1: i32, %arg2: i32) -> (i32, i32) {
    %c0_i32 = arith.constant 0 : i32
    %c0_i32_0 = arith.constant 0 : i32
    return %c0_i32, %arg1 : i32, i32
  }
  func.func @transform_4(%arg0: i32, %arg1: i32, %arg2: i32) -> (i32, i32) {
    %c0_i32 = arith.constant 0 : i32
    return %arg0, %arg1 : i32, i32
  }
}

module attributes {stable_mosaic.version = 11 : i64} {
  func.func @_dw_s1_kernel(%arg0: i32, %arg1: i32, %arg2: memref<1x4x4x128xbf16, #tpu.memory_space<vmem>>, %arg3: memref<9x128xf32, #tpu.memory_space<vmem>>, %arg4: memref<1x128xf32, #tpu.memory_space<vmem>>, %arg5: memref<1x128xf32, #tpu.memory_space<vmem>>, %arg6: memref<1x4x4x128xbf16, #tpu.memory_space<vmem>>, %arg7: memref<1x1x128xf32, #tpu.memory_space<vmem>>, %arg8: memref<6x6x128xbf16, #tpu.memory_space<vmem>>) attributes {dimension_semantics = [#tpu.dimension_semantics<parallel>, #tpu.dimension_semantics<parallel>], iteration_bounds = array<i64: 2, 2>, scalar_prefetch = 0 : i64, scratch_operands = 1 : i64, tpu.core_type = #tpu.core_type<tc>, window_params = [{transform_indices = @transform_0, window_bounds = array<i64: 1, 4, 4, 128>}, {transform_indices = @transform_1, window_bounds = array<i64: 9, 128>}, {transform_indices = @transform_2, window_bounds = array<i64: 1, 128>}, {transform_indices = @transform_3, window_bounds = array<i64: 1, 128>}, {transform_indices = @transform_4, window_bounds = array<i64: 1, 4, 4, 128>}, {transform_indices = @transform_5, window_bounds = array<i64: 1, 1, 128>}]} {
    %cst = arith.constant 0.000000e+00 : bf16
    %0 = vector.broadcast %cst : bf16 to vector<6x6x128xbf16>
    %c0 = arith.constant 0 : index
    %c0_0 = arith.constant 0 : index
    %c0_1 = arith.constant 0 : index
    %1 = vector.load %arg8[%c0, %c0_0, %c0_1] : memref<6x6x128xbf16, #tpu.memory_space<vmem>>, vector<6x6x128xbf16>
    tpu.vector_store %arg8[%c0, %c0_0, %c0_1], %0 {strides = array<i32>} : memref<6x6x128xbf16, #tpu.memory_space<vmem>>, vector<6x6x128xbf16>,
    %c0_2 = arith.constant 0 : index
    %c0_3 = arith.constant 0 : index
    %c0_4 = arith.constant 0 : index
    %c0_5 = arith.constant 0 : index
    %2 = vector.load %arg2[%c0_2, %c0_3, %c0_4, %c0_5] : memref<1x4x4x128xbf16, #tpu.memory_space<vmem>>, vector<1x4x4x128xbf16>
    %3 = vector.shape_cast %2 : vector<1x4x4x128xbf16> to vector<4x4x128xbf16>
    %c1 = arith.constant 1 : index
    %c1_6 = arith.constant 1 : index
    %c0_7 = arith.constant 0 : index
    %4 = vector.load %arg8[%c1, %c1_6, %c0_7] : memref<6x6x128xbf16, #tpu.memory_space<vmem>>, vector<4x4x128xbf16>
    tpu.vector_store %arg8[%c1, %c1_6, %c0_7], %3 {strides = array<i32>} : memref<6x6x128xbf16, #tpu.memory_space<vmem>>, vector<4x4x128xbf16>,
    %c0_8 = arith.constant 0 : index
    %c0_9 = arith.constant 0 : index
    %c0_10 = arith.constant 0 : index
    %5 = vector.load %arg8[%c0_8, %c0_9, %c0_10] : memref<6x6x128xbf16, #tpu.memory_space<vmem>>, vector<6x4x128xbf16>
    %6 = vector.extract_strided_slice %5 {offsets = [0, 0, 0], sizes = [4, 4, 128], strides = [1, 1, 1]} : vector<6x4x128xbf16> to vector<4x4x128xbf16>
    %7 = arith.extf %6 : vector<4x4x128xbf16> to vector<4x4x128xf32>
    %c0_11 = arith.constant 0 : index
    %c0_12 = arith.constant 0 : index
    %8 = vector.load %arg3[%c0_11, %c0_12] : memref<9x128xf32, #tpu.memory_space<vmem>>, vector<1x128xf32>
    %9 = vector.shape_cast %8 : vector<1x128xf32> to vector<1x1x128xf32>
    %10 = vector.broadcast %9 : vector<1x1x128xf32> to vector<4x4x128xf32>
    %11 = arith.mulf %7, %10 : vector<4x4x128xf32>
    %12 = vector.extract_strided_slice %5 {offsets = [1, 0, 0], sizes = [4, 4, 128], strides = [1, 1, 1]} : vector<6x4x128xbf16> to vector<4x4x128xbf16>
    %13 = arith.extf %12 : vector<4x4x128xbf16> to vector<4x4x128xf32>
    %c3 = arith.constant 3 : index
    %c0_13 = arith.constant 0 : index
    %14 = vector.load %arg3[%c3, %c0_13] : memref<9x128xf32, #tpu.memory_space<vmem>>, vector<1x128xf32>
    %15 = vector.shape_cast %14 : vector<1x128xf32> to vector<1x1x128xf32>
    %16 = vector.broadcast %15 : vector<1x1x128xf32> to vector<4x4x128xf32>
    %17 = arith.mulf %13, %16 : vector<4x4x128xf32>
    %18 = arith.addf %11, %17 : vector<4x4x128xf32>
    %19 = vector.extract_strided_slice %5 {offsets = [2, 0, 0], sizes = [4, 4, 128], strides = [1, 1, 1]} : vector<6x4x128xbf16> to vector<4x4x128xbf16>
    %20 = arith.extf %19 : vector<4x4x128xbf16> to vector<4x4x128xf32>
    %c6 = arith.constant 6 : index
    %c0_14 = arith.constant 0 : index
    %21 = vector.load %arg3[%c6, %c0_14] : memref<9x128xf32, #tpu.memory_space<vmem>>, vector<1x128xf32>
    %22 = vector.shape_cast %21 : vector<1x128xf32> to vector<1x1x128xf32>
    %23 = vector.broadcast %22 : vector<1x1x128xf32> to vector<4x4x128xf32>
    %24 = arith.mulf %20, %23 : vector<4x4x128xf32>
    %25 = arith.addf %18, %24 : vector<4x4x128xf32>
    %c0_15 = arith.constant 0 : index
    %c1_16 = arith.constant 1 : index
    %c0_17 = arith.constant 0 : index
    %26 = vector.load %arg8[%c0_15, %c1_16, %c0_17] : memref<6x6x128xbf16, #tpu.memory_space<vmem>>, vector<6x4x128xbf16>
    %27 = vector.extract_strided_slice %26 {offsets = [0, 0, 0], sizes = [4, 4, 128], strides = [1, 1, 1]} : vector<6x4x128xbf16> to vector<4x4x128xbf16>
    %28 = arith.extf %27 : vector<4x4x128xbf16> to vector<4x4x128xf32>
    %c1_18 = arith.constant 1 : index
    %c0_19 = arith.constant 0 : index
    %29 = vector.load %arg3[%c1_18, %c0_19] : memref<9x128xf32, #tpu.memory_space<vmem>>, vector<1x128xf32>
    %30 = vector.shape_cast %29 : vector<1x128xf32> to vector<1x1x128xf32>
    %31 = vector.broadcast %30 : vector<1x1x128xf32> to vector<4x4x128xf32>
    %32 = arith.mulf %28, %31 : vector<4x4x128xf32>
    %33 = arith.addf %25, %32 : vector<4x4x128xf32>
    %34 = vector.extract_strided_slice %26 {offsets = [1, 0, 0], sizes = [4, 4, 128], strides = [1, 1, 1]} : vector<6x4x128xbf16> to vector<4x4x128xbf16>
    %35 = arith.extf %34 : vector<4x4x128xbf16> to vector<4x4x128xf32>
    %c4 = arith.constant 4 : index
    %c0_20 = arith.constant 0 : index
    %36 = vector.load %arg3[%c4, %c0_20] : memref<9x128xf32, #tpu.memory_space<vmem>>, vector<1x128xf32>
    %37 = vector.shape_cast %36 : vector<1x128xf32> to vector<1x1x128xf32>
    %38 = vector.broadcast %37 : vector<1x1x128xf32> to vector<4x4x128xf32>
    %39 = arith.mulf %35, %38 : vector<4x4x128xf32>
    %40 = arith.addf %33, %39 : vector<4x4x128xf32>
    %41 = vector.extract_strided_slice %26 {offsets = [2, 0, 0], sizes = [4, 4, 128], strides = [1, 1, 1]} : vector<6x4x128xbf16> to vector<4x4x128xbf16>
    %42 = arith.extf %41 : vector<4x4x128xbf16> to vector<4x4x128xf32>
    %c7 = arith.constant 7 : index
    %c0_21 = arith.constant 0 : index
    %43 = vector.load %arg3[%c7, %c0_21] : memref<9x128xf32, #tpu.memory_space<vmem>>, vector<1x128xf32>
    %44 = vector.shape_cast %43 : vector<1x128xf32> to vector<1x1x128xf32>
    %45 = vector.broadcast %44 : vector<1x1x128xf32> to vector<4x4x128xf32>
    %46 = arith.mulf %42, %45 : vector<4x4x128xf32>
    %47 = arith.addf %40, %46 : vector<4x4x128xf32>
    %c0_22 = arith.constant 0 : index
    %c2 = arith.constant 2 : index
    %c0_23 = arith.constant 0 : index
    %48 = vector.load %arg8[%c0_22, %c2, %c0_23] : memref<6x6x128xbf16, #tpu.memory_space<vmem>>, vector<6x4x128xbf16>
    %49 = vector.extract_strided_slice %48 {offsets = [0, 0, 0], sizes = [4, 4, 128], strides = [1, 1, 1]} : vector<6x4x128xbf16> to vector<4x4x128xbf16>
    %50 = arith.extf %49 : vector<4x4x128xbf16> to vector<4x4x128xf32>
    %c2_24 = arith.constant 2 : index
    %c0_25 = arith.constant 0 : index
    %51 = vector.load %arg3[%c2_24, %c0_25] : memref<9x128xf32, #tpu.memory_space<vmem>>, vector<1x128xf32>
    %52 = vector.shape_cast %51 : vector<1x128xf32> to vector<1x1x128xf32>
    %53 = vector.broadcast %52 : vector<1x1x128xf32> to vector<4x4x128xf32>
    %54 = arith.mulf %50, %53 : vector<4x4x128xf32>
    %55 = arith.addf %47, %54 : vector<4x4x128xf32>
    %56 = vector.extract_strided_slice %48 {offsets = [1, 0, 0], sizes = [4, 4, 128], strides = [1, 1, 1]} : vector<6x4x128xbf16> to vector<4x4x128xbf16>
    %57 = arith.extf %56 : vector<4x4x128xbf16> to vector<4x4x128xf32>
    %c5 = arith.constant 5 : index
    %c0_26 = arith.constant 0 : index
    %58 = vector.load %arg3[%c5, %c0_26] : memref<9x128xf32, #tpu.memory_space<vmem>>, vector<1x128xf32>
    %59 = vector.shape_cast %58 : vector<1x128xf32> to vector<1x1x128xf32>
    %60 = vector.broadcast %59 : vector<1x1x128xf32> to vector<4x4x128xf32>
    %61 = arith.mulf %57, %60 : vector<4x4x128xf32>
    %62 = arith.addf %55, %61 : vector<4x4x128xf32>
    %63 = vector.extract_strided_slice %48 {offsets = [2, 0, 0], sizes = [4, 4, 128], strides = [1, 1, 1]} : vector<6x4x128xbf16> to vector<4x4x128xbf16>
    %64 = arith.extf %63 : vector<4x4x128xbf16> to vector<4x4x128xf32>
    %c8 = arith.constant 8 : index
    %c0_27 = arith.constant 0 : index
    %65 = vector.load %arg3[%c8, %c0_27] : memref<9x128xf32, #tpu.memory_space<vmem>>, vector<1x128xf32>
    %66 = vector.shape_cast %65 : vector<1x128xf32> to vector<1x1x128xf32>
    %67 = vector.broadcast %66 : vector<1x1x128xf32> to vector<4x4x128xf32>
    %68 = arith.mulf %64, %67 : vector<4x4x128xf32>
    %69 = arith.addf %62, %68 : vector<4x4x128xf32>
    %c0_28 = arith.constant 0 : index
    %c0_29 = arith.constant 0 : index
    %70 = vector.load %arg4[%c0_28, %c0_29] : memref<1x128xf32, #tpu.memory_space<vmem>>, vector<1x128xf32>
    %71 = vector.shape_cast %70 : vector<1x128xf32> to vector<1x1x128xf32>
    %72 = vector.broadcast %71 : vector<1x1x128xf32> to vector<4x4x128xf32>
    %73 = arith.mulf %69, %72 : vector<4x4x128xf32>
    %c0_30 = arith.constant 0 : index
    %c0_31 = arith.constant 0 : index
    %74 = vector.load %arg5[%c0_30, %c0_31] : memref<1x128xf32, #tpu.memory_space<vmem>>, vector<1x128xf32>
    %75 = vector.shape_cast %74 : vector<1x128xf32> to vector<1x1x128xf32>
    %76 = vector.broadcast %75 : vector<1x1x128xf32> to vector<4x4x128xf32>
    %77 = arith.addf %73, %76 : vector<4x4x128xf32>
    %78 = arith.negf %77 : vector<4x4x128xf32>
    %79 = math.exp %78 : vector<4x4x128xf32>
    %cst_32 = arith.constant 1.000000e+00 : f32
    %80 = vector.broadcast %cst_32 : f32 to vector<4x4x128xf32>
    %81 = arith.addf %80, %79 : vector<4x4x128xf32>
    %82 = arith.divf %80, %81 : vector<4x4x128xf32>
    %83 = arith.mulf %77, %82 : vector<4x4x128xf32>
    %84 = arith.truncf %83 : vector<4x4x128xf32> to vector<4x4x128xbf16>
    %c0_33 = arith.constant 0 : index
    %c0_34 = arith.constant 0 : index
    %c0_35 = arith.constant 0 : index
    %c0_36 = arith.constant 0 : index
    %85 = vector.load %arg6[%c0_33, %c0_34, %c0_35, %c0_36] : memref<1x4x4x128xbf16, #tpu.memory_space<vmem>>, vector<1x4x4x128xbf16>
    %86 = vector.shape_cast %85 : vector<1x4x4x128xbf16> to vector<4x4x128xbf16>
    %87 = vector.shape_cast %84 : vector<4x4x128xbf16> to vector<1x4x4x128xbf16>
    tpu.vector_store %arg6[%c0_33, %c0_34, %c0_35, %c0_36], %87 {strides = array<i32>} : memref<1x4x4x128xbf16, #tpu.memory_space<vmem>>, vector<1x4x4x128xbf16>,
    %cst_37 = arith.constant dense<0.000000e+00> : vector<128xf32>
    %88 = vector.multi_reduction <add>, %83, %cst_37 [0, 1] : vector<4x4x128xf32> to vector<128xf32>
    %89 = vector.shape_cast %88 : vector<128xf32> to vector<1x1x128xf32>
    %c0_38 = arith.constant 0 : index
    %c0_39 = arith.constant 0 : index
    %c0_40 = arith.constant 0 : index
    %90 = vector.load %arg7[%c0_38, %c0_39, %c0_40] : memref<1x1x128xf32, #tpu.memory_space<vmem>>, vector<1x1x128xf32>
    tpu.vector_store %arg7[%c0_38, %c0_39, %c0_40], %89 {strides = array<i32>} : memref<1x1x128xf32, #tpu.memory_space<vmem>>, vector<1x1x128xf32>,
    return
  }
  func.func @transform_0(%arg0: i32, %arg1: i32) -> (i32, i32, i32, i32) {
    %c0_i32 = arith.constant 0 : i32
    %c0_i32_0 = arith.constant 0 : i32
    %c0_i32_1 = arith.constant 0 : i32
    return %arg0, %c0_i32, %c0_i32_0, %arg1 : i32, i32, i32, i32
  }
  func.func @transform_1(%arg0: i32, %arg1: i32) -> (i32, i32) {
    %c0_i32 = arith.constant 0 : i32
    %c0_i32_0 = arith.constant 0 : i32
    return %c0_i32, %arg1 : i32, i32
  }
  func.func @transform_2(%arg0: i32, %arg1: i32) -> (i32, i32) {
    %c0_i32 = arith.constant 0 : i32
    %c0_i32_0 = arith.constant 0 : i32
    return %c0_i32, %arg1 : i32, i32
  }
  func.func @transform_3(%arg0: i32, %arg1: i32) -> (i32, i32) {
    %c0_i32 = arith.constant 0 : i32
    %c0_i32_0 = arith.constant 0 : i32
    return %c0_i32, %arg1 : i32, i32
  }
  func.func @transform_4(%arg0: i32, %arg1: i32) -> (i32, i32, i32, i32) {
    %c0_i32 = arith.constant 0 : i32
    %c0_i32_0 = arith.constant 0 : i32
    %c0_i32_1 = arith.constant 0 : i32
    return %arg0, %c0_i32, %c0_i32_0, %arg1 : i32, i32, i32, i32
  }
  func.func @transform_5(%arg0: i32, %arg1: i32) -> (i32, i32, i32) {
    %c0_i32 = arith.constant 0 : i32
    %c0_i32_0 = arith.constant 0 : i32
    return %arg0, %c0_i32, %arg1 : i32, i32, i32
  }
}

module attributes {stable_mosaic.version = 11 : i64} {
  func.func @_mmg_kernel(%arg0: i32, %arg1: i32, %arg2: i32, %arg3: i32, %arg4: memref<1x16x256xbf16, #tpu.memory_space<vmem>>, %arg5: memref<256x128xbf16, #tpu.memory_space<vmem>>, %arg6: memref<1x128xf32, #tpu.memory_space<vmem>>, %arg7: memref<1x128xf32, #tpu.memory_space<vmem>>, %arg8: memref<1x1x256xf32, #tpu.memory_space<vmem>>, %arg9: memref<1x16x128xbf16, #tpu.memory_space<vmem>>, %arg10: memref<1x16x128xbf16, #tpu.memory_space<vmem>>) attributes {dimension_semantics = [#tpu.dimension_semantics<parallel>, #tpu.dimension_semantics<parallel>, #tpu.dimension_semantics<parallel>, #tpu.dimension_semantics<arbitrary>], iteration_bounds = array<i64: 2, 1, 1, 1>, scalar_prefetch = 0 : i64, scratch_operands = 0 : i64, tpu.core_type = #tpu.core_type<tc>, window_params = [{transform_indices = @transform_0, window_bounds = array<i64: 1, 16, 256>}, {transform_indices = @transform_1, window_bounds = array<i64: 256, 128>}, {transform_indices = @transform_2, window_bounds = array<i64: 1, 128>}, {transform_indices = @transform_3, window_bounds = array<i64: 1, 128>}, {transform_indices = @transform_4, window_bounds = array<i64: 1, 1, 256>}, {transform_indices = @transform_5, window_bounds = array<i64: 1, 16, 128>}, {transform_indices = @transform_6, window_bounds = array<i64: 1, 16, 128>}]} {
    %c0 = arith.constant 0 : index
    %c0_0 = arith.constant 0 : index
    %c0_1 = arith.constant 0 : index
    %0 = vector.load %arg4[%c0, %c0_0, %c0_1] : memref<1x16x256xbf16, #tpu.memory_space<vmem>>, vector<1x16x256xbf16>
    %1 = vector.shape_cast %0 : vector<1x16x256xbf16> to vector<16x256xbf16>
    %c0_2 = arith.constant 0 : index
    %c0_3 = arith.constant 0 : index
    %c0_4 = arith.constant 0 : index
    %2 = vector.load %arg8[%c0_2, %c0_3, %c0_4] : memref<1x1x256xf32, #tpu.memory_space<vmem>>, vector<1x1x256xf32>
    %3 = vector.shape_cast %2 : vector<1x1x256xf32> to vector<1x256xf32>
    %4 = arith.truncf %3 : vector<1x256xf32> to vector<1x256xbf16>
    %5 = vector.broadcast %4 : vector<1x256xbf16> to vector<16x256xbf16>
    %6 = arith.mulf %1, %5 : vector<16x256xbf16>
    %c0_5 = arith.constant 0 : index
    %c0_6 = arith.constant 0 : index
    %7 = vector.load %arg5[%c0_5, %c0_6] : memref<256x128xbf16, #tpu.memory_space<vmem>>, vector<256x128xbf16>
    %cst = arith.constant dense<0.000000e+00> : vector<16x128xf32>
    %8 = tpu.matmul %6, %7, %cst {dimension_numbers = #tpu.dot_dimension_numbers<[1], [0], [0], [1], [0, 0, 1, 1], [], []>} : vector<16x256xbf16>, vector<256x128xbf16>, vector<16x128xf32> -> vector<16x128xf32>
    %c0_7 = arith.constant 0 : index
    %c0_8 = arith.constant 0 : index
    %9 = vector.load %arg6[%c0_7, %c0_8] : memref<1x128xf32, #tpu.memory_space<vmem>>, vector<1x128xf32>
    %10 = vector.broadcast %9 : vector<1x128xf32> to vector<16x128xf32>
    %11 = arith.mulf %8, %10 : vector<16x128xf32>
    %c0_9 = arith.constant 0 : index
    %c0_10 = arith.constant 0 : index
    %12 = vector.load %arg7[%c0_9, %c0_10] : memref<1x128xf32, #tpu.memory_space<vmem>>, vector<1x128xf32>
    %13 = vector.broadcast %12 : vector<1x128xf32> to vector<16x128xf32>
    %14 = arith.addf %11, %13 : vector<16x128xf32>
    %c0_11 = arith.constant 0 : index
    %c0_12 = arith.constant 0 : index
    %c0_13 = arith.constant 0 : index
    %15 = vector.load %arg9[%c0_11, %c0_12, %c0_13] : memref<1x16x128xbf16, #tpu.memory_space<vmem>>, vector<1x16x128xbf16>
    %16 = vector.shape_cast %15 : vector<1x16x128xbf16> to vector<16x128xbf16>
    %17 = arith.extf %16 : vector<16x128xbf16> to vector<16x128xf32>
    %18 = arith.addf %14, %17 : vector<16x128xf32>
    %19 = arith.truncf %18 : vector<16x128xf32> to vector<16x128xbf16>
    %c0_14 = arith.constant 0 : index
    %c0_15 = arith.constant 0 : index
    %c0_16 = arith.constant 0 : index
    %20 = vector.load %arg10[%c0_14, %c0_15, %c0_16] : memref<1x16x128xbf16, #tpu.memory_space<vmem>>, vector<1x16x128xbf16>
    %21 = vector.shape_cast %20 : vector<1x16x128xbf16> to vector<16x128xbf16>
    %22 = vector.shape_cast %19 : vector<16x128xbf16> to vector<1x16x128xbf16>
    tpu.vector_store %arg10[%c0_14, %c0_15, %c0_16], %22 {strides = array<i32>} : memref<1x16x128xbf16, #tpu.memory_space<vmem>>, vector<1x16x128xbf16>,
    return
  }
  func.func @transform_0(%arg0: i32, %arg1: i32, %arg2: i32, %arg3: i32) -> (i32, i32, i32) {
    %c0_i32 = arith.constant 0 : i32
    return %arg0, %arg1, %arg3 : i32, i32, i32
  }
  func.func @transform_1(%arg0: i32, %arg1: i32, %arg2: i32, %arg3: i32) -> (i32, i32) {
    %c0_i32 = arith.constant 0 : i32
    return %arg3, %arg2 : i32, i32
  }
  func.func @transform_2(%arg0: i32, %arg1: i32, %arg2: i32, %arg3: i32) -> (i32, i32) {
    %c0_i32 = arith.constant 0 : i32
    %c0_i32_0 = arith.constant 0 : i32
    return %c0_i32, %arg2 : i32, i32
  }
  func.func @transform_3(%arg0: i32, %arg1: i32, %arg2: i32, %arg3: i32) -> (i32, i32) {
    %c0_i32 = arith.constant 0 : i32
    %c0_i32_0 = arith.constant 0 : i32
    return %c0_i32, %arg2 : i32, i32
  }
  func.func @transform_4(%arg0: i32, %arg1: i32, %arg2: i32, %arg3: i32) -> (i32, i32, i32) {
    %c0_i32 = arith.constant 0 : i32
    %c0_i32_0 = arith.constant 0 : i32
    return %arg0, %c0_i32, %arg3 : i32, i32, i32
  }
  func.func @transform_5(%arg0: i32, %arg1: i32, %arg2: i32, %arg3: i32) -> (i32, i32, i32) {
    %c0_i32 = arith.constant 0 : i32
    return %arg0, %arg1, %arg2 : i32, i32, i32
  }
  func.func @transform_6(%arg0: i32, %arg1: i32, %arg2: i32, %arg3: i32) -> (i32, i32, i32) {
    %c0_i32 = arith.constant 0 : i32
    return %arg0, %arg1, %arg2 : i32, i32, i32
  }
}

module attributes {stable_mosaic.version = 11 : i64} {
  func.func @_dw_phase_kernel(%arg0: i32, %arg1: i32, %arg2: memref<4x1x4x4x128xbf16, #tpu.memory_space<vmem>>, %arg3: memref<25x128xf32, #tpu.memory_space<vmem>>, %arg4: memref<1x128xf32, #tpu.memory_space<vmem>>, %arg5: memref<1x128xf32, #tpu.memory_space<vmem>>, %arg6: memref<1x2x2x128xbf16, #tpu.memory_space<vmem>>, %arg7: memref<1x1x128xf32, #tpu.memory_space<vmem>>) attributes {dimension_semantics = [#tpu.dimension_semantics<parallel>, #tpu.dimension_semantics<parallel>], iteration_bounds = array<i64: 2, 2>, scalar_prefetch = 0 : i64, scratch_operands = 0 : i64, tpu.core_type = #tpu.core_type<tc>, window_params = [{transform_indices = @transform_0, window_bounds = array<i64: 4, 1, 4, 4, 128>}, {transform_indices = @transform_1, window_bounds = array<i64: 25, 128>}, {transform_indices = @transform_2, window_bounds = array<i64: 1, 128>}, {transform_indices = @transform_3, window_bounds = array<i64: 1, 128>}, {transform_indices = @transform_4, window_bounds = array<i64: 1, 2, 2, 128>}, {transform_indices = @transform_5, window_bounds = array<i64: 1, 1, 128>}]} {
    %c0 = arith.constant 0 : index
    %c0_0 = arith.constant 0 : index
    %c0_1 = arith.constant 0 : index
    %c0_2 = arith.constant 0 : index
    %c0_3 = arith.constant 0 : index
    %0 = vector.load %arg2[%c0, %c0_0, %c0_1, %c0_2, %c0_3] : memref<4x1x4x4x128xbf16, #tpu.memory_space<vmem>>, vector<1x1x4x2x128xbf16>
    %1 = vector.shape_cast %0 : vector<1x1x4x2x128xbf16> to vector<4x2x128xbf16>
    %2 = vector.extract_strided_slice %1 {offsets = [0, 0, 0], sizes = [2, 2, 128], strides = [1, 1, 1]} : vector<4x2x128xbf16> to vector<2x2x128xbf16>
    %3 = arith.extf %2 : vector<2x2x128xbf16> to vector<2x2x128xf32>
    %c0_4 = arith.constant 0 : index
    %c0_5 = arith.constant 0 : index
    %4 = vector.load %arg3[%c0_4, %c0_5] : memref<25x128xf32, #tpu.memory_space<vmem>>, vector<1x128xf32>
    %5 = vector.shape_cast %4 : vector<1x128xf32> to vector<1x1x128xf32>
    %6 = vector.broadcast %5 : vector<1x1x128xf32> to vector<2x2x128xf32>
    %7 = arith.mulf %3, %6 : vector<2x2x128xf32>
    %8 = vector.extract_strided_slice %1 {offsets = [1, 0, 0], sizes = [2, 2, 128], strides = [1, 1, 1]} : vector<4x2x128xbf16> to vector<2x2x128xbf16>
    %9 = arith.extf %8 : vector<2x2x128xbf16> to vector<2x2x128xf32>
    %c10 = arith.constant 10 : index
    %c0_6 = arith.constant 0 : index
    %10 = vector.load %arg3[%c10, %c0_6] : memref<25x128xf32, #tpu.memory_space<vmem>>, vector<1x128xf32>
    %11 = vector.shape_cast %10 : vector<1x128xf32> to vector<1x1x128xf32>
    %12 = vector.broadcast %11 : vector<1x1x128xf32> to vector<2x2x128xf32>
    %13 = arith.mulf %9, %12 : vector<2x2x128xf32>
    %14 = arith.addf %7, %13 : vector<2x2x128xf32>
    %15 = vector.extract_strided_slice %1 {offsets = [2, 0, 0], sizes = [2, 2, 128], strides = [1, 1, 1]} : vector<4x2x128xbf16> to vector<2x2x128xbf16>
    %16 = arith.extf %15 : vector<2x2x128xbf16> to vector<2x2x128xf32>
    %c20 = arith.constant 20 : index
    %c0_7 = arith.constant 0 : index
    %17 = vector.load %arg3[%c20, %c0_7] : memref<25x128xf32, #tpu.memory_space<vmem>>, vector<1x128xf32>
    %18 = vector.shape_cast %17 : vector<1x128xf32> to vector<1x1x128xf32>
    %19 = vector.broadcast %18 : vector<1x1x128xf32> to vector<2x2x128xf32>
    %20 = arith.mulf %16, %19 : vector<2x2x128xf32>
    %21 = arith.addf %14, %20 : vector<2x2x128xf32>
    %c0_8 = arith.constant 0 : index
    %c0_9 = arith.constant 0 : index
    %c0_10 = arith.constant 0 : index
    %c1 = arith.constant 1 : index
    %c0_11 = arith.constant 0 : index
    %22 = vector.load %arg2[%c0_8, %c0_9, %c0_10, %c1, %c0_11] : memref<4x1x4x4x128xbf16, #tpu.memory_space<vmem>>, vector<1x1x4x2x128xbf16>
    %23 = vector.shape_cast %22 : vector<1x1x4x2x128xbf16> to vector<4x2x128xbf16>
    %24 = vector.extract_strided_slice %23 {offsets = [0, 0, 0], sizes = [2, 2, 128], strides = [1, 1, 1]} : vector<4x2x128xbf16> to vector<2x2x128xbf16>
    %25 = arith.extf %24 : vector<2x2x128xbf16> to vector<2x2x128xf32>
    %c2 = arith.constant 2 : index
    %c0_12 = arith.constant 0 : index
    %26 = vector.load %arg3[%c2, %c0_12] : memref<25x128xf32, #tpu.memory_space<vmem>>, vector<1x128xf32>
    %27 = vector.shape_cast %26 : vector<1x128xf32> to vector<1x1x128xf32>
    %28 = vector.broadcast %27 : vector<1x1x128xf32> to vector<2x2x128xf32>
    %29 = arith.mulf %25, %28 : vector<2x2x128xf32>
    %30 = arith.addf %21, %29 : vector<2x2x128xf32>
    %31 = vector.extract_strided_slice %23 {offsets = [1, 0, 0], sizes = [2, 2, 128], strides = [1, 1, 1]} : vector<4x2x128xbf16> to vector<2x2x128xbf16>
    %32 = arith.extf %31 : vector<2x2x128xbf16> to vector<2x2x128xf32>
    %c12 = arith.constant 12 : index
    %c0_13 = arith.constant 0 : index
    %33 = vector.load %arg3[%c12, %c0_13] : memref<25x128xf32, #tpu.memory_space<vmem>>, vector<1x128xf32>
    %34 = vector.shape_cast %33 : vector<1x128xf32> to vector<1x1x128xf32>
    %35 = vector.broadcast %34 : vector<1x1x128xf32> to vector<2x2x128xf32>
    %36 = arith.mulf %32, %35 : vector<2x2x128xf32>
    %37 = arith.addf %30, %36 : vector<2x2x128xf32>
    %38 = vector.extract_strided_slice %23 {offsets = [2, 0, 0], sizes = [2, 2, 128], strides = [1, 1, 1]} : vector<4x2x128xbf16> to vector<2x2x128xbf16>
    %39 = arith.extf %38 : vector<2x2x128xbf16> to vector<2x2x128xf32>
    %c22 = arith.constant 22 : index
    %c0_14 = arith.constant 0 : index
    %40 = vector.load %arg3[%c22, %c0_14] : memref<25x128xf32, #tpu.memory_space<vmem>>, vector<1x128xf32>
    %41 = vector.shape_cast %40 : vector<1x128xf32> to vector<1x1x128xf32>
    %42 = vector.broadcast %41 : vector<1x1x128xf32> to vector<2x2x128xf32>
    %43 = arith.mulf %39, %42 : vector<2x2x128xf32>
    %44 = arith.addf %37, %43 : vector<2x2x128xf32>
    %c0_15 = arith.constant 0 : index
    %c0_16 = arith.constant 0 : index
    %c0_17 = arith.constant 0 : index
    %c2_18 = arith.constant 2 : index
    %c0_19 = arith.constant 0 : index
    %45 = vector.load %arg2[%c0_15, %c0_16, %c0_17, %c2_18, %c0_19] : memref<4x1x4x4x128xbf16, #tpu.memory_space<vmem>>, vector<1x1x4x2x128xbf16>
    %46 = vector.shape_cast %45 : vector<1x1x4x2x128xbf16> to vector<4x2x128xbf16>
    %47 = vector.extract_strided_slice %46 {offsets = [0, 0, 0], sizes = [2, 2, 128], strides = [1, 1, 1]} : vector<4x2x128xbf16> to vector<2x2x128xbf16>
    %48 = arith.extf %47 : vector<2x2x128xbf16> to vector<2x2x128xf32>
    %c4 = arith.constant 4 : index
    %c0_20 = arith.constant 0 : index
    %49 = vector.load %arg3[%c4, %c0_20] : memref<25x128xf32, #tpu.memory_space<vmem>>, vector<1x128xf32>
    %50 = vector.shape_cast %49 : vector<1x128xf32> to vector<1x1x128xf32>
    %51 = vector.broadcast %50 : vector<1x1x128xf32> to vector<2x2x128xf32>
    %52 = arith.mulf %48, %51 : vector<2x2x128xf32>
    %53 = arith.addf %44, %52 : vector<2x2x128xf32>
    %54 = vector.extract_strided_slice %46 {offsets = [1, 0, 0], sizes = [2, 2, 128], strides = [1, 1, 1]} : vector<4x2x128xbf16> to vector<2x2x128xbf16>
    %55 = arith.extf %54 : vector<2x2x128xbf16> to vector<2x2x128xf32>
    %c14 = arith.constant 14 : index
    %c0_21 = arith.constant 0 : index
    %56 = vector.load %arg3[%c14, %c0_21] : memref<25x128xf32, #tpu.memory_space<vmem>>, vector<1x128xf32>
    %57 = vector.shape_cast %56 : vector<1x128xf32> to vector<1x1x128xf32>
    %58 = vector.broadcast %57 : vector<1x1x128xf32> to vector<2x2x128xf32>
    %59 = arith.mulf %55, %58 : vector<2x2x128xf32>
    %60 = arith.addf %53, %59 : vector<2x2x128xf32>
    %61 = vector.extract_strided_slice %46 {offsets = [2, 0, 0], sizes = [2, 2, 128], strides = [1, 1, 1]} : vector<4x2x128xbf16> to vector<2x2x128xbf16>
    %62 = arith.extf %61 : vector<2x2x128xbf16> to vector<2x2x128xf32>
    %c24 = arith.constant 24 : index
    %c0_22 = arith.constant 0 : index
    %63 = vector.load %arg3[%c24, %c0_22] : memref<25x128xf32, #tpu.memory_space<vmem>>, vector<1x128xf32>
    %64 = vector.shape_cast %63 : vector<1x128xf32> to vector<1x1x128xf32>
    %65 = vector.broadcast %64 : vector<1x1x128xf32> to vector<2x2x128xf32>
    %66 = arith.mulf %62, %65 : vector<2x2x128xf32>
    %67 = arith.addf %60, %66 : vector<2x2x128xf32>
    %c1_23 = arith.constant 1 : index
    %c0_24 = arith.constant 0 : index
    %c0_25 = arith.constant 0 : index
    %c0_26 = arith.constant 0 : index
    %c0_27 = arith.constant 0 : index
    %68 = vector.load %arg2[%c1_23, %c0_24, %c0_25, %c0_26, %c0_27] : memref<4x1x4x4x128xbf16, #tpu.memory_space<vmem>>, vector<1x1x4x2x128xbf16>
    %69 = vector.shape_cast %68 : vector<1x1x4x2x128xbf16> to vector<4x2x128xbf16>
    %70 = vector.extract_strided_slice %69 {offsets = [0, 0, 0], sizes = [2, 2, 128], strides = [1, 1, 1]} : vector<4x2x128xbf16> to vector<2x2x128xbf16>
    %71 = arith.extf %70 : vector<2x2x128xbf16> to vector<2x2x128xf32>
    %c1_28 = arith.constant 1 : index
    %c0_29 = arith.constant 0 : index
    %72 = vector.load %arg3[%c1_28, %c0_29] : memref<25x128xf32, #tpu.memory_space<vmem>>, vector<1x128xf32>
    %73 = vector.shape_cast %72 : vector<1x128xf32> to vector<1x1x128xf32>
    %74 = vector.broadcast %73 : vector<1x1x128xf32> to vector<2x2x128xf32>
    %75 = arith.mulf %71, %74 : vector<2x2x128xf32>
    %76 = arith.addf %67, %75 : vector<2x2x128xf32>
    %77 = vector.extract_strided_slice %69 {offsets = [1, 0, 0], sizes = [2, 2, 128], strides = [1, 1, 1]} : vector<4x2x128xbf16> to vector<2x2x128xbf16>
    %78 = arith.extf %77 : vector<2x2x128xbf16> to vector<2x2x128xf32>
    %c11 = arith.constant 11 : index
    %c0_30 = arith.constant 0 : index
    %79 = vector.load %arg3[%c11, %c0_30] : memref<25x128xf32, #tpu.memory_space<vmem>>, vector<1x128xf32>
    %80 = vector.shape_cast %79 : vector<1x128xf32> to vector<1x1x128xf32>
    %81 = vector.broadcast %80 : vector<1x1x128xf32> to vector<2x2x128xf32>
    %82 = arith.mulf %78, %81 : vector<2x2x128xf32>
    %83 = arith.addf %76, %82 : vector<2x2x128xf32>
    %84 = vector.extract_strided_slice %69 {offsets = [2, 0, 0], sizes = [2, 2, 128], strides = [1, 1, 1]} : vector<4x2x128xbf16> to vector<2x2x128xbf16>
    %85 = arith.extf %84 : vector<2x2x128xbf16> to vector<2x2x128xf32>
    %c21 = arith.constant 21 : index
    %c0_31 = arith.constant 0 : index
    %86 = vector.load %arg3[%c21, %c0_31] : memref<25x128xf32, #tpu.memory_space<vmem>>, vector<1x128xf32>
    %87 = vector.shape_cast %86 : vector<1x128xf32> to vector<1x1x128xf32>
    %88 = vector.broadcast %87 : vector<1x1x128xf32> to vector<2x2x128xf32>
    %89 = arith.mulf %85, %88 : vector<2x2x128xf32>
    %90 = arith.addf %83, %89 : vector<2x2x128xf32>
    %c1_32 = arith.constant 1 : index
    %c0_33 = arith.constant 0 : index
    %c0_34 = arith.constant 0 : index
    %c1_35 = arith.constant 1 : index
    %c0_36 = arith.constant 0 : index
    %91 = vector.load %arg2[%c1_32, %c0_33, %c0_34, %c1_35, %c0_36] : memref<4x1x4x4x128xbf16, #tpu.memory_space<vmem>>, vector<1x1x4x2x128xbf16>
    %92 = vector.shape_cast %91 : vector<1x1x4x2x128xbf16> to vector<4x2x128xbf16>
    %93 = vector.extract_strided_slice %92 {offsets = [0, 0, 0], sizes = [2, 2, 128], strides = [1, 1, 1]} : vector<4x2x128xbf16> to vector<2x2x128xbf16>
    %94 = arith.extf %93 : vector<2x2x128xbf16> to vector<2x2x128xf32>
    %c3 = arith.constant 3 : index
    %c0_37 = arith.constant 0 : index
    %95 = vector.load %arg3[%c3, %c0_37] : memref<25x128xf32, #tpu.memory_space<vmem>>, vector<1x128xf32>
    %96 = vector.shape_cast %95 : vector<1x128xf32> to vector<1x1x128xf32>
    %97 = vector.broadcast %96 : vector<1x1x128xf32> to vector<2x2x128xf32>
    %98 = arith.mulf %94, %97 : vector<2x2x128xf32>
    %99 = arith.addf %90, %98 : vector<2x2x128xf32>
    %100 = vector.extract_strided_slice %92 {offsets = [1, 0, 0], sizes = [2, 2, 128], strides = [1, 1, 1]} : vector<4x2x128xbf16> to vector<2x2x128xbf16>
    %101 = arith.extf %100 : vector<2x2x128xbf16> to vector<2x2x128xf32>
    %c13 = arith.constant 13 : index
    %c0_38 = arith.constant 0 : index
    %102 = vector.load %arg3[%c13, %c0_38] : memref<25x128xf32, #tpu.memory_space<vmem>>, vector<1x128xf32>
    %103 = vector.shape_cast %102 : vector<1x128xf32> to vector<1x1x128xf32>
    %104 = vector.broadcast %103 : vector<1x1x128xf32> to vector<2x2x128xf32>
    %105 = arith.mulf %101, %104 : vector<2x2x128xf32>
    %106 = arith.addf %99, %105 : vector<2x2x128xf32>
    %107 = vector.extract_strided_slice %92 {offsets = [2, 0, 0], sizes = [2, 2, 128], strides = [1, 1, 1]} : vector<4x2x128xbf16> to vector<2x2x128xbf16>
    %108 = arith.extf %107 : vector<2x2x128xbf16> to vector<2x2x128xf32>
    %c23 = arith.constant 23 : index
    %c0_39 = arith.constant 0 : index
    %109 = vector.load %arg3[%c23, %c0_39] : memref<25x128xf32, #tpu.memory_space<vmem>>, vector<1x128xf32>
    %110 = vector.shape_cast %109 : vector<1x128xf32> to vector<1x1x128xf32>
    %111 = vector.broadcast %110 : vector<1x1x128xf32> to vector<2x2x128xf32>
    %112 = arith.mulf %108, %111 : vector<2x2x128xf32>
    %113 = arith.addf %106, %112 : vector<2x2x128xf32>
    %c2_40 = arith.constant 2 : index
    %c0_41 = arith.constant 0 : index
    %c0_42 = arith.constant 0 : index
    %c0_43 = arith.constant 0 : index
    %c0_44 = arith.constant 0 : index
    %114 = vector.load %arg2[%c2_40, %c0_41, %c0_42, %c0_43, %c0_44] : memref<4x1x4x4x128xbf16, #tpu.memory_space<vmem>>, vector<1x1x4x2x128xbf16>
    %115 = vector.shape_cast %114 : vector<1x1x4x2x128xbf16> to vector<4x2x128xbf16>
    %116 = vector.extract_strided_slice %115 {offsets = [0, 0, 0], sizes = [2, 2, 128], strides = [1, 1, 1]} : vector<4x2x128xbf16> to vector<2x2x128xbf16>
    %117 = arith.extf %116 : vector<2x2x128xbf16> to vector<2x2x128xf32>
    %c5 = arith.constant 5 : index
    %c0_45 = arith.constant 0 : index
    %118 = vector.load %arg3[%c5, %c0_45] : memref<25x128xf32, #tpu.memory_space<vmem>>, vector<1x128xf32>
    %119 = vector.shape_cast %118 : vector<1x128xf32> to vector<1x1x128xf32>
    %120 = vector.broadcast %119 : vector<1x1x128xf32> to vector<2x2x128xf32>
    %121 = arith.mulf %117, %120 : vector<2x2x128xf32>
    %122 = arith.addf %113, %121 : vector<2x2x128xf32>
    %123 = vector.extract_strided_slice %115 {offsets = [1, 0, 0], sizes = [2, 2, 128], strides = [1, 1, 1]} : vector<4x2x128xbf16> to vector<2x2x128xbf16>
    %124 = arith.extf %123 : vector<2x2x128xbf16> to vector<2x2x128xf32>
    %c15 = arith.constant 15 : index
    %c0_46 = arith.constant 0 : index
    %125 = vector.load %arg3[%c15, %c0_46] : memref<25x128xf32, #tpu.memory_space<vmem>>, vector<1x128xf32>
    %126 = vector.shape_cast %125 : vector<1x128xf32> to vector<1x1x128xf32>
    %127 = vector.broadcast %126 : vector<1x1x128xf32> to vector<2x2x128xf32>
    %128 = arith.mulf %124, %127 : vector<2x2x128xf32>
    %129 = arith.addf %122, %128 : vector<2x2x128xf32>
    %c2_47 = arith.constant 2 : index
    %c0_48 = arith.constant 0 : index
    %c0_49 = arith.constant 0 : index
    %c1_50 = arith.constant 1 : index
    %c0_51 = arith.constant 0 : index
    %130 = vector.load %arg2[%c2_47, %c0_48, %c0_49, %c1_50, %c0_51] : memref<4x1x4x4x128xbf16, #tpu.memory_space<vmem>>, vector<1x1x4x2x128xbf16>
    %131 = vector.shape_cast %130 : vector<1x1x4x2x128xbf16> to vector<4x2x128xbf16>
    %132 = vector.extract_strided_slice %131 {offsets = [0, 0, 0], sizes = [2, 2, 128], strides = [1, 1, 1]} : vector<4x2x128xbf16> to vector<2x2x128xbf16>
    %133 = arith.extf %132 : vector<2x2x128xbf16> to vector<2x2x128xf32>
    %c7 = arith.constant 7 : index
    %c0_52 = arith.constant 0 : index
    %134 = vector.load %arg3[%c7, %c0_52] : memref<25x128xf32, #tpu.memory_space<vmem>>, vector<1x128xf32>
    %135 = vector.shape_cast %134 : vector<1x128xf32> to vector<1x1x128xf32>
    %136 = vector.broadcast %135 : vector<1x1x128xf32> to vector<2x2x128xf32>
    %137 = arith.mulf %133, %136 : vector<2x2x128xf32>
    %138 = arith.addf %129, %137 : vector<2x2x128xf32>
    %139 = vector.extract_strided_slice %131 {offsets = [1, 0, 0], sizes = [2, 2, 128], strides = [1, 1, 1]} : vector<4x2x128xbf16> to vector<2x2x128xbf16>
    %140 = arith.extf %139 : vector<2x2x128xbf16> to vector<2x2x128xf32>
    %c17 = arith.constant 17 : index
    %c0_53 = arith.constant 0 : index
    %141 = vector.load %arg3[%c17, %c0_53] : memref<25x128xf32, #tpu.memory_space<vmem>>, vector<1x128xf32>
    %142 = vector.shape_cast %141 : vector<1x128xf32> to vector<1x1x128xf32>
    %143 = vector.broadcast %142 : vector<1x1x128xf32> to vector<2x2x128xf32>
    %144 = arith.mulf %140, %143 : vector<2x2x128xf32>
    %145 = arith.addf %138, %144 : vector<2x2x128xf32>
    %c2_54 = arith.constant 2 : index
    %c0_55 = arith.constant 0 : index
    %c0_56 = arith.constant 0 : index
    %c2_57 = arith.constant 2 : index
    %c0_58 = arith.constant 0 : index
    %146 = vector.load %arg2[%c2_54, %c0_55, %c0_56, %c2_57, %c0_58] : memref<4x1x4x4x128xbf16, #tpu.memory_space<vmem>>, vector<1x1x4x2x128xbf16>
    %147 = vector.shape_cast %146 : vector<1x1x4x2x128xbf16> to vector<4x2x128xbf16>
    %148 = vector.extract_strided_slice %147 {offsets = [0, 0, 0], sizes = [2, 2, 128], strides = [1, 1, 1]} : vector<4x2x128xbf16> to vector<2x2x128xbf16>
    %149 = arith.extf %148 : vector<2x2x128xbf16> to vector<2x2x128xf32>
    %c9 = arith.constant 9 : index
    %c0_59 = arith.constant 0 : index
    %150 = vector.load %arg3[%c9, %c0_59] : memref<25x128xf32, #tpu.memory_space<vmem>>, vector<1x128xf32>
    %151 = vector.shape_cast %150 : vector<1x128xf32> to vector<1x1x128xf32>
    %152 = vector.broadcast %151 : vector<1x1x128xf32> to vector<2x2x128xf32>
    %153 = arith.mulf %149, %152 : vector<2x2x128xf32>
    %154 = arith.addf %145, %153 : vector<2x2x128xf32>
    %155 = vector.extract_strided_slice %147 {offsets = [1, 0, 0], sizes = [2, 2, 128], strides = [1, 1, 1]} : vector<4x2x128xbf16> to vector<2x2x128xbf16>
    %156 = arith.extf %155 : vector<2x2x128xbf16> to vector<2x2x128xf32>
    %c19 = arith.constant 19 : index
    %c0_60 = arith.constant 0 : index
    %157 = vector.load %arg3[%c19, %c0_60] : memref<25x128xf32, #tpu.memory_space<vmem>>, vector<1x128xf32>
    %158 = vector.shape_cast %157 : vector<1x128xf32> to vector<1x1x128xf32>
    %159 = vector.broadcast %158 : vector<1x1x128xf32> to vector<2x2x128xf32>
    %160 = arith.mulf %156, %159 : vector<2x2x128xf32>
    %161 = arith.addf %154, %160 : vector<2x2x128xf32>
    %c3_61 = arith.constant 3 : index
    %c0_62 = arith.constant 0 : index
    %c0_63 = arith.constant 0 : index
    %c0_64 = arith.constant 0 : index
    %c0_65 = arith.constant 0 : index
    %162 = vector.load %arg2[%c3_61, %c0_62, %c0_63, %c0_64, %c0_65] : memref<4x1x4x4x128xbf16, #tpu.memory_space<vmem>>, vector<1x1x4x2x128xbf16>
    %163 = vector.shape_cast %162 : vector<1x1x4x2x128xbf16> to vector<4x2x128xbf16>
    %164 = vector.extract_strided_slice %163 {offsets = [0, 0, 0], sizes = [2, 2, 128], strides = [1, 1, 1]} : vector<4x2x128xbf16> to vector<2x2x128xbf16>
    %165 = arith.extf %164 : vector<2x2x128xbf16> to vector<2x2x128xf32>
    %c6 = arith.constant 6 : index
    %c0_66 = arith.constant 0 : index
    %166 = vector.load %arg3[%c6, %c0_66] : memref<25x128xf32, #tpu.memory_space<vmem>>, vector<1x128xf32>
    %167 = vector.shape_cast %166 : vector<1x128xf32> to vector<1x1x128xf32>
    %168 = vector.broadcast %167 : vector<1x1x128xf32> to vector<2x2x128xf32>
    %169 = arith.mulf %165, %168 : vector<2x2x128xf32>
    %170 = arith.addf %161, %169 : vector<2x2x128xf32>
    %171 = vector.extract_strided_slice %163 {offsets = [1, 0, 0], sizes = [2, 2, 128], strides = [1, 1, 1]} : vector<4x2x128xbf16> to vector<2x2x128xbf16>
    %172 = arith.extf %171 : vector<2x2x128xbf16> to vector<2x2x128xf32>
    %c16 = arith.constant 16 : index
    %c0_67 = arith.constant 0 : index
    %173 = vector.load %arg3[%c16, %c0_67] : memref<25x128xf32, #tpu.memory_space<vmem>>, vector<1x128xf32>
    %174 = vector.shape_cast %173 : vector<1x128xf32> to vector<1x1x128xf32>
    %175 = vector.broadcast %174 : vector<1x1x128xf32> to vector<2x2x128xf32>
    %176 = arith.mulf %172, %175 : vector<2x2x128xf32>
    %177 = arith.addf %170, %176 : vector<2x2x128xf32>
    %c3_68 = arith.constant 3 : index
    %c0_69 = arith.constant 0 : index
    %c0_70 = arith.constant 0 : index
    %c1_71 = arith.constant 1 : index
    %c0_72 = arith.constant 0 : index
    %178 = vector.load %arg2[%c3_68, %c0_69, %c0_70, %c1_71, %c0_72] : memref<4x1x4x4x128xbf16, #tpu.memory_space<vmem>>, vector<1x1x4x2x128xbf16>
    %179 = vector.shape_cast %178 : vector<1x1x4x2x128xbf16> to vector<4x2x128xbf16>
    %180 = vector.extract_strided_slice %179 {offsets = [0, 0, 0], sizes = [2, 2, 128], strides = [1, 1, 1]} : vector<4x2x128xbf16> to vector<2x2x128xbf16>
    %181 = arith.extf %180 : vector<2x2x128xbf16> to vector<2x2x128xf32>
    %c8 = arith.constant 8 : index
    %c0_73 = arith.constant 0 : index
    %182 = vector.load %arg3[%c8, %c0_73] : memref<25x128xf32, #tpu.memory_space<vmem>>, vector<1x128xf32>
    %183 = vector.shape_cast %182 : vector<1x128xf32> to vector<1x1x128xf32>
    %184 = vector.broadcast %183 : vector<1x1x128xf32> to vector<2x2x128xf32>
    %185 = arith.mulf %181, %184 : vector<2x2x128xf32>
    %186 = arith.addf %177, %185 : vector<2x2x128xf32>
    %187 = vector.extract_strided_slice %179 {offsets = [1, 0, 0], sizes = [2, 2, 128], strides = [1, 1, 1]} : vector<4x2x128xbf16> to vector<2x2x128xbf16>
    %188 = arith.extf %187 : vector<2x2x128xbf16> to vector<2x2x128xf32>
    %c18 = arith.constant 18 : index
    %c0_74 = arith.constant 0 : index
    %189 = vector.load %arg3[%c18, %c0_74] : memref<25x128xf32, #tpu.memory_space<vmem>>, vector<1x128xf32>
    %190 = vector.shape_cast %189 : vector<1x128xf32> to vector<1x1x128xf32>
    %191 = vector.broadcast %190 : vector<1x1x128xf32> to vector<2x2x128xf32>
    %192 = arith.mulf %188, %191 : vector<2x2x128xf32>
    %193 = arith.addf %186, %192 : vector<2x2x128xf32>
    %c0_75 = arith.constant 0 : index
    %c0_76 = arith.constant 0 : index
    %194 = vector.load %arg4[%c0_75, %c0_76] : memref<1x128xf32, #tpu.memory_space<vmem>>, vector<1x128xf32>
    %195 = vector.shape_cast %194 : vector<1x128xf32> to vector<1x1x128xf32>
    %196 = vector.broadcast %195 : vector<1x1x128xf32> to vector<2x2x128xf32>
    %197 = arith.mulf %193, %196 : vector<2x2x128xf32>
    %c0_77 = arith.constant 0 : index
    %c0_78 = arith.constant 0 : index
    %198 = vector.load %arg5[%c0_77, %c0_78] : memref<1x128xf32, #tpu.memory_space<vmem>>, vector<1x128xf32>
    %199 = vector.shape_cast %198 : vector<1x128xf32> to vector<1x1x128xf32>
    %200 = vector.broadcast %199 : vector<1x1x128xf32> to vector<2x2x128xf32>
    %201 = arith.addf %197, %200 : vector<2x2x128xf32>
    %202 = arith.negf %201 : vector<2x2x128xf32>
    %203 = math.exp %202 : vector<2x2x128xf32>
    %cst = arith.constant 1.000000e+00 : f32
    %204 = vector.broadcast %cst : f32 to vector<2x2x128xf32>
    %205 = arith.addf %204, %203 : vector<2x2x128xf32>
    %206 = arith.divf %204, %205 : vector<2x2x128xf32>
    %207 = arith.mulf %201, %206 : vector<2x2x128xf32>
    %208 = arith.truncf %207 : vector<2x2x128xf32> to vector<2x2x128xbf16>
    %c0_79 = arith.constant 0 : index
    %c0_80 = arith.constant 0 : index
    %c0_81 = arith.constant 0 : index
    %c0_82 = arith.constant 0 : index
    %209 = vector.load %arg6[%c0_79, %c0_80, %c0_81, %c0_82] : memref<1x2x2x128xbf16, #tpu.memory_space<vmem>>, vector<1x2x2x128xbf16>
    %210 = vector.shape_cast %209 : vector<1x2x2x128xbf16> to vector<2x2x128xbf16>
    %211 = vector.shape_cast %208 : vector<2x2x128xbf16> to vector<1x2x2x128xbf16>
    tpu.vector_store %arg6[%c0_79, %c0_80, %c0_81, %c0_82], %211 {strides = array<i32>} : memref<1x2x2x128xbf16, #tpu.memory_space<vmem>>, vector<1x2x2x128xbf16>,
    %cst_83 = arith.constant dense<0.000000e+00> : vector<128xf32>
    %212 = vector.multi_reduction <add>, %207, %cst_83 [0, 1] : vector<2x2x128xf32> to vector<128xf32>
    %213 = vector.shape_cast %212 : vector<128xf32> to vector<1x1x128xf32>
    %c0_84 = arith.constant 0 : index
    %c0_85 = arith.constant 0 : index
    %c0_86 = arith.constant 0 : index
    %214 = vector.load %arg7[%c0_84, %c0_85, %c0_86] : memref<1x1x128xf32, #tpu.memory_space<vmem>>, vector<1x1x128xf32>
    tpu.vector_store %arg7[%c0_84, %c0_85, %c0_86], %213 {strides = array<i32>} : memref<1x1x128xf32, #tpu.memory_space<vmem>>, vector<1x1x128xf32>,
    return
  }
  func.func @transform_0(%arg0: i32, %arg1: i32) -> (i32, i32, i32, i32, i32) {
    %c0_i32 = arith.constant 0 : i32
    %c0_i32_0 = arith.constant 0 : i32
    %c0_i32_1 = arith.constant 0 : i32
    %c0_i32_2 = arith.constant 0 : i32
    return %c0_i32, %arg0, %c0_i32_0, %c0_i32_1, %arg1 : i32, i32, i32, i32, i32
  }
  func.func @transform_1(%arg0: i32, %arg1: i32) -> (i32, i32) {
    %c0_i32 = arith.constant 0 : i32
    %c0_i32_0 = arith.constant 0 : i32
    return %c0_i32, %arg1 : i32, i32
  }
  func.func @transform_2(%arg0: i32, %arg1: i32) -> (i32, i32) {
    %c0_i32 = arith.constant 0 : i32
    %c0_i32_0 = arith.constant 0 : i32
    return %c0_i32, %arg1 : i32, i32
  }
  func.func @transform_3(%arg0: i32, %arg1: i32) -> (i32, i32) {
    %c0_i32 = arith.constant 0 : i32
    %c0_i32_0 = arith.constant 0 : i32
    return %c0_i32, %arg1 : i32, i32
  }
  func.func @transform_4(%arg0: i32, %arg1: i32) -> (i32, i32, i32, i32) {
    %c0_i32 = arith.constant 0 : i32
    %c0_i32_0 = arith.constant 0 : i32
    %c0_i32_1 = arith.constant 0 : i32
    return %arg0, %c0_i32, %c0_i32_0, %arg1 : i32, i32, i32, i32
  }
  func.func @transform_5(%arg0: i32, %arg1: i32) -> (i32, i32, i32) {
    %c0_i32 = arith.constant 0 : i32
    %c0_i32_0 = arith.constant 0 : i32
    return %arg0, %c0_i32, %arg1 : i32, i32, i32
  }
}

module attributes {stable_mosaic.version = 11 : i64} {
  func.func @_mmg_kernel(%arg0: i32, %arg1: i32, %arg2: i32, %arg3: i32, %arg4: memref<1x4x256xbf16, #tpu.memory_space<vmem>>, %arg5: memref<256x128xbf16, #tpu.memory_space<vmem>>, %arg6: memref<1x128xf32, #tpu.memory_space<vmem>>, %arg7: memref<1x128xf32, #tpu.memory_space<vmem>>, %arg8: memref<1x1x256xf32, #tpu.memory_space<vmem>>, %arg9: memref<1x4x128xbf16, #tpu.memory_space<vmem>>) attributes {dimension_semantics = [#tpu.dimension_semantics<parallel>, #tpu.dimension_semantics<parallel>, #tpu.dimension_semantics<parallel>, #tpu.dimension_semantics<arbitrary>], iteration_bounds = array<i64: 2, 1, 1, 1>, scalar_prefetch = 0 : i64, scratch_operands = 0 : i64, tpu.core_type = #tpu.core_type<tc>, window_params = [{transform_indices = @transform_0, window_bounds = array<i64: 1, 4, 256>}, {transform_indices = @transform_1, window_bounds = array<i64: 256, 128>}, {transform_indices = @transform_2, window_bounds = array<i64: 1, 128>}, {transform_indices = @transform_3, window_bounds = array<i64: 1, 128>}, {transform_indices = @transform_4, window_bounds = array<i64: 1, 1, 256>}, {transform_indices = @transform_5, window_bounds = array<i64: 1, 4, 128>}]} {
    %c0 = arith.constant 0 : index
    %c0_0 = arith.constant 0 : index
    %c0_1 = arith.constant 0 : index
    %0 = vector.load %arg4[%c0, %c0_0, %c0_1] : memref<1x4x256xbf16, #tpu.memory_space<vmem>>, vector<1x4x256xbf16>
    %1 = vector.shape_cast %0 : vector<1x4x256xbf16> to vector<4x256xbf16>
    %c0_2 = arith.constant 0 : index
    %c0_3 = arith.constant 0 : index
    %c0_4 = arith.constant 0 : index
    %2 = vector.load %arg8[%c0_2, %c0_3, %c0_4] : memref<1x1x256xf32, #tpu.memory_space<vmem>>, vector<1x1x256xf32>
    %3 = vector.shape_cast %2 : vector<1x1x256xf32> to vector<1x256xf32>
    %4 = arith.truncf %3 : vector<1x256xf32> to vector<1x256xbf16>
    %5 = vector.broadcast %4 : vector<1x256xbf16> to vector<4x256xbf16>
    %6 = arith.mulf %1, %5 : vector<4x256xbf16>
    %c0_5 = arith.constant 0 : index
    %c0_6 = arith.constant 0 : index
    %7 = vector.load %arg5[%c0_5, %c0_6] : memref<256x128xbf16, #tpu.memory_space<vmem>>, vector<256x128xbf16>
    %cst = arith.constant dense<0.000000e+00> : vector<4x128xf32>
    %8 = tpu.matmul %6, %7, %cst {dimension_numbers = #tpu.dot_dimension_numbers<[1], [0], [0], [1], [0, 0, 1, 1], [], []>} : vector<4x256xbf16>, vector<256x128xbf16>, vector<4x128xf32> -> vector<4x128xf32>
    %c0_7 = arith.constant 0 : index
    %c0_8 = arith.constant 0 : index
    %9 = vector.load %arg6[%c0_7, %c0_8] : memref<1x128xf32, #tpu.memory_space<vmem>>, vector<1x128xf32>
    %10 = vector.broadcast %9 : vector<1x128xf32> to vector<4x128xf32>
    %11 = arith.mulf %8, %10 : vector<4x128xf32>
    %c0_9 = arith.constant 0 : index
    %c0_10 = arith.constant 0 : index
    %12 = vector.load %arg7[%c0_9, %c0_10] : memref<1x128xf32, #tpu.memory_space<vmem>>, vector<1x128xf32>
    %13 = vector.broadcast %12 : vector<1x128xf32> to vector<4x128xf32>
    %14 = arith.addf %11, %13 : vector<4x128xf32>
    %15 = arith.truncf %14 : vector<4x128xf32> to vector<4x128xbf16>
    %c0_11 = arith.constant 0 : index
    %c0_12 = arith.constant 0 : index
    %c0_13 = arith.constant 0 : index
    %16 = vector.load %arg9[%c0_11, %c0_12, %c0_13] : memref<1x4x128xbf16, #tpu.memory_space<vmem>>, vector<1x4x128xbf16>
    %17 = vector.shape_cast %16 : vector<1x4x128xbf16> to vector<4x128xbf16>
    %18 = vector.shape_cast %15 : vector<4x128xbf16> to vector<1x4x128xbf16>
    tpu.vector_store %arg9[%c0_11, %c0_12, %c0_13], %18 {strides = array<i32>} : memref<1x4x128xbf16, #tpu.memory_space<vmem>>, vector<1x4x128xbf16>,
    return
  }
  func.func @transform_0(%arg0: i32, %arg1: i32, %arg2: i32, %arg3: i32) -> (i32, i32, i32) {
    %c0_i32 = arith.constant 0 : i32
    return %arg0, %arg1, %arg3 : i32, i32, i32
  }
  func.func @transform_1(%arg0: i32, %arg1: i32, %arg2: i32, %arg3: i32) -> (i32, i32) {
    %c0_i32 = arith.constant 0 : i32
    return %arg3, %arg2 : i32, i32
  }
  func.func @transform_2(%arg0: i32, %arg1: i32, %arg2: i32, %arg3: i32) -> (i32, i32) {
    %c0_i32 = arith.constant 0 : i32
    %c0_i32_0 = arith.constant 0 : i32
    return %c0_i32, %arg2 : i32, i32
  }
  func.func @transform_3(%arg0: i32, %arg1: i32, %arg2: i32, %arg3: i32) -> (i32, i32) {
    %c0_i32 = arith.constant 0 : i32
    %c0_i32_0 = arith.constant 0 : i32
    return %c0_i32, %arg2 : i32, i32
  }
  func.func @transform_4(%arg0: i32, %arg1: i32, %arg2: i32, %arg3: i32) -> (i32, i32, i32) {
    %c0_i32 = arith.constant 0 : i32
    %c0_i32_0 = arith.constant 0 : i32
    return %arg0, %c0_i32, %arg3 : i32, i32, i32
  }
  func.func @transform_5(%arg0: i32, %arg1: i32, %arg2: i32, %arg3: i32) -> (i32, i32, i32) {
    %c0_i32 = arith.constant 0 : i32
    return %arg0, %arg1, %arg2 : i32, i32, i32
  }
}

module attributes {stable_mosaic.version = 11 : i64} {
  func.func @_mm2d_kernel(%arg0: i32, %arg1: i32, %arg2: i32, %arg3: memref<8x128xbf16, #tpu.memory_space<vmem>>, %arg4: memref<128x256xbf16, #tpu.memory_space<vmem>>, %arg5: memref<1x256xf32, #tpu.memory_space<vmem>>, %arg6: memref<1x256xf32, #tpu.memory_space<vmem>>, %arg7: memref<8x256xbf16, #tpu.memory_space<vmem>>) attributes {dimension_semantics = [#tpu.dimension_semantics<parallel>, #tpu.dimension_semantics<parallel>, #tpu.dimension_semantics<arbitrary>], iteration_bounds = array<i64: 1, 5, 1>, scalar_prefetch = 0 : i64, scratch_operands = 0 : i64, tpu.core_type = #tpu.core_type<tc>, window_params = [{transform_indices = @transform_0, window_bounds = array<i64: 8, 128>}, {transform_indices = @transform_1, window_bounds = array<i64: 128, 256>}, {transform_indices = @transform_2, window_bounds = array<i64: 1, 256>}, {transform_indices = @transform_3, window_bounds = array<i64: 1, 256>}, {transform_indices = @transform_4, window_bounds = array<i64: 8, 256>}]} {
    %c0 = arith.constant 0 : index
    %c0_0 = arith.constant 0 : index
    %0 = vector.load %arg3[%c0, %c0_0] : memref<8x128xbf16, #tpu.memory_space<vmem>>, vector<8x128xbf16>
    %c0_1 = arith.constant 0 : index
    %c0_2 = arith.constant 0 : index
    %1 = vector.load %arg4[%c0_1, %c0_2] : memref<128x256xbf16, #tpu.memory_space<vmem>>, vector<128x256xbf16>
    %cst = arith.constant dense<0.000000e+00> : vector<8x256xf32>
    %2 = tpu.matmul %0, %1, %cst {dimension_numbers = #tpu.dot_dimension_numbers<[1], [0], [0], [1], [0, 0, 1, 1], [], []>} : vector<8x128xbf16>, vector<128x256xbf16>, vector<8x256xf32> -> vector<8x256xf32>
    %c0_3 = arith.constant 0 : index
    %c0_4 = arith.constant 0 : index
    %3 = vector.load %arg5[%c0_3, %c0_4] : memref<1x256xf32, #tpu.memory_space<vmem>>, vector<1x256xf32>
    %4 = vector.broadcast %3 : vector<1x256xf32> to vector<8x256xf32>
    %5 = arith.mulf %2, %4 : vector<8x256xf32>
    %c0_5 = arith.constant 0 : index
    %c0_6 = arith.constant 0 : index
    %6 = vector.load %arg6[%c0_5, %c0_6] : memref<1x256xf32, #tpu.memory_space<vmem>>, vector<1x256xf32>
    %7 = vector.broadcast %6 : vector<1x256xf32> to vector<8x256xf32>
    %8 = arith.addf %5, %7 : vector<8x256xf32>
    %9 = arith.negf %8 : vector<8x256xf32>
    %10 = math.exp %9 : vector<8x256xf32>
    %cst_7 = arith.constant 1.000000e+00 : f32
    %11 = vector.broadcast %cst_7 : f32 to vector<8x256xf32>
    %12 = arith.addf %11, %10 : vector<8x256xf32>
    %13 = arith.divf %11, %12 : vector<8x256xf32>
    %14 = arith.mulf %8, %13 : vector<8x256xf32>
    %15 = arith.truncf %14 : vector<8x256xf32> to vector<8x256xbf16>
    %c0_8 = arith.constant 0 : index
    %c0_9 = arith.constant 0 : index
    %16 = vector.load %arg7[%c0_8, %c0_9] : memref<8x256xbf16, #tpu.memory_space<vmem>>, vector<8x256xbf16>
    tpu.vector_store %arg7[%c0_8, %c0_9], %15 {strides = array<i32>} : memref<8x256xbf16, #tpu.memory_space<vmem>>, vector<8x256xbf16>,
    return
  }
  func.func @transform_0(%arg0: i32, %arg1: i32, %arg2: i32) -> (i32, i32) {
    %c0_i32 = arith.constant 0 : i32
    return %arg0, %arg2 : i32, i32
  }
  func.func @transform_1(%arg0: i32, %arg1: i32, %arg2: i32) -> (i32, i32) {
    %c0_i32 = arith.constant 0 : i32
    return %arg2, %arg1 : i32, i32
  }
  func.func @transform_2(%arg0: i32, %arg1: i32, %arg2: i32) -> (i32, i32) {
    %c0_i32 = arith.constant 0 : i32
    %c0_i32_0 = arith.constant 0 : i32
    return %c0_i32, %arg1 : i32, i32
  }
  func.func @transform_3(%arg0: i32, %arg1: i32, %arg2: i32) -> (i32, i32) {
    %c0_i32 = arith.constant 0 : i32
    %c0_i32_0 = arith.constant 0 : i32
    return %c0_i32, %arg1 : i32, i32
  }
  func.func @transform_4(%arg0: i32, %arg1: i32, %arg2: i32) -> (i32, i32) {
    %c0_i32 = arith.constant 0 : i32
    return %arg0, %arg1 : i32, i32
  }
}

</mosaic_0001>

<llo_original>
// kernel: _lambda_.13
$region0: #{_lambda_.13}
  #allocation0 [shape = 'u32[]', space=smem, size = 0x4, offset = 0x4, fixed_abs, tag = 'smem constant byte address 0x4 - core index']
  #allocation1 [shape = 'u32[144,128]{1,0:T(1,128)}', space=vmem, size = 0x12000, scoped, tag = 'internal scratch']
  %s0 = inlined_call_operand.vmem [shape: bf16[2,64,128], index: 0, kind: input, shape index: {}]
  %s1 = inlined_call_operand.vmem [shape: bf16[128,128], index: 1, kind: input, shape index: {}]
  %s2 = inlined_call_operand.vmem [shape: f32[1,128], index: 2, kind: input, shape index: {}]
  %s3 = inlined_call_operand.vmem [shape: f32[1,128], index: 3, kind: input, shape index: {}]
  %s4 = inlined_call_operand.vmem [shape: f32[2,1,128], index: 4, kind: input, shape index: {}]
  %s5 = inlined_call_operand.vmem [shape: bf16[2,64,128], index: 5, kind: output, shape index: {}]
  %s6 = sld [smem:[#allocation0]]
  $region53: #{_lambda_.13} parent=0
    _
  %s8 = ssub.s32 1, %s6
  %s9 = scalar_select 0, %s8, %s6
  loop: start=0, step=1, limit=4
  $region2: #{_lambda_.13} parent=0 // loop_pre_header
    _
  $region3: #{_lambda_.13} parent=0 // loop_header
    %s11 = sphi 0, %s15
    %p12 = scmp.ge.s32.totalorder %s11, 4
    %s18 = sphi 0, %s44
    %s19 = sphi 0, %s40
    %s20 = sphi 0, %s36
    %s21 = sphi 0, %s32
    %s22 = sphi 0, %s18
    %s23 = sphi 0, %s19
    %s24 = sphi 0, %s20
    %s25 = sphi 0, %s21
    %s26 = sphi 0, %s22
    %s27 = sphi 0, %s23
    %s28 = sphi 0, %s24
    %s29 = sphi 0, %s25
    %s51 = sphi 0, %s53
    %s54 = sphi 0, %s51
    %s55 = sphi 0, %s54
    %s71 = sphi 0, %s55
    %s79 = sphi 0, %s81
    %s82 = sphi 0, %s79
    %s83 = sphi 0, %s82
    %s99 = sphi 0, %s83
    %s105 = sphi 0, %s107
    %s108 = sphi 0, %s105
    %s109 = sphi 0, %s108
    %s125 = sphi 0, %s109
    %s131 = sphi 0, %s133
    %s134 = sphi 0, %s131
    %s135 = sphi 0, %s134
    %s151 = sphi 0, %s135
    %s159 = sphi 0, %s161
    %s162 = sphi 0, %s159
    %s163 = sphi 0, %s162
    %s179 = sphi 0, %s163
    %s189 = sphi 0, %s191
    %s192 = sphi 0, %s189
    %s193 = sphi 0, %s192
    %s209 = sphi 0, %s193
  $region4: #{_lambda_.13} parent=0 // loop_header_branch
    %14 = sbr.rel (%p12) target = $region8
  $region5: #{_lambda_.13} parent=0 // loop_body
    %s16 = ssub.s32 %s11, 1
    %s17 = ssub.s32 %s11, 2
    %s30 = sadd.s32 1, %s21
    %p31 = scmp.ge.s32.totalorder %s30, 1
    %s32 = scalar_select %p31, 0, %s30
    %s33 = sadd.s32 1, %s20
    %s34 = scalar_select %p31, %s33, %s20
    %p35 = scmp.ge.s32.totalorder %s34, 1
    %s36 = scalar_select %p35, 0, %s34
    %s37 = sadd.s32 1, %s19
    %s38 = scalar_select %p35, %s37, %s19
    %p39 = scmp.ge.s32.totalorder %s38, 1
    %s40 = scalar_select %p39, 0, %s38
    %s41 = sadd.s32 1, %s18
    %s42 = scalar_select %p39, %s41, %s18
    %p43 = scmp.ge.s32.totalorder %s42, 2
    %s44 = scalar_select %p43, 0, %s42
    %s45 = ssub.s32 %s18, %s44
    %s46 = ssub.s32 %s19, %s40
    %s47 = sor.u32 %s45, %s46
    %s48 = ssub.s32 %s21, %s32
    %s49 = sor.u32 %s47, %s48
    %p50 = scmp.eq.s32.totalorder %s49, 0
    %s52 = sadd.s32 %s51, 1
    %s53 = scalar_select %p50, %s51, %s52
    %p56 = pneg %p50
    %p57 = scmp.eq.s32.totalorder %s11, 1
    %p58 = por %p56, %p57
    %p59 = scmp.ne.s32.totalorder %s51, %s54
    %p60 = scmp.eq.s32.totalorder %s11, 0
    %p61 = por %p59, %p60
    %p62 = scmp.ne.s32.totalorder %s51, %s54
    %p63 = scmp.eq.s32.totalorder %s16, 1
    %p64 = por %p62, %p63
    %p65 = scmp.ne.s32.totalorder %s54, %s55
    %p66 = scmp.eq.s32.totalorder %s16, 0
    %p67 = por %p65, %p66
    %p68 = scmp.ne.s32.totalorder %s54, %s55
    %p69 = scmp.eq.s32.totalorder %s17, 1
    %p70 = por %p68, %p69
    %p72 = scmp.ne.s32.totalorder %s55, %s71
    %p73 = scmp.eq.s32.totalorder %s17, 0
    %p74 = por %p72, %p73
    %s75 = ssub.s32 %s21, %s32
    %s76 = ssub.s32 %s20, %s36
    %s77 = sor.u32 %s75, %s76
    %p78 = scmp.eq.s32.totalorder %s77, 0
    %s80 = sadd.s32 %s79, 1
    %s81 = scalar_select %p78, %s79, %s80
    %p84 = pneg %p78
    %p85 = scmp.eq.s32.totalorder %s11, 1
    %p86 = por %p84, %p85
    %p87 = scmp.ne.s32.totalorder %s79, %s82
    %p88 = scmp.eq.s32.totalorder %s11, 0
    %p89 = por %p87, %p88
    %p90 = scmp.ne.s32.totalorder %s79, %s82
    %p91 = scmp.eq.s32.totalorder %s16, 1
    %p92 = por %p90, %p91
    %p93 = scmp.ne.s32.totalorder %s82, %s83
    %p94 = scmp.eq.s32.totalorder %s16, 0
    %p95 = por %p93, %p94
    %p96 = scmp.ne.s32.totalorder %s82, %s83
    %p97 = scmp.eq.s32.totalorder %s17, 1
    %p98 = por %p96, %p97
    %p100 = scmp.ne.s32.totalorder %s83, %s99
    %p101 = scmp.eq.s32.totalorder %s17, 0
    %p102 = por %p100, %p101
    %s103 = ssub.s32 %s20, %s36
    %p104 = scmp.eq.s32.totalorder %s103, 0
    %s106 = sadd.s32 %s105, 1
    %s107 = scalar_select %p104, %s105, %s106
    %p110 = pneg %p104
    %p111 = scmp.eq.s32.totalorder %s11, 1
    %p112 = por %p110, %p111
    %p113 = scmp.ne.s32.totalorder %s105, %s108
    %p114 = scmp.eq.s32.totalorder %s11, 0
    %p115 = por %p113, %p114
    %p116 = scmp.ne.s32.totalorder %s105, %s108
    %p117 = scmp.eq.s32.totalorder %s16, 1
    %p118 = por %p116, %p117
    %p119 = scmp.ne.s32.totalorder %s108, %s109
    %p120 = scmp.eq.s32.totalorder %s16, 0
    %p121 = por %p119, %p120
    %p122 = scmp.ne.s32.totalorder %s108, %s109
    %p123 = scmp.eq.s32.totalorder %s17, 1
    %p124 = por %p122, %p123
    %p126 = scmp.ne.s32.totalorder %s109, %s125
    %p127 = scmp.eq.s32.totalorder %s17, 0
    %p128 = por %p126, %p127
    %s129 = ssub.s32 %s20, %s36
    %p130 = scmp.eq.s32.totalorder %s129, 0
    %s132 = sadd.s32 %s131, 1
    %s133 = scalar_select %p130, %s131, %s132
    %p136 = pneg %p130
    %p137 = scmp.eq.s32.totalorder %s11, 1
    %p138 = por %p136, %p137
    %p139 = scmp.ne.s32.totalorder %s131, %s134
    %p140 = scmp.eq.s32.totalorder %s11, 0
    %p141 = por %p139, %p140
    %p142 = scmp.ne.s32.totalorder %s131, %s134
    %p143 = scmp.eq.s32.totalorder %s16, 1
    %p144 = por %p142, %p143
    %p145 = scmp.ne.s32.totalorder %s134, %s135
    %p146 = scmp.eq.s32.totalorder %s16, 0
    %p147 = por %p145, %p146
    %p148 = scmp.ne.s32.totalorder %s134, %s135
    %p149 = scmp.eq.s32.totalorder %s17, 1
    %p150 = por %p148, %p149
    %p152 = scmp.ne.s32.totalorder %s135, %s151
    %p153 = scmp.eq.s32.totalorder %s17, 0
    %p154 = por %p152, %p153
    %s155 = ssub.s32 %s18, %s44
    %s156 = ssub.s32 %s21, %s32
    %s157 = sor.u32 %s155, %s156
    %p158 = scmp.eq.s32.totalorder %s157, 0
    %s160 = sadd.s32 %s159, 1
    %s161 = scalar_select %p158, %s159, %s160
    %p164 = pneg %p158
    %p165 = scmp.eq.s32.totalorder %s11, 1
    %p166 = por %p164, %p165
    %p167 = scmp.ne.s32.totalorder %s159, %s162
    %p168 = scmp.eq.s32.totalorder %s11, 0
    %p169 = por %p167, %p168
    %p170 = scmp.ne.s32.totalorder %s159, %s162
    %p171 = scmp.eq.s32.totalorder %s16, 1
    %p172 = por %p170, %p171
    %p173 = scmp.ne.s32.totalorder %s162, %s163
    %p174 = scmp.eq.s32.totalorder %s16, 0
    %p175 = por %p173, %p174
    %p176 = scmp.ne.s32.totalorder %s162, %s163
    %p177 = scmp.eq.s32.totalorder %s17, 1
    %p178 = por %p176, %p177
    %p180 = scmp.ne.s32.totalorder %s163, %s179
    %p181 = scmp.eq.s32.totalorder %s17, 0
    %p182 = por %p180, %p181
    %s183 = ssub.s32 %s18, %s44
    %s184 = ssub.s32 %s19, %s40
    %s185 = sor.u32 %s183, %s184
    %s186 = ssub.s32 %s20, %s36
    %s187 = sor.u32 %s185, %s186
    %p188 = scmp.eq.s32.totalorder %s187, 0
    %s190 = sadd.s32 %s189, 1
    %s191 = scalar_select %p188, %s189, %s190
    %p194 = pneg %p188
    %p195 = scmp.eq.s32.totalorder %s11, 1
    %p196 = por %p194, %p195
    %p197 = scmp.ne.s32.totalorder %s189, %s192
    %p198 = scmp.eq.s32.totalorder %s11, 0
    %p199 = por %p197, %p198
    %p200 = scmp.ne.s32.totalorder %s189, %s192
    %p201 = scmp.eq.s32.totalorder %s16, 1
    %p202 = por %p200, %p201
    %p203 = scmp.ne.s32.totalorder %s192, %s193
    %p204 = scmp.eq.s32.totalorder %s16, 0
    %p205 = por %p203, %p204
    %p206 = scmp.ne.s32.totalorder %s192, %s193
    %p207 = scmp.eq.s32.totalorder %s17, 1
    %p208 = por %p206, %p207
    %p210 = scmp.ne.s32.totalorder %s193, %s209
    %p211 = scmp.eq.s32.totalorder %s17, 0
    %p212 = por %p210, %p211
    %p213 = scmp.le.s32.totalorder 1, %s11
    %p214 = scmp.lt.s32.totalorder %s11, 3
    %p215 = pnand %p213, %p214
    %p216 = pneg %p215
    // Predicated region
    $region9: #{_lambda_.13} parent=5 // pred_check
      _
    $region10: #{_lambda_.13} parent=5 // pred_check_branch
      %218 = sbr.rel (%p215) target = $region12
    $region11: #{_lambda_.13} parent=5 // pred_region
      %s219 = ssub.s32 %s11, 1
      // Predicated region
      $region13: #{_lambda_.13} parent=11 // pred_check
        %p220 = pneg %p95
      $region14: #{_lambda_.13} parent=11 // pred_check_branch
        %222 = sbr.rel (%p220) target = $region16
      $region15: #{_lambda_.13} parent=11 // pred_region
        %s223 = smul.u32 16, %s25
        %p224 = scmp.lt.s32.totalorder %s223, 15
        %s225 = scalar_select %p224, %s223, 15
        %p226 = scmp.lt.s32.totalorder %s24, 0
        %s227 = scalar_select %p226, %s24, 0
        %s228 = sadd.s32 %s227, %s225
        %s229 = smul.addr %s228, 4
        %s230 = scalar_lea.vmem %s1, %s229
        %s231 = smul.u32 16, %s25
      $region16: #{_lambda_.13} parent=11 // pred_fallthru
        _
      // Predicated region
      $region17: #{_lambda_.13} parent=11 // pred_check
        %p232 = pneg %p121
      $region18: #{_lambda_.13} parent=11 // pred_check_branch
        %234 = sbr.rel (%p232) target = $region20
      $region19: #{_lambda_.13} parent=11 // pred_region
        %p235 = scmp.lt.s32.totalorder %s24, 0
        %s236 = scalar_select %p235, %s24, 0
        %s237 = scalar_lea.vmem %s2, %s236
      $region20: #{_lambda_.13} parent=11 // pred_fallthru
        _
      // Predicated region
      $region21: #{_lambda_.13} parent=11 // pred_check
        %p238 = pneg %p147
      $region22: #{_lambda_.13} parent=11 // pred_check_branch
        %240 = sbr.rel (%p238) target = $region24
      $region23: #{_lambda_.13} parent=11 // pred_region
        %p241 = scmp.lt.s32.totalorder %s24, 0
        %s242 = scalar_select %p241, %s24, 0
        %s243 = scalar_lea.vmem %s3, %s242
      $region24: #{_lambda_.13} parent=11 // pred_fallthru
        _
    $region12: #{_lambda_.13} parent=5 // pred_fallthru
      _
    %p244 = scmp.lt.s32.totalorder %s11, 2
    // Predicated region
    $region25: #{_lambda_.13} parent=5 // pred_check
      %p245 = pneg %p244
    $region26: #{_lambda_.13} parent=5 // pred_check_branch
      %247 = sbr.rel (%p245) target = $region28
    $region27: #{_lambda_.13} parent=5 // pred_region
      // Predicated region
      $region29: #{_lambda_.13} parent=27 // pred_check
        %p248 = pneg %p61
      $region30: #{_lambda_.13} parent=27 // pred_check_branch
        %250 = sbr.rel (%p248) target = $region32
      $region31: #{_lambda_.13} parent=27 // pred_region
        %s251 = smul.u32 8, %s19
        %p252 = scmp.lt.s32.totalorder %s18, 1
        %s253 = scalar_select %p252, %s18, 1
        %p254 = scmp.lt.s32.totalorder %s251, 7
        %s255 = scalar_select %p254, %s251, 7
        %p256 = scmp.lt.s32.totalorder %s21, 0
        %s257 = scalar_select %p256, %s21, 0
        %s258 = sadd.s32 %s257, %s255
        %s259 = smul.addr %s253, 8
        %s260 = sadd.s32 %s258, %s259
        %s261 = smul.addr %s260, 4
        %s262 = scalar_lea.vmem %s0, %s261
        %s263 = smul.u32 8, %s19
      $region32: #{_lambda_.13} parent=27 // pred_fallthru
        _
      // Predicated region
      $region33: #{_lambda_.13} parent=27 // pred_check
        %p264 = pneg %p169
      $region34: #{_lambda_.13} parent=27 // pred_check_branch
        %266 = sbr.rel (%p264) target = $region36
      $region35: #{_lambda_.13} parent=27 // pred_region
        %p267 = scmp.lt.s32.totalorder %s18, 1
        %s268 = scalar_select %p267, %s18, 1
        %p269 = scmp.lt.s32.totalorder %s21, 0
        %s270 = scalar_select %p269, %s21, 0
        %s271 = sadd.s32 %s270, %s268
        %s272 = scalar_lea.vmem %s4, %s271
      $region36: #{_lambda_.13} parent=27 // pred_fallthru
        _
    $region28: #{_lambda_.13} parent=5 // pred_fallthru
      _
    %p273 = scmp.le.s32.totalorder 1, %s11
    %p274 = scmp.lt.s32.totalorder %s11, 3
    %p275 = pnand %p273, %p274
    %p276 = pneg %p275
    // Predicated region
    $region37: #{_lambda_.13} parent=5 // pred_check
      _
    $region38: #{_lambda_.13} parent=5 // pred_check_branch
      %278 = sbr.rel (%p275) target = $region40
    $region39: #{_lambda_.13} parent=5 // pred_region
      %s279 = ssub.s32 %s11, 1
      %s280 = smul.u32 8, %s23
      %p281 = scmp.lt.s32.totalorder %s22, 1
      %s282 = scalar_select %p281, %s22, 1
      %p283 = scmp.lt.s32.totalorder %s280, 7
      %s284 = scalar_select %p283, %s280, 7
      %p285 = scmp.lt.s32.totalorder %s25, 0
      %s286 = scalar_select %p285, %s25, 0
      %s287 = sadd.s32 %s286, %s284
      %s288 = smul.addr %s282, 8
      %s289 = sadd.s32 %s287, %s288
      %s290 = smul.addr %s289, 4
      %s291 = scalar_lea.vmem %s0, %s290
      %p292 = pneg %p67
      %p293 = pneg %p64
      %s294 = smul.u32 16, %s25
      %p295 = scmp.lt.s32.totalorder %s294, 15
      %s296 = scalar_select %p295, %s294, 15
      %p297 = scmp.lt.s32.totalorder %s24, 0
      %s298 = scalar_select %p297, %s24, 0
      %s299 = sadd.s32 %s298, %s296
      %s300 = smul.addr %s299, 4
      %s301 = scalar_lea.vmem %s1, %s300
      %p302 = pneg %p95
      %p303 = pneg %p92
      %p304 = scmp.lt.s32.totalorder %s24, 0
      %s305 = scalar_select %p304, %s24, 0
      %s306 = scalar_lea.vmem %s2, %s305
      %p307 = pneg %p121
      %p308 = pneg %p118
      %p309 = scmp.lt.s32.totalorder %s24, 0
      %s310 = scalar_select %p309, %s24, 0
      %s311 = scalar_lea.vmem %s3, %s310
      %p312 = pneg %p147
      %p313 = pneg %p144
      %p314 = scmp.lt.s32.totalorder %s22, 1
      %s315 = scalar_select %p314, %s22, 1
      %p316 = scmp.lt.s32.totalorder %s25, 0
      %s317 = scalar_select %p316, %s25, 0
      %s318 = sadd.s32 %s317, %s315
      %s319 = scalar_lea.vmem %s4, %s318
      %p320 = pneg %p175
      %p321 = pneg %p172
      %p322 = pneg %p205
      %p323 = pneg %p202
      %s324 = smul.u32 8, %s23
      %p325 = scmp.lt.s32.totalorder %s22, 1
      %s326 = scalar_select %p325, %s22, 1
      %p327 = scmp.lt.s32.totalorder %s324, 7
      %s328 = scalar_select %p327, %s324, 7
      %p329 = scmp.lt.s32.totalorder %s24, 0
      %s330 = scalar_select %p329, %s24, 0
      %s331 = sadd.s32 %s330, %s328
      %s332 = smul.addr %s326, 8
      %s333 = sadd.s32 %s331, %s332
      %s334 = smul.addr %s333, 4
      %s335 = scalar_lea.vmem %s5, %s334
      %s336 = smul.u32 8, %s23
      %p337 = scmp.lt.s32.totalorder %s22, 1
      %s338 = scalar_select %p337, %s22, 1
      %p339 = scmp.lt.s32.totalorder %s336, 7
      %s340 = scalar_select %p339, %s336, 7
      %p341 = scmp.lt.s32.totalorder %s25, 0
      %s342 = scalar_select %p341, %s25, 0
      %s343 = sadd.s32 %s342, %s340
      %s344 = smul.addr %s338, 8
      %s345 = sadd.s32 %s343, %s344
      %s346 = smul.addr %s345, 4
      %s347 = scalar_lea.vmem %s0, %s346
      %s348 = smul.u32 8, %s23
      %s349 = smul.u32 16, %s25
      %p350 = scmp.lt.s32.totalorder %s349, 15
      %s351 = scalar_select %p350, %s349, 15
      %p352 = scmp.lt.s32.totalorder %s24, 0
      %s353 = scalar_select %p352, %s24, 0
      %s354 = sadd.s32 %s353, %s351
      %s355 = smul.addr %s354, 4
      %s356 = scalar_lea.vmem %s1, %s355
      %s357 = smul.u32 16, %s25
      %p358 = scmp.lt.s32.totalorder %s24, 0
      %s359 = scalar_select %p358, %s24, 0
      %s360 = scalar_lea.vmem %s2, %s359
      %p361 = scmp.lt.s32.totalorder %s24, 0
      %s362 = scalar_select %p361, %s24, 0
      %s363 = scalar_lea.vmem %s3, %s362
      %p364 = scmp.lt.s32.totalorder %s22, 1
      %s365 = scalar_select %p364, %s22, 1
      %p366 = scmp.lt.s32.totalorder %s25, 0
      %s367 = scalar_select %p366, %s25, 0
      %s368 = sadd.s32 %s367, %s365
      %s369 = scalar_lea.vmem %s4, %s368
      %s370 = smul.u32 8, %s23
      %p371 = scmp.lt.s32.totalorder %s22, 1
      %s372 = scalar_select %p371, %s22, 1
      %p373 = scmp.lt.s32.totalorder %s370, 7
      %s374 = scalar_select %p373, %s370, 7
      %p375 = scmp.lt.s32.totalorder %s24, 0
      %s376 = scalar_select %p375, %s24, 0
      %s377 = sadd.s32 %s376, %s374
      %s378 = smul.addr %s372, 8
      %s379 = sadd.s32 %s377, %s378
      %s380 = smul.addr %s379, 4
      %s381 = scalar_lea.vmem %s5, %s380
      %s382 = smul.u32 8, %s23
      %v384 = vld [vmem:[%s347] sm:$0xf]
      %v385 = vld [vmem:[%s347 + $0x4] sm:$0xf]
      %v386 = vld [vmem:[%s347 + $0x8] sm:$0xf]
      %v387 = vld [vmem:[%s347 + $0xc] sm:$0xf]
      %v388 = vld [vmem:[%s347 + $0x10] sm:$0xf]
      %v389 = vld [vmem:[%s347 + $0x14] sm:$0xf]
      %v390 = vld [vmem:[%s347 + $0x18] sm:$0xf]
      %v391 = vld [vmem:[%s347 + $0x1c] sm:$0xf]
      %v392 = vld [vmem:[%s369] sm:$0x1]
      %v393 = vpack.c.bf16 %v392, %v392
      %v395 = vpack.i.b16 %v393, %v393
      %v397 = vlaneseq
      %v398 = vshrl.u32 %v397, 7
      %v399 = vsub.s32 0, %v398
      %v400 = vrot.slane %v395, %v399
      %v402 = vunpack.c.l.b16 %v400
      %v403 = vpack.c.b16 %v402, %v402
      %v405 = vmul.bf16 %v384, %v403
      %v406 = vmul.bf16 %v385, %v403
      %v407 = vmul.bf16 %v386, %v403
      %v408 = vmul.bf16 %v387, %v403
      %v409 = vmul.bf16 %v388, %v403
      %v410 = vmul.bf16 %v389, %v403
      %v411 = vmul.bf16 %v390, %v403
      %v412 = vmul.bf16 %v391, %v403
      %v413 = vld [vmem:[%s356] sm:$0xf]
      %v414 = vld [vmem:[%s356 + $0x4] sm:$0xf]
      %v415 = vld [vmem:[%s356 + $0x8] sm:$0xf]
      %v416 = vld [vmem:[%s356 + $0xc] sm:$0xf]
      %v417 = vld [vmem:[%s356 + $0x10] sm:$0xf]
      %v418 = vld [vmem:[%s356 + $0x14] sm:$0xf]
      %v419 = vld [vmem:[%s356 + $0x18] sm:$0xf]
      %v420 = vld [vmem:[%s356 + $0x1c] sm:$0xf]
      %v421 = vld [vmem:[%s356 + $0x20] sm:$0xf]
      %v422 = vld [vmem:[%s356 + $0x24] sm:$0xf]
      %v423 = vld [vmem:[%s356 + $0x28] sm:$0xf]
      %v424 = vld [vmem:[%s356 + $0x2c] sm:$0xf]
      %v425 = vld [vmem:[%s356 + $0x30] sm:$0xf]
      %v426 = vld [vmem:[%s356 + $0x34] sm:$0xf]
      %v427 = vld [vmem:[%s356 + $0x38] sm:$0xf]
      %v428 = vld [vmem:[%s356 + $0x3c] sm:$0xf]
      %v437 = vunpack.c.l.b16 %v405
      %v438 = vunpack.c.l.b16 %v406
      %v439 = vunpack.c.l.b16 %v407
      %v440 = vunpack.c.l.b16 %v408
      %v441 = vunpack.c.l.b16 %v409
      %v442 = vunpack.c.l.b16 %v410
      %v443 = vunpack.c.l.b16 %v411
      %v444 = vunpack.c.l.b16 %v412
      %v445 = vpack.c.b16 %v438, %v437
      %v446 = vpack.c.b16 %v440, %v439
      %v447 = vpack.c.b16 %v442, %v441
      %v448 = vpack.c.b16 %v444, %v443
      %v469 = vunpack.c.l.b16 %v413
      %v470 = vunpack.c.l.b16 %v414
      %v471 = vunpack.c.l.b16 %v415
      %v472 = vunpack.c.l.b16 %v416
      %v473 = vunpack.c.l.b16 %v417
      %v474 = vunpack.c.l.b16 %v418
      %v475 = vunpack.c.l.b16 %v419
      %v476 = vunpack.c.l.b16 %v420
      %v477 = vunpack.c.l.b16 %v421
      %v478 = vunpack.c.l.b16 %v422
      %v479 = vunpack.c.l.b16 %v423
      %v480 = vunpack.c.l.b16 %v424
      %v481 = vunpack.c.l.b16 %v425
      %v482 = vunpack.c.l.b16 %v426
      %v483 = vunpack.c.l.b16 %v427
      %v484 = vunpack.c.l.b16 %v428
      %v485 = vpack.c.b16 %v470, %v469
      %v486 = vpack.c.b16 %v472, %v471
      %v487 = vpack.c.b16 %v474, %v473
      %v488 = vpack.c.b16 %v476, %v475
      %v489 = vpack.c.b16 %v478, %v477
      %v490 = vpack.c.b16 %v480, %v479
      %v491 = vpack.c.b16 %v482, %v481
      %v492 = vpack.c.b16 %v484, %v483
      %501 = vmatprep.subr.bf16.mxu0 0
      %502 = vmatpush1.bf16.msra.mxu0 %v485
      %503 = vmatprep.subr.bf16.mxu0 0
      %504 = vmatpush1.bf16.msra.mxu0 %v486
      %505 = vmatprep.subr.bf16.mxu0 0
      %506 = vmatpush1.bf16.msra.mxu0 %v487
      %507 = vmatprep.subr.bf16.mxu0 0
      %508 = vmatpush1.bf16.msra.mxu0 %v488
      %509 = vmatprep.subr.bf16.mxu0 0
      %510 = vmatpush1.bf16.msra.mxu0 %v489
      %511 = vmatprep.subr.bf16.mxu0 0
      %512 = vmatpush1.bf16.msra.mxu0 %v490
      %513 = vmatprep.subr.bf16.mxu0 0
      %514 = vmatpush1.bf16.msra.mxu0 %v491
      %515 = vmatprep.subr.bf16.mxu0 0
      %516 = vmatpush1.bf16.msra.mxu0 %v492
      %517 = vmatprep.subr.bf16.mxu0 0
      %518 = vmatpush1.bf16.msra.mxu0 0
      %519 = vmatprep.subr.bf16.mxu0 0
      %520 = vmatpush1.bf16.msra.mxu0 0
      %521 = vmatprep.subr.bf16.mxu0 0
      %522 = vmatpush1.bf16.msra.mxu0 0
      %523 = vmatprep.subr.bf16.mxu0 0
      %524 = vmatpush1.bf16.msra.mxu0 0
      %525 = vmatprep.subr.bf16.mxu0 0
      %526 = vmatpush1.bf16.msra.mxu0 0
      %527 = vmatprep.subr.bf16.mxu0 0
      %528 = vmatpush1.bf16.msra.mxu0 0
      %529 = vmatprep.subr.bf16.mxu0 0
      %530 = vmatpush1.bf16.msra.mxu0 0
      %531 = vmatprep.subr.bf16.mxu0 0
      %532 = vmatpush1.bf16.msra.mxu0 0
      %533 = vmatprep.mubr.bf16.mxu0 0
      %534 = vmatmul.mubr.bf16.gmra.mrb[0].mxu0 %v445
      %v535 = vpop.f32.mrb[0].mxu0
      %v536 = vadd.f32 0.0, %v535
      %v537 = vpop.f32.mrb[0].mxu0
      %v538 = vpop.f32.mrb[0].mxu0
      %v539 = vadd.f32 0.0, %v538
      %v540 = vpop.f32.mrb[0].mxu0
      %541 = vmatprep.mubr.bf16.mxu0 0
      %542 = vmatmul.mubr.bf16.gmra.mrb[0].mxu0 %v446
      %v543 = vpop.f32.mrb[0].mxu0
      %v544 = vadd.f32 0.0, %v543
      %v545 = vpop.f32.mrb[0].mxu0
      %v546 = vpop.f32.mrb[0].mxu0
      %v547 = vadd.f32 0.0, %v546
      %v548 = vpop.f32.mrb[0].mxu0
      %549 = vmatprep.mubr.bf16.mxu0 0
      %550 = vmatmul.mubr.bf16.gmra.mrb[0].mxu0 %v447
      %v551 = vpop.f32.mrb[0].mxu0
      %v552 = vadd.f32 0.0, %v551
      %v553 = vpop.f32.mrb[0].mxu0
      %v554 = vpop.f32.mrb[0].mxu0
      %v555 = vadd.f32 0.0, %v554
      %v556 = vpop.f32.mrb[0].mxu0
      %557 = vmatprep.mubr.bf16.mxu0 0
      %558 = vmatmul.mubr.bf16.gmra.mrb[0].mxu0 %v448
      %v559 = vpop.f32.mrb[0].mxu0
      %v560 = vadd.f32 0.0, %v559
      %v561 = vpop.f32.mrb[0].mxu0
      %v562 = vpop.f32.mrb[0].mxu0
      %v563 = vadd.f32 0.0, %v562
      %v564 = vpop.f32.mrb[0].mxu0
      %565 = vdwg.mxu0
      %v566 = vld [vmem:[%s360] sm:$0x1]
      %v568 = vlaneseq
      %v569 = vshrl.u32 %v568, 7
      %v570 = vsub.s32 0, %v569
      %v571 = vrot.slane %v566, %v570
      %v573 = vmul.f32 %v536, %v571
      %v574 = vmul.f32 %v539, %v571
      %v575 = vmul.f32 %v544, %v571
      %v576 = vmul.f32 %v547, %v571
      %v577 = vmul.f32 %v552, %v571
      %v578 = vmul.f32 %v555, %v571
      %v579 = vmul.f32 %v560, %v571
      %v580 = vmul.f32 %v563, %v571
      %v581 = vld [vmem:[%s363] sm:$0x1]
      %v583 = vlaneseq
      %v584 = vshrl.u32 %v583, 7
      %v585 = vsub.s32 0, %v584
      %v586 = vrot.slane %v581, %v585
      %v588 = vadd.f32 %v573, %v586
      %v589 = vadd.f32 %v574, %v586
      %v590 = vadd.f32 %v575, %v586
      %v591 = vadd.f32 %v576, %v586
      %v592 = vadd.f32 %v577, %v586
      %v593 = vadd.f32 %v578, %v586
      %v594 = vadd.f32 %v579, %v586
      %v595 = vadd.f32 %v580, %v586
      %v596 = vpack.c.bf16 %v589, %v588
      %v597 = vpack.c.bf16 %v591, %v590
      %v598 = vpack.c.bf16 %v593, %v592
      %v599 = vpack.c.bf16 %v595, %v594
      %v604 = vunpack.c.l.b16 %v596
      %v605 = vunpack.c.h.b16 %v596
      %v606 = vunpack.c.l.b16 %v597
      %v607 = vunpack.c.h.b16 %v597
      %v608 = vunpack.c.l.b16 %v598
      %v609 = vunpack.c.h.b16 %v598
      %v610 = vunpack.c.l.b16 %v599
      %v611 = vunpack.c.h.b16 %v599
      %v612 = vpack.c.b16 %v604, %v604
      %v613 = vpack.c.b16 %v605, %v605
      %v614 = vpack.c.b16 %v606, %v606
      %v615 = vpack.c.b16 %v607, %v607
      %v616 = vpack.c.b16 %v608, %v608
      %v617 = vpack.c.b16 %v609, %v609
      %v618 = vpack.c.b16 %v610, %v610
      %v619 = vpack.c.b16 %v611, %v611
      %628 = vst [vmem:[%s381] sm:$0xf] %v612
      %629 = vst [vmem:[%s381 + $0x4] sm:$0xf] %v613
      %630 = vst [vmem:[%s381 + $0x8] sm:$0xf] %v614
      %631 = vst [vmem:[%s381 + $0xc] sm:$0xf] %v615
      %632 = vst [vmem:[%s381 + $0x10] sm:$0xf] %v616
      %633 = vst [vmem:[%s381 + $0x14] sm:$0xf] %v617
      %634 = vst [vmem:[%s381 + $0x18] sm:$0xf] %v618
      %635 = vst [vmem:[%s381 + $0x1c] sm:$0xf] %v619
      %s636 = smul.u32 8, %s23
      %p637 = scmp.lt.s32.totalorder %s22, 1
      %s638 = scalar_select %p637, %s22, 1
      %p639 = scmp.lt.s32.totalorder %s636, 7
      %s640 = scalar_select %p639, %s636, 7
      %p641 = scmp.lt.s32.totalorder %s24, 0
      %s642 = scalar_select %p641, %s24, 0
      %s643 = sadd.s32 %s642, %s640
      %s644 = smul.addr %s638, 8
      %s645 = sadd.s32 %s643, %s644
      %s646 = smul.addr %s645, 4
      %s647 = scalar_lea.vmem %s5, %s646
      // Predicated region
      $region41: #{_lambda_.13} parent=39 // pred_check
        %p648 = pneg %p202
      $region42: #{_lambda_.13} parent=39 // pred_check_branch
        %650 = sbr.rel (%p648) target = $region44
      $region43: #{_lambda_.13} parent=39 // pred_region
        %s651 = smul.u32 8, %s23
      $region44: #{_lambda_.13} parent=39 // pred_fallthru
        _
    $region40: #{_lambda_.13} parent=5 // pred_fallthru
      _
    %p652 = scmp.le.s32.totalorder 2, %s11
    // Predicated region
    $region45: #{_lambda_.13} parent=5 // pred_check
      %p653 = pneg %p652
    $region46: #{_lambda_.13} parent=5 // pred_check_branch
      %655 = sbr.rel (%p653) target = $region48
    $region47: #{_lambda_.13} parent=5 // pred_region
      %s656 = ssub.s32 %s11, 2
      // Predicated region
      $region49: #{_lambda_.13} parent=47 // pred_check
        %p657 = pneg %p208
      $region50: #{_lambda_.13} parent=47 // pred_check_branch
        %659 = sbr.rel (%p657) target = $region52
      $region51: #{_lambda_.13} parent=47 // pred_region
        %s660 = smul.u32 8, %s27
        %p661 = scmp.lt.s32.totalorder %s26, 1
        %s662 = scalar_select %p661, %s26, 1
        %p663 = scmp.lt.s32.totalorder %s660, 7
        %s664 = scalar_select %p663, %s660, 7
        %p665 = scmp.lt.s32.totalorder %s28, 0
        %s666 = scalar_select %p665, %s28, 0
        %s667 = sadd.s32 %s666, %s664
        %s668 = smul.addr %s662, 8
        %s669 = sadd.s32 %s667, %s668
        %s670 = smul.addr %s669, 4
        %s671 = scalar_lea.vmem %s5, %s670
      $region52: #{_lambda_.13} parent=47 // pred_fallthru
        _
    $region48: #{_lambda_.13} parent=5 // pred_fallthru
      _
  $region6: #{_lambda_.13} parent=0 // loop_footer
    %s15 = sadd.s32 1, %s11
  $region7: #{_lambda_.13} parent=0 // loop_footer_branch
    %10 = sbr.rel target = $region3
  $region8: #{_lambda_.13} parent=0 // loop_exit
    _

// kernel: _lambda_.14
$region0: #{_lambda_.14}
  #allocation0 [shape = 'u32[]', space=smem, size = 0x4, offset = 0x4, fixed_abs, tag = 'smem constant byte address 0x4 - core index']
  #allocation1 [shape = 'u32[144,128]{1,0:T(1,128)}', space=vmem, size = 0x12000, scoped, tag = 'internal scratch']
  %s0 = inlined_call_operand.vmem [shape: bf16[128,128], index: 0, kind: input, shape index: {}]
  %s1 = inlined_call_operand.vmem [shape: bf16[128,128], index: 1, kind: input, shape index: {}]
  %s2 = inlined_call_operand.vmem [shape: f32[1,128], index: 2, kind: input, shape index: {}]
  %s3 = inlined_call_operand.vmem [shape: f32[1,128], index: 3, kind: input, shape index: {}]
  %s4 = inlined_call_operand.vmem [shape: bf16[128,128], index: 4, kind: output, shape index: {}]
  %s5 = sld [smem:[#allocation0]]
  $region26: #{_lambda_.14} parent=0
    _
  %s7 = ssub.s32 1, %s5
  %s8 = scalar_select 0, %s7, %s5
  // Predicated region
  $region2: #{_lambda_.14} parent=0 // pred_check
    _
  $region3: #{_lambda_.14} parent=0 // pred_check_branch
    %10 = sbr.rel (0) target = $region5
  $region4: #{_lambda_.14} parent=0 // pred_region
    _
  $region5: #{_lambda_.14} parent=0 // pred_fallthru
    _
  // Predicated region
  $region6: #{_lambda_.14} parent=0 // pred_check
    _
  $region7: #{_lambda_.14} parent=0 // pred_check_branch
    %12 = sbr.rel (0) target = $region9
  $region8: #{_lambda_.14} parent=0 // pred_region
    _
  $region9: #{_lambda_.14} parent=0 // pred_fallthru
    _
  // Predicated region
  $region10: #{_lambda_.14} parent=0 // pred_check
    _
  $region11: #{_lambda_.14} parent=0 // pred_check_branch
    %14 = sbr.rel (0) target = $region13
  $region12: #{_lambda_.14} parent=0 // pred_region
    _
  $region13: #{_lambda_.14} parent=0 // pred_fallthru
    _
  // Predicated region
  $region14: #{_lambda_.14} parent=0 // pred_check
    _
  $region15: #{_lambda_.14} parent=0 // pred_check_branch
    %16 = sbr.rel (0) target = $region17
  $region16: #{_lambda_.14} parent=0 // pred_region
    _
  $region17: #{_lambda_.14} parent=0 // pred_fallthru
    _
  %v18 = vld [vmem:[%s0] sm:$0xf]
  %v19 = vld [vmem:[%s0 + $0x4] sm:$0xf]
  %v20 = vld [vmem:[%s0 + $0x8] sm:$0xf]
  %v21 = vld [vmem:[%s0 + $0xc] sm:$0xf]
  %v22 = vld [vmem:[%s0 + $0x10] sm:$0xf]
  %v23 = vld [vmem:[%s0 + $0x14] sm:$0xf]
  %v24 = vld [vmem:[%s0 + $0x18] sm:$0xf]
  %v25 = vld [vmem:[%s0 + $0x1c] sm:$0xf]
  %v26 = vld [vmem:[%s0 + $0x20] sm:$0xf]
  %v27 = vld [vmem:[%s0 + $0x24] sm:$0xf]
  %v28 = vld [vmem:[%s0 + $0x28] sm:$0xf]
  %v29 = vld [vmem:[%s0 + $0x2c] sm:$0xf]
  %v30 = vld [vmem:[%s0 + $0x30] sm:$0xf]
  %v31 = vld [vmem:[%s0 + $0x34] sm:$0xf]
  %v32 = vld [vmem:[%s0 + $0x38] sm:$0xf]
  %v33 = vld [vmem:[%s0 + $0x3c] sm:$0xf]
  %v34 = vld [vmem:[%s1] sm:$0xf]
  %v35 = vld [vmem:[%s1 + $0x4] sm:$0xf]
  %v36 = vld [vmem:[%s1 + $0x8] sm:$0xf]
  %v37 = vld [vmem:[%s1 + $0xc] sm:$0xf]
  %v38 = vld [vmem:[%s1 + $0x10] sm:$0xf]
  %v39 = vld [vmem:[%s1 + $0x14] sm:$0xf]
  %v40 = vld [vmem:[%s1 + $0x18] sm:$0xf]
  %v41 = vld [vmem:[%s1 + $0x1c] sm:$0xf]
  %v42 = vld [vmem:[%s1 + $0x20] sm:$0xf]
  %v43 = vld [vmem:[%s1 + $0x24] sm:$0xf]
  %v44 = vld [vmem:[%s1 + $0x28] sm:$0xf]
  %v45 = vld [vmem:[%s1 + $0x2c] sm:$0xf]
  %v46 = vld [vmem:[%s1 + $0x30] sm:$0xf]
  %v47 = vld [vmem:[%s1 + $0x34] sm:$0xf]
  %v48 = vld [vmem:[%s1 + $0x38] sm:$0xf]
  %v49 = vld [vmem:[%s1 + $0x3c] sm:$0xf]
  %v66 = vunpack.c.l.b16 %v18
  %v67 = vunpack.c.l.b16 %v19
  %v68 = vunpack.c.l.b16 %v20
  %v69 = vunpack.c.l.b16 %v21
  %v70 = vunpack.c.l.b16 %v22
  %v71 = vunpack.c.l.b16 %v23
  %v72 = vunpack.c.l.b16 %v24
  %v73 = vunpack.c.l.b16 %v25
  %v74 = vunpack.c.l.b16 %v26
  %v75 = vunpack.c.l.b16 %v27
  %v76 = vunpack.c.l.b16 %v28
  %v77 = vunpack.c.l.b16 %v29
  %v78 = vunpack.c.l.b16 %v30
  %v79 = vunpack.c.l.b16 %v31
  %v80 = vunpack.c.l.b16 %v32
  %v81 = vunpack.c.l.b16 %v33
  %v82 = vpack.c.b16 %v67, %v66
  %v83 = vpack.c.b16 %v69, %v68
  %v84 = vpack.c.b16 %v71, %v70
  %v85 = vpack.c.b16 %v73, %v72
  %v86 = vpack.c.b16 %v75, %v74
  %v87 = vpack.c.b16 %v77, %v76
  %v88 = vpack.c.b16 %v79, %v78
  %v89 = vpack.c.b16 %v81, %v80
  %v114 = vunpack.c.l.b16 %v34
  %v115 = vunpack.c.l.b16 %v35
  %v116 = vunpack.c.l.b16 %v36
  %v117 = vunpack.c.l.b16 %v37
  %v118 = vunpack.c.l.b16 %v38
  %v119 = vunpack.c.l.b16 %v39
  %v120 = vunpack.c.l.b16 %v40
  %v121 = vunpack.c.l.b16 %v41
  %v122 = vunpack.c.l.b16 %v42
  %v123 = vunpack.c.l.b16 %v43
  %v124 = vunpack.c.l.b16 %v44
  %v125 = vunpack.c.l.b16 %v45
  %v126 = vunpack.c.l.b16 %v46
  %v127 = vunpack.c.l.b16 %v47
  %v128 = vunpack.c.l.b16 %v48
  %v129 = vunpack.c.l.b16 %v49
  %v130 = vpack.c.b16 %v115, %v114
  %v131 = vpack.c.b16 %v117, %v116
  %v132 = vpack.c.b16 %v119, %v118
  %v133 = vpack.c.b16 %v121, %v120
  %v134 = vpack.c.b16 %v123, %v122
  %v135 = vpack.c.b16 %v125, %v124
  %v136 = vpack.c.b16 %v127, %v126
  %v137 = vpack.c.b16 %v129, %v128
  %146 = vmatprep.subr.bf16.mxu0 0
  %147 = vmatpush1.bf16.msra.mxu0 %v130
  %148 = vmatprep.subr.bf16.mxu0 0
  %149 = vmatpush1.bf16.msra.mxu0 %v131
  %150 = vmatprep.subr.bf16.mxu0 0
  %151 = vmatpush1.bf16.msra.mxu0 %v132
  %152 = vmatprep.subr.bf16.mxu0 0
  %153 = vmatpush1.bf16.msra.mxu0 %v133
  %154 = vmatprep.subr.bf16.mxu0 0
  %155 = vmatpush1.bf16.msra.mxu0 %v134
  %156 = vmatprep.subr.bf16.mxu0 0
  %157 = vmatpush1.bf16.msra.mxu0 %v135
  %158 = vmatprep.subr.bf16.mxu0 0
  %159 = vmatpush1.bf16.msra.mxu0 %v136
  %160 = vmatprep.subr.bf16.mxu0 0
  %161 = vmatpush1.bf16.msra.mxu0 %v137
  %162 = vmatprep.subr.bf16.mxu0 0
  %163 = vmatpush1.bf16.msra.mxu0 0
  %164 = vmatprep.subr.bf16.mxu0 0
  %165 = vmatpush1.bf16.msra.mxu0 0
  %166 = vmatprep.subr.bf16.mxu0 0
  %167 = vmatpush1.bf16.msra.mxu0 0
  %168 = vmatprep.subr.bf16.mxu0 0
  %169 = vmatpush1.bf16.msra.mxu0 0
  %170 = vmatprep.subr.bf16.mxu0 0
  %171 = vmatpush1.bf16.msra.mxu0 0
  %172 = vmatprep.subr.bf16.mxu0 0
  %173 = vmatpush1.bf16.msra.mxu0 0
  %174 = vmatprep.subr.bf16.mxu0 0
  %175 = vmatpush1.bf16.msra.mxu0 0
  %176 = vmatprep.subr.bf16.mxu0 0
  %177 = vmatpush1.bf16.msra.mxu0 0
  %178 = vmatprep.mubr.bf16.mxu0 0
  %179 = vmatmul.mubr.bf16.gmra.mrb[0].mxu0 %v82
  %v180 = vpop.f32.mrb[0].mxu0
  %v181 = vadd.f32 0.0, %v180
  %v182 = vpop.f32.mrb[0].mxu0
  %v183 = vpop.f32.mrb[0].mxu0
  %v184 = vadd.f32 0.0, %v183
  %v185 = vpop.f32.mrb[0].mxu0
  %186 = vmatprep.mubr.bf16.mxu0 0
  %187 = vmatmul.mubr.bf16.gmra.mrb[0].mxu0 %v83
  %v188 = vpop.f32.mrb[0].mxu0
  %v189 = vadd.f32 0.0, %v188
  %v190 = vpop.f32.mrb[0].mxu0
  %v191 = vpop.f32.mrb[0].mxu0
  %v192 = vadd.f32 0.0, %v191
  %v193 = vpop.f32.mrb[0].mxu0
  %194 = vmatprep.mubr.bf16.mxu0 0
  %195 = vmatmul.mubr.bf16.gmra.mrb[0].mxu0 %v84
  %v196 = vpop.f32.mrb[0].mxu0
  %v197 = vadd.f32 0.0, %v196
  %v198 = vpop.f32.mrb[0].mxu0
  %v199 = vpop.f32.mrb[0].mxu0
  %v200 = vadd.f32 0.0, %v199
  %v201 = vpop.f32.mrb[0].mxu0
  %202 = vmatprep.mubr.bf16.mxu0 0
  %203 = vmatmul.mubr.bf16.gmra.mrb[0].mxu0 %v85
  %v204 = vpop.f32.mrb[0].mxu0
  %v205 = vadd.f32 0.0, %v204
  %v206 = vpop.f32.mrb[0].mxu0
  %v207 = vpop.f32.mrb[0].mxu0
  %v208 = vadd.f32 0.0, %v207
  %v209 = vpop.f32.mrb[0].mxu0
  %210 = vmatprep.mubr.bf16.mxu0 0
  %211 = vmatmul.mubr.bf16.gmra.mrb[0].mxu0 %v86
  %v212 = vpop.f32.mrb[0].mxu0
  %v213 = vadd.f32 0.0, %v212
  %v214 = vpop.f32.mrb[0].mxu0
  %v215 = vpop.f32.mrb[0].mxu0
  %v216 = vadd.f32 0.0, %v215
  %v217 = vpop.f32.mrb[0].mxu0
  %218 = vmatprep.mubr.bf16.mxu0 0
  %219 = vmatmul.mubr.bf16.gmra.mrb[0].mxu0 %v87
  %v220 = vpop.f32.mrb[0].mxu0
  %v221 = vadd.f32 0.0, %v220
  %v222 = vpop.f32.mrb[0].mxu0
  %v223 = vpop.f32.mrb[0].mxu0
  %v224 = vadd.f32 0.0, %v223
  %v225 = vpop.f32.mrb[0].mxu0
  %226 = vmatprep.mubr.bf16.mxu0 0
  %227 = vmatmul.mubr.bf16.gmra.mrb[0].mxu0 %v88
  %v228 = vpop.f32.mrb[0].mxu0
  %v229 = vadd.f32 0.0, %v228
  %v230 = vpop.f32.mrb[0].mxu0
  %v231 = vpop.f32.mrb[0].mxu0
  %v232 = vadd.f32 0.0, %v231
  %v233 = vpop.f32.mrb[0].mxu0
  %234 = vmatprep.mubr.bf16.mxu0 0
  %235 = vmatmul.mubr.bf16.gmra.mrb[0].mxu0 %v89
  %v236 = vpop.f32.mrb[0].mxu0
  %v237 = vadd.f32 0.0, %v236
  %v238 = vpop.f32.mrb[0].mxu0
  %v239 = vpop.f32.mrb[0].mxu0
  %v240 = vadd.f32 0.0, %v239
  %v241 = vpop.f32.mrb[0].mxu0
  %242 = vdwg.mxu0
  %v243 = vld [vmem:[%s2] sm:$0x1]
  %v245 = vlaneseq
  %v246 = vshrl.u32 %v245, 7
  %v247 = vsub.s32 0, %v246
  %v248 = vrot.slane %v243, %v247
  %v250 = vmul.f32 %v181, %v248
  %v251 = vmul.f32 %v184, %v248
  %v252 = vmul.f32 %v189, %v248
  %v253 = vmul.f32 %v192, %v248
  %v254 = vmul.f32 %v197, %v248
  %v255 = vmul.f32 %v200, %v248
  %v256 = vmul.f32 %v205, %v248
  %v257 = vmul.f32 %v208, %v248
  %v258 = vmul.f32 %v213, %v248
  %v259 = vmul.f32 %v216, %v248
  %v260 = vmul.f32 %v221, %v248
  %v261 = vmul.f32 %v224, %v248
  %v262 = vmul.f32 %v229, %v248
  %v263 = vmul.f32 %v232, %v248
  %v264 = vmul.f32 %v237, %v248
  %v265 = vmul.f32 %v240, %v248
  %v266 = vld [vmem:[%s3] sm:$0x1]
  %v268 = vlaneseq
  %v269 = vshrl.u32 %v268, 7
  %v270 = vsub.s32 0, %v269
  %v271 = vrot.slane %v266, %v270
  %v273 = vadd.f32 %v250, %v271
  %v274 = vadd.f32 %v251, %v271
  %v275 = vadd.f32 %v252, %v271
  %v276 = vadd.f32 %v253, %v271
  %v277 = vadd.f32 %v254, %v271
  %v278 = vadd.f32 %v255, %v271
  %v279 = vadd.f32 %v256, %v271
  %v280 = vadd.f32 %v257, %v271
  %v281 = vadd.f32 %v258, %v271
  %v282 = vadd.f32 %v259, %v271
  %v283 = vadd.f32 %v260, %v271
  %v284 = vadd.f32 %v261, %v271
  %v285 = vadd.f32 %v262, %v271
  %v286 = vadd.f32 %v263, %v271
  %v287 = vadd.f32 %v264, %v271
  %v288 = vadd.f32 %v265, %v271
  %v289 = vxor.u32 %v273, 2147483648
  %v290 = vxor.u32 %v274, 2147483648
  %v291 = vxor.u32 %v275, 2147483648
  %v292 = vxor.u32 %v276, 2147483648
  %v293 = vxor.u32 %v277, 2147483648
  %v294 = vxor.u32 %v278, 2147483648
  %v295 = vxor.u32 %v279, 2147483648
  %v296 = vxor.u32 %v280, 2147483648
  %v297 = vxor.u32 %v281, 2147483648
  %v298 = vxor.u32 %v282, 2147483648
  %v299 = vxor.u32 %v283, 2147483648
  %v300 = vxor.u32 %v284, 2147483648
  %v301 = vxor.u32 %v285, 2147483648
  %v302 = vxor.u32 %v286, 2147483648
  %v303 = vxor.u32 %v287, 2147483648
  %v304 = vxor.u32 %v288, 2147483648
  %v305 = vmul.f32 %v289, 1.442695
  %v306 = vpow.pop %v305
  %v307 = vmul.f32 %v290, 1.442695
  %v308 = vpow.pop %v307
  %v309 = vmul.f32 %v291, 1.442695
  %v310 = vpow.pop %v309
  %v311 = vmul.f32 %v292, 1.442695
  %v312 = vpow.pop %v311
  %v313 = vmul.f32 %v293, 1.442695
  %v314 = vpow.pop %v313
  %v315 = vmul.f32 %v294, 1.442695
  %v316 = vpow.pop %v315
  %v317 = vmul.f32 %v295, 1.442695
  %v318 = vpow.pop %v317
  %v319 = vmul.f32 %v296, 1.442695
  %v320 = vpow.pop %v319
  %v321 = vmul.f32 %v297, 1.442695
  %v322 = vpow.pop %v321
  %v323 = vmul.f32 %v298, 1.442695
  %v324 = vpow.pop %v323
  %v325 = vmul.f32 %v299, 1.442695
  %v326 = vpow.pop %v325
  %v327 = vmul.f32 %v300, 1.442695
  %v328 = vpow.pop %v327
  %v329 = vmul.f32 %v301, 1.442695
  %v330 = vpow.pop %v329
  %v331 = vmul.f32 %v302, 1.442695
  %v332 = vpow.pop %v331
  %v333 = vmul.f32 %v303, 1.442695
  %v334 = vpow.pop %v333
  %v335 = vmul.f32 %v304, 1.442695
  %v336 = vpow.pop %v335
  %v337 = vadd.f32 %v306, 1.0
  %v338 = vadd.f32 %v308, 1.0
  %v339 = vadd.f32 %v310, 1.0
  %v340 = vadd.f32 %v312, 1.0
  %v341 = vadd.f32 %v314, 1.0
  %v342 = vadd.f32 %v316, 1.0
  %v343 = vadd.f32 %v318, 1.0
  %v344 = vadd.f32 %v320, 1.0
  %v345 = vadd.f32 %v322, 1.0
  %v346 = vadd.f32 %v324, 1.0
  %v347 = vadd.f32 %v326, 1.0
  %v348 = vadd.f32 %v328, 1.0
  %v349 = vadd.f32 %v330, 1.0
  %v350 = vadd.f32 %v332, 1.0
  %v351 = vadd.f32 %v334, 1.0
  %v352 = vadd.f32 %v336, 1.0
  %v353 = vrcp.pop %v337
  %v354 = vmul.f32 1.0, %v353
  %v355 = vrcp.pop %v338
  %v356 = vmul.f32 1.0, %v355
  %v357 = vrcp.pop %v339
  %v358 = vmul.f32 1.0, %v357
  %v359 = vrcp.pop %v340
  %v360 = vmul.f32 1.0, %v359
  %v361 = vrcp.pop %v341
  %v362 = vmul.f32 1.0, %v361
  %v363 = vrcp.pop %v342
  %v364 = vmul.f32 1.0, %v363
  %v365 = vrcp.pop %v343
  %v366 = vmul.f32 1.0, %v365
  %v367 = vrcp.pop %v344
  %v368 = vmul.f32 1.0, %v367
  %v369 = vrcp.pop %v345
  %v370 = vmul.f32 1.0, %v369
  %v371 = vrcp.pop %v346
  %v372 = vmul.f32 1.0, %v371
  %v373 = vrcp.pop %v347
  %v374 = vmul.f32 1.0, %v373
  %v375 = vrcp.pop %v348
  %v376 = vmul.f32 1.0, %v375
  %v377 = vrcp.pop %v349
  %v378 = vmul.f32 1.0, %v377
  %v379 = vrcp.pop %v350
  %v380 = vmul.f32 1.0, %v379
  %v381 = vrcp.pop %v351
  %v382 = vmul.f32 1.0, %v381
  %v383 = vrcp.pop %v352
  %v384 = vmul.f32 1.0, %v383
  %v385 = vmul.f32 %v273, %v354
  %v386 = vmul.f32 %v274, %v356
  %v387 = vmul.f32 %v275, %v358
  %v388 = vmul.f32 %v276, %v360
  %v389 = vmul.f32 %v277, %v362
  %v390 = vmul.f32 %v278, %v364
  %v391 = vmul.f32 %v279, %v366
  %v392 = vmul.f32 %v280, %v368
  %v393 = vmul.f32 %v281, %v370
  %v394 = vmul.f32 %v282, %v372
  %v395 = vmul.f32 %v283, %v374
  %v396 = vmul.f32 %v284, %v376
  %v397 = vmul.f32 %v285, %v378
  %v398 = vmul.f32 %v286, %v380
  %v399 = vmul.f32 %v287, %v382
  %v400 = vmul.f32 %v288, %v384
  %v401 = vpack.c.bf16 %v386, %v385
  %v402 = vpack.c.bf16 %v388, %v387
  %v403 = vpack.c.bf16 %v390, %v389
  %v404 = vpack.c.bf16 %v392, %v391
  %v405 = vpack.c.bf16 %v394, %v393
  %v406 = vpack.c.bf16 %v396, %v395
  %v407 = vpack.c.bf16 %v398, %v397
  %v408 = vpack.c.bf16 %v400, %v399
  %v417 = vunpack.c.l.b16 %v401
  %v418 = vunpack.c.h.b16 %v401
  %v419 = vunpack.c.l.b16 %v402
  %v420 = vunpack.c.h.b16 %v402
  %v421 = vunpack.c.l.b16 %v403
  %v422 = vunpack.c.h.b16 %v403
  %v423 = vunpack.c.l.b16 %v404
  %v424 = vunpack.c.h.b16 %v404
  %v425 = vunpack.c.l.b16 %v405
  %v426 = vunpack.c.h.b16 %v405
  %v427 = vunpack.c.l.b16 %v406
  %v428 = vunpack.c.h.b16 %v406
  %v429 = vunpack.c.l.b16 %v407
  %v430 = vunpack.c.h.b16 %v407
  %v431 = vunpack.c.l.b16 %v408
  %v432 = vunpack.c.h.b16 %v408
  %v433 = vpack.c.b16 %v417, %v417
  %v434 = vpack.c.b16 %v418, %v418
  %v435 = vpack.c.b16 %v419, %v419
  %v436 = vpack.c.b16 %v420, %v420
  %v437 = vpack.c.b16 %v421, %v421
  %v438 = vpack.c.b16 %v422, %v422
  %v439 = vpack.c.b16 %v423, %v423
  %v440 = vpack.c.b16 %v424, %v424
  %v441 = vpack.c.b16 %v425, %v425
  %v442 = vpack.c.b16 %v426, %v426
  %v443 = vpack.c.b16 %v427, %v427
  %v444 = vpack.c.b16 %v428, %v428
  %v445 = vpack.c.b16 %v429, %v429
  %v446 = vpack.c.b16 %v430, %v430
  %v447 = vpack.c.b16 %v431, %v431
  %v448 = vpack.c.b16 %v432, %v432
  %465 = vst [vmem:[%s4] sm:$0xf] %v433
  %466 = vst [vmem:[%s4 + $0x4] sm:$0xf] %v434
  %467 = vst [vmem:[%s4 + $0x8] sm:$0xf] %v435
  %468 = vst [vmem:[%s4 + $0xc] sm:$0xf] %v436
  %469 = vst [vmem:[%s4 + $0x10] sm:$0xf] %v437
  %470 = vst [vmem:[%s4 + $0x14] sm:$0xf] %v438
  %471 = vst [vmem:[%s4 + $0x18] sm:$0xf] %v439
  %472 = vst [vmem:[%s4 + $0x1c] sm:$0xf] %v440
  %473 = vst [vmem:[%s4 + $0x20] sm:$0xf] %v441
  %474 = vst [vmem:[%s4 + $0x24] sm:$0xf] %v442
  %475 = vst [vmem:[%s4 + $0x28] sm:$0xf] %v443
  %476 = vst [vmem:[%s4 + $0x2c] sm:$0xf] %v444
  %477 = vst [vmem:[%s4 + $0x30] sm:$0xf] %v445
  %478 = vst [vmem:[%s4 + $0x34] sm:$0xf] %v446
  %479 = vst [vmem:[%s4 + $0x38] sm:$0xf] %v447
  %480 = vst [vmem:[%s4 + $0x3c] sm:$0xf] %v448
  // Predicated region
  $region18: #{_lambda_.14} parent=0 // pred_check
    _
  $region19: #{_lambda_.14} parent=0 // pred_check_branch
    %482 = sbr.rel (0) target = $region21
  $region20: #{_lambda_.14} parent=0 // pred_region
    _
  $region21: #{_lambda_.14} parent=0 // pred_fallthru
    _
  // Predicated region
  $region22: #{_lambda_.14} parent=0 // pred_check
    _
  $region23: #{_lambda_.14} parent=0 // pred_check_branch
    %484 = sbr.rel (0) target = $region25
  $region24: #{_lambda_.14} parent=0 // pred_region
    _
  $region25: #{_lambda_.14} parent=0 // pred_fallthru
    _

// kernel: _lambda_.12
$region0: #{_lambda_.12}
  #allocation0 [shape = 'u32[]', space=smem, size = 0x4, offset = 0x4, fixed_abs, tag = 'smem constant byte address 0x4 - core index']
  #allocation1 [shape = 'u32[144,128]{1,0:T(1,128)}', space=vmem, size = 0x12000, scoped, tag = 'internal scratch']
  #allocation2 [shape = 'bf16[10,10,128]{2,1,0:T(8,128)(2,1)}', space=vmem, size = 0xa000, scoped, tag = 'scratch operand']
  %s0 = inlined_call_operand.vmem [shape: bf16[2,8,8,128], index: 0, kind: input, shape index: {}]
  %s1 = inlined_call_operand.vmem [shape: f32[9,128], index: 1, kind: input, shape index: {}]
  %s2 = inlined_call_operand.vmem [shape: f32[1,128], index: 2, kind: input, shape index: {}]
  %s3 = inlined_call_operand.vmem [shape: f32[1,128], index: 3, kind: input, shape index: {}]
  %s4 = inlined_call_operand.vmem [shape: bf16[2,8,8,128], index: 4, kind: output, shape index: {0}]
  %s5 = inlined_call_operand.vmem [shape: f32[2,1,128], index: 5, kind: output, shape index: {1}]
  %6 = xla_tuple %s4, %s5
  %s7 = sld [smem:[#allocation0]]
  $region57: #{_lambda_.12} parent=0
    _
  %s9 = ssub.s32 1, %s7
  %s10 = scalar_select 0, %s9, %s7
  loop: start=0, step=1, limit=4
  $region2: #{_lambda_.12} parent=0 // loop_pre_header
    _
  $region3: #{_lambda_.12} parent=0 // loop_header
    %s12 = sphi 0, %s16
    %p13 = scmp.ge.s32.totalorder %s12, 4
    %s19 = sphi 0, %s31
    %s20 = sphi 0, %s27
    %s21 = sphi 0, %s19
    %s22 = sphi 0, %s20
    %s23 = sphi 0, %s21
    %s24 = sphi 0, %s22
    %s36 = sphi 0, %s38
    %s39 = sphi 0, %s36
    %s40 = sphi 0, %s39
    %s56 = sphi 0, %s40
    %s62 = sphi 0, %s64
    %s65 = sphi 0, %s62
    %s66 = sphi 0, %s65
    %s82 = sphi 0, %s66
    %s88 = sphi 0, %s90
    %s91 = sphi 0, %s88
    %s92 = sphi 0, %s91
    %s108 = sphi 0, %s92
    %s114 = sphi 0, %s116
    %s117 = sphi 0, %s114
    %s118 = sphi 0, %s117
    %s134 = sphi 0, %s118
    %s142 = sphi 0, %s144
    %s145 = sphi 0, %s142
    %s146 = sphi 0, %s145
    %s162 = sphi 0, %s146
    %s170 = sphi 0, %s172
    %s173 = sphi 0, %s170
    %s174 = sphi 0, %s173
    %s190 = sphi 0, %s174
  $region4: #{_lambda_.12} parent=0 // loop_header_branch
    %15 = sbr.rel (%p13) target = $region8
  $region5: #{_lambda_.12} parent=0 // loop_body
    %s17 = ssub.s32 %s12, 1
    %s18 = ssub.s32 %s12, 2
    %s25 = sadd.s32 1, %s20
    %p26 = scmp.ge.s32.totalorder %s25, 1
    %s27 = scalar_select %p26, 0, %s25
    %s28 = sadd.s32 1, %s19
    %s29 = scalar_select %p26, %s28, %s19
    %p30 = scmp.ge.s32.totalorder %s29, 2
    %s31 = scalar_select %p30, 0, %s29
    %s32 = ssub.s32 %s19, %s31
    %s33 = ssub.s32 %s20, %s27
    %s34 = sor.u32 %s32, %s33
    %p35 = scmp.eq.s32.totalorder %s34, 0
    %s37 = sadd.s32 %s36, 1
    %s38 = scalar_select %p35, %s36, %s37
    %p41 = pneg %p35
    %p42 = scmp.eq.s32.totalorder %s12, 1
    %p43 = por %p41, %p42
    %p44 = scmp.ne.s32.totalorder %s36, %s39
    %p45 = scmp.eq.s32.totalorder %s12, 0
    %p46 = por %p44, %p45
    %p47 = scmp.ne.s32.totalorder %s36, %s39
    %p48 = scmp.eq.s32.totalorder %s17, 1
    %p49 = por %p47, %p48
    %p50 = scmp.ne.s32.totalorder %s39, %s40
    %p51 = scmp.eq.s32.totalorder %s17, 0
    %p52 = por %p50, %p51
    %p53 = scmp.ne.s32.totalorder %s39, %s40
    %p54 = scmp.eq.s32.totalorder %s18, 1
    %p55 = por %p53, %p54
    %p57 = scmp.ne.s32.totalorder %s40, %s56
    %p58 = scmp.eq.s32.totalorder %s18, 0
    %p59 = por %p57, %p58
    %s60 = ssub.s32 %s20, %s27
    %p61 = scmp.eq.s32.totalorder %s60, 0
    %s63 = sadd.s32 %s62, 1
    %s64 = scalar_select %p61, %s62, %s63
    %p67 = pneg %p61
    %p68 = scmp.eq.s32.totalorder %s12, 1
    %p69 = por %p67, %p68
    %p70 = scmp.ne.s32.totalorder %s62, %s65
    %p71 = scmp.eq.s32.totalorder %s12, 0
    %p72 = por %p70, %p71
    %p73 = scmp.ne.s32.totalorder %s62, %s65
    %p74 = scmp.eq.s32.totalorder %s17, 1
    %p75 = por %p73, %p74
    %p76 = scmp.ne.s32.totalorder %s65, %s66
    %p77 = scmp.eq.s32.totalorder %s17, 0
    %p78 = por %p76, %p77
    %p79 = scmp.ne.s32.totalorder %s65, %s66
    %p80 = scmp.eq.s32.totalorder %s18, 1
    %p81 = por %p79, %p80
    %p83 = scmp.ne.s32.totalorder %s66, %s82
    %p84 = scmp.eq.s32.totalorder %s18, 0
    %p85 = por %p83, %p84
    %s86 = ssub.s32 %s20, %s27
    %p87 = scmp.eq.s32.totalorder %s86, 0
    %s89 = sadd.s32 %s88, 1
    %s90 = scalar_select %p87, %s88, %s89
    %p93 = pneg %p87
    %p94 = scmp.eq.s32.totalorder %s12, 1
    %p95 = por %p93, %p94
    %p96 = scmp.ne.s32.totalorder %s88, %s91
    %p97 = scmp.eq.s32.totalorder %s12, 0
    %p98 = por %p96, %p97
    %p99 = scmp.ne.s32.totalorder %s88, %s91
    %p100 = scmp.eq.s32.totalorder %s17, 1
    %p101 = por %p99, %p100
    %p102 = scmp.ne.s32.totalorder %s91, %s92
    %p103 = scmp.eq.s32.totalorder %s17, 0
    %p104 = por %p102, %p103
    %p105 = scmp.ne.s32.totalorder %s91, %s92
    %p106 = scmp.eq.s32.totalorder %s18, 1
    %p107 = por %p105, %p106
    %p109 = scmp.ne.s32.totalorder %s92, %s108
    %p110 = scmp.eq.s32.totalorder %s18, 0
    %p111 = por %p109, %p110
    %s112 = ssub.s32 %s20, %s27
    %p113 = scmp.eq.s32.totalorder %s112, 0
    %s115 = sadd.s32 %s114, 1
    %s116 = scalar_select %p113, %s114, %s115
    %p119 = pneg %p113
    %p120 = scmp.eq.s32.totalorder %s12, 1
    %p121 = por %p119, %p120
    %p122 = scmp.ne.s32.totalorder %s114, %s117
    %p123 = scmp.eq.s32.totalorder %s12, 0
    %p124 = por %p122, %p123
    %p125 = scmp.ne.s32.totalorder %s114, %s117
    %p126 = scmp.eq.s32.totalorder %s17, 1
    %p127 = por %p125, %p126
    %p128 = scmp.ne.s32.totalorder %s117, %s118
    %p129 = scmp.eq.s32.totalorder %s17, 0
    %p130 = por %p128, %p129
    %p131 = scmp.ne.s32.totalorder %s117, %s118
    %p132 = scmp.eq.s32.totalorder %s18, 1
    %p133 = por %p131, %p132
    %p135 = scmp.ne.s32.totalorder %s118, %s134
    %p136 = scmp.eq.s32.totalorder %s18, 0
    %p137 = por %p135, %p136
    %s138 = ssub.s32 %s19, %s31
    %s139 = ssub.s32 %s20, %s27
    %s140 = sor.u32 %s138, %s139
    %p141 = scmp.eq.s32.totalorder %s140, 0
    %s143 = sadd.s32 %s142, 1
    %s144 = scalar_select %p141, %s142, %s143
    %p147 = pneg %p141
    %p148 = scmp.eq.s32.totalorder %s12, 1
    %p149 = por %p147, %p148
    %p150 = scmp.ne.s32.totalorder %s142, %s145
    %p151 = scmp.eq.s32.totalorder %s12, 0
    %p152 = por %p150, %p151
    %p153 = scmp.ne.s32.totalorder %s142, %s145
    %p154 = scmp.eq.s32.totalorder %s17, 1
    %p155 = por %p153, %p154
    %p156 = scmp.ne.s32.totalorder %s145, %s146
    %p157 = scmp.eq.s32.totalorder %s17, 0
    %p158 = por %p156, %p157
    %p159 = scmp.ne.s32.totalorder %s145, %s146
    %p160 = scmp.eq.s32.totalorder %s18, 1
    %p161 = por %p159, %p160
    %p163 = scmp.ne.s32.totalorder %s146, %s162
    %p164 = scmp.eq.s32.totalorder %s18, 0
    %p165 = por %p163, %p164
    %s166 = ssub.s32 %s19, %s31
    %s167 = ssub.s32 %s20, %s27
    %s168 = sor.u32 %s166, %s167
    %p169 = scmp.eq.s32.totalorder %s168, 0
    %s171 = sadd.s32 %s170, 1
    %s172 = scalar_select %p169, %s170, %s171
    %p175 = pneg %p169
    %p176 = scmp.eq.s32.totalorder %s12, 1
    %p177 = por %p175, %p176
    %p178 = scmp.ne.s32.totalorder %s170, %s173
    %p179 = scmp.eq.s32.totalorder %s12, 0
    %p180 = por %p178, %p179
    %p181 = scmp.ne.s32.totalorder %s170, %s173
    %p182 = scmp.eq.s32.totalorder %s17, 1
    %p183 = por %p181, %p182
    %p184 = scmp.ne.s32.totalorder %s173, %s174
    %p185 = scmp.eq.s32.totalorder %s17, 0
    %p186 = por %p184, %p185
    %p187 = scmp.ne.s32.totalorder %s173, %s174
    %p188 = scmp.eq.s32.totalorder %s18, 1
    %p189 = por %p187, %p188
    %p191 = scmp.ne.s32.totalorder %s174, %s190
    %p192 = scmp.eq.s32.totalorder %s18, 0
    %p193 = por %p191, %p192
    %p194 = scmp.le.s32.totalorder 1, %s12
    %p195 = scmp.lt.s32.totalorder %s12, 3
    %p196 = pnand %p194, %p195
    %p197 = pneg %p196
    // Predicated region
    $region9: #{_lambda_.12} parent=5 // pred_check
      _
    $region10: #{_lambda_.12} parent=5 // pred_check_branch
      %199 = sbr.rel (%p196) target = $region12
    $region11: #{_lambda_.12} parent=5 // pred_region
      %s200 = ssub.s32 %s12, 1
      // Predicated region
      $region13: #{_lambda_.12} parent=11 // pred_check
        %p201 = pneg %p78
      $region14: #{_lambda_.12} parent=11 // pred_check_branch
        %203 = sbr.rel (%p201) target = $region16
      $region15: #{_lambda_.12} parent=11 // pred_region
        %p204 = scmp.lt.s32.totalorder %s22, 0
        %s205 = scalar_select %p204, %s22, 0
        %s206 = smul.addr %s205, 8
        %s207 = scalar_lea.vmem %s1, %s206
      $region16: #{_lambda_.12} parent=11 // pred_fallthru
        _
      // Predicated region
      $region17: #{_lambda_.12} parent=11 // pred_check
        %p208 = pneg %p104
      $region18: #{_lambda_.12} parent=11 // pred_check_branch
        %210 = sbr.rel (%p208) target = $region20
      $region19: #{_lambda_.12} parent=11 // pred_region
        %p211 = scmp.lt.s32.totalorder %s22, 0
        %s212 = scalar_select %p211, %s22, 0
        %s213 = scalar_lea.vmem %s2, %s212
      $region20: #{_lambda_.12} parent=11 // pred_fallthru
        _
      // Predicated region
      $region21: #{_lambda_.12} parent=11 // pred_check
        %p214 = pneg %p130
      $region22: #{_lambda_.12} parent=11 // pred_check_branch
        %216 = sbr.rel (%p214) target = $region24
      $region23: #{_lambda_.12} parent=11 // pred_region
        %p217 = scmp.lt.s32.totalorder %s22, 0
        %s218 = scalar_select %p217, %s22, 0
        %s219 = scalar_lea.vmem %s3, %s218
      $region24: #{_lambda_.12} parent=11 // pred_fallthru
        _
    $region12: #{_lambda_.12} parent=5 // pred_fallthru
      _
    %p220 = scmp.lt.s32.totalorder %s12, 2
    // Predicated region
    $region25: #{_lambda_.12} parent=5 // pred_check
      %p221 = pneg %p220
    $region26: #{_lambda_.12} parent=5 // pred_check_branch
      %223 = sbr.rel (%p221) target = $region28
    $region27: #{_lambda_.12} parent=5 // pred_region
      // Predicated region
      $region29: #{_lambda_.12} parent=27 // pred_check
        %p224 = pneg %p46
      $region30: #{_lambda_.12} parent=27 // pred_check_branch
        %226 = sbr.rel (%p224) target = $region32
      $region31: #{_lambda_.12} parent=27 // pred_region
        %p227 = scmp.lt.s32.totalorder %s19, 1
        %s228 = scalar_select %p227, %s19, 1
        %p229 = scmp.lt.s32.totalorder %s20, 0
        %s230 = scalar_select %p229, %s20, 0
        %s231 = smul.addr %s228, 8
        %s232 = sadd.s32 %s230, %s231
        %s233 = smul.addr %s232, 4
        %s234 = scalar_lea.vmem %s0, %s233
      $region32: #{_lambda_.12} parent=27 // pred_fallthru
        _
    $region28: #{_lambda_.12} parent=5 // pred_fallthru
      _
    %p235 = scmp.le.s32.totalorder 1, %s12
    %p236 = scmp.lt.s32.totalorder %s12, 3
    %p237 = pnand %p235, %p236
    %p238 = pneg %p237
    // Predicated region
    $region33: #{_lambda_.12} parent=5 // pred_check
      _
    $region34: #{_lambda_.12} parent=5 // pred_check_branch
      %240 = sbr.rel (%p237) target = $region36
    $region35: #{_lambda_.12} parent=5 // pred_region
      %s241 = ssub.s32 %s12, 1
      %p242 = scmp.lt.s32.totalorder %s21, 1
      %s243 = scalar_select %p242, %s21, 1
      %p244 = scmp.lt.s32.totalorder %s22, 0
      %s245 = scalar_select %p244, %s22, 0
      %s246 = smul.addr %s243, 8
      %s247 = sadd.s32 %s245, %s246
      %s248 = smul.addr %s247, 4
      %s249 = scalar_lea.vmem %s0, %s248
      %p250 = pneg %p52
      %p251 = pneg %p49
      %p252 = scmp.lt.s32.totalorder %s22, 0
      %s253 = scalar_select %p252, %s22, 0
      %s254 = smul.addr %s253, 8
      %s255 = scalar_lea.vmem %s1, %s254
      %p256 = pneg %p78
      %p257 = pneg %p75
      %p258 = scmp.lt.s32.totalorder %s22, 0
      %s259 = scalar_select %p258, %s22, 0
      %s260 = scalar_lea.vmem %s2, %s259
      %p261 = pneg %p104
      %p262 = pneg %p101
      %p263 = scmp.lt.s32.totalorder %s22, 0
      %s264 = scalar_select %p263, %s22, 0
      %s265 = scalar_lea.vmem %s3, %s264
      %p266 = pneg %p130
      %p267 = pneg %p127
      %p268 = pneg %p158
      %p269 = pneg %p155
      %p270 = scmp.lt.s32.totalorder %s21, 1
      %s271 = scalar_select %p270, %s21, 1
      %p272 = scmp.lt.s32.totalorder %s22, 0
      %s273 = scalar_select %p272, %s22, 0
      %s274 = smul.addr %s271, 8
      %s275 = sadd.s32 %s273, %s274
      %s276 = smul.addr %s275, 4
      %s277 = scalar_lea.vmem %s4, %s276
      %p278 = pneg %p186
      %p279 = pneg %p183
      %p280 = scmp.lt.s32.totalorder %s21, 1
      %s281 = scalar_select %p280, %s21, 1
      %p282 = scmp.lt.s32.totalorder %s22, 0
      %s283 = scalar_select %p282, %s22, 0
      %s284 = sadd.s32 %s283, %s281
      %s285 = scalar_lea.vmem %s5, %s284
      %p286 = scmp.lt.s32.totalorder %s21, 1
      %s287 = scalar_select %p286, %s21, 1
      %p288 = scmp.lt.s32.totalorder %s22, 0
      %s289 = scalar_select %p288, %s22, 0
      %s290 = smul.addr %s287, 8
      %s291 = sadd.s32 %s289, %s290
      %s292 = smul.addr %s291, 4
      %s293 = scalar_lea.vmem %s0, %s292
      %p294 = scmp.lt.s32.totalorder %s22, 0
      %s295 = scalar_select %p294, %s22, 0
      %s296 = smul.addr %s295, 8
      %s297 = scalar_lea.vmem %s1, %s296
      %p298 = scmp.lt.s32.totalorder %s22, 0
      %s299 = scalar_select %p298, %s22, 0
      %s300 = scalar_lea.vmem %s2, %s299
      %p301 = scmp.lt.s32.totalorder %s22, 0
      %s302 = scalar_select %p301, %s22, 0
      %s303 = scalar_lea.vmem %s3, %s302
      %p304 = scmp.lt.s32.totalorder %s21, 1
      %s305 = scalar_select %p304, %s21, 1
      %p306 = scmp.lt.s32.totalorder %s22, 0
      %s307 = scalar_select %p306, %s22, 0
      %s308 = smul.addr %s305, 8
      %s309 = sadd.s32 %s307, %s308
      %s310 = smul.addr %s309, 4
      %s311 = scalar_lea.vmem %s4, %s310
      %p312 = scmp.lt.s32.totalorder %s21, 1
      %s313 = scalar_select %p312, %s21, 1
      %p314 = scmp.lt.s32.totalorder %s22, 0
      %s315 = scalar_select %p314, %s22, 0
      %s316 = sadd.s32 %s315, %s313
      %s317 = scalar_lea.vmem %s5, %s316
      %319 = vst [vmem:[#allocation2] sm:$0xf] 0
      %320 = vst [vmem:[#allocation2 + $0x4] sm:$0x1] 0
      %321 = vst [vmem:[#allocation2 + $0x8] sm:$0xf] 0
      %322 = vst [vmem:[#allocation2 + $0xc] sm:$0x1] 0
      %323 = vst [vmem:[#allocation2 + $0x10] sm:$0xf] 0
      %324 = vst [vmem:[#allocation2 + $0x14] sm:$0x1] 0
      %325 = vst [vmem:[#allocation2 + $0x18] sm:$0xf] 0
      %326 = vst [vmem:[#allocation2 + $0x1c] sm:$0x1] 0
      %327 = vst [vmem:[#allocation2 + $0x20] sm:$0xf] 0
      %328 = vst [vmem:[#allocation2 + $0x24] sm:$0x1] 0
      %329 = vst [vmem:[#allocation2 + $0x28] sm:$0xf] 0
      %330 = vst [vmem:[#allocation2 + $0x2c] sm:$0x1] 0
      %331 = vst [vmem:[#allocation2 + $0x30] sm:$0xf] 0
      %332 = vst [vmem:[#allocation2 + $0x34] sm:$0x1] 0
      %333 = vst [vmem:[#allocation2 + $0x38] sm:$0xf] 0
      %334 = vst [vmem:[#allocation2 + $0x3c] sm:$0x1] 0
      %335 = vst [vmem:[#allocation2 + $0x40] sm:$0xf] 0
      %336 = vst [vmem:[#allocation2 + $0x44] sm:$0x1] 0
      %337 = vst [vmem:[#allocation2 + $0x48] sm:$0xf] 0
      %338 = vst [vmem:[#allocation2 + $0x4c] sm:$0x1] 0
      %v339 = vld [vmem:[%s293] sm:$0xf]
      %v340 = vld [vmem:[%s293 + $0x4] sm:$0xf]
      %v341 = vld [vmem:[%s293 + $0x8] sm:$0xf]
      %v342 = vld [vmem:[%s293 + $0xc] sm:$0xf]
      %v343 = vld [vmem:[%s293 + $0x10] sm:$0xf]
      %v344 = vld [vmem:[%s293 + $0x14] sm:$0xf]
      %v345 = vld [vmem:[%s293 + $0x18] sm:$0xf]
      %v346 = vld [vmem:[%s293 + $0x1c] sm:$0xf]
      %v348 = vshrl.u32 %v339, 16
      %v350 = vrot.slane %v348, 7
      %v351 = vshll.u32 %v339, 16
      %v353 = vor.u32 %v350, %v351
      %v354 = vrot.slane %v350, 4
      %v356 = vshrl.u32 %v340, 16
      %v358 = vrot.slane %v356, 7
      %v359 = vshll.u32 %v340, 16
      %v361 = vor.u32 %v358, %v359
      %v362 = vrot.slane %v358, 4
      %v364 = vshrl.u32 %v341, 16
      %v366 = vrot.slane %v364, 7
      %v367 = vshll.u32 %v341, 16
      %v369 = vor.u32 %v366, %v367
      %v370 = vrot.slane %v366, 4
      %v372 = vshrl.u32 %v342, 16
      %v374 = vrot.slane %v372, 7
      %v375 = vshll.u32 %v342, 16
      %v377 = vor.u32 %v374, %v375
      %v378 = vrot.slane %v374, 4
      %v380 = vshrl.u32 %v343, 16
      %v382 = vrot.slane %v380, 7
      %v383 = vshll.u32 %v343, 16
      %v385 = vor.u32 %v382, %v383
      %v386 = vrot.slane %v382, 4
      %v388 = vshrl.u32 %v344, 16
      %v390 = vrot.slane %v388, 7
      %v391 = vshll.u32 %v344, 16
      %v393 = vor.u32 %v390, %v391
      %v394 = vrot.slane %v390, 4
      %v396 = vshrl.u32 %v345, 16
      %v398 = vrot.slane %v396, 7
      %v399 = vshll.u32 %v345, 16
      %v401 = vor.u32 %v398, %v399
      %v402 = vrot.slane %v398, 4
      %v404 = vshrl.u32 %v346, 16
      %v406 = vrot.slane %v404, 7
      %v407 = vshll.u32 %v346, 16
      %v409 = vor.u32 %v406, %v407
      %v410 = vrot.slane %v406, 4
      %s427 = scalar_lea.vmem [#allocation2], 8
      %vm428 = vcmask 1043456
      %vm429 = vsmask.f32 7938
      %vm430 = vmand %vm428, %vm429
      %v431 = vld [vmem:[%s427] sm:$0xf]
      %v432 = vsel %vm430, %v353, %v431
      %433 = vst [vmem:[%s427] sm:$0xf] %v432
      %vm434 = vcmask 1040384
      %vm435 = vsmask.f32 256
      %vm436 = vmand %vm434, %vm435
      %v437 = vld [vmem:[%s427 + $0x4] sm:$0x1]
      %v438 = vsel %vm436, %v354, %v437
      %439 = vst [vmem:[%s427 + $0x4] sm:$0x1] %v438
      %v440 = vld [vmem:[%s427 + $0x8] sm:$0xf]
      %v441 = vsel %vm430, %v361, %v440
      %442 = vst [vmem:[%s427 + $0x8] sm:$0xf] %v441
      %v443 = vld [vmem:[%s427 + $0xc] sm:$0x1]
      %v444 = vsel %vm436, %v362, %v443
      %445 = vst [vmem:[%s427 + $0xc] sm:$0x1] %v444
      %v446 = vld [vmem:[%s427 + $0x10] sm:$0xf]
      %v447 = vsel %vm430, %v369, %v446
      %448 = vst [vmem:[%s427 + $0x10] sm:$0xf] %v447
      %v449 = vld [vmem:[%s427 + $0x14] sm:$0x1]
      %v450 = vsel %vm436, %v370, %v449
      %451 = vst [vmem:[%s427 + $0x14] sm:$0x1] %v450
      %v452 = vld [vmem:[%s427 + $0x18] sm:$0xf]
      %v453 = vsel %vm430, %v377, %v452
      %454 = vst [vmem:[%s427 + $0x18] sm:$0xf] %v453
      %v455 = vld [vmem:[%s427 + $0x1c] sm:$0x1]
      %v456 = vsel %vm436, %v378, %v455
      %457 = vst [vmem:[%s427 + $0x1c] sm:$0x1] %v456
      %v458 = vld [vmem:[%s427 + $0x20] sm:$0xf]
      %v459 = vsel %vm430, %v385, %v458
      %460 = vst [vmem:[%s427 + $0x20] sm:$0xf] %v459
      %v461 = vld [vmem:[%s427 + $0x24] sm:$0x1]
      %v462 = vsel %vm436, %v386, %v461
      %463 = vst [vmem:[%s427 + $0x24] sm:$0x1] %v462
      %v464 = vld [vmem:[%s427 + $0x28] sm:$0xf]
      %v465 = vsel %vm430, %v393, %v464
      %466 = vst [vmem:[%s427 + $0x28] sm:$0xf] %v465
      %v467 = vld [vmem:[%s427 + $0x2c] sm:$0x1]
      %v468 = vsel %vm436, %v394, %v467
      %469 = vst [vmem:[%s427 + $0x2c] sm:$0x1] %v468
      %v470 = vld [vmem:[%s427 + $0x30] sm:$0xf]
      %v471 = vsel %vm430, %v401, %v470
      %472 = vst [vmem:[%s427 + $0x30] sm:$0xf] %v471
      %v473 = vld [vmem:[%s427 + $0x34] sm:$0x1]
      %v474 = vsel %vm436, %v402, %v473
      %475 = vst [vmem:[%s427 + $0x34] sm:$0x1] %v474
      %v476 = vld [vmem:[%s427 + $0x38] sm:$0xf]
      %v477 = vsel %vm430, %v409, %v476
      %478 = vst [vmem:[%s427 + $0x38] sm:$0xf] %v477
      %v479 = vld [vmem:[%s427 + $0x3c] sm:$0x1]
      %v480 = vsel %vm436, %v410, %v479
      %481 = vst [vmem:[%s427 + $0x3c] sm:$0x1] %v480
      %v482 = vld [vmem:[#allocation2] sm:$0xf]
      %v483 = vld [vmem:[#allocation2 + $0x8] sm:$0xf]
      %v484 = vld [vmem:[#allocation2 + $0x10] sm:$0xf]
      %v485 = vld [vmem:[#allocation2 + $0x18] sm:$0xf]
      %v486 = vld [vmem:[#allocation2 + $0x20] sm:$0xf]
      %v487 = vld [vmem:[#allocation2 + $0x28] sm:$0xf]
      %v488 = vld [vmem:[#allocation2 + $0x30] sm:$0xf]
      %v489 = vld [vmem:[#allocation2 + $0x38] sm:$0xf]
      %v490 = vld [vmem:[#allocation2 + $0x40] sm:$0xf]
      %v491 = vld [vmem:[#allocation2 + $0x48] sm:$0xf]
      %v492 = vunpack.c.l.bf16 %v482
      %v493 = vunpack.c.l.bf16 %v483
      %v494 = vunpack.c.l.bf16 %v484
      %v495 = vunpack.c.l.bf16 %v485
      %v496 = vunpack.c.l.bf16 %v486
      %v497 = vunpack.c.l.bf16 %v487
      %v498 = vunpack.c.l.bf16 %v488
      %v499 = vunpack.c.l.bf16 %v489
      %v500 = vld [vmem:[%s297] sm:$0x1]
      %v501 = vlaneseq
      %v502 = vshrl.u32 %v501, 7
      %v503 = vsub.s32 0, %v502
      %v504 = vrot.slane %v500, %v503
      %v505 = vmul.f32 %v492, %v504
      %v506 = vmul.f32 %v493, %v504
      %v507 = vmul.f32 %v494, %v504
      %v508 = vmul.f32 %v495, %v504
      %v509 = vmul.f32 %v496, %v504
      %v510 = vmul.f32 %v497, %v504
      %v511 = vmul.f32 %v498, %v504
      %v512 = vmul.f32 %v499, %v504
      %v513 = vunpack.c.l.bf16 %v490
      %v514 = vld [vmem:[%s297 + $0x3] sm:$0x1]
      %v515 = vlaneseq
      %v516 = vshrl.u32 %v515, 7
      %v517 = vsub.s32 0, %v516
      %v518 = vrot.slane %v514, %v517
      %v519 = vmul.f32 %v493, %v518
      %v520 = vmul.f32 %v494, %v518
      %v521 = vmul.f32 %v495, %v518
      %v522 = vmul.f32 %v496, %v518
      %v523 = vmul.f32 %v497, %v518
      %v524 = vmul.f32 %v498, %v518
      %v525 = vmul.f32 %v499, %v518
      %v526 = vmul.f32 %v513, %v518
      %v527 = vadd.f32 %v505, %v519
      %v528 = vadd.f32 %v506, %v520
      %v529 = vadd.f32 %v507, %v521
      %v530 = vadd.f32 %v508, %v522
      %v531 = vadd.f32 %v509, %v523
      %v532 = vadd.f32 %v510, %v524
      %v533 = vadd.f32 %v511, %v525
      %v534 = vadd.f32 %v512, %v526
      %v535 = vunpack.c.l.bf16 %v491
      %v536 = vld [vmem:[%s297 + $0x6] sm:$0x1]
      %v537 = vlaneseq
      %v538 = vshrl.u32 %v537, 7
      %v539 = vsub.s32 0, %v538
      %v540 = vrot.slane %v536, %v539
      %v541 = vmul.f32 %v494, %v540
      %v542 = vmul.f32 %v495, %v540
      %v543 = vmul.f32 %v496, %v540
      %v544 = vmul.f32 %v497, %v540
      %v545 = vmul.f32 %v498, %v540
      %v546 = vmul.f32 %v499, %v540
      %v547 = vmul.f32 %v513, %v540
      %v548 = vmul.f32 %v535, %v540
      %v549 = vadd.f32 %v527, %v541
      %v550 = vadd.f32 %v528, %v542
      %v551 = vadd.f32 %v529, %v543
      %v552 = vadd.f32 %v530, %v544
      %v553 = vadd.f32 %v531, %v545
      %v554 = vadd.f32 %v532, %v546
      %v555 = vadd.f32 %v533, %v547
      %v556 = vadd.f32 %v534, %v548
      %v557 = vld [vmem:[#allocation2 + $0x4] sm:$0x1]
      %v558 = vld [vmem:[#allocation2 + $0xc] sm:$0x1]
      %v559 = vld [vmem:[#allocation2 + $0x14] sm:$0x1]
      %v560 = vld [vmem:[#allocation2 + $0x1c] sm:$0x1]
      %v561 = vld [vmem:[#allocation2 + $0x24] sm:$0x1]
      %v562 = vld [vmem:[#allocation2 + $0x2c] sm:$0x1]
      %v563 = vld [vmem:[#allocation2 + $0x34] sm:$0x1]
      %v564 = vld [vmem:[#allocation2 + $0x3c] sm:$0x1]
      %v565 = vld [vmem:[#allocation2 + $0x44] sm:$0x1]
      %v566 = vld [vmem:[#allocation2 + $0x4c] sm:$0x1]
      %v567 = vunpack.c.l.bf16 %v557
      %v568 = vunpack.c.l.bf16 %v558
      %v569 = vunpack.c.l.bf16 %v559
      %v570 = vunpack.c.l.bf16 %v560
      %v571 = vunpack.c.l.bf16 %v561
      %v572 = vunpack.c.l.bf16 %v562
      %v573 = vunpack.c.l.bf16 %v563
      %v574 = vunpack.c.l.bf16 %v564
      %v575 = vld [vmem:[%s297 + $0x1] sm:$0x1]
      %v576 = vlaneseq
      %v577 = vshrl.u32 %v576, 7
      %v578 = vsub.s32 0, %v577
      %v579 = vrot.slane %v575, %v578
      %v580 = vmul.f32 %v492, %v579
      %v581 = vmul.f32 %v567, %v579
      %v582 = vmul.f32 %v493, %v579
      %v583 = vmul.f32 %v568, %v579
      %v584 = vmul.f32 %v494, %v579
      %v585 = vmul.f32 %v569, %v579
      %v586 = vmul.f32 %v495, %v579
      %v587 = vmul.f32 %v570, %v579
      %v588 = vmul.f32 %v496, %v579
      %v589 = vmul.f32 %v571, %v579
      %v590 = vmul.f32 %v497, %v579
      %v591 = vmul.f32 %v572, %v579
      %v592 = vmul.f32 %v498, %v579
      %v593 = vmul.f32 %v573, %v579
      %v594 = vmul.f32 %v499, %v579
      %v595 = vmul.f32 %v574, %v579
      %vm612 = vcmask 1046528
      %v613 = vrot.slane %v580, 1
      %v614 = vrot.slane %v581, 1
      %v615 = vsel %vm612, %v613, %v614
      %v616 = vrot.slane %v582, 1
      %v617 = vrot.slane %v583, 1
      %v618 = vsel %vm612, %v616, %v617
      %v619 = vrot.slane %v584, 1
      %v620 = vrot.slane %v585, 1
      %v621 = vsel %vm612, %v619, %v620
      %v622 = vrot.slane %v586, 1
      %v623 = vrot.slane %v587, 1
      %v624 = vsel %vm612, %v622, %v623
      %v625 = vrot.slane %v588, 1
      %v626 = vrot.slane %v589, 1
      %v627 = vsel %vm612, %v625, %v626
      %v628 = vrot.slane %v590, 1
      %v629 = vrot.slane %v591, 1
      %v630 = vsel %vm612, %v628, %v629
      %v631 = vrot.slane %v592, 1
      %v632 = vrot.slane %v593, 1
      %v633 = vsel %vm612, %v631, %v632
      %v634 = vrot.slane %v594, 1
      %v635 = vrot.slane %v595, 1
      %v636 = vsel %vm612, %v634, %v635
      %v645 = vadd.f32 %v549, %v615
      %v646 = vadd.f32 %v550, %v618
      %v647 = vadd.f32 %v551, %v621
      %v648 = vadd.f32 %v552, %v624
      %v649 = vadd.f32 %v553, %v627
      %v650 = vadd.f32 %v554, %v630
      %v651 = vadd.f32 %v555, %v633
      %v652 = vadd.f32 %v556, %v636
      %v653 = vunpack.c.l.bf16 %v565
      %v654 = vld [vmem:[%s297 + $0x4] sm:$0x1]
      %v655 = vlaneseq
      %v656 = vshrl.u32 %v655, 7
      %v657 = vsub.s32 0, %v656
      %v658 = vrot.slane %v654, %v657
      %v659 = vmul.f32 %v493, %v658
      %v660 = vmul.f32 %v568, %v658
      %v661 = vmul.f32 %v494, %v658
      %v662 = vmul.f32 %v569, %v658
      %v663 = vmul.f32 %v495, %v658
      %v664 = vmul.f32 %v570, %v658
      %v665 = vmul.f32 %v496, %v658
      %v666 = vmul.f32 %v571, %v658
      %v667 = vmul.f32 %v497, %v658
      %v668 = vmul.f32 %v572, %v658
      %v669 = vmul.f32 %v498, %v658
      %v670 = vmul.f32 %v573, %v658
      %v671 = vmul.f32 %v499, %v658
      %v672 = vmul.f32 %v574, %v658
      %v673 = vmul.f32 %v513, %v658
      %v674 = vmul.f32 %v653, %v658
      %v691 = vrot.slane %v659, 1
      %v692 = vrot.slane %v660, 1
      %v693 = vsel %vm612, %v691, %v692
      %v694 = vrot.slane %v661, 1
      %v695 = vrot.slane %v662, 1
      %v696 = vsel %vm612, %v694, %v695
      %v697 = vrot.slane %v663, 1
      %v698 = vrot.slane %v664, 1
      %v699 = vsel %vm612, %v697, %v698
      %v700 = vrot.slane %v665, 1
      %v701 = vrot.slane %v666, 1
      %v702 = vsel %vm612, %v700, %v701
      %v703 = vrot.slane %v667, 1
      %v704 = vrot.slane %v668, 1
      %v705 = vsel %vm612, %v703, %v704
      %v706 = vrot.slane %v669, 1
      %v707 = vrot.slane %v670, 1
      %v708 = vsel %vm612, %v706, %v707
      %v709 = vrot.slane %v671, 1
      %v710 = vrot.slane %v672, 1
      %v711 = vsel %vm612, %v709, %v710
      %v712 = vrot.slane %v673, 1
      %v713 = vrot.slane %v674, 1
      %v714 = vsel %vm612, %v712, %v713
      %v723 = vadd.f32 %v645, %v693
      %v724 = vadd.f32 %v646, %v696
      %v725 = vadd.f32 %v647, %v699
      %v726 = vadd.f32 %v648, %v702
      %v727 = vadd.f32 %v649, %v705
      %v728 = vadd.f32 %v650, %v708
      %v729 = vadd.f32 %v651, %v711
      %v730 = vadd.f32 %v652, %v714
      %v731 = vunpack.c.l.bf16 %v566
      %v732 = vld [vmem:[%s297 + $0x7] sm:$0x1]
      %v733 = vlaneseq
      %v734 = vshrl.u32 %v733, 7
      %v735 = vsub.s32 0, %v734
      %v736 = vrot.slane %v732, %v735
      %v737 = vmul.f32 %v494, %v736
      %v738 = vmul.f32 %v569, %v736
      %v739 = vmul.f32 %v495, %v736
      %v740 = vmul.f32 %v570, %v736
      %v741 = vmul.f32 %v496, %v736
      %v742 = vmul.f32 %v571, %v736
      %v743 = vmul.f32 %v497, %v736
      %v744 = vmul.f32 %v572, %v736
      %v745 = vmul.f32 %v498, %v736
      %v746 = vmul.f32 %v573, %v736
      %v747 = vmul.f32 %v499, %v736
      %v748 = vmul.f32 %v574, %v736
      %v749 = vmul.f32 %v513, %v736
      %v750 = vmul.f32 %v653, %v736
      %v751 = vmul.f32 %v535, %v736
      %v752 = vmul.f32 %v731, %v736
      %v769 = vrot.slane %v737, 1
      %v770 = vrot.slane %v738, 1
      %v771 = vsel %vm612, %v769, %v770
      %v772 = vrot.slane %v739, 1
      %v773 = vrot.slane %v740, 1
      %v774 = vsel %vm612, %v772, %v773
      %v775 = vrot.slane %v741, 1
      %v776 = vrot.slane %v742, 1
      %v777 = vsel %vm612, %v775, %v776
      %v778 = vrot.slane %v743, 1
      %v779 = vrot.slane %v744, 1
      %v780 = vsel %vm612, %v778, %v779
      %v781 = vrot.slane %v745, 1
      %v782 = vrot.slane %v746, 1
      %v783 = vsel %vm612, %v781, %v782
      %v784 = vrot.slane %v747, 1
      %v785 = vrot.slane %v748, 1
      %v786 = vsel %vm612, %v784, %v785
      %v787 = vrot.slane %v749, 1
      %v788 = vrot.slane %v750, 1
      %v789 = vsel %vm612, %v787, %v788
      %v790 = vrot.slane %v751, 1
      %v791 = vrot.slane %v752, 1
      %v792 = vsel %vm612, %v790, %v791
      %v801 = vadd.f32 %v723, %v771
      %v802 = vadd.f32 %v724, %v774
      %v803 = vadd.f32 %v725, %v777
      %v804 = vadd.f32 %v726, %v780
      %v805 = vadd.f32 %v727, %v783
      %v806 = vadd.f32 %v728, %v786
      %v807 = vadd.f32 %v729, %v789
      %v808 = vadd.f32 %v730, %v792
      %v809 = vld [vmem:[#allocation2] sm:$0xe]
      %v810 = vld [vmem:[#allocation2 + $0x8] sm:$0xe]
      %v811 = vld [vmem:[#allocation2 + $0x10] sm:$0xe]
      %v812 = vld [vmem:[#allocation2 + $0x18] sm:$0xe]
      %v813 = vld [vmem:[#allocation2 + $0x20] sm:$0xe]
      %v814 = vld [vmem:[#allocation2 + $0x28] sm:$0xe]
      %v815 = vld [vmem:[#allocation2 + $0x30] sm:$0xe]
      %v816 = vld [vmem:[#allocation2 + $0x38] sm:$0xe]
      %v817 = vld [vmem:[#allocation2 + $0x40] sm:$0xe]
      %v818 = vld [vmem:[#allocation2 + $0x48] sm:$0xe]
      %v819 = vunpack.c.l.bf16 %v809
      %v820 = vunpack.c.l.bf16 %v810
      %v821 = vunpack.c.l.bf16 %v811
      %v822 = vunpack.c.l.bf16 %v812
      %v823 = vunpack.c.l.bf16 %v813
      %v824 = vunpack.c.l.bf16 %v814
      %v825 = vunpack.c.l.bf16 %v815
      %v826 = vunpack.c.l.bf16 %v816
      %v827 = vld [vmem:[%s297 + $0x2] sm:$0x1]
      %v828 = vlaneseq
      %v829 = vshrl.u32 %v828, 7
      %v830 = vsub.s32 0, %v829
      %v831 = vrot.slane %v827, %v830
      %v832 = vmul.f32 %v819, %v831
      %v833 = vmul.f32 %v567, %v831
      %v834 = vmul.f32 %v820, %v831
      %v835 = vmul.f32 %v568, %v831
      %v836 = vmul.f32 %v821, %v831
      %v837 = vmul.f32 %v569, %v831
      %v838 = vmul.f32 %v822, %v831
      %v839 = vmul.f32 %v570, %v831
      %v840 = vmul.f32 %v823, %v831
      %v841 = vmul.f32 %v571, %v831
      %v842 = vmul.f32 %v824, %v831
      %v843 = vmul.f32 %v572, %v831
      %v844 = vmul.f32 %v825, %v831
      %v845 = vmul.f32 %v573, %v831
      %v846 = vmul.f32 %v826, %v831
      %v847 = vmul.f32 %v574, %v831
      %vm864 = vcmask 1045504
      %v865 = vrot.slane %v832, 2
      %v866 = vrot.slane %v833, 2
      %v867 = vsel %vm864, %v865, %v866
      %v868 = vrot.slane %v834, 2
      %v869 = vrot.slane %v835, 2
      %v870 = vsel %vm864, %v868, %v869
      %v871 = vrot.slane %v836, 2
      %v872 = vrot.slane %v837, 2
      %v873 = vsel %vm864, %v871, %v872
      %v874 = vrot.slane %v838, 2
      %v875 = vrot.slane %v839, 2
      %v876 = vsel %vm864, %v874, %v875
      %v877 = vrot.slane %v840, 2
      %v878 = vrot.slane %v841, 2
      %v879 = vsel %vm864, %v877, %v878
      %v880 = vrot.slane %v842, 2
      %v881 = vrot.slane %v843, 2
      %v882 = vsel %vm864, %v880, %v881
      %v883 = vrot.slane %v844, 2
      %v884 = vrot.slane %v845, 2
      %v885 = vsel %vm864, %v883, %v884
      %v886 = vrot.slane %v846, 2
      %v887 = vrot.slane %v847, 2
      %v888 = vsel %vm864, %v886, %v887
      %v897 = vadd.f32 %v801, %v867
      %v898 = vadd.f32 %v802, %v870
      %v899 = vadd.f32 %v803, %v873
      %v900 = vadd.f32 %v804, %v876
      %v901 = vadd.f32 %v805, %v879
      %v902 = vadd.f32 %v806, %v882
      %v903 = vadd.f32 %v807, %v885
      %v904 = vadd.f32 %v808, %v888
      %v905 = vunpack.c.l.bf16 %v817
      %v906 = vld [vmem:[%s297 + $0x5] sm:$0x1]
      %v907 = vlaneseq
      %v908 = vshrl.u32 %v907, 7
      %v909 = vsub.s32 0, %v908
      %v910 = vrot.slane %v906, %v909
      %v911 = vmul.f32 %v820, %v910
      %v912 = vmul.f32 %v568, %v910
      %v913 = vmul.f32 %v821, %v910
      %v914 = vmul.f32 %v569, %v910
      %v915 = vmul.f32 %v822, %v910
      %v916 = vmul.f32 %v570, %v910
      %v917 = vmul.f32 %v823, %v910
      %v918 = vmul.f32 %v571, %v910
      %v919 = vmul.f32 %v824, %v910
      %v920 = vmul.f32 %v572, %v910
      %v921 = vmul.f32 %v825, %v910
      %v922 = vmul.f32 %v573, %v910
      %v923 = vmul.f32 %v826, %v910
      %v924 = vmul.f32 %v574, %v910
      %v925 = vmul.f32 %v905, %v910
      %v926 = vmul.f32 %v653, %v910
      %v943 = vrot.slane %v911, 2
      %v944 = vrot.slane %v912, 2
      %v945 = vsel %vm864, %v943, %v944
      %v946 = vrot.slane %v913, 2
      %v947 = vrot.slane %v914, 2
      %v948 = vsel %vm864, %v946, %v947
      %v949 = vrot.slane %v915, 2
      %v950 = vrot.slane %v916, 2
      %v951 = vsel %vm864, %v949, %v950
      %v952 = vrot.slane %v917, 2
      %v953 = vrot.slane %v918, 2
      %v954 = vsel %vm864, %v952, %v953
      %v955 = vrot.slane %v919, 2
      %v956 = vrot.slane %v920, 2
      %v957 = vsel %vm864, %v955, %v956
      %v958 = vrot.slane %v921, 2
      %v959 = vrot.slane %v922, 2
      %v960 = vsel %vm864, %v958, %v959
      %v961 = vrot.slane %v923, 2
      %v962 = vrot.slane %v924, 2
      %v963 = vsel %vm864, %v961, %v962
      %v964 = vrot.slane %v925, 2
      %v965 = vrot.slane %v926, 2
      %v966 = vsel %vm864, %v964, %v965
      %v975 = vadd.f32 %v897, %v945
      %v976 = vadd.f32 %v898, %v948
      %v977 = vadd.f32 %v899, %v951
      %v978 = vadd.f32 %v900, %v954
      %v979 = vadd.f32 %v901, %v957
      %v980 = vadd.f32 %v902, %v960
      %v981 = vadd.f32 %v903, %v963
      %v982 = vadd.f32 %v904, %v966
      %v983 = vunpack.c.l.bf16 %v818
      %v984 = vld [vmem:[%s297 + $0x8] sm:$0x1]
      %v985 = vlaneseq
      %v986 = vshrl.u32 %v985, 7
      %v987 = vsub.s32 0, %v986
      %v988 = vrot.slane %v984, %v987
      %v989 = vmul.f32 %v821, %v988
      %v990 = vmul.f32 %v569, %v988
      %v991 = vmul.f32 %v822, %v988
      %v992 = vmul.f32 %v570, %v988
      %v993 = vmul.f32 %v823, %v988
      %v994 = vmul.f32 %v571, %v988
      %v995 = vmul.f32 %v824, %v988
      %v996 = vmul.f32 %v572, %v988
      %v997 = vmul.f32 %v825, %v988
      %v998 = vmul.f32 %v573, %v988
      %v999 = vmul.f32 %v826, %v988
      %v1000 = vmul.f32 %v574, %v988
      %v1001 = vmul.f32 %v905, %v988
      %v1002 = vmul.f32 %v653, %v988
      %v1003 = vmul.f32 %v983, %v988
      %v1004 = vmul.f32 %v731, %v988
      %v1021 = vrot.slane %v989, 2
      %v1022 = vrot.slane %v990, 2
      %v1023 = vsel %vm864, %v1021, %v1022
      %v1024 = vrot.slane %v991, 2
      %v1025 = vrot.slane %v992, 2
      %v1026 = vsel %vm864, %v1024, %v1025
      %v1027 = vrot.slane %v993, 2
      %v1028 = vrot.slane %v994, 2
      %v1029 = vsel %vm864, %v1027, %v1028
      %v1030 = vrot.slane %v995, 2
      %v1031 = vrot.slane %v996, 2
      %v1032 = vsel %vm864, %v1030, %v1031
      %v1033 = vrot.slane %v997, 2
      %v1034 = vrot.slane %v998, 2
      %v1035 = vsel %vm864, %v1033, %v1034
      %v1036 = vrot.slane %v999, 2
      %v1037 = vrot.slane %v1000, 2
      %v1038 = vsel %vm864, %v1036, %v1037
      %v1039 = vrot.slane %v1001, 2
      %v1040 = vrot.slane %v1002, 2
      %v1041 = vsel %vm864, %v1039, %v1040
      %v1042 = vrot.slane %v1003, 2
      %v1043 = vrot.slane %v1004, 2
      %v1044 = vsel %vm864, %v1042, %v1043
      %v1053 = vadd.f32 %v975, %v1023
      %v1054 = vadd.f32 %v976, %v1026
      %v1055 = vadd.f32 %v977, %v1029
      %v1056 = vadd.f32 %v978, %v1032
      %v1057 = vadd.f32 %v979, %v1035
      %v1058 = vadd.f32 %v980, %v1038
      %v1059 = vadd.f32 %v981, %v1041
      %v1060 = vadd.f32 %v982, %v1044
      %v1061 = vld [vmem:[%s300] sm:$0x1]
      %v1063 = vlaneseq
      %v1064 = vshrl.u32 %v1063, 7
      %v1065 = vsub.s32 0, %v1064
      %v1066 = vrot.slane %v1061, %v1065
      %v1068 = vmul.f32 %v1053, %v1066
      %v1069 = vmul.f32 %v1054, %v1066
      %v1070 = vmul.f32 %v1055, %v1066
      %v1071 = vmul.f32 %v1056, %v1066
      %v1072 = vmul.f32 %v1057, %v1066
      %v1073 = vmul.f32 %v1058, %v1066
      %v1074 = vmul.f32 %v1059, %v1066
      %v1075 = vmul.f32 %v1060, %v1066
      %v1076 = vld [vmem:[%s303] sm:$0x1]
      %v1078 = vlaneseq
      %v1079 = vshrl.u32 %v1078, 7
      %v1080 = vsub.s32 0, %v1079
      %v1081 = vrot.slane %v1076, %v1080
      %v1083 = vadd.f32 %v1068, %v1081
      %v1084 = vadd.f32 %v1069, %v1081
      %v1085 = vadd.f32 %v1070, %v1081
      %v1086 = vadd.f32 %v1071, %v1081
      %v1087 = vadd.f32 %v1072, %v1081
      %v1088 = vadd.f32 %v1073, %v1081
      %v1089 = vadd.f32 %v1074, %v1081
      %v1090 = vadd.f32 %v1075, %v1081
      %v1091 = vxor.u32 %v1083, 2147483648
      %v1092 = vxor.u32 %v1084, 2147483648
      %v1093 = vxor.u32 %v1085, 2147483648
      %v1094 = vxor.u32 %v1086, 2147483648
      %v1095 = vxor.u32 %v1087, 2147483648
      %v1096 = vxor.u32 %v1088, 2147483648
      %v1097 = vxor.u32 %v1089, 2147483648
      %v1098 = vxor.u32 %v1090, 2147483648
      %v1099 = vmul.f32 %v1091, 1.442695
      %v1100 = vpow.pop %v1099
      %v1101 = vmul.f32 %v1092, 1.442695
      %v1102 = vpow.pop %v1101
      %v1103 = vmul.f32 %v1093, 1.442695
      %v1104 = vpow.pop %v1103
      %v1105 = vmul.f32 %v1094, 1.442695
      %v1106 = vpow.pop %v1105
      %v1107 = vmul.f32 %v1095, 1.442695
      %v1108 = vpow.pop %v1107
      %v1109 = vmul.f32 %v1096, 1.442695
      %v1110 = vpow.pop %v1109
      %v1111 = vmul.f32 %v1097, 1.442695
      %v1112 = vpow.pop %v1111
      %v1113 = vmul.f32 %v1098, 1.442695
      %v1114 = vpow.pop %v1113
      %v1115 = vadd.f32 %v1100, 1.0
      %v1116 = vadd.f32 %v1102, 1.0
      %v1117 = vadd.f32 %v1104, 1.0
      %v1118 = vadd.f32 %v1106, 1.0
      %v1119 = vadd.f32 %v1108, 1.0
      %v1120 = vadd.f32 %v1110, 1.0
      %v1121 = vadd.f32 %v1112, 1.0
      %v1122 = vadd.f32 %v1114, 1.0
      %v1123 = vrcp.pop %v1115
      %v1124 = vmul.f32 1.0, %v1123
      %v1125 = vrcp.pop %v1116
      %v1126 = vmul.f32 1.0, %v1125
      %v1127 = vrcp.pop %v1117
      %v1128 = vmul.f32 1.0, %v1127
      %v1129 = vrcp.pop %v1118
      %v1130 = vmul.f32 1.0, %v1129
      %v1131 = vrcp.pop %v1119
      %v1132 = vmul.f32 1.0, %v1131
      %v1133 = vrcp.pop %v1120
      %v1134 = vmul.f32 1.0, %v1133
      %v1135 = vrcp.pop %v1121
      %v1136 = vmul.f32 1.0, %v1135
      %v1137 = vrcp.pop %v1122
      %v1138 = vmul.f32 1.0, %v1137
      %v1139 = vmul.f32 %v1083, %v1124
      %v1140 = vmul.f32 %v1084, %v1126
      %v1141 = vmul.f32 %v1085, %v1128
      %v1142 = vmul.f32 %v1086, %v1130
      %v1143 = vmul.f32 %v1087, %v1132
      %v1144 = vmul.f32 %v1088, %v1134
      %v1145 = vmul.f32 %v1089, %v1136
      %v1146 = vmul.f32 %v1090, %v1138
      %v1147 = vpack.c.bf16 %v1139, %v1139
      %v1148 = vpack.c.bf16 %v1140, %v1140
      %v1149 = vpack.c.bf16 %v1141, %v1141
      %v1150 = vpack.c.bf16 %v1142, %v1142
      %v1151 = vpack.c.bf16 %v1143, %v1143
      %v1152 = vpack.c.bf16 %v1144, %v1144
      %v1153 = vpack.c.bf16 %v1145, %v1145
      %v1154 = vpack.c.bf16 %v1146, %v1146
      %1155 = vst [vmem:[%s311] sm:$0xf] %v1147
      %1156 = vst [vmem:[%s311 + $0x4] sm:$0xf] %v1148
      %1157 = vst [vmem:[%s311 + $0x8] sm:$0xf] %v1149
      %1158 = vst [vmem:[%s311 + $0xc] sm:$0xf] %v1150
      %1159 = vst [vmem:[%s311 + $0x10] sm:$0xf] %v1151
      %1160 = vst [vmem:[%s311 + $0x14] sm:$0xf] %v1152
      %1161 = vst [vmem:[%s311 + $0x18] sm:$0xf] %v1153
      %1162 = vst [vmem:[%s311 + $0x1c] sm:$0xf] %v1154
      %v1163 = vadd.f32 %v1139, %v1140
      %v1164 = vadd.f32 %v1163, %v1141
      %v1165 = vadd.f32 %v1164, %v1142
      %v1166 = vadd.f32 %v1165, %v1143
      %v1167 = vadd.f32 %v1166, %v1144
      %v1168 = vadd.f32 %v1167, %v1145
      %v1169 = vadd.f32 %v1168, %v1146
      %v1170 = vrot.slane %v1169, 4
      %v1171 = vadd.f32 %v1169, %v1170
      %v1172 = vrot.slane %v1171, 2
      %v1173 = vadd.f32 %v1171, %v1172
      %v1174 = vrot.slane %v1173, 1
      %v1175 = vadd.f32 %v1173, %v1174
      %1176 = vst [vmem:[%s317] sm:$0x1] %v1175
      %p1177 = scmp.lt.s32.totalorder %s21, 1
      %s1178 = scalar_select %p1177, %s21, 1
      %p1179 = scmp.lt.s32.totalorder %s22, 0
      %s1180 = scalar_select %p1179, %s22, 0
      %s1181 = smul.addr %s1178, 8
      %s1182 = sadd.s32 %s1180, %s1181
      %s1183 = smul.addr %s1182, 4
      %s1184 = scalar_lea.vmem %s4, %s1183
      %p1185 = scmp.lt.s32.totalorder %s21, 1
      %s1186 = scalar_select %p1185, %s21, 1
      %p1187 = scmp.lt.s32.totalorder %s22, 0
      %s1188 = scalar_select %p1187, %s22, 0
      %s1189 = sadd.s32 %s1188, %s1186
      %s1190 = scalar_lea.vmem %s5, %s1189
      // Predicated region
      $region37: #{_lambda_.12} parent=35 // pred_check
        %p1191 = pneg %p155
      $region38: #{_lambda_.12} parent=35 // pred_check_branch
        %1193 = sbr.rel (%p1191) target = $region40
      $region39: #{_lambda_.12} parent=35 // pred_region
        _
      $region40: #{_lambda_.12} parent=35 // pred_fallthru
        _
      // Predicated region
      $region41: #{_lambda_.12} parent=35 // pred_check
        %p1194 = pneg %p183
      $region42: #{_lambda_.12} parent=35 // pred_check_branch
        %1196 = sbr.rel (%p1194) target = $region44
      $region43: #{_lambda_.12} parent=35 // pred_region
        _
      $region44: #{_lambda_.12} parent=35 // pred_fallthru
        _
    $region36: #{_lambda_.12} parent=5 // pred_fallthru
      _
    %p1197 = scmp.le.s32.totalorder 2, %s12
    // Predicated region
    $region45: #{_lambda_.12} parent=5 // pred_check
      %p1198 = pneg %p1197
    $region46: #{_lambda_.12} parent=5 // pred_check_branch
      %1200 = sbr.rel (%p1198) target = $region48
    $region47: #{_lambda_.12} parent=5 // pred_region
      %s1201 = ssub.s32 %s12, 2
      // Predicated region
      $region49: #{_lambda_.12} parent=47 // pred_check
        %p1202 = pneg %p161
      $region50: #{_lambda_.12} parent=47 // pred_check_branch
        %1204 = sbr.rel (%p1202) target = $region52
      $region51: #{_lambda_.12} parent=47 // pred_region
        %p1205 = scmp.lt.s32.totalorder %s23, 1
        %s1206 = scalar_select %p1205, %s23, 1
        %p1207 = scmp.lt.s32.totalorder %s24, 0
        %s1208 = scalar_select %p1207, %s24, 0
        %s1209 = smul.addr %s1206, 8
        %s1210 = sadd.s32 %s1208, %s1209
        %s1211 = smul.addr %s1210, 4
        %s1212 = scalar_lea.vmem %s4, %s1211
      $region52: #{_lambda_.12} parent=47 // pred_fallthru
        _
      // Predicated region
      $region53: #{_lambda_.12} parent=47 // pred_check
        %p1213 = pneg %p189
      $region54: #{_lambda_.12} parent=47 // pred_check_branch
        %1215 = sbr.rel (%p1213) target = $region56
      $region55: #{_lambda_.12} parent=47 // pred_region
        %p1216 = scmp.lt.s32.totalorder %s23, 1
        %s1217 = scalar_select %p1216, %s23, 1
        %p1218 = scmp.lt.s32.totalorder %s24, 0
        %s1219 = scalar_select %p1218, %s24, 0
        %s1220 = sadd.s32 %s1219, %s1217
        %s1221 = scalar_lea.vmem %s5, %s1220
      $region56: #{_lambda_.12} parent=47 // pred_fallthru
        _
    $region48: #{_lambda_.12} parent=5 // pred_fallthru
      _
  $region6: #{_lambda_.12} parent=0 // loop_footer
    %s16 = sadd.s32 1, %s12
  $region7: #{_lambda_.12} parent=0 // loop_footer_branch
    %11 = sbr.rel target = $region3
  $region8: #{_lambda_.12} parent=0 // loop_exit
    _

// kernel: _lambda_.15
$region0: #{_lambda_.15}
  #allocation0 [shape = 'u32[]', space=smem, size = 0x4, offset = 0x4, fixed_abs, tag = 'smem constant byte address 0x4 - core index']
  #allocation1 [shape = 'u32[144,128]{1,0:T(1,128)}', space=vmem, size = 0x12000, scoped, tag = 'internal scratch']
  %s0 = inlined_call_operand.vmem [shape: bf16[4,2,5,5,128], index: 0, kind: input, shape index: {}]
  %s1 = inlined_call_operand.vmem [shape: f32[9,128], index: 1, kind: input, shape index: {}]
  %s2 = inlined_call_operand.vmem [shape: f32[1,128], index: 2, kind: input, shape index: {}]
  %s3 = inlined_call_operand.vmem [shape: f32[1,128], index: 3, kind: input, shape index: {}]
  %s4 = inlined_call_operand.vmem [shape: bf16[2,4,4,128], index: 4, kind: output, shape index: {0}]
  %s5 = inlined_call_operand.vmem [shape: f32[2,1,128], index: 5, kind: output, shape index: {1}]
  %6 = xla_tuple %s4, %s5
  %s7 = sld [smem:[#allocation0]]
  $region98: #{_lambda_.15} parent=0
    _
  %s9 = ssub.s32 1, %s7
  %s10 = scalar_select 0, %s9, %s7
  $region1: #{_lambda_.15} parent=0
    #allocation2 [shape = 'u8[81920]{0}', space=vmem, size = 0x14000, scoped, tag = 'input window, operand 0']
    loop: start=0, step=1, limit=4
    $region2: #{_lambda_.15} parent=1 // loop_pre_header
      _
    $region3: #{_lambda_.15} parent=1 // loop_header
      %s12 = sphi 0, %s16
      %p13 = scmp.ge.s32.totalorder %s12, 4
      %s19 = sphi 0, %s31
      %s20 = sphi 0, %s27
      %s21 = sphi 0, %s19
      %s22 = sphi 0, %s20
      %s23 = sphi 0, %s21
      %s24 = sphi 0, %s22
      %s36 = sphi 0, %s38
      %s39 = sphi 0, %s36
      %s40 = sphi 0, %s39
      %s56 = sphi 0, %s40
      %s62 = sphi 0, %s64
      %s65 = sphi 0, %s62
      %s66 = sphi 0, %s65
      %s82 = sphi 0, %s66
      %s88 = sphi 0, %s90
      %s91 = sphi 0, %s88
      %s92 = sphi 0, %s91
      %s108 = sphi 0, %s92
      %s114 = sphi 0, %s116
      %s117 = sphi 0, %s114
      %s118 = sphi 0, %s117
      %s134 = sphi 0, %s118
      %s142 = sphi 0, %s144
      %s145 = sphi 0, %s142
      %s146 = sphi 0, %s145
      %s162 = sphi 0, %s146
      %s170 = sphi 0, %s172
      %s173 = sphi 0, %s170
      %s174 = sphi 0, %s173
      %s190 = sphi 0, %s174
    $region4: #{_lambda_.15} parent=1 // loop_header_branch
      %15 = sbr.rel (%p13) target = $region8
    $region5: #{_lambda_.15} parent=1 // loop_body
      %s17 = ssub.s32 %s12, 1
      %s18 = ssub.s32 %s12, 2
      %s25 = sadd.s32 1, %s20
      %p26 = scmp.ge.s32.totalorder %s25, 1
      %s27 = scalar_select %p26, 0, %s25
      %s28 = sadd.s32 1, %s19
      %s29 = scalar_select %p26, %s28, %s19
      %p30 = scmp.ge.s32.totalorder %s29, 2
      %s31 = scalar_select %p30, 0, %s29
      %s32 = ssub.s32 %s19, %s31
      %s33 = ssub.s32 %s20, %s27
      %s34 = sor.u32 %s32, %s33
      %p35 = scmp.eq.s32.totalorder %s34, 0
      %s37 = sadd.s32 %s36, 1
      %s38 = scalar_select %p35, %s36, %s37
      %p41 = pneg %p35
      %p42 = scmp.eq.s32.totalorder %s12, 1
      %p43 = por %p41, %p42
      %p44 = scmp.ne.s32.totalorder %s36, %s39
      %p45 = scmp.eq.s32.totalorder %s12, 0
      %p46 = por %p44, %p45
      %p47 = scmp.ne.s32.totalorder %s36, %s39
      %p48 = scmp.eq.s32.totalorder %s17, 1
      %p49 = por %p47, %p48
      %p50 = scmp.ne.s32.totalorder %s39, %s40
      %p51 = scmp.eq.s32.totalorder %s17, 0
      %p52 = por %p50, %p51
      %p53 = scmp.ne.s32.totalorder %s39, %s40
      %p54 = scmp.eq.s32.totalorder %s18, 1
      %p55 = por %p53, %p54
      %p57 = scmp.ne.s32.totalorder %s40, %s56
      %p58 = scmp.eq.s32.totalorder %s18, 0
      %p59 = por %p57, %p58
      %s60 = ssub.s32 %s20, %s27
      %p61 = scmp.eq.s32.totalorder %s60, 0
      %s63 = sadd.s32 %s62, 1
      %s64 = scalar_select %p61, %s62, %s63
      %p67 = pneg %p61
      %p68 = scmp.eq.s32.totalorder %s12, 1
      %p69 = por %p67, %p68
      %p70 = scmp.ne.s32.totalorder %s62, %s65
      %p71 = scmp.eq.s32.totalorder %s12, 0
      %p72 = por %p70, %p71
      %p73 = scmp.ne.s32.totalorder %s62, %s65
      %p74 = scmp.eq.s32.totalorder %s17, 1
      %p75 = por %p73, %p74
      %p76 = scmp.ne.s32.totalorder %s65, %s66
      %p77 = scmp.eq.s32.totalorder %s17, 0
      %p78 = por %p76, %p77
      %p79 = scmp.ne.s32.totalorder %s65, %s66
      %p80 = scmp.eq.s32.totalorder %s18, 1
      %p81 = por %p79, %p80
      %p83 = scmp.ne.s32.totalorder %s66, %s82
      %p84 = scmp.eq.s32.totalorder %s18, 0
      %p85 = por %p83, %p84
      %s86 = ssub.s32 %s20, %s27
      %p87 = scmp.eq.s32.totalorder %s86, 0
      %s89 = sadd.s32 %s88, 1
      %s90 = scalar_select %p87, %s88, %s89
      %p93 = pneg %p87
      %p94 = scmp.eq.s32.totalorder %s12, 1
      %p95 = por %p93, %p94
      %p96 = scmp.ne.s32.totalorder %s88, %s91
      %p97 = scmp.eq.s32.totalorder %s12, 0
      %p98 = por %p96, %p97
      %p99 = scmp.ne.s32.totalorder %s88, %s91
      %p100 = scmp.eq.s32.totalorder %s17, 1
      %p101 = por %p99, %p100
      %p102 = scmp.ne.s32.totalorder %s91, %s92
      %p103 = scmp.eq.s32.totalorder %s17, 0
      %p104 = por %p102, %p103
      %p105 = scmp.ne.s32.totalorder %s91, %s92
      %p106 = scmp.eq.s32.totalorder %s18, 1
      %p107 = por %p105, %p106
      %p109 = scmp.ne.s32.totalorder %s92, %s108
      %p110 = scmp.eq.s32.totalorder %s18, 0
      %p111 = por %p109, %p110
      %s112 = ssub.s32 %s20, %s27
      %p113 = scmp.eq.s32.totalorder %s112, 0
      %s115 = sadd.s32 %s114, 1
      %s116 = scalar_select %p113, %s114, %s115
      %p119 = pneg %p113
      %p120 = scmp.eq.s32.totalorder %s12, 1
      %p121 = por %p119, %p120
      %p122 = scmp.ne.s32.totalorder %s114, %s117
      %p123 = scmp.eq.s32.totalorder %s12, 0
      %p124 = por %p122, %p123
      %p125 = scmp.ne.s32.totalorder %s114, %s117
      %p126 = scmp.eq.s32.totalorder %s17, 1
      %p127 = por %p125, %p126
      %p128 = scmp.ne.s32.totalorder %s117, %s118
      %p129 = scmp.eq.s32.totalorder %s17, 0
      %p130 = por %p128, %p129
      %p131 = scmp.ne.s32.totalorder %s117, %s118
      %p132 = scmp.eq.s32.totalorder %s18, 1
      %p133 = por %p131, %p132
      %p135 = scmp.ne.s32.totalorder %s118, %s134
      %p136 = scmp.eq.s32.totalorder %s18, 0
      %p137 = por %p135, %p136
      %s138 = ssub.s32 %s19, %s31
      %s139 = ssub.s32 %s20, %s27
      %s140 = sor.u32 %s138, %s139
      %p141 = scmp.eq.s32.totalorder %s140, 0
      %s143 = sadd.s32 %s142, 1
      %s144 = scalar_select %p141, %s142, %s143
      %p147 = pneg %p141
      %p148 = scmp.eq.s32.totalorder %s12, 1
      %p149 = por %p147, %p148
      %p150 = scmp.ne.s32.totalorder %s142, %s145
      %p151 = scmp.eq.s32.totalorder %s12, 0
      %p152 = por %p150, %p151
      %p153 = scmp.ne.s32.totalorder %s142, %s145
      %p154 = scmp.eq.s32.totalorder %s17, 1
      %p155 = por %p153, %p154
      %p156 = scmp.ne.s32.totalorder %s145, %s146
      %p157 = scmp.eq.s32.totalorder %s17, 0
      %p158 = por %p156, %p157
      %p159 = scmp.ne.s32.totalorder %s145, %s146
      %p160 = scmp.eq.s32.totalorder %s18, 1
      %p161 = por %p159, %p160
      %p163 = scmp.ne.s32.totalorder %s146, %s162
      %p164 = scmp.eq.s32.totalorder %s18, 0
      %p165 = por %p163, %p164
      %s166 = ssub.s32 %s19, %s31
      %s167 = ssub.s32 %s20, %s27
      %s168 = sor.u32 %s166, %s167
      %p169 = scmp.eq.s32.totalorder %s168, 0
      %s171 = sadd.s32 %s170, 1
      %s172 = scalar_select %p169, %s170, %s171
      %p175 = pneg %p169
      %p176 = scmp.eq.s32.totalorder %s12, 1
      %p177 = por %p175, %p176
      %p178 = scmp.ne.s32.totalorder %s170, %s173
      %p179 = scmp.eq.s32.totalorder %s12, 0
      %p180 = por %p178, %p179
      %p181 = scmp.ne.s32.totalorder %s170, %s173
      %p182 = scmp.eq.s32.totalorder %s17, 1
      %p183 = por %p181, %p182
      %p184 = scmp.ne.s32.totalorder %s173, %s174
      %p185 = scmp.eq.s32.totalorder %s17, 0
      %p186 = por %p184, %p185
      %p187 = scmp.ne.s32.totalorder %s173, %s174
      %p188 = scmp.eq.s32.totalorder %s18, 1
      %p189 = por %p187, %p188
      %p191 = scmp.ne.s32.totalorder %s174, %s190
      %p192 = scmp.eq.s32.totalorder %s18, 0
      %p193 = por %p191, %p192
      %p194 = scmp.le.s32.totalorder 1, %s12
      %p195 = scmp.lt.s32.totalorder %s12, 3
      %p196 = pnand %p194, %p195
      %p197 = pneg %p196
      // Predicated region
      $region9: #{_lambda_.15} parent=5 // pred_check
        _
      $region10: #{_lambda_.15} parent=5 // pred_check_branch
        %199 = sbr.rel (%p196) target = $region12
      $region11: #{_lambda_.15} parent=5 // pred_region
        %s200 = ssub.s32 %s12, 1
        // Predicated region
        $region13: #{_lambda_.15} parent=11 // pred_check
          %p201 = pneg %p78
        $region14: #{_lambda_.15} parent=11 // pred_check_branch
          %203 = sbr.rel (%p201) target = $region16
        $region15: #{_lambda_.15} parent=11 // pred_region
          %p204 = scmp.lt.s32.totalorder %s22, 0
          %s205 = scalar_select %p204, %s22, 0
          %s206 = smul.addr %s205, 8
          %s207 = scalar_lea.vmem %s1, %s206
        $region16: #{_lambda_.15} parent=11 // pred_fallthru
          _
        // Predicated region
        $region17: #{_lambda_.15} parent=11 // pred_check
          %p208 = pneg %p104
        $region18: #{_lambda_.15} parent=11 // pred_check_branch
          %210 = sbr.rel (%p208) target = $region20
        $region19: #{_lambda_.15} parent=11 // pred_region
          %p211 = scmp.lt.s32.totalorder %s22, 0
          %s212 = scalar_select %p211, %s22, 0
          %s213 = scalar_lea.vmem %s2, %s212
        $region20: #{_lambda_.15} parent=11 // pred_fallthru
          _
        // Predicated region
        $region21: #{_lambda_.15} parent=11 // pred_check
          %p214 = pneg %p130
        $region22: #{_lambda_.15} parent=11 // pred_check_branch
          %216 = sbr.rel (%p214) target = $region24
        $region23: #{_lambda_.15} parent=11 // pred_region
          %p217 = scmp.lt.s32.totalorder %s22, 0
          %s218 = scalar_select %p217, %s22, 0
          %s219 = scalar_lea.vmem %s3, %s218
        $region24: #{_lambda_.15} parent=11 // pred_fallthru
          _
      $region12: #{_lambda_.15} parent=5 // pred_fallthru
        _
      %p220 = scmp.lt.s32.totalorder %s12, 2
      // Predicated region
      $region25: #{_lambda_.15} parent=5 // pred_check
        %p221 = pneg %p220
      $region26: #{_lambda_.15} parent=5 // pred_check_branch
        %223 = sbr.rel (%p221) target = $region28
      $region27: #{_lambda_.15} parent=5 // pred_region
        // Predicated region
        $region29: #{_lambda_.15} parent=27 // pred_check
          %p224 = pneg %p46
        $region30: #{_lambda_.15} parent=27 // pred_check_branch
          %226 = sbr.rel (%p224) target = $region32
        $region31: #{_lambda_.15} parent=27 // pred_region
          %s227 = sand.u32 %s36, 1
          %s228 = sand.u32 %s36, 1
          %s229 = smul.addr %s228, 80
          %s230 = scalar_lea.vmem [#allocation2], %s229
          %s231 = smul.addr %s19, 5
          %s232 = sadd.s32 %s20, %s231
          %s233 = smul.addr %s232, 4
          %s234 = scalar_lea.vmem %s0, %s233
          // Predicated region
          $region33: #{_lambda_.15} parent=31 // pred_check
            _
          $region34: #{_lambda_.15} parent=31 // pred_check_branch
            %236 = sbr.rel (0) target = $region36
          $region35: #{_lambda_.15} parent=31 // pred_region
            // Predicated region
            $region37: #{_lambda_.15} parent=35 // pred_check
              _
            $region38: #{_lambda_.15} parent=35 // pred_check_branch
              %238 = sbr.rel target = $region40
            $region39: #{_lambda_.15} parent=35 // pred_region
              // Predicated region
              $region52: #{_lambda_.15} parent=39 // pred_check
                _
              $region53: #{_lambda_.15} parent=39 // pred_check_branch
                %291 = sbr.rel (0) target = $region55
              $region54: #{_lambda_.15} parent=39 // pred_region
                loop: start=0, step=1, limit=1
                $region56: #{_lambda_.15} parent=54 // loop_pre_header
                  _
                $region57: #{_lambda_.15} parent=54 // loop_header
                  %s293 = sphi 0, %s297
                  %p294 = scmp.ge.s32.totalorder %s293, 1
                  %s298 = sphi %s234, %s234
                  %s299 = sphi %s230, %s230
                $region58: #{_lambda_.15} parent=54 // loop_header_branch
                  %296 = sbr.rel (%p294) target = $region62
                $region59: #{_lambda_.15} parent=54 // loop_body
                  _
                $region60: #{_lambda_.15} parent=54 // loop_footer
                  %s297 = sadd.s32 1, %s293
                $region61: #{_lambda_.15} parent=54 // loop_footer_branch
                  %292 = sbr.rel target = $region57
                $region62: #{_lambda_.15} parent=54 // loop_exit
                  _
                loop: start=0, step=1, limit=1
                $region63: #{_lambda_.15} parent=54 // loop_pre_header
                  _
                $region64: #{_lambda_.15} parent=54 // loop_header
                  %s302 = sphi 0, %s306
                  %p303 = scmp.ge.s32.totalorder %s302, 1
                  %s307 = sphi %s234, %s234
                  %s308 = sphi %s230, %s230
                $region65: #{_lambda_.15} parent=54 // loop_header_branch
                  %305 = sbr.rel (%p303) target = $region69
                $region66: #{_lambda_.15} parent=54 // loop_body
                  %v309 = vld [vmem:[%s307] sm:$0xf]
                  %310 = vst [vmem:[%s308] sm:$0xf] %v309
                  %v311 = vld [vmem:[%s307 + $0x4] sm:$0xf]
                  %312 = vst [vmem:[%s308 + $0x4] sm:$0xf] %v311
                  %v313 = vld [vmem:[%s307 + $0x8] sm:$0xf]
                  %314 = vst [vmem:[%s308 + $0x8] sm:$0xf] %v313
                  %v315 = vld [vmem:[%s307 + $0xc] sm:$0xf]
                  %316 = vst [vmem:[%s308 + $0xc] sm:$0xf] %v315
                  %v317 = vld [vmem:[%s307 + $0x10] sm:$0xf]
                  %318 = vst [vmem:[%s308 + $0x10] sm:$0xf] %v317
                  %v319 = vld [vmem:[%s307 + $0x28] sm:$0xf]
                  %320 = vst [vmem:[%s308 + $0x14] sm:$0xf] %v319
                  %v321 = vld [vmem:[%s307 + $0x2c] sm:$0xf]
                  %322 = vst [vmem:[%s308 + $0x18] sm:$0xf] %v321
                  %v323 = vld [vmem:[%s307 + $0x30] sm:$0xf]
                  %324 = vst [vmem:[%s308 + $0x1c] sm:$0xf] %v323
                  %v325 = vld [vmem:[%s307 + $0x34] sm:$0xf]
                  %326 = vst [vmem:[%s308 + $0x20] sm:$0xf] %v325
                  %v327 = vld [vmem:[%s307 + $0x38] sm:$0xf]
                  %328 = vst [vmem:[%s308 + $0x24] sm:$0xf] %v327
                  %v329 = vld [vmem:[%s307 + $0x50] sm:$0xf]
                  %330 = vst [vmem:[%s308 + $0x28] sm:$0xf] %v329
                  %v331 = vld [vmem:[%s307 + $0x54] sm:$0xf]
                  %332 = vst [vmem:[%s308 + $0x2c] sm:$0xf] %v331
                  %v333 = vld [vmem:[%s307 + $0x58] sm:$0xf]
                  %334 = vst [vmem:[%s308 + $0x30] sm:$0xf] %v333
                  %v335 = vld [vmem:[%s307 + $0x5c] sm:$0xf]
                  %336 = vst [vmem:[%s308 + $0x34] sm:$0xf] %v335
                  %v337 = vld [vmem:[%s307 + $0x60] sm:$0xf]
                  %338 = vst [vmem:[%s308 + $0x38] sm:$0xf] %v337
                  %v339 = vld [vmem:[%s307 + $0x78] sm:$0xf]
                  %340 = vst [vmem:[%s308 + $0x3c] sm:$0xf] %v339
                  %v341 = vld [vmem:[%s307 + $0x7c] sm:$0xf]
                  %342 = vst [vmem:[%s308 + $0x40] sm:$0xf] %v341
                  %v343 = vld [vmem:[%s307 + $0x80] sm:$0xf]
                  %344 = vst [vmem:[%s308 + $0x44] sm:$0xf] %v343
                  %v345 = vld [vmem:[%s307 + $0x84] sm:$0xf]
                  %346 = vst [vmem:[%s308 + $0x48] sm:$0xf] %v345
                  %v347 = vld [vmem:[%s307 + $0x88] sm:$0xf]
                  %348 = vst [vmem:[%s308 + $0x4c] sm:$0xf] %v347
                $region67: #{_lambda_.15} parent=54 // loop_footer
                  %s306 = sadd.s32 1, %s302
                $region68: #{_lambda_.15} parent=54 // loop_footer_branch
                  %301 = sbr.rel target = $region64
                $region69: #{_lambda_.15} parent=54 // loop_exit
                  _
              $region55: #{_lambda_.15} parent=39 // pred_fallthru
                _
            $region40: #{_lambda_.15} parent=35 // pred_fallthru
              _
            // Predicated region
            $region41: #{_lambda_.15} parent=35 // pred_check
              _
            $region42: #{_lambda_.15} parent=35 // pred_check_branch
              %240 = sbr.rel (0) target = $region44
            $region43: #{_lambda_.15} parent=35 // pred_region
              loop: start=0, step=1, limit=1
              $region45: #{_lambda_.15} parent=43 // loop_pre_header
                _
              $region46: #{_lambda_.15} parent=43 // loop_header
                %s243 = sphi 0, %s247
                %p244 = scmp.ge.s32.totalorder %s243, 1
                %s248 = sphi %s234, %s234
                %s249 = sphi %s230, %s230
              $region47: #{_lambda_.15} parent=43 // loop_header_branch
                %246 = sbr.rel (%p244) target = $region51
              $region48: #{_lambda_.15} parent=43 // loop_body
                %v250 = vld [vmem:[%s248] sm:$0xf]
                %251 = vst [vmem:[%s249] sm:$0xf] %v250
                %v252 = vld [vmem:[%s248 + $0x4] sm:$0xf]
                %253 = vst [vmem:[%s249 + $0x4] sm:$0xf] %v252
                %v254 = vld [vmem:[%s248 + $0x8] sm:$0xf]
                %255 = vst [vmem:[%s249 + $0x8] sm:$0xf] %v254
                %v256 = vld [vmem:[%s248 + $0xc] sm:$0xf]
                %257 = vst [vmem:[%s249 + $0xc] sm:$0xf] %v256
                %v258 = vld [vmem:[%s248 + $0x10] sm:$0xf]
                %259 = vst [vmem:[%s249 + $0x10] sm:$0xf] %v258
                %v260 = vld [vmem:[%s248 + $0x28] sm:$0xf]
                %261 = vst [vmem:[%s249 + $0x14] sm:$0xf] %v260
                %v262 = vld [vmem:[%s248 + $0x2c] sm:$0xf]
                %263 = vst [vmem:[%s249 + $0x18] sm:$0xf] %v262
                %v264 = vld [vmem:[%s248 + $0x30] sm:$0xf]
                %265 = vst [vmem:[%s249 + $0x1c] sm:$0xf] %v264
                %v266 = vld [vmem:[%s248 + $0x34] sm:$0xf]
                %267 = vst [vmem:[%s249 + $0x20] sm:$0xf] %v266
                %v268 = vld [vmem:[%s248 + $0x38] sm:$0xf]
                %269 = vst [vmem:[%s249 + $0x24] sm:$0xf] %v268
                %v270 = vld [vmem:[%s248 + $0x50] sm:$0xf]
                %271 = vst [vmem:[%s249 + $0x28] sm:$0xf] %v270
                %v272 = vld [vmem:[%s248 + $0x54] sm:$0xf]
                %273 = vst [vmem:[%s249 + $0x2c] sm:$0xf] %v272
                %v274 = vld [vmem:[%s248 + $0x58] sm:$0xf]
                %275 = vst [vmem:[%s249 + $0x30] sm:$0xf] %v274
                %v276 = vld [vmem:[%s248 + $0x5c] sm:$0xf]
                %277 = vst [vmem:[%s249 + $0x34] sm:$0xf] %v276
                %v278 = vld [vmem:[%s248 + $0x60] sm:$0xf]
                %279 = vst [vmem:[%s249 + $0x38] sm:$0xf] %v278
                %v280 = vld [vmem:[%s248 + $0x78] sm:$0xf]
                %281 = vst [vmem:[%s249 + $0x3c] sm:$0xf] %v280
                %v282 = vld [vmem:[%s248 + $0x7c] sm:$0xf]
                %283 = vst [vmem:[%s249 + $0x40] sm:$0xf] %v282
                %v284 = vld [vmem:[%s248 + $0x80] sm:$0xf]
                %285 = vst [vmem:[%s249 + $0x44] sm:$0xf] %v284
                %v286 = vld [vmem:[%s248 + $0x84] sm:$0xf]
                %287 = vst [vmem:[%s249 + $0x48] sm:$0xf] %v286
                %v288 = vld [vmem:[%s248 + $0x88] sm:$0xf]
                %289 = vst [vmem:[%s249 + $0x4c] sm:$0xf] %v288
              $region49: #{_lambda_.15} parent=43 // loop_footer
                %s247 = sadd.s32 1, %s243
              $region50: #{_lambda_.15} parent=43 // loop_footer_branch
                %242 = sbr.rel target = $region46
              $region51: #{_lambda_.15} parent=43 // loop_exit
                _
            $region44: #{_lambda_.15} parent=35 // pred_fallthru
              _
          $region36: #{_lambda_.15} parent=31 // pred_fallthru
            _
          %349 = vnop
        $region32: #{_lambda_.15} parent=27 // pred_fallthru
          _
      $region28: #{_lambda_.15} parent=5 // pred_fallthru
        _
      %p350 = scmp.le.s32.totalorder 1, %s12
      %p351 = scmp.lt.s32.totalorder %s12, 3
      %p352 = pnand %p350, %p351
      %p353 = pneg %p352
      // Predicated region
      $region70: #{_lambda_.15} parent=5 // pred_check
        _
      $region71: #{_lambda_.15} parent=5 // pred_check_branch
        %355 = sbr.rel (%p352) target = $region73
      $region72: #{_lambda_.15} parent=5 // pred_region
        %s356 = ssub.s32 %s12, 1
        %s357 = sand.u32 %s39, 1
        %s358 = sand.u32 %s39, 1
        %s359 = smul.addr %s358, 80
        %s360 = scalar_lea.vmem [#allocation2], %s359
        // Predicated region
        $region74: #{_lambda_.15} parent=72 // pred_check
          %p361 = pneg %p52
        $region75: #{_lambda_.15} parent=72 // pred_check_branch
          %363 = sbr.rel (%p361) target = $region77
        $region76: #{_lambda_.15} parent=72 // pred_region
          _
        $region77: #{_lambda_.15} parent=72 // pred_fallthru
          _
        %s364 = sand.u32 %s39, 1
        %s365 = sand.u32 %s39, 1
        %s366 = smul.addr %s365, 80
        %s367 = scalar_lea.vmem [#allocation2], %s366
        %p368 = pneg %p52
        %p369 = pneg %p49
        %p370 = scmp.lt.s32.totalorder %s22, 0
        %s371 = scalar_select %p370, %s22, 0
        %s372 = smul.addr %s371, 8
        %s373 = scalar_lea.vmem %s1, %s372
        %p374 = pneg %p78
        %p375 = pneg %p75
        %p376 = scmp.lt.s32.totalorder %s22, 0
        %s377 = scalar_select %p376, %s22, 0
        %s378 = scalar_lea.vmem %s2, %s377
        %p379 = pneg %p104
        %p380 = pneg %p101
        %p381 = scmp.lt.s32.totalorder %s22, 0
        %s382 = scalar_select %p381, %s22, 0
        %s383 = scalar_lea.vmem %s3, %s382
        %p384 = pneg %p130
        %p385 = pneg %p127
        %p386 = pneg %p158
        %p387 = pneg %p155
        %p388 = scmp.lt.s32.totalorder %s21, 1
        %s389 = scalar_select %p388, %s21, 1
        %p390 = scmp.lt.s32.totalorder %s22, 0
        %s391 = scalar_select %p390, %s22, 0
        %s392 = smul.addr %s389, 4
        %s393 = sadd.s32 %s391, %s392
        %s394 = smul.addr %s393, 2
        %s395 = scalar_lea.vmem %s4, %s394
        %p396 = pneg %p186
        %p397 = pneg %p183
        %p398 = scmp.lt.s32.totalorder %s21, 1
        %s399 = scalar_select %p398, %s21, 1
        %p400 = scmp.lt.s32.totalorder %s22, 0
        %s401 = scalar_select %p400, %s22, 0
        %s402 = sadd.s32 %s401, %s399
        %s403 = scalar_lea.vmem %s5, %s402
        %p404 = scmp.lt.s32.totalorder %s22, 0
        %s405 = scalar_select %p404, %s22, 0
        %s406 = smul.addr %s405, 8
        %s407 = scalar_lea.vmem %s1, %s406
        %p408 = scmp.lt.s32.totalorder %s22, 0
        %s409 = scalar_select %p408, %s22, 0
        %s410 = scalar_lea.vmem %s2, %s409
        %p411 = scmp.lt.s32.totalorder %s22, 0
        %s412 = scalar_select %p411, %s22, 0
        %s413 = scalar_lea.vmem %s3, %s412
        %p414 = scmp.lt.s32.totalorder %s21, 1
        %s415 = scalar_select %p414, %s21, 1
        %p416 = scmp.lt.s32.totalorder %s22, 0
        %s417 = scalar_select %p416, %s22, 0
        %s418 = smul.addr %s415, 4
        %s419 = sadd.s32 %s417, %s418
        %s420 = smul.addr %s419, 2
        %s421 = scalar_lea.vmem %s4, %s420
        %p422 = scmp.lt.s32.totalorder %s21, 1
        %s423 = scalar_select %p422, %s21, 1
        %p424 = scmp.lt.s32.totalorder %s22, 0
        %s425 = scalar_select %p424, %s22, 0
        %s426 = sadd.s32 %s425, %s423
        %s427 = scalar_lea.vmem %s5, %s426
        %v428 = vld [vmem:[%s360] sm:$0x3]
        %v429 = vld [vmem:[%s360 + $0x4] sm:$0x3]
        %v430 = vld [vmem:[%s360 + $0x8] sm:$0x3]
        %v431 = vld [vmem:[%s360 + $0xc] sm:$0x3]
        %v432 = vld [vmem:[%s360 + $0x10] sm:$0x3]
        %v433 = vunpack.c.l.bf16 %v428
        %v434 = vunpack.c.l.bf16 %v429
        %v435 = vunpack.c.l.bf16 %v430
        %v436 = vunpack.c.l.bf16 %v431
        %v437 = vld [vmem:[%s407] sm:$0x1]
        %v438 = vlaneseq
        %v439 = vshrl.u32 %v438, 7
        %v440 = vsub.s32 0, %v439
        %v441 = vrot.slane %v437, %v440
        %v442 = vmul.f32 %v433, %v441
        %v443 = vmul.f32 %v434, %v441
        %v444 = vmul.f32 %v435, %v441
        %v445 = vmul.f32 %v436, %v441
        %v446 = vunpack.c.l.bf16 %v432
        %v447 = vld [vmem:[%s407 + $0x6] sm:$0x1]
        %v448 = vlaneseq
        %v449 = vshrl.u32 %v448, 7
        %v450 = vsub.s32 0, %v449
        %v451 = vrot.slane %v447, %v450
        %v452 = vmul.f32 %v434, %v451
        %v453 = vmul.f32 %v435, %v451
        %v454 = vmul.f32 %v436, %v451
        %v455 = vmul.f32 %v446, %v451
        %v456 = vadd.f32 %v442, %v452
        %v457 = vadd.f32 %v443, %v453
        %v458 = vadd.f32 %v444, %v454
        %v459 = vadd.f32 %v445, %v455
        %v460 = vld [vmem:[%s360] sm:$0x7]
        %v461 = vld [vmem:[%s360 + $0x4] sm:$0x7]
        %v462 = vld [vmem:[%s360 + $0x8] sm:$0x7]
        %v463 = vld [vmem:[%s360 + $0xc] sm:$0x7]
        %v464 = vld [vmem:[%s360 + $0x10] sm:$0x7]
        %v465 = vunpack.c.l.bf16 %v460
        %v466 = vunpack.c.l.bf16 %v461
        %v467 = vunpack.c.l.bf16 %v462
        %v468 = vunpack.c.l.bf16 %v463
        %v469 = vld [vmem:[%s407 + $0x2] sm:$0x1]
        %v470 = vlaneseq
        %v471 = vshrl.u32 %v470, 7
        %v472 = vsub.s32 0, %v471
        %v473 = vrot.slane %v469, %v472
        %v474 = vmul.f32 %v465, %v473
        %v475 = vmul.f32 %v466, %v473
        %v476 = vmul.f32 %v467, %v473
        %v477 = vmul.f32 %v468, %v473
        %v482 = vrot.slane %v474, 1
        %v483 = vrot.slane %v475, 1
        %v484 = vrot.slane %v476, 1
        %v485 = vrot.slane %v477, 1
        %v490 = vadd.f32 %v456, %v482
        %v491 = vadd.f32 %v457, %v483
        %v492 = vadd.f32 %v458, %v484
        %v493 = vadd.f32 %v459, %v485
        %v494 = vunpack.c.l.bf16 %v464
        %v495 = vld [vmem:[%s407 + $0x8] sm:$0x1]
        %v496 = vlaneseq
        %v497 = vshrl.u32 %v496, 7
        %v498 = vsub.s32 0, %v497
        %v499 = vrot.slane %v495, %v498
        %v500 = vmul.f32 %v466, %v499
        %v501 = vmul.f32 %v467, %v499
        %v502 = vmul.f32 %v468, %v499
        %v503 = vmul.f32 %v494, %v499
        %v508 = vrot.slane %v500, 1
        %v509 = vrot.slane %v501, 1
        %v510 = vrot.slane %v502, 1
        %v511 = vrot.slane %v503, 1
        %v516 = vadd.f32 %v490, %v508
        %v517 = vadd.f32 %v491, %v509
        %v518 = vadd.f32 %v492, %v510
        %v519 = vadd.f32 %v493, %v511
        %s520 = scalar_lea.vmem %s360, 20 [#allocation2]
        %v521 = vld [vmem:[%s520] sm:$0x3]
        %v522 = vld [vmem:[%s520 + $0x4] sm:$0x3]
        %v523 = vld [vmem:[%s520 + $0x8] sm:$0x3]
        %v524 = vld [vmem:[%s520 + $0xc] sm:$0x3]
        %v525 = vld [vmem:[%s520 + $0x10] sm:$0x3]
        %v526 = vunpack.c.l.bf16 %v521
        %v527 = vunpack.c.l.bf16 %v522
        %v528 = vunpack.c.l.bf16 %v523
        %v529 = vunpack.c.l.bf16 %v524
        %v530 = vld [vmem:[%s407 + $0x1] sm:$0x1]
        %v531 = vlaneseq
        %v532 = vshrl.u32 %v531, 7
        %v533 = vsub.s32 0, %v532
        %v534 = vrot.slane %v530, %v533
        %v535 = vmul.f32 %v526, %v534
        %v536 = vmul.f32 %v527, %v534
        %v537 = vmul.f32 %v528, %v534
        %v538 = vmul.f32 %v529, %v534
        %v539 = vadd.f32 %v516, %v535
        %v540 = vadd.f32 %v517, %v536
        %v541 = vadd.f32 %v518, %v537
        %v542 = vadd.f32 %v519, %v538
        %v543 = vunpack.c.l.bf16 %v525
        %v544 = vld [vmem:[%s407 + $0x7] sm:$0x1]
        %v545 = vlaneseq
        %v546 = vshrl.u32 %v545, 7
        %v547 = vsub.s32 0, %v546
        %v548 = vrot.slane %v544, %v547
        %v549 = vmul.f32 %v527, %v548
        %v550 = vmul.f32 %v528, %v548
        %v551 = vmul.f32 %v529, %v548
        %v552 = vmul.f32 %v543, %v548
        %v553 = vadd.f32 %v539, %v549
        %v554 = vadd.f32 %v540, %v550
        %v555 = vadd.f32 %v541, %v551
        %v556 = vadd.f32 %v542, %v552
        %s557 = scalar_lea.vmem %s360, 40 [#allocation2]
        %v558 = vld [vmem:[%s557] sm:$0x3]
        %v559 = vld [vmem:[%s557 + $0x4] sm:$0x3]
        %v560 = vld [vmem:[%s557 + $0x8] sm:$0x3]
        %v561 = vld [vmem:[%s557 + $0xc] sm:$0x3]
        %v562 = vunpack.c.l.bf16 %v558
        %v563 = vunpack.c.l.bf16 %v559
        %v564 = vunpack.c.l.bf16 %v560
        %v565 = vunpack.c.l.bf16 %v561
        %v566 = vld [vmem:[%s407 + $0x3] sm:$0x1]
        %v567 = vlaneseq
        %v568 = vshrl.u32 %v567, 7
        %v569 = vsub.s32 0, %v568
        %v570 = vrot.slane %v566, %v569
        %v571 = vmul.f32 %v562, %v570
        %v572 = vmul.f32 %v563, %v570
        %v573 = vmul.f32 %v564, %v570
        %v574 = vmul.f32 %v565, %v570
        %v575 = vadd.f32 %v553, %v571
        %v576 = vadd.f32 %v554, %v572
        %v577 = vadd.f32 %v555, %v573
        %v578 = vadd.f32 %v556, %v574
        %v579 = vld [vmem:[%s557] sm:$0x7]
        %v580 = vld [vmem:[%s557 + $0x4] sm:$0x7]
        %v581 = vld [vmem:[%s557 + $0x8] sm:$0x7]
        %v582 = vld [vmem:[%s557 + $0xc] sm:$0x7]
        %v583 = vunpack.c.l.bf16 %v579
        %v584 = vunpack.c.l.bf16 %v580
        %v585 = vunpack.c.l.bf16 %v581
        %v586 = vunpack.c.l.bf16 %v582
        %v587 = vld [vmem:[%s407 + $0x5] sm:$0x1]
        %v588 = vlaneseq
        %v589 = vshrl.u32 %v588, 7
        %v590 = vsub.s32 0, %v589
        %v591 = vrot.slane %v587, %v590
        %v592 = vmul.f32 %v583, %v591
        %v593 = vmul.f32 %v584, %v591
        %v594 = vmul.f32 %v585, %v591
        %v595 = vmul.f32 %v586, %v591
        %v600 = vrot.slane %v592, 1
        %v601 = vrot.slane %v593, 1
        %v602 = vrot.slane %v594, 1
        %v603 = vrot.slane %v595, 1
        %v608 = vadd.f32 %v575, %v600
        %v609 = vadd.f32 %v576, %v601
        %v610 = vadd.f32 %v577, %v602
        %v611 = vadd.f32 %v578, %v603
        %s612 = scalar_lea.vmem %s360, 60 [#allocation2]
        %v613 = vld [vmem:[%s612] sm:$0x3]
        %v614 = vld [vmem:[%s612 + $0x4] sm:$0x3]
        %v615 = vld [vmem:[%s612 + $0x8] sm:$0x3]
        %v616 = vld [vmem:[%s612 + $0xc] sm:$0x3]
        %v617 = vunpack.c.l.bf16 %v613
        %v618 = vunpack.c.l.bf16 %v614
        %v619 = vunpack.c.l.bf16 %v615
        %v620 = vunpack.c.l.bf16 %v616
        %v621 = vld [vmem:[%s407 + $0x4] sm:$0x1]
        %v622 = vlaneseq
        %v623 = vshrl.u32 %v622, 7
        %v624 = vsub.s32 0, %v623
        %v625 = vrot.slane %v621, %v624
        %v626 = vmul.f32 %v617, %v625
        %v627 = vmul.f32 %v618, %v625
        %v628 = vmul.f32 %v619, %v625
        %v629 = vmul.f32 %v620, %v625
        %v630 = vadd.f32 %v608, %v626
        %v631 = vadd.f32 %v609, %v627
        %v632 = vadd.f32 %v610, %v628
        %v633 = vadd.f32 %v611, %v629
        %v634 = vld [vmem:[%s410] sm:$0x1]
        %v636 = vlaneseq
        %v637 = vshrl.u32 %v636, 7
        %v638 = vsub.s32 0, %v637
        %v639 = vrot.slane %v634, %v638
        %v641 = vmul.f32 %v630, %v639
        %v642 = vmul.f32 %v631, %v639
        %v643 = vmul.f32 %v632, %v639
        %v644 = vmul.f32 %v633, %v639
        %v645 = vld [vmem:[%s413] sm:$0x1]
        %v647 = vlaneseq
        %v648 = vshrl.u32 %v647, 7
        %v649 = vsub.s32 0, %v648
        %v650 = vrot.slane %v645, %v649
        %v652 = vadd.f32 %v641, %v650
        %v653 = vadd.f32 %v642, %v650
        %v654 = vadd.f32 %v643, %v650
        %v655 = vadd.f32 %v644, %v650
        %v656 = vxor.u32 %v652, 2147483648
        %v657 = vxor.u32 %v653, 2147483648
        %v658 = vxor.u32 %v654, 2147483648
        %v659 = vxor.u32 %v655, 2147483648
        %v660 = vmul.f32 %v656, 1.442695
        %v661 = vpow.pop %v660
        %v662 = vmul.f32 %v657, 1.442695
        %v663 = vpow.pop %v662
        %v664 = vmul.f32 %v658, 1.442695
        %v665 = vpow.pop %v664
        %v666 = vmul.f32 %v659, 1.442695
        %v667 = vpow.pop %v666
        %v668 = vadd.f32 %v661, 1.0
        %v669 = vadd.f32 %v663, 1.0
        %v670 = vadd.f32 %v665, 1.0
        %v671 = vadd.f32 %v667, 1.0
        %v672 = vrcp.pop %v668
        %v673 = vmul.f32 1.0, %v672
        %v674 = vrcp.pop %v669
        %v675 = vmul.f32 1.0, %v674
        %v676 = vrcp.pop %v670
        %v677 = vmul.f32 1.0, %v676
        %v678 = vrcp.pop %v671
        %v679 = vmul.f32 1.0, %v678
        %v680 = vmul.f32 %v652, %v673
        %v681 = vmul.f32 %v653, %v675
        %v682 = vmul.f32 %v654, %v677
        %v683 = vmul.f32 %v655, %v679
        %v684 = vpack.c.bf16 %v680, %v680
        %v685 = vpack.c.bf16 %v681, %v681
        %v686 = vpack.c.bf16 %v682, %v682
        %v687 = vpack.c.bf16 %v683, %v683
        %688 = vst [vmem:[%s421] sm:$0x3] %v684
        %689 = vst [vmem:[%s421 + $0x2] sm:$0x3] %v685
        %690 = vst [vmem:[%s421 + $0x4] sm:$0x3] %v686
        %691 = vst [vmem:[%s421 + $0x6] sm:$0x3] %v687
        %vm692 = vcmask 1043456
        %v693 = vsel %vm692, %v680, 0.0
        %v694 = vsel %vm692, %v681, 0.0
        %v695 = vadd.f32 %v693, %v694
        %v696 = vsel %vm692, %v682, 0.0
        %v697 = vadd.f32 %v695, %v696
        %v698 = vsel %vm692, %v683, 0.0
        %v699 = vadd.f32 %v697, %v698
        %v700 = vrot.slane %v699, 4
        %v701 = vadd.f32 %v699, %v700
        %v702 = vrot.slane %v701, 2
        %v703 = vadd.f32 %v701, %v702
        %v704 = vrot.slane %v703, 1
        %v705 = vadd.f32 %v703, %v704
        %706 = vst [vmem:[%s427] sm:$0x1] %v705
        %p707 = scmp.lt.s32.totalorder %s21, 1
        %s708 = scalar_select %p707, %s21, 1
        %p709 = scmp.lt.s32.totalorder %s22, 0
        %s710 = scalar_select %p709, %s22, 0
        %s711 = smul.addr %s708, 4
        %s712 = sadd.s32 %s710, %s711
        %s713 = smul.addr %s712, 2
        %s714 = scalar_lea.vmem %s4, %s713
        %p715 = scmp.lt.s32.totalorder %s21, 1
        %s716 = scalar_select %p715, %s21, 1
        %p717 = scmp.lt.s32.totalorder %s22, 0
        %s718 = scalar_select %p717, %s22, 0
        %s719 = sadd.s32 %s718, %s716
        %s720 = scalar_lea.vmem %s5, %s719
        // Predicated region
        $region78: #{_lambda_.15} parent=72 // pred_check
          %p721 = pneg %p155
        $region79: #{_lambda_.15} parent=72 // pred_check_branch
          %723 = sbr.rel (%p721) target = $region81
        $region80: #{_lambda_.15} parent=72 // pred_region
          _
        $region81: #{_lambda_.15} parent=72 // pred_fallthru
          _
        // Predicated region
        $region82: #{_lambda_.15} parent=72 // pred_check
          %p724 = pneg %p183
        $region83: #{_lambda_.15} parent=72 // pred_check_branch
          %726 = sbr.rel (%p724) target = $region85
        $region84: #{_lambda_.15} parent=72 // pred_region
          _
        $region85: #{_lambda_.15} parent=72 // pred_fallthru
          _
      $region73: #{_lambda_.15} parent=5 // pred_fallthru
        _
      %p727 = scmp.le.s32.totalorder 2, %s12
      // Predicated region
      $region86: #{_lambda_.15} parent=5 // pred_check
        %p728 = pneg %p727
      $region87: #{_lambda_.15} parent=5 // pred_check_branch
        %730 = sbr.rel (%p728) target = $region89
      $region88: #{_lambda_.15} parent=5 // pred_region
        %s731 = ssub.s32 %s12, 2
        // Predicated region
        $region90: #{_lambda_.15} parent=88 // pred_check
          %p732 = pneg %p161
        $region91: #{_lambda_.15} parent=88 // pred_check_branch
          %734 = sbr.rel (%p732) target = $region93
        $region92: #{_lambda_.15} parent=88 // pred_region
          %p735 = scmp.lt.s32.totalorder %s23, 1
          %s736 = scalar_select %p735, %s23, 1
          %p737 = scmp.lt.s32.totalorder %s24, 0
          %s738 = scalar_select %p737, %s24, 0
          %s739 = smul.addr %s736, 4
          %s740 = sadd.s32 %s738, %s739
          %s741 = smul.addr %s740, 2
          %s742 = scalar_lea.vmem %s4, %s741
        $region93: #{_lambda_.15} parent=88 // pred_fallthru
          _
        // Predicated region
        $region94: #{_lambda_.15} parent=88 // pred_check
          %p743 = pneg %p189
        $region95: #{_lambda_.15} parent=88 // pred_check_branch
          %745 = sbr.rel (%p743) target = $region97
        $region96: #{_lambda_.15} parent=88 // pred_region
          %p746 = scmp.lt.s32.totalorder %s23, 1
          %s747 = scalar_select %p746, %s23, 1
          %p748 = scmp.lt.s32.totalorder %s24, 0
          %s749 = scalar_select %p748, %s24, 0
          %s750 = sadd.s32 %s749, %s747
          %s751 = scalar_lea.vmem %s5, %s750
        $region97: #{_lambda_.15} parent=88 // pred_fallthru
          _
      $region89: #{_lambda_.15} parent=5 // pred_fallthru
        _
    $region6: #{_lambda_.15} parent=1 // loop_footer
      %s16 = sadd.s32 1, %s12
    $region7: #{_lambda_.15} parent=1 // loop_footer_branch
      %11 = sbr.rel target = $region3
    $region8: #{_lambda_.15} parent=1 // loop_exit
      _

// kernel: _lambda_.16
$region0: #{_lambda_.16}
  #allocation0 [shape = 'u32[]', space=smem, size = 0x4, offset = 0x4, fixed_abs, tag = 'smem constant byte address 0x4 - core index']
  #allocation1 [shape = 'u32[144,128]{1,0:T(1,128)}', space=vmem, size = 0x12000, scoped, tag = 'internal scratch']
  %s0 = inlined_call_operand.vmem [shape: bf16[2,16,128], index: 0, kind: input, shape index: {}]
  %s1 = inlined_call_operand.vmem [shape: bf16[128,128], index: 1, kind: input, shape index: {}]
  %s2 = inlined_call_operand.vmem [shape: f32[1,128], index: 2, kind: input, shape index: {}]
  %s3 = inlined_call_operand.vmem [shape: f32[1,128], index: 3, kind: input, shape index: {}]
  %s4 = inlined_call_operand.vmem [shape: f32[2,1,128], index: 4, kind: input, shape index: {}]
  %s5 = inlined_call_operand.vmem [shape: bf16[2,16,128], index: 5, kind: output, shape index: {}]
  %s6 = sld [smem:[#allocation0]]
  $region53: #{_lambda_.16} parent=0
    _
  %s8 = ssub.s32 1, %s6
  %s9 = scalar_select 0, %s8, %s6
  loop: start=0, step=1, limit=4
  $region2: #{_lambda_.16} parent=0 // loop_pre_header
    _
  $region3: #{_lambda_.16} parent=0 // loop_header
    %s11 = sphi 0, %s15
    %p12 = scmp.ge.s32.totalorder %s11, 4
    %s18 = sphi 0, %s44
    %s19 = sphi 0, %s40
    %s20 = sphi 0, %s36
    %s21 = sphi 0, %s32
    %s22 = sphi 0, %s18
    %s23 = sphi 0, %s19
    %s24 = sphi 0, %s20
    %s25 = sphi 0, %s21
    %s26 = sphi 0, %s22
    %s27 = sphi 0, %s23
    %s28 = sphi 0, %s24
    %s29 = sphi 0, %s25
    %s51 = sphi 0, %s53
    %s54 = sphi 0, %s51
    %s55 = sphi 0, %s54
    %s71 = sphi 0, %s55
    %s79 = sphi 0, %s81
    %s82 = sphi 0, %s79
    %s83 = sphi 0, %s82
    %s99 = sphi 0, %s83
    %s105 = sphi 0, %s107
    %s108 = sphi 0, %s105
    %s109 = sphi 0, %s108
    %s125 = sphi 0, %s109
    %s131 = sphi 0, %s133
    %s134 = sphi 0, %s131
    %s135 = sphi 0, %s134
    %s151 = sphi 0, %s135
    %s159 = sphi 0, %s161
    %s162 = sphi 0, %s159
    %s163 = sphi 0, %s162
    %s179 = sphi 0, %s163
    %s189 = sphi 0, %s191
    %s192 = sphi 0, %s189
    %s193 = sphi 0, %s192
    %s209 = sphi 0, %s193
  $region4: #{_lambda_.16} parent=0 // loop_header_branch
    %14 = sbr.rel (%p12) target = $region8
  $region5: #{_lambda_.16} parent=0 // loop_body
    %s16 = ssub.s32 %s11, 1
    %s17 = ssub.s32 %s11, 2
    %s30 = sadd.s32 1, %s21
    %p31 = scmp.ge.s32.totalorder %s30, 1
    %s32 = scalar_select %p31, 0, %s30
    %s33 = sadd.s32 1, %s20
    %s34 = scalar_select %p31, %s33, %s20
    %p35 = scmp.ge.s32.totalorder %s34, 1
    %s36 = scalar_select %p35, 0, %s34
    %s37 = sadd.s32 1, %s19
    %s38 = scalar_select %p35, %s37, %s19
    %p39 = scmp.ge.s32.totalorder %s38, 1
    %s40 = scalar_select %p39, 0, %s38
    %s41 = sadd.s32 1, %s18
    %s42 = scalar_select %p39, %s41, %s18
    %p43 = scmp.ge.s32.totalorder %s42, 2
    %s44 = scalar_select %p43, 0, %s42
    %s45 = ssub.s32 %s18, %s44
    %s46 = ssub.s32 %s19, %s40
    %s47 = sor.u32 %s45, %s46
    %s48 = ssub.s32 %s21, %s32
    %s49 = sor.u32 %s47, %s48
    %p50 = scmp.eq.s32.totalorder %s49, 0
    %s52 = sadd.s32 %s51, 1
    %s53 = scalar_select %p50, %s51, %s52
    %p56 = pneg %p50
    %p57 = scmp.eq.s32.totalorder %s11, 1
    %p58 = por %p56, %p57
    %p59 = scmp.ne.s32.totalorder %s51, %s54
    %p60 = scmp.eq.s32.totalorder %s11, 0
    %p61 = por %p59, %p60
    %p62 = scmp.ne.s32.totalorder %s51, %s54
    %p63 = scmp.eq.s32.totalorder %s16, 1
    %p64 = por %p62, %p63
    %p65 = scmp.ne.s32.totalorder %s54, %s55
    %p66 = scmp.eq.s32.totalorder %s16, 0
    %p67 = por %p65, %p66
    %p68 = scmp.ne.s32.totalorder %s54, %s55
    %p69 = scmp.eq.s32.totalorder %s17, 1
    %p70 = por %p68, %p69
    %p72 = scmp.ne.s32.totalorder %s55, %s71
    %p73 = scmp.eq.s32.totalorder %s17, 0
    %p74 = por %p72, %p73
    %s75 = ssub.s32 %s21, %s32
    %s76 = ssub.s32 %s20, %s36
    %s77 = sor.u32 %s75, %s76
    %p78 = scmp.eq.s32.totalorder %s77, 0
    %s80 = sadd.s32 %s79, 1
    %s81 = scalar_select %p78, %s79, %s80
    %p84 = pneg %p78
    %p85 = scmp.eq.s32.totalorder %s11, 1
    %p86 = por %p84, %p85
    %p87 = scmp.ne.s32.totalorder %s79, %s82
    %p88 = scmp.eq.s32.totalorder %s11, 0
    %p89 = por %p87, %p88
    %p90 = scmp.ne.s32.totalorder %s79, %s82
    %p91 = scmp.eq.s32.totalorder %s16, 1
    %p92 = por %p90, %p91
    %p93 = scmp.ne.s32.totalorder %s82, %s83
    %p94 = scmp.eq.s32.totalorder %s16, 0
    %p95 = por %p93, %p94
    %p96 = scmp.ne.s32.totalorder %s82, %s83
    %p97 = scmp.eq.s32.totalorder %s17, 1
    %p98 = por %p96, %p97
    %p100 = scmp.ne.s32.totalorder %s83, %s99
    %p101 = scmp.eq.s32.totalorder %s17, 0
    %p102 = por %p100, %p101
    %s103 = ssub.s32 %s20, %s36
    %p104 = scmp.eq.s32.totalorder %s103, 0
    %s106 = sadd.s32 %s105, 1
    %s107 = scalar_select %p104, %s105, %s106
    %p110 = pneg %p104
    %p111 = scmp.eq.s32.totalorder %s11, 1
    %p112 = por %p110, %p111
    %p113 = scmp.ne.s32.totalorder %s105, %s108
    %p114 = scmp.eq.s32.totalorder %s11, 0
    %p115 = por %p113, %p114
    %p116 = scmp.ne.s32.totalorder %s105, %s108
    %p117 = scmp.eq.s32.totalorder %s16, 1
    %p118 = por %p116, %p117
    %p119 = scmp.ne.s32.totalorder %s108, %s109
    %p120 = scmp.eq.s32.totalorder %s16, 0
    %p121 = por %p119, %p120
    %p122 = scmp.ne.s32.totalorder %s108, %s109
    %p123 = scmp.eq.s32.totalorder %s17, 1
    %p124 = por %p122, %p123
    %p126 = scmp.ne.s32.totalorder %s109, %s125
    %p127 = scmp.eq.s32.totalorder %s17, 0
    %p128 = por %p126, %p127
    %s129 = ssub.s32 %s20, %s36
    %p130 = scmp.eq.s32.totalorder %s129, 0
    %s132 = sadd.s32 %s131, 1
    %s133 = scalar_select %p130, %s131, %s132
    %p136 = pneg %p130
    %p137 = scmp.eq.s32.totalorder %s11, 1
    %p138 = por %p136, %p137
    %p139 = scmp.ne.s32.totalorder %s131, %s134
    %p140 = scmp.eq.s32.totalorder %s11, 0
    %p141 = por %p139, %p140
    %p142 = scmp.ne.s32.totalorder %s131, %s134
    %p143 = scmp.eq.s32.totalorder %s16, 1
    %p144 = por %p142, %p143
    %p145 = scmp.ne.s32.totalorder %s134, %s135
    %p146 = scmp.eq.s32.totalorder %s16, 0
    %p147 = por %p145, %p146
    %p148 = scmp.ne.s32.totalorder %s134, %s135
    %p149 = scmp.eq.s32.totalorder %s17, 1
    %p150 = por %p148, %p149
    %p152 = scmp.ne.s32.totalorder %s135, %s151
    %p153 = scmp.eq.s32.totalorder %s17, 0
    %p154 = por %p152, %p153
    %s155 = ssub.s32 %s18, %s44
    %s156 = ssub.s32 %s21, %s32
    %s157 = sor.u32 %s155, %s156
    %p158 = scmp.eq.s32.totalorder %s157, 0
    %s160 = sadd.s32 %s159, 1
    %s161 = scalar_select %p158, %s159, %s160
    %p164 = pneg %p158
    %p165 = scmp.eq.s32.totalorder %s11, 1
    %p166 = por %p164, %p165
    %p167 = scmp.ne.s32.totalorder %s159, %s162
    %p168 = scmp.eq.s32.totalorder %s11, 0
    %p169 = por %p167, %p168
    %p170 = scmp.ne.s32.totalorder %s159, %s162
    %p171 = scmp.eq.s32.totalorder %s16, 1
    %p172 = por %p170, %p171
    %p173 = scmp.ne.s32.totalorder %s162, %s163
    %p174 = scmp.eq.s32.totalorder %s16, 0
    %p175 = por %p173, %p174
    %p176 = scmp.ne.s32.totalorder %s162, %s163
    %p177 = scmp.eq.s32.totalorder %s17, 1
    %p178 = por %p176, %p177
    %p180 = scmp.ne.s32.totalorder %s163, %s179
    %p181 = scmp.eq.s32.totalorder %s17, 0
    %p182 = por %p180, %p181
    %s183 = ssub.s32 %s18, %s44
    %s184 = ssub.s32 %s19, %s40
    %s185 = sor.u32 %s183, %s184
    %s186 = ssub.s32 %s20, %s36
    %s187 = sor.u32 %s185, %s186
    %p188 = scmp.eq.s32.totalorder %s187, 0
    %s190 = sadd.s32 %s189, 1
    %s191 = scalar_select %p188, %s189, %s190
    %p194 = pneg %p188
    %p195 = scmp.eq.s32.totalorder %s11, 1
    %p196 = por %p194, %p195
    %p197 = scmp.ne.s32.totalorder %s189, %s192
    %p198 = scmp.eq.s32.totalorder %s11, 0
    %p199 = por %p197, %p198
    %p200 = scmp.ne.s32.totalorder %s189, %s192
    %p201 = scmp.eq.s32.totalorder %s16, 1
    %p202 = por %p200, %p201
    %p203 = scmp.ne.s32.totalorder %s192, %s193
    %p204 = scmp.eq.s32.totalorder %s16, 0
    %p205 = por %p203, %p204
    %p206 = scmp.ne.s32.totalorder %s192, %s193
    %p207 = scmp.eq.s32.totalorder %s17, 1
    %p208 = por %p206, %p207
    %p210 = scmp.ne.s32.totalorder %s193, %s209
    %p211 = scmp.eq.s32.totalorder %s17, 0
    %p212 = por %p210, %p211
    %p213 = scmp.le.s32.totalorder 1, %s11
    %p214 = scmp.lt.s32.totalorder %s11, 3
    %p215 = pnand %p213, %p214
    %p216 = pneg %p215
    // Predicated region
    $region9: #{_lambda_.16} parent=5 // pred_check
      _
    $region10: #{_lambda_.16} parent=5 // pred_check_branch
      %218 = sbr.rel (%p215) target = $region12
    $region11: #{_lambda_.16} parent=5 // pred_region
      %s219 = ssub.s32 %s11, 1
      // Predicated region
      $region13: #{_lambda_.16} parent=11 // pred_check
        %p220 = pneg %p95
      $region14: #{_lambda_.16} parent=11 // pred_check_branch
        %222 = sbr.rel (%p220) target = $region16
      $region15: #{_lambda_.16} parent=11 // pred_region
        %s223 = smul.u32 16, %s25
        %p224 = scmp.lt.s32.totalorder %s223, 15
        %s225 = scalar_select %p224, %s223, 15
        %p226 = scmp.lt.s32.totalorder %s24, 0
        %s227 = scalar_select %p226, %s24, 0
        %s228 = sadd.s32 %s227, %s225
        %s229 = smul.addr %s228, 4
        %s230 = scalar_lea.vmem %s1, %s229
        %s231 = smul.u32 16, %s25
      $region16: #{_lambda_.16} parent=11 // pred_fallthru
        _
      // Predicated region
      $region17: #{_lambda_.16} parent=11 // pred_check
        %p232 = pneg %p121
      $region18: #{_lambda_.16} parent=11 // pred_check_branch
        %234 = sbr.rel (%p232) target = $region20
      $region19: #{_lambda_.16} parent=11 // pred_region
        %p235 = scmp.lt.s32.totalorder %s24, 0
        %s236 = scalar_select %p235, %s24, 0
        %s237 = scalar_lea.vmem %s2, %s236
      $region20: #{_lambda_.16} parent=11 // pred_fallthru
        _
      // Predicated region
      $region21: #{_lambda_.16} parent=11 // pred_check
        %p238 = pneg %p147
      $region22: #{_lambda_.16} parent=11 // pred_check_branch
        %240 = sbr.rel (%p238) target = $region24
      $region23: #{_lambda_.16} parent=11 // pred_region
        %p241 = scmp.lt.s32.totalorder %s24, 0
        %s242 = scalar_select %p241, %s24, 0
        %s243 = scalar_lea.vmem %s3, %s242
      $region24: #{_lambda_.16} parent=11 // pred_fallthru
        _
    $region12: #{_lambda_.16} parent=5 // pred_fallthru
      _
    %p244 = scmp.lt.s32.totalorder %s11, 2
    // Predicated region
    $region25: #{_lambda_.16} parent=5 // pred_check
      %p245 = pneg %p244
    $region26: #{_lambda_.16} parent=5 // pred_check_branch
      %247 = sbr.rel (%p245) target = $region28
    $region27: #{_lambda_.16} parent=5 // pred_region
      // Predicated region
      $region29: #{_lambda_.16} parent=27 // pred_check
        %p248 = pneg %p61
      $region30: #{_lambda_.16} parent=27 // pred_check_branch
        %250 = sbr.rel (%p248) target = $region32
      $region31: #{_lambda_.16} parent=27 // pred_region
        %s251 = smul.u32 2, %s19
        %p252 = scmp.lt.s32.totalorder %s18, 1
        %s253 = scalar_select %p252, %s18, 1
        %p254 = scmp.lt.s32.totalorder %s251, 1
        %s255 = scalar_select %p254, %s251, 1
        %p256 = scmp.lt.s32.totalorder %s21, 0
        %s257 = scalar_select %p256, %s21, 0
        %s258 = sadd.s32 %s257, %s255
        %s259 = smul.addr %s253, 2
        %s260 = sadd.s32 %s258, %s259
        %s261 = smul.addr %s260, 4
        %s262 = scalar_lea.vmem %s0, %s261
        %s263 = smul.u32 2, %s19
      $region32: #{_lambda_.16} parent=27 // pred_fallthru
        _
      // Predicated region
      $region33: #{_lambda_.16} parent=27 // pred_check
        %p264 = pneg %p169
      $region34: #{_lambda_.16} parent=27 // pred_check_branch
        %266 = sbr.rel (%p264) target = $region36
      $region35: #{_lambda_.16} parent=27 // pred_region
        %p267 = scmp.lt.s32.totalorder %s18, 1
        %s268 = scalar_select %p267, %s18, 1
        %p269 = scmp.lt.s32.totalorder %s21, 0
        %s270 = scalar_select %p269, %s21, 0
        %s271 = sadd.s32 %s270, %s268
        %s272 = scalar_lea.vmem %s4, %s271
      $region36: #{_lambda_.16} parent=27 // pred_fallthru
        _
    $region28: #{_lambda_.16} parent=5 // pred_fallthru
      _
    %p273 = scmp.le.s32.totalorder 1, %s11
    %p274 = scmp.lt.s32.totalorder %s11, 3
    %p275 = pnand %p273, %p274
    %p276 = pneg %p275
    // Predicated region
    $region37: #{_lambda_.16} parent=5 // pred_check
      _
    $region38: #{_lambda_.16} parent=5 // pred_check_branch
      %278 = sbr.rel (%p275) target = $region40
    $region39: #{_lambda_.16} parent=5 // pred_region
      %s279 = ssub.s32 %s11, 1
      %s280 = smul.u32 2, %s23
      %p281 = scmp.lt.s32.totalorder %s22, 1
      %s282 = scalar_select %p281, %s22, 1
      %p283 = scmp.lt.s32.totalorder %s280, 1
      %s284 = scalar_select %p283, %s280, 1
      %p285 = scmp.lt.s32.totalorder %s25, 0
      %s286 = scalar_select %p285, %s25, 0
      %s287 = sadd.s32 %s286, %s284
      %s288 = smul.addr %s282, 2
      %s289 = sadd.s32 %s287, %s288
      %s290 = smul.addr %s289, 4
      %s291 = scalar_lea.vmem %s0, %s290
      %p292 = pneg %p67
      %p293 = pneg %p64
      %s294 = smul.u32 16, %s25
      %p295 = scmp.lt.s32.totalorder %s294, 15
      %s296 = scalar_select %p295, %s294, 15
      %p297 = scmp.lt.s32.totalorder %s24, 0
      %s298 = scalar_select %p297, %s24, 0
      %s299 = sadd.s32 %s298, %s296
      %s300 = smul.addr %s299, 4
      %s301 = scalar_lea.vmem %s1, %s300
      %p302 = pneg %p95
      %p303 = pneg %p92
      %p304 = scmp.lt.s32.totalorder %s24, 0
      %s305 = scalar_select %p304, %s24, 0
      %s306 = scalar_lea.vmem %s2, %s305
      %p307 = pneg %p121
      %p308 = pneg %p118
      %p309 = scmp.lt.s32.totalorder %s24, 0
      %s310 = scalar_select %p309, %s24, 0
      %s311 = scalar_lea.vmem %s3, %s310
      %p312 = pneg %p147
      %p313 = pneg %p144
      %p314 = scmp.lt.s32.totalorder %s22, 1
      %s315 = scalar_select %p314, %s22, 1
      %p316 = scmp.lt.s32.totalorder %s25, 0
      %s317 = scalar_select %p316, %s25, 0
      %s318 = sadd.s32 %s317, %s315
      %s319 = scalar_lea.vmem %s4, %s318
      %p320 = pneg %p175
      %p321 = pneg %p172
      %p322 = pneg %p205
      %p323 = pneg %p202
      %s324 = smul.u32 2, %s23
      %p325 = scmp.lt.s32.totalorder %s22, 1
      %s326 = scalar_select %p325, %s22, 1
      %p327 = scmp.lt.s32.totalorder %s324, 1
      %s328 = scalar_select %p327, %s324, 1
      %p329 = scmp.lt.s32.totalorder %s24, 0
      %s330 = scalar_select %p329, %s24, 0
      %s331 = sadd.s32 %s330, %s328
      %s332 = smul.addr %s326, 2
      %s333 = sadd.s32 %s331, %s332
      %s334 = smul.addr %s333, 4
      %s335 = scalar_lea.vmem %s5, %s334
      %s336 = smul.u32 2, %s23
      %p337 = scmp.lt.s32.totalorder %s22, 1
      %s338 = scalar_select %p337, %s22, 1
      %p339 = scmp.lt.s32.totalorder %s336, 1
      %s340 = scalar_select %p339, %s336, 1
      %p341 = scmp.lt.s32.totalorder %s25, 0
      %s342 = scalar_select %p341, %s25, 0
      %s343 = sadd.s32 %s342, %s340
      %s344 = smul.addr %s338, 2
      %s345 = sadd.s32 %s343, %s344
      %s346 = smul.addr %s345, 4
      %s347 = scalar_lea.vmem %s0, %s346
      %s348 = smul.u32 2, %s23
      %s349 = smul.u32 16, %s25
      %p350 = scmp.lt.s32.totalorder %s349, 15
      %s351 = scalar_select %p350, %s349, 15
      %p352 = scmp.lt.s32.totalorder %s24, 0
      %s353 = scalar_select %p352, %s24, 0
      %s354 = sadd.s32 %s353, %s351
      %s355 = smul.addr %s354, 4
      %s356 = scalar_lea.vmem %s1, %s355
      %s357 = smul.u32 16, %s25
      %p358 = scmp.lt.s32.totalorder %s24, 0
      %s359 = scalar_select %p358, %s24, 0
      %s360 = scalar_lea.vmem %s2, %s359
      %p361 = scmp.lt.s32.totalorder %s24, 0
      %s362 = scalar_select %p361, %s24, 0
      %s363 = scalar_lea.vmem %s3, %s362
      %p364 = scmp.lt.s32.totalorder %s22, 1
      %s365 = scalar_select %p364, %s22, 1
      %p366 = scmp.lt.s32.totalorder %s25, 0
      %s367 = scalar_select %p366, %s25, 0
      %s368 = sadd.s32 %s367, %s365
      %s369 = scalar_lea.vmem %s4, %s368
      %s370 = smul.u32 2, %s23
      %p371 = scmp.lt.s32.totalorder %s22, 1
      %s372 = scalar_select %p371, %s22, 1
      %p373 = scmp.lt.s32.totalorder %s370, 1
      %s374 = scalar_select %p373, %s370, 1
      %p375 = scmp.lt.s32.totalorder %s24, 0
      %s376 = scalar_select %p375, %s24, 0
      %s377 = sadd.s32 %s376, %s374
      %s378 = smul.addr %s372, 2
      %s379 = sadd.s32 %s377, %s378
      %s380 = smul.addr %s379, 4
      %s381 = scalar_lea.vmem %s5, %s380
      %s382 = smul.u32 2, %s23
      %v384 = vld [vmem:[%s347] sm:$0xf]
      %v385 = vld [vmem:[%s347 + $0x4] sm:$0xf]
      %v386 = vld [vmem:[%s369] sm:$0x1]
      %v387 = vpack.c.bf16 %v386, %v386
      %v389 = vpack.i.b16 %v387, %v387
      %v391 = vlaneseq
      %v392 = vshrl.u32 %v391, 7
      %v393 = vsub.s32 0, %v392
      %v394 = vrot.slane %v389, %v393
      %v396 = vunpack.c.l.b16 %v394
      %v397 = vpack.c.b16 %v396, %v396
      %v399 = vmul.bf16 %v384, %v397
      %v400 = vmul.bf16 %v385, %v397
      %v401 = vld [vmem:[%s356] sm:$0xf]
      %v402 = vld [vmem:[%s356 + $0x4] sm:$0xf]
      %v403 = vld [vmem:[%s356 + $0x8] sm:$0xf]
      %v404 = vld [vmem:[%s356 + $0xc] sm:$0xf]
      %v405 = vld [vmem:[%s356 + $0x10] sm:$0xf]
      %v406 = vld [vmem:[%s356 + $0x14] sm:$0xf]
      %v407 = vld [vmem:[%s356 + $0x18] sm:$0xf]
      %v408 = vld [vmem:[%s356 + $0x1c] sm:$0xf]
      %v409 = vld [vmem:[%s356 + $0x20] sm:$0xf]
      %v410 = vld [vmem:[%s356 + $0x24] sm:$0xf]
      %v411 = vld [vmem:[%s356 + $0x28] sm:$0xf]
      %v412 = vld [vmem:[%s356 + $0x2c] sm:$0xf]
      %v413 = vld [vmem:[%s356 + $0x30] sm:$0xf]
      %v414 = vld [vmem:[%s356 + $0x34] sm:$0xf]
      %v415 = vld [vmem:[%s356 + $0x38] sm:$0xf]
      %v416 = vld [vmem:[%s356 + $0x3c] sm:$0xf]
      %v419 = vunpack.c.l.b16 %v399
      %v420 = vunpack.c.l.b16 %v400
      %v421 = vpack.c.b16 %v420, %v419
      %v439 = vunpack.c.l.b16 %v401
      %v440 = vunpack.c.l.b16 %v402
      %v441 = vunpack.c.l.b16 %v403
      %v442 = vunpack.c.l.b16 %v404
      %v443 = vunpack.c.l.b16 %v405
      %v444 = vunpack.c.l.b16 %v406
      %v445 = vunpack.c.l.b16 %v407
      %v446 = vunpack.c.l.b16 %v408
      %v447 = vunpack.c.l.b16 %v409
      %v448 = vunpack.c.l.b16 %v410
      %v449 = vunpack.c.l.b16 %v411
      %v450 = vunpack.c.l.b16 %v412
      %v451 = vunpack.c.l.b16 %v413
      %v452 = vunpack.c.l.b16 %v414
      %v453 = vunpack.c.l.b16 %v415
      %v454 = vunpack.c.l.b16 %v416
      %v455 = vpack.c.b16 %v440, %v439
      %v456 = vpack.c.b16 %v442, %v441
      %v457 = vpack.c.b16 %v444, %v443
      %v458 = vpack.c.b16 %v446, %v445
      %v459 = vpack.c.b16 %v448, %v447
      %v460 = vpack.c.b16 %v450, %v449
      %v461 = vpack.c.b16 %v452, %v451
      %v462 = vpack.c.b16 %v454, %v453
      %471 = vmatprep.subr.bf16.mxu0 0
      %472 = vmatpush1.bf16.msra.mxu0 %v455
      %473 = vmatprep.subr.bf16.mxu0 0
      %474 = vmatpush1.bf16.msra.mxu0 %v456
      %475 = vmatprep.subr.bf16.mxu0 0
      %476 = vmatpush1.bf16.msra.mxu0 %v457
      %477 = vmatprep.subr.bf16.mxu0 0
      %478 = vmatpush1.bf16.msra.mxu0 %v458
      %479 = vmatprep.subr.bf16.mxu0 0
      %480 = vmatpush1.bf16.msra.mxu0 %v459
      %481 = vmatprep.subr.bf16.mxu0 0
      %482 = vmatpush1.bf16.msra.mxu0 %v460
      %483 = vmatprep.subr.bf16.mxu0 0
      %484 = vmatpush1.bf16.msra.mxu0 %v461
      %485 = vmatprep.subr.bf16.mxu0 0
      %486 = vmatpush1.bf16.msra.mxu0 %v462
      %487 = vmatprep.subr.bf16.mxu0 0
      %488 = vmatpush1.bf16.msra.mxu0 0
      %489 = vmatprep.subr.bf16.mxu0 0
      %490 = vmatpush1.bf16.msra.mxu0 0
      %491 = vmatprep.subr.bf16.mxu0 0
      %492 = vmatpush1.bf16.msra.mxu0 0
      %493 = vmatprep.subr.bf16.mxu0 0
      %494 = vmatpush1.bf16.msra.mxu0 0
      %495 = vmatprep.subr.bf16.mxu0 0
      %496 = vmatpush1.bf16.msra.mxu0 0
      %497 = vmatprep.subr.bf16.mxu0 0
      %498 = vmatpush1.bf16.msra.mxu0 0
      %499 = vmatprep.subr.bf16.mxu0 0
      %500 = vmatpush1.bf16.msra.mxu0 0
      %501 = vmatprep.subr.bf16.mxu0 0
      %502 = vmatpush1.bf16.msra.mxu0 0
      %503 = vmatprep.mubr.bf16.mxu0 0
      %504 = vmatmul.mubr.bf16.gmra.mrb[0].mxu0 %v421
      %v505 = vpop.f32.mrb[0].mxu0
      %v506 = vadd.f32 0.0, %v505
      %v507 = vpop.f32.mrb[0].mxu0
      %v508 = vpop.f32.mrb[0].mxu0
      %v509 = vadd.f32 0.0, %v508
      %v510 = vpop.f32.mrb[0].mxu0
      %511 = vdwg.mxu0
      %v512 = vld [vmem:[%s360] sm:$0x1]
      %v514 = vlaneseq
      %v515 = vshrl.u32 %v514, 7
      %v516 = vsub.s32 0, %v515
      %v517 = vrot.slane %v512, %v516
      %v519 = vmul.f32 %v506, %v517
      %v520 = vmul.f32 %v509, %v517
      %v521 = vld [vmem:[%s363] sm:$0x1]
      %v523 = vlaneseq
      %v524 = vshrl.u32 %v523, 7
      %v525 = vsub.s32 0, %v524
      %v526 = vrot.slane %v521, %v525
      %v528 = vadd.f32 %v519, %v526
      %v529 = vadd.f32 %v520, %v526
      %v530 = vpack.c.bf16 %v529, %v528
      %v532 = vunpack.c.l.b16 %v530
      %v533 = vunpack.c.h.b16 %v530
      %v534 = vpack.c.b16 %v532, %v532
      %v535 = vpack.c.b16 %v533, %v533
      %538 = vst [vmem:[%s381] sm:$0xf] %v534
      %539 = vst [vmem:[%s381 + $0x4] sm:$0xf] %v535
      %s540 = smul.u32 2, %s23
      %p541 = scmp.lt.s32.totalorder %s22, 1
      %s542 = scalar_select %p541, %s22, 1
      %p543 = scmp.lt.s32.totalorder %s540, 1
      %s544 = scalar_select %p543, %s540, 1
      %p545 = scmp.lt.s32.totalorder %s24, 0
      %s546 = scalar_select %p545, %s24, 0
      %s547 = sadd.s32 %s546, %s544
      %s548 = smul.addr %s542, 2
      %s549 = sadd.s32 %s547, %s548
      %s550 = smul.addr %s549, 4
      %s551 = scalar_lea.vmem %s5, %s550
      // Predicated region
      $region41: #{_lambda_.16} parent=39 // pred_check
        %p552 = pneg %p202
      $region42: #{_lambda_.16} parent=39 // pred_check_branch
        %554 = sbr.rel (%p552) target = $region44
      $region43: #{_lambda_.16} parent=39 // pred_region
        %s555 = smul.u32 2, %s23
      $region44: #{_lambda_.16} parent=39 // pred_fallthru
        _
    $region40: #{_lambda_.16} parent=5 // pred_fallthru
      _
    %p556 = scmp.le.s32.totalorder 2, %s11
    // Predicated region
    $region45: #{_lambda_.16} parent=5 // pred_check
      %p557 = pneg %p556
    $region46: #{_lambda_.16} parent=5 // pred_check_branch
      %559 = sbr.rel (%p557) target = $region48
    $region47: #{_lambda_.16} parent=5 // pred_region
      %s560 = ssub.s32 %s11, 2
      // Predicated region
      $region49: #{_lambda_.16} parent=47 // pred_check
        %p561 = pneg %p208
      $region50: #{_lambda_.16} parent=47 // pred_check_branch
        %563 = sbr.rel (%p561) target = $region52
      $region51: #{_lambda_.16} parent=47 // pred_region
        %s564 = smul.u32 2, %s27
        %p565 = scmp.lt.s32.totalorder %s26, 1
        %s566 = scalar_select %p565, %s26, 1
        %p567 = scmp.lt.s32.totalorder %s564, 1
        %s568 = scalar_select %p567, %s564, 1
        %p569 = scmp.lt.s32.totalorder %s28, 0
        %s570 = scalar_select %p569, %s28, 0
        %s571 = sadd.s32 %s570, %s568
        %s572 = smul.addr %s566, 2
        %s573 = sadd.s32 %s571, %s572
        %s574 = smul.addr %s573, 4
        %s575 = scalar_lea.vmem %s5, %s574
      $region52: #{_lambda_.16} parent=47 // pred_fallthru
        _
    $region48: #{_lambda_.16} parent=5 // pred_fallthru
      _
  $region6: #{_lambda_.16} parent=0 // loop_footer
    %s15 = sadd.s32 1, %s11
  $region7: #{_lambda_.16} parent=0 // loop_footer_branch
    %10 = sbr.rel target = $region3
  $region8: #{_lambda_.16} parent=0 // loop_exit
    _

// kernel: _lambda_.17
$region0: #{_lambda_.17}
  #allocation0 [shape = 'u32[]', space=smem, size = 0x4, offset = 0x4, fixed_abs, tag = 'smem constant byte address 0x4 - core index']
  #allocation1 [shape = 'u32[144,128]{1,0:T(1,128)}', space=vmem, size = 0x12000, scoped, tag = 'internal scratch']
  %s0 = inlined_call_operand.vmem [shape: bf16[32,128], index: 0, kind: input, shape index: {}]
  %s1 = inlined_call_operand.vmem [shape: bf16[128,256], index: 1, kind: input, shape index: {}]
  %s2 = inlined_call_operand.vmem [shape: f32[1,256], index: 2, kind: input, shape index: {}]
  %s3 = inlined_call_operand.vmem [shape: f32[1,256], index: 3, kind: input, shape index: {}]
  %s4 = inlined_call_operand.vmem [shape: bf16[32,256], index: 4, kind: output, shape index: {}]
  %s5 = sld [smem:[#allocation0]]
  $region26: #{_lambda_.17} parent=0
    _
  %s7 = ssub.s32 1, %s5
  %s8 = scalar_select 0, %s7, %s5
  // Predicated region
  $region2: #{_lambda_.17} parent=0 // pred_check
    _
  $region3: #{_lambda_.17} parent=0 // pred_check_branch
    %10 = sbr.rel (0) target = $region5
  $region4: #{_lambda_.17} parent=0 // pred_region
    _
  $region5: #{_lambda_.17} parent=0 // pred_fallthru
    _
  // Predicated region
  $region6: #{_lambda_.17} parent=0 // pred_check
    _
  $region7: #{_lambda_.17} parent=0 // pred_check_branch
    %12 = sbr.rel (0) target = $region9
  $region8: #{_lambda_.17} parent=0 // pred_region
    _
  $region9: #{_lambda_.17} parent=0 // pred_fallthru
    _
  // Predicated region
  $region10: #{_lambda_.17} parent=0 // pred_check
    _
  $region11: #{_lambda_.17} parent=0 // pred_check_branch
    %14 = sbr.rel (0) target = $region13
  $region12: #{_lambda_.17} parent=0 // pred_region
    _
  $region13: #{_lambda_.17} parent=0 // pred_fallthru
    _
  // Predicated region
  $region14: #{_lambda_.17} parent=0 // pred_check
    _
  $region15: #{_lambda_.17} parent=0 // pred_check_branch
    %16 = sbr.rel (0) target = $region17
  $region16: #{_lambda_.17} parent=0 // pred_region
    _
  $region17: #{_lambda_.17} parent=0 // pred_fallthru
    _
  %v18 = vld [vmem:[%s0] sm:$0xf]
  %v19 = vld [vmem:[%s0 + $0x4] sm:$0xf]
  %v20 = vld [vmem:[%s0 + $0x8] sm:$0xf]
  %v21 = vld [vmem:[%s0 + $0xc] sm:$0xf]
  %v22 = vld [vmem:[%s1] sm:$0xff]
  %v23 = vld [vmem:[%s1 + $0x8] sm:$0xff]
  %v24 = vld [vmem:[%s1 + $0x10] sm:$0xff]
  %v25 = vld [vmem:[%s1 + $0x18] sm:$0xff]
  %v26 = vld [vmem:[%s1 + $0x20] sm:$0xff]
  %v27 = vld [vmem:[%s1 + $0x28] sm:$0xff]
  %v28 = vld [vmem:[%s1 + $0x30] sm:$0xff]
  %v29 = vld [vmem:[%s1 + $0x38] sm:$0xff]
  %v30 = vld [vmem:[%s1 + $0x40] sm:$0xff]
  %v31 = vld [vmem:[%s1 + $0x48] sm:$0xff]
  %v32 = vld [vmem:[%s1 + $0x50] sm:$0xff]
  %v33 = vld [vmem:[%s1 + $0x58] sm:$0xff]
  %v34 = vld [vmem:[%s1 + $0x60] sm:$0xff]
  %v35 = vld [vmem:[%s1 + $0x68] sm:$0xff]
  %v36 = vld [vmem:[%s1 + $0x70] sm:$0xff]
  %v37 = vld [vmem:[%s1 + $0x78] sm:$0xff]
  %v42 = vunpack.c.l.b16 %v18
  %v43 = vunpack.c.l.b16 %v19
  %v44 = vunpack.c.l.b16 %v20
  %v45 = vunpack.c.l.b16 %v21
  %v46 = vpack.c.b16 %v43, %v42
  %v47 = vpack.c.b16 %v45, %v44
  %v66 = vunpack.c.l.b16 %v22
  %v67 = vunpack.c.h.b16 %v22
  %v68 = vunpack.c.l.b16 %v23
  %v69 = vunpack.c.h.b16 %v23
  %v70 = vunpack.c.l.b16 %v24
  %v71 = vunpack.c.h.b16 %v24
  %v72 = vunpack.c.l.b16 %v25
  %v73 = vunpack.c.h.b16 %v25
  %v74 = vunpack.c.l.b16 %v26
  %v75 = vunpack.c.h.b16 %v26
  %v76 = vunpack.c.l.b16 %v27
  %v77 = vunpack.c.h.b16 %v27
  %v78 = vunpack.c.l.b16 %v28
  %v79 = vunpack.c.h.b16 %v28
  %v80 = vunpack.c.l.b16 %v29
  %v81 = vunpack.c.h.b16 %v29
  %v82 = vunpack.c.l.b16 %v30
  %v83 = vunpack.c.h.b16 %v30
  %v84 = vunpack.c.l.b16 %v31
  %v85 = vunpack.c.h.b16 %v31
  %v86 = vunpack.c.l.b16 %v32
  %v87 = vunpack.c.h.b16 %v32
  %v88 = vunpack.c.l.b16 %v33
  %v89 = vunpack.c.h.b16 %v33
  %v90 = vunpack.c.l.b16 %v34
  %v91 = vunpack.c.h.b16 %v34
  %v92 = vunpack.c.l.b16 %v35
  %v93 = vunpack.c.h.b16 %v35
  %v94 = vunpack.c.l.b16 %v36
  %v95 = vunpack.c.h.b16 %v36
  %v96 = vunpack.c.l.b16 %v37
  %v97 = vunpack.c.h.b16 %v37
  %v98 = vpack.c.b16 %v68, %v66
  %v99 = vpack.c.b16 %v69, %v67
  %v100 = vpack.c.b16 %v72, %v70
  %v101 = vpack.c.b16 %v73, %v71
  %v102 = vpack.c.b16 %v76, %v74
  %v103 = vpack.c.b16 %v77, %v75
  %v104 = vpack.c.b16 %v80, %v78
  %v105 = vpack.c.b16 %v81, %v79
  %v106 = vpack.c.b16 %v84, %v82
  %v107 = vpack.c.b16 %v85, %v83
  %v108 = vpack.c.b16 %v88, %v86
  %v109 = vpack.c.b16 %v89, %v87
  %v110 = vpack.c.b16 %v92, %v90
  %v111 = vpack.c.b16 %v93, %v91
  %v112 = vpack.c.b16 %v96, %v94
  %v113 = vpack.c.b16 %v97, %v95
  %130 = vmatprep.subr.bf16.mxu0 %v99
  %131 = vmatpush1.bf16.msra.mxu0 %v98
  %132 = vmatprep.subr.bf16.mxu0 %v101
  %133 = vmatpush1.bf16.msra.mxu0 %v100
  %134 = vmatprep.subr.bf16.mxu0 %v103
  %135 = vmatpush1.bf16.msra.mxu0 %v102
  %136 = vmatprep.subr.bf16.mxu0 %v105
  %137 = vmatpush1.bf16.msra.mxu0 %v104
  %138 = vmatprep.subr.bf16.mxu0 %v107
  %139 = vmatpush1.bf16.msra.mxu0 %v106
  %140 = vmatprep.subr.bf16.mxu0 %v109
  %141 = vmatpush1.bf16.msra.mxu0 %v108
  %142 = vmatprep.subr.bf16.mxu0 %v111
  %143 = vmatpush1.bf16.msra.mxu0 %v110
  %144 = vmatprep.subr.bf16.mxu0 %v113
  %145 = vmatpush1.bf16.msra.mxu0 %v112
  %146 = vmatprep.subr.bf16.mxu0 0
  %147 = vmatpush1.bf16.msra.mxu0 0
  %148 = vmatprep.subr.bf16.mxu0 0
  %149 = vmatpush1.bf16.msra.mxu0 0
  %150 = vmatprep.subr.bf16.mxu0 0
  %151 = vmatpush1.bf16.msra.mxu0 0
  %152 = vmatprep.subr.bf16.mxu0 0
  %153 = vmatpush1.bf16.msra.mxu0 0
  %154 = vmatprep.subr.bf16.mxu0 0
  %155 = vmatpush1.bf16.msra.mxu0 0
  %156 = vmatprep.subr.bf16.mxu0 0
  %157 = vmatpush1.bf16.msra.mxu0 0
  %158 = vmatprep.subr.bf16.mxu0 0
  %159 = vmatpush1.bf16.msra.mxu0 0
  %160 = vmatprep.subr.bf16.mxu0 0
  %161 = vmatpush1.bf16.msra.mxu0 0
  %162 = vmatprep.mubr.bf16.mxu0 0
  %163 = vmatmul.mubr.bf16.gmra.mrb[0].mxu0 %v46
  %v164 = vpop.f32.mrb[0].mxu0
  %v165 = vadd.f32 0.0, %v164
  %v166 = vpop.f32.mrb[0].mxu0
  %v167 = vadd.f32 0.0, %v166
  %v168 = vpop.f32.mrb[0].mxu0
  %v169 = vadd.f32 0.0, %v168
  %v170 = vpop.f32.mrb[0].mxu0
  %v171 = vadd.f32 0.0, %v170
  %172 = vmatprep.mubr.bf16.mxu0 0
  %173 = vmatmul.mubr.bf16.gmra.mrb[0].mxu0 %v47
  %v174 = vpop.f32.mrb[0].mxu0
  %v175 = vadd.f32 0.0, %v174
  %v176 = vpop.f32.mrb[0].mxu0
  %v177 = vadd.f32 0.0, %v176
  %v178 = vpop.f32.mrb[0].mxu0
  %v179 = vadd.f32 0.0, %v178
  %v180 = vpop.f32.mrb[0].mxu0
  %v181 = vadd.f32 0.0, %v180
  %182 = vdwg.mxu0
  %v183 = vld [vmem:[%s2] sm:$0x3]
  %v185 = vlaneseq
  %v186 = vshrl.u32 %v185, 7
  %v187 = vsub.s32 0, %v186
  %v188 = vrot.slane %v183, %v187
  %v189 = vlaneseq
  %v190 = vshrl.u32 %v189, 7
  %v191 = vsub.s32 1, %v190
  %v192 = vrot.slane %v183, %v191
  %v195 = vmul.f32 %v165, %v188
  %v196 = vmul.f32 %v167, %v192
  %v197 = vmul.f32 %v169, %v188
  %v198 = vmul.f32 %v171, %v192
  %v199 = vmul.f32 %v175, %v188
  %v200 = vmul.f32 %v177, %v192
  %v201 = vmul.f32 %v179, %v188
  %v202 = vmul.f32 %v181, %v192
  %v203 = vld [vmem:[%s3] sm:$0x3]
  %v205 = vlaneseq
  %v206 = vshrl.u32 %v205, 7
  %v207 = vsub.s32 0, %v206
  %v208 = vrot.slane %v203, %v207
  %v209 = vlaneseq
  %v210 = vshrl.u32 %v209, 7
  %v211 = vsub.s32 1, %v210
  %v212 = vrot.slane %v203, %v211
  %v215 = vadd.f32 %v195, %v208
  %v216 = vadd.f32 %v196, %v212
  %v217 = vadd.f32 %v197, %v208
  %v218 = vadd.f32 %v198, %v212
  %v219 = vadd.f32 %v199, %v208
  %v220 = vadd.f32 %v200, %v212
  %v221 = vadd.f32 %v201, %v208
  %v222 = vadd.f32 %v202, %v212
  %v223 = vxor.u32 %v215, 2147483648
  %v224 = vxor.u32 %v216, 2147483648
  %v225 = vxor.u32 %v217, 2147483648
  %v226 = vxor.u32 %v218, 2147483648
  %v227 = vxor.u32 %v219, 2147483648
  %v228 = vxor.u32 %v220, 2147483648
  %v229 = vxor.u32 %v221, 2147483648
  %v230 = vxor.u32 %v222, 2147483648
  %v231 = vmul.f32 %v223, 1.442695
  %v232 = vpow.pop %v231
  %v233 = vmul.f32 %v224, 1.442695
  %v234 = vpow.pop %v233
  %v235 = vmul.f32 %v225, 1.442695
  %v236 = vpow.pop %v235
  %v237 = vmul.f32 %v226, 1.442695
  %v238 = vpow.pop %v237
  %v239 = vmul.f32 %v227, 1.442695
  %v240 = vpow.pop %v239
  %v241 = vmul.f32 %v228, 1.442695
  %v242 = vpow.pop %v241
  %v243 = vmul.f32 %v229, 1.442695
  %v244 = vpow.pop %v243
  %v245 = vmul.f32 %v230, 1.442695
  %v246 = vpow.pop %v245
  %v247 = vadd.f32 %v232, 1.0
  %v248 = vadd.f32 %v234, 1.0
  %v249 = vadd.f32 %v236, 1.0
  %v250 = vadd.f32 %v238, 1.0
  %v251 = vadd.f32 %v240, 1.0
  %v252 = vadd.f32 %v242, 1.0
  %v253 = vadd.f32 %v244, 1.0
  %v254 = vadd.f32 %v246, 1.0
  %v255 = vrcp.pop %v247
  %v256 = vmul.f32 1.0, %v255
  %v257 = vrcp.pop %v248
  %v258 = vmul.f32 1.0, %v257
  %v259 = vrcp.pop %v249
  %v260 = vmul.f32 1.0, %v259
  %v261 = vrcp.pop %v250
  %v262 = vmul.f32 1.0, %v261
  %v263 = vrcp.pop %v251
  %v264 = vmul.f32 1.0, %v263
  %v265 = vrcp.pop %v252
  %v266 = vmul.f32 1.0, %v265
  %v267 = vrcp.pop %v253
  %v268 = vmul.f32 1.0, %v267
  %v269 = vrcp.pop %v254
  %v270 = vmul.f32 1.0, %v269
  %v271 = vmul.f32 %v215, %v256
  %v272 = vmul.f32 %v216, %v258
  %v273 = vmul.f32 %v217, %v260
  %v274 = vmul.f32 %v218, %v262
  %v275 = vmul.f32 %v219, %v264
  %v276 = vmul.f32 %v220, %v266
  %v277 = vmul.f32 %v221, %v268
  %v278 = vmul.f32 %v222, %v270
  %v279 = vpack.c.bf16 %v273, %v271
  %v280 = vpack.c.bf16 %v274, %v272
  %v281 = vpack.c.bf16 %v277, %v275
  %v282 = vpack.c.bf16 %v278, %v276
  %v287 = vunpack.c.l.b16 %v279
  %v288 = vunpack.c.l.b16 %v280
  %v289 = vunpack.c.h.b16 %v279
  %v290 = vunpack.c.h.b16 %v280
  %v291 = vunpack.c.l.b16 %v281
  %v292 = vunpack.c.l.b16 %v282
  %v293 = vunpack.c.h.b16 %v281
  %v294 = vunpack.c.h.b16 %v282
  %v295 = vpack.c.b16 %v288, %v287
  %v296 = vpack.c.b16 %v290, %v289
  %v297 = vpack.c.b16 %v292, %v291
  %v298 = vpack.c.b16 %v294, %v293
  %303 = vst [vmem:[%s4] sm:$0xff] %v295
  %304 = vst [vmem:[%s4 + $0x8] sm:$0xff] %v296
  %305 = vst [vmem:[%s4 + $0x10] sm:$0xff] %v297
  %306 = vst [vmem:[%s4 + $0x18] sm:$0xff] %v298
  // Predicated region
  $region18: #{_lambda_.17} parent=0 // pred_check
    _
  $region19: #{_lambda_.17} parent=0 // pred_check_branch
    %308 = sbr.rel (0) target = $region21
  $region20: #{_lambda_.17} parent=0 // pred_region
    _
  $region21: #{_lambda_.17} parent=0 // pred_fallthru
    _
  // Predicated region
  $region22: #{_lambda_.17} parent=0 // pred_check
    _
  $region23: #{_lambda_.17} parent=0 // pred_check_branch
    %310 = sbr.rel (0) target = $region25
  $region24: #{_lambda_.17} parent=0 // pred_region
    _
  $region25: #{_lambda_.17} parent=0 // pred_fallthru
    _

// kernel: _lambda_.18
$region0: #{_lambda_.18}
  #allocation0 [shape = 'u32[]', space=smem, size = 0x4, offset = 0x4, fixed_abs, tag = 'smem constant byte address 0x4 - core index']
  #allocation1 [shape = 'u32[144,128]{1,0:T(1,128)}', space=vmem, size = 0x12000, scoped, tag = 'internal scratch']
  #allocation2 [shape = 'bf16[6,6,128]{2,1,0:T(8,128)(2,1)}', space=vmem, size = 0x3000, scoped, tag = 'scratch operand']
  %s0 = inlined_call_operand.vmem [shape: bf16[2,4,4,256], index: 0, kind: input, shape index: {}]
  %s1 = inlined_call_operand.vmem [shape: f32[9,256], index: 1, kind: input, shape index: {}]
  %s2 = inlined_call_operand.vmem [shape: f32[1,256], index: 2, kind: input, shape index: {}]
  %s3 = inlined_call_operand.vmem [shape: f32[1,256], index: 3, kind: input, shape index: {}]
  %s4 = inlined_call_operand.vmem [shape: bf16[2,4,4,256], index: 4, kind: output, shape index: {0}]
  %s5 = inlined_call_operand.vmem [shape: f32[2,1,256], index: 5, kind: output, shape index: {1}]
  %6 = xla_tuple %s4, %s5
  %s7 = sld [smem:[#allocation0]]
  $region173: #{_lambda_.18} parent=0
    _
  %s9 = ssub.s32 1, %s7
  %s10 = scalar_select 0, %s9, %s7
  $region1: #{_lambda_.18} parent=0
    #allocation3 [shape = 'u8[8192]{0}', space=vmem, size = 0x2000, scoped, tag = 'input window, operand 0']
    #allocation4 [shape = 'u8[16384]{0}', space=vmem, size = 0x4000, scoped, tag = 'input window, operand 1']
    #allocation5 [shape = 'u8[8192]{0}', space=vmem, size = 0x2000, scoped, tag = 'output window, operand 0']
    loop: start=0, step=1, limit=6
    $region2: #{_lambda_.18} parent=1 // loop_pre_header
      _
    $region3: #{_lambda_.18} parent=1 // loop_header
      %s12 = sphi 0, %s16
      %p13 = scmp.ge.s32.totalorder %s12, 6
      %s19 = sphi 0, %s31
      %s20 = sphi 0, %s27
      %s21 = sphi 0, %s19
      %s22 = sphi 0, %s20
      %s23 = sphi 0, %s21
      %s24 = sphi 0, %s22
      %s36 = sphi 0, %s38
      %s39 = sphi 0, %s36
      %s40 = sphi 0, %s39
      %s56 = sphi 0, %s40
      %s62 = sphi 0, %s64
      %s65 = sphi 0, %s62
      %s66 = sphi 0, %s65
      %s82 = sphi 0, %s66
      %s88 = sphi 0, %s90
      %s91 = sphi 0, %s88
      %s92 = sphi 0, %s91
      %s108 = sphi 0, %s92
      %s114 = sphi 0, %s116
      %s117 = sphi 0, %s114
      %s118 = sphi 0, %s117
      %s134 = sphi 0, %s118
      %s142 = sphi 0, %s144
      %s145 = sphi 0, %s142
      %s146 = sphi 0, %s145
      %s162 = sphi 0, %s146
      %s170 = sphi 0, %s172
      %s173 = sphi 0, %s170
      %s174 = sphi 0, %s173
      %s190 = sphi 0, %s174
    $region4: #{_lambda_.18} parent=1 // loop_header_branch
      %15 = sbr.rel (%p13) target = $region8
    $region5: #{_lambda_.18} parent=1 // loop_body
      %s17 = ssub.s32 %s12, 1
      %s18 = ssub.s32 %s12, 2
      %s25 = sadd.s32 1, %s20
      %p26 = scmp.ge.s32.totalorder %s25, 2
      %s27 = scalar_select %p26, 0, %s25
      %s28 = sadd.s32 1, %s19
      %s29 = scalar_select %p26, %s28, %s19
      %p30 = scmp.ge.s32.totalorder %s29, 2
      %s31 = scalar_select %p30, 0, %s29
      %s32 = ssub.s32 %s19, %s31
      %s33 = ssub.s32 %s20, %s27
      %s34 = sor.u32 %s32, %s33
      %p35 = scmp.eq.s32.totalorder %s34, 0
      %s37 = sadd.s32 %s36, 1
      %s38 = scalar_select %p35, %s36, %s37
      %p41 = pneg %p35
      %p42 = scmp.eq.s32.totalorder %s12, 3
      %p43 = por %p41, %p42
      %p44 = scmp.ne.s32.totalorder %s36, %s39
      %p45 = scmp.eq.s32.totalorder %s12, 0
      %p46 = por %p44, %p45
      %p47 = scmp.ne.s32.totalorder %s36, %s39
      %p48 = scmp.eq.s32.totalorder %s17, 3
      %p49 = por %p47, %p48
      %p50 = scmp.ne.s32.totalorder %s39, %s40
      %p51 = scmp.eq.s32.totalorder %s17, 0
      %p52 = por %p50, %p51
      %p53 = scmp.ne.s32.totalorder %s39, %s40
      %p54 = scmp.eq.s32.totalorder %s18, 3
      %p55 = por %p53, %p54
      %p57 = scmp.ne.s32.totalorder %s40, %s56
      %p58 = scmp.eq.s32.totalorder %s18, 0
      %p59 = por %p57, %p58
      %s60 = ssub.s32 %s20, %s27
      %p61 = scmp.eq.s32.totalorder %s60, 0
      %s63 = sadd.s32 %s62, 1
      %s64 = scalar_select %p61, %s62, %s63
      %p67 = pneg %p61
      %p68 = scmp.eq.s32.totalorder %s12, 3
      %p69 = por %p67, %p68
      %p70 = scmp.ne.s32.totalorder %s62, %s65
      %p71 = scmp.eq.s32.totalorder %s12, 0
      %p72 = por %p70, %p71
      %p73 = scmp.ne.s32.totalorder %s62, %s65
      %p74 = scmp.eq.s32.totalorder %s17, 3
      %p75 = por %p73, %p74
      %p76 = scmp.ne.s32.totalorder %s65, %s66
      %p77 = scmp.eq.s32.totalorder %s17, 0
      %p78 = por %p76, %p77
      %p79 = scmp.ne.s32.totalorder %s65, %s66
      %p80 = scmp.eq.s32.totalorder %s18, 3
      %p81 = por %p79, %p80
      %p83 = scmp.ne.s32.totalorder %s66, %s82
      %p84 = scmp.eq.s32.totalorder %s18, 0
      %p85 = por %p83, %p84
      %s86 = ssub.s32 %s20, %s27
      %p87 = scmp.eq.s32.totalorder %s86, 0
      %s89 = sadd.s32 %s88, 1
      %s90 = scalar_select %p87, %s88, %s89
      %p93 = pneg %p87
      %p94 = scmp.eq.s32.totalorder %s12, 3
      %p95 = por %p93, %p94
      %p96 = scmp.ne.s32.totalorder %s88, %s91
      %p97 = scmp.eq.s32.totalorder %s12, 0
      %p98 = por %p96, %p97
      %p99 = scmp.ne.s32.totalorder %s88, %s91
      %p100 = scmp.eq.s32.totalorder %s17, 3
      %p101 = por %p99, %p100
      %p102 = scmp.ne.s32.totalorder %s91, %s92
      %p103 = scmp.eq.s32.totalorder %s17, 0
      %p104 = por %p102, %p103
      %p105 = scmp.ne.s32.totalorder %s91, %s92
      %p106 = scmp.eq.s32.totalorder %s18, 3
      %p107 = por %p105, %p106
      %p109 = scmp.ne.s32.totalorder %s92, %s108
      %p110 = scmp.eq.s32.totalorder %s18, 0
      %p111 = por %p109, %p110
      %s112 = ssub.s32 %s20, %s27
      %p113 = scmp.eq.s32.totalorder %s112, 0
      %s115 = sadd.s32 %s114, 1
      %s116 = scalar_select %p113, %s114, %s115
      %p119 = pneg %p113
      %p120 = scmp.eq.s32.totalorder %s12, 3
      %p121 = por %p119, %p120
      %p122 = scmp.ne.s32.totalorder %s114, %s117
      %p123 = scmp.eq.s32.totalorder %s12, 0
      %p124 = por %p122, %p123
      %p125 = scmp.ne.s32.totalorder %s114, %s117
      %p126 = scmp.eq.s32.totalorder %s17, 3
      %p127 = por %p125, %p126
      %p128 = scmp.ne.s32.totalorder %s117, %s118
      %p129 = scmp.eq.s32.totalorder %s17, 0
      %p130 = por %p128, %p129
      %p131 = scmp.ne.s32.totalorder %s117, %s118
      %p132 = scmp.eq.s32.totalorder %s18, 3
      %p133 = por %p131, %p132
      %p135 = scmp.ne.s32.totalorder %s118, %s134
      %p136 = scmp.eq.s32.totalorder %s18, 0
      %p137 = por %p135, %p136
      %s138 = ssub.s32 %s19, %s31
      %s139 = ssub.s32 %s20, %s27
      %s140 = sor.u32 %s138, %s139
      %p141 = scmp.eq.s32.totalorder %s140, 0
      %s143 = sadd.s32 %s142, 1
      %s144 = scalar_select %p141, %s142, %s143
      %p147 = pneg %p141
      %p148 = scmp.eq.s32.totalorder %s12, 3
      %p149 = por %p147, %p148
      %p150 = scmp.ne.s32.totalorder %s142, %s145
      %p151 = scmp.eq.s32.totalorder %s12, 0
      %p152 = por %p150, %p151
      %p153 = scmp.ne.s32.totalorder %s142, %s145
      %p154 = scmp.eq.s32.totalorder %s17, 3
      %p155 = por %p153, %p154
      %p156 = scmp.ne.s32.totalorder %s145, %s146
      %p157 = scmp.eq.s32.totalorder %s17, 0
      %p158 = por %p156, %p157
      %p159 = scmp.ne.s32.totalorder %s145, %s146
      %p160 = scmp.eq.s32.totalorder %s18, 3
      %p161 = por %p159, %p160
      %p163 = scmp.ne.s32.totalorder %s146, %s162
      %p164 = scmp.eq.s32.totalorder %s18, 0
      %p165 = por %p163, %p164
      %s166 = ssub.s32 %s19, %s31
      %s167 = ssub.s32 %s20, %s27
      %s168 = sor.u32 %s166, %s167
      %p169 = scmp.eq.s32.totalorder %s168, 0
      %s171 = sadd.s32 %s170, 1
      %s172 = scalar_select %p169, %s170, %s171
      %p175 = pneg %p169
      %p176 = scmp.eq.s32.totalorder %s12, 3
      %p177 = por %p175, %p176
      %p178 = scmp.ne.s32.totalorder %s170, %s173
      %p179 = scmp.eq.s32.totalorder %s12, 0
      %p180 = por %p178, %p179
      %p181 = scmp.ne.s32.totalorder %s170, %s173
      %p182 = scmp.eq.s32.totalorder %s17, 3
      %p183 = por %p181, %p182
      %p184 = scmp.ne.s32.totalorder %s173, %s174
      %p185 = scmp.eq.s32.totalorder %s17, 0
      %p186 = por %p184, %p185
      %p187 = scmp.ne.s32.totalorder %s173, %s174
      %p188 = scmp.eq.s32.totalorder %s18, 3
      %p189 = por %p187, %p188
      %p191 = scmp.ne.s32.totalorder %s174, %s190
      %p192 = scmp.eq.s32.totalorder %s18, 0
      %p193 = por %p191, %p192
      %p194 = scmp.le.s32.totalorder 1, %s12
      %p195 = scmp.lt.s32.totalorder %s12, 5
      %p196 = pnand %p194, %p195
      %p197 = pneg %p196
      // Predicated region
      $region9: #{_lambda_.18} parent=5 // pred_check
        _
      $region10: #{_lambda_.18} parent=5 // pred_check_branch
        %199 = sbr.rel (%p196) target = $region12
      $region11: #{_lambda_.18} parent=5 // pred_region
        %s200 = ssub.s32 %s12, 1
      $region12: #{_lambda_.18} parent=5 // pred_fallthru
        _
      %p201 = scmp.lt.s32.totalorder %s12, 4
      // Predicated region
      $region13: #{_lambda_.18} parent=5 // pred_check
        %p202 = pneg %p201
      $region14: #{_lambda_.18} parent=5 // pred_check_branch
        %204 = sbr.rel (%p202) target = $region16
      $region15: #{_lambda_.18} parent=5 // pred_region
        // Predicated region
        $region17: #{_lambda_.18} parent=15 // pred_check
          %p205 = pneg %p46
        $region18: #{_lambda_.18} parent=15 // pred_check_branch
          %207 = sbr.rel (%p205) target = $region20
        $region19: #{_lambda_.18} parent=15 // pred_region
          %s208 = sand.u32 %s36, 1
          %s209 = sand.u32 %s36, 1
          %s210 = smul.addr %s209, 8
          %s211 = scalar_lea.vmem [#allocation3], %s210
          %s212 = smul.addr %s19, 8
          %s213 = sadd.s32 %s20, %s212
          %s214 = smul.addr %s213, 2
          %s215 = scalar_lea.vmem %s0, %s214
          // Predicated region
          $region21: #{_lambda_.18} parent=19 // pred_check
            _
          $region22: #{_lambda_.18} parent=19 // pred_check_branch
            %217 = sbr.rel (0) target = $region24
          $region23: #{_lambda_.18} parent=19 // pred_region
            // Predicated region
            $region25: #{_lambda_.18} parent=23 // pred_check
              _
            $region26: #{_lambda_.18} parent=23 // pred_check_branch
              %219 = sbr.rel target = $region28
            $region27: #{_lambda_.18} parent=23 // pred_region
              // Predicated region
              $region40: #{_lambda_.18} parent=27 // pred_check
                _
              $region41: #{_lambda_.18} parent=27 // pred_check_branch
                %240 = sbr.rel (0) target = $region43
              $region42: #{_lambda_.18} parent=27 // pred_region
                loop: start=0, step=1, limit=1
                $region44: #{_lambda_.18} parent=42 // loop_pre_header
                  _
                $region45: #{_lambda_.18} parent=42 // loop_header
                  %s242 = sphi 0, %s246
                  %p243 = scmp.ge.s32.totalorder %s242, 1
                  %s247 = sphi %s215, %s215
                  %s248 = sphi %s211, %s211
                $region46: #{_lambda_.18} parent=42 // loop_header_branch
                  %245 = sbr.rel (%p243) target = $region50
                $region47: #{_lambda_.18} parent=42 // loop_body
                  _
                $region48: #{_lambda_.18} parent=42 // loop_footer
                  %s246 = sadd.s32 1, %s242
                $region49: #{_lambda_.18} parent=42 // loop_footer_branch
                  %241 = sbr.rel target = $region45
                $region50: #{_lambda_.18} parent=42 // loop_exit
                  _
                loop: start=0, step=1, limit=1
                $region51: #{_lambda_.18} parent=42 // loop_pre_header
                  _
                $region52: #{_lambda_.18} parent=42 // loop_header
                  %s251 = sphi 0, %s255
                  %p252 = scmp.ge.s32.totalorder %s251, 1
                  %s256 = sphi %s215, %s215
                  %s257 = sphi %s211, %s211
                $region53: #{_lambda_.18} parent=42 // loop_header_branch
                  %254 = sbr.rel (%p252) target = $region57
                $region54: #{_lambda_.18} parent=42 // loop_body
                  %v258 = vld [vmem:[%s256] sm:$0x3]
                  %259 = vst [vmem:[%s257] sm:$0x3] %v258
                  %v260 = vld [vmem:[%s256 + $0x4] sm:$0x3]
                  %261 = vst [vmem:[%s257 + $0x2] sm:$0x3] %v260
                  %v262 = vld [vmem:[%s256 + $0x8] sm:$0x3]
                  %263 = vst [vmem:[%s257 + $0x4] sm:$0x3] %v262
                  %v264 = vld [vmem:[%s256 + $0xc] sm:$0x3]
                  %265 = vst [vmem:[%s257 + $0x6] sm:$0x3] %v264
                $region55: #{_lambda_.18} parent=42 // loop_footer
                  %s255 = sadd.s32 1, %s251
                $region56: #{_lambda_.18} parent=42 // loop_footer_branch
                  %250 = sbr.rel target = $region52
                $region57: #{_lambda_.18} parent=42 // loop_exit
                  _
              $region43: #{_lambda_.18} parent=27 // pred_fallthru
                _
            $region28: #{_lambda_.18} parent=23 // pred_fallthru
              _
            // Predicated region
            $region29: #{_lambda_.18} parent=23 // pred_check
              _
            $region30: #{_lambda_.18} parent=23 // pred_check_branch
              %221 = sbr.rel (0) target = $region32
            $region31: #{_lambda_.18} parent=23 // pred_region
              loop: start=0, step=1, limit=1
              $region33: #{_lambda_.18} parent=31 // loop_pre_header
                _
              $region34: #{_lambda_.18} parent=31 // loop_header
                %s224 = sphi 0, %s228
                %p225 = scmp.ge.s32.totalorder %s224, 1
                %s229 = sphi %s215, %s215
                %s230 = sphi %s211, %s211
              $region35: #{_lambda_.18} parent=31 // loop_header_branch
                %227 = sbr.rel (%p225) target = $region39
              $region36: #{_lambda_.18} parent=31 // loop_body
                %v231 = vld [vmem:[%s229] sm:$0x3]
                %232 = vst [vmem:[%s230] sm:$0x3] %v231
                %v233 = vld [vmem:[%s229 + $0x4] sm:$0x3]
                %234 = vst [vmem:[%s230 + $0x2] sm:$0x3] %v233
                %v235 = vld [vmem:[%s229 + $0x8] sm:$0x3]
                %236 = vst [vmem:[%s230 + $0x4] sm:$0x3] %v235
                %v237 = vld [vmem:[%s229 + $0xc] sm:$0x3]
                %238 = vst [vmem:[%s230 + $0x6] sm:$0x3] %v237
              $region37: #{_lambda_.18} parent=31 // loop_footer
                %s228 = sadd.s32 1, %s224
              $region38: #{_lambda_.18} parent=31 // loop_footer_branch
                %223 = sbr.rel target = $region34
              $region39: #{_lambda_.18} parent=31 // loop_exit
                _
            $region32: #{_lambda_.18} parent=23 // pred_fallthru
              _
          $region24: #{_lambda_.18} parent=19 // pred_fallthru
            _
          %266 = vnop
        $region20: #{_lambda_.18} parent=15 // pred_fallthru
          _
        // Predicated region
        $region58: #{_lambda_.18} parent=15 // pred_check
          %p267 = pneg %p72
        $region59: #{_lambda_.18} parent=15 // pred_check_branch
          %269 = sbr.rel (%p267) target = $region61
        $region60: #{_lambda_.18} parent=15 // pred_region
          %s270 = sand.u32 %s62, 1
          %s271 = sand.u32 %s62, 1
          %s272 = smul.addr %s271, 16
          %s273 = scalar_lea.vmem [#allocation4], %s272
          %s274 = smul.addr %s20, 8
          %s275 = scalar_lea.vmem %s1, %s274
          // Predicated region
          $region62: #{_lambda_.18} parent=60 // pred_check
            _
          $region63: #{_lambda_.18} parent=60 // pred_check_branch
            %277 = sbr.rel (0) target = $region65
          $region64: #{_lambda_.18} parent=60 // pred_region
            // Predicated region
            $region66: #{_lambda_.18} parent=64 // pred_check
              _
            $region67: #{_lambda_.18} parent=64 // pred_check_branch
              %279 = sbr.rel (0) target = $region69
            $region68: #{_lambda_.18} parent=64 // pred_region
              // Predicated region
              $region81: #{_lambda_.18} parent=68 // pred_check
                _
              $region82: #{_lambda_.18} parent=68 // pred_check_branch
                %296 = sbr.rel (0) target = $region84
              $region83: #{_lambda_.18} parent=68 // pred_region
                loop: start=0, step=1, limit=1
                $region85: #{_lambda_.18} parent=83 // loop_pre_header
                  _
                $region86: #{_lambda_.18} parent=83 // loop_header
                  %s298 = sphi 0, %s302
                  %p299 = scmp.ge.s32.totalorder %s298, 1
                  %s303 = sphi %s275, %s275
                  %s304 = sphi %s273, %s273
                $region87: #{_lambda_.18} parent=83 // loop_header_branch
                  %301 = sbr.rel (%p299) target = $region91
                $region88: #{_lambda_.18} parent=83 // loop_body
                  %v305 = vld [vmem:[%s303] sm:$0xff]
                  %306 = vst [vmem:[%s304] sm:$0xff] %v305
                  %v307 = vld [vmem:[%s303 + $0x10] sm:$0xff]
                  %308 = vst [vmem:[%s304 + $0x8] sm:$0xff] %v307
                $region89: #{_lambda_.18} parent=83 // loop_footer
                  %s302 = sadd.s32 1, %s298
                $region90: #{_lambda_.18} parent=83 // loop_footer_branch
                  %297 = sbr.rel target = $region86
                $region91: #{_lambda_.18} parent=83 // loop_exit
                  _
              $region84: #{_lambda_.18} parent=68 // pred_fallthru
                _
              // Predicated region
              $region92: #{_lambda_.18} parent=68 // pred_check
                _
              $region93: #{_lambda_.18} parent=68 // pred_check_branch
                %310 = sbr.rel target = $region95
              $region94: #{_lambda_.18} parent=68 // pred_region
                _
              $region95: #{_lambda_.18} parent=68 // pred_fallthru
                _
            $region69: #{_lambda_.18} parent=64 // pred_fallthru
              _
            // Predicated region
            $region70: #{_lambda_.18} parent=64 // pred_check
              _
            $region71: #{_lambda_.18} parent=64 // pred_check_branch
              %281 = sbr.rel target = $region73
            $region72: #{_lambda_.18} parent=64 // pred_region
              loop: start=0, step=1, limit=1
              $region74: #{_lambda_.18} parent=72 // loop_pre_header
                _
              $region75: #{_lambda_.18} parent=72 // loop_header
                %s284 = sphi 0, %s288
                %p285 = scmp.ge.s32.totalorder %s284, 1
                %s289 = sphi %s275, %s275
                %s290 = sphi %s273, %s273
              $region76: #{_lambda_.18} parent=72 // loop_header_branch
                %287 = sbr.rel (%p285) target = $region80
              $region77: #{_lambda_.18} parent=72 // loop_body
                %v291 = vld [vmem:[%s289] sm:$0xff]
                %292 = vst [vmem:[%s290] sm:$0xff] %v291
                %v293 = vld [vmem:[%s289 + $0x10] sm:$0xff]
                %294 = vst [vmem:[%s290 + $0x8] sm:$0xff] %v293
              $region78: #{_lambda_.18} parent=72 // loop_footer
                %s288 = sadd.s32 1, %s284
              $region79: #{_lambda_.18} parent=72 // loop_footer_branch
                %283 = sbr.rel target = $region75
              $region80: #{_lambda_.18} parent=72 // loop_exit
                _
            $region73: #{_lambda_.18} parent=64 // pred_fallthru
              _
          $region65: #{_lambda_.18} parent=60 // pred_fallthru
            _
          %311 = vnop
        $region61: #{_lambda_.18} parent=15 // pred_fallthru
          _
        // Predicated region
        $region96: #{_lambda_.18} parent=15 // pred_check
          %p312 = pneg %p98
        $region97: #{_lambda_.18} parent=15 // pred_check_branch
          %314 = sbr.rel (%p312) target = $region99
        $region98: #{_lambda_.18} parent=15 // pred_region
          %p315 = scmp.lt.s32.totalorder %s20, 1
          %s316 = scalar_select %p315, %s20, 1
          %s317 = scalar_lea.vmem %s2, %s316
        $region99: #{_lambda_.18} parent=15 // pred_fallthru
          _
        // Predicated region
        $region100: #{_lambda_.18} parent=15 // pred_check
          %p318 = pneg %p124
        $region101: #{_lambda_.18} parent=15 // pred_check_branch
          %320 = sbr.rel (%p318) target = $region103
        $region102: #{_lambda_.18} parent=15 // pred_region
          %p321 = scmp.lt.s32.totalorder %s20, 1
          %s322 = scalar_select %p321, %s20, 1
          %s323 = scalar_lea.vmem %s3, %s322
        $region103: #{_lambda_.18} parent=15 // pred_fallthru
          _
      $region16: #{_lambda_.18} parent=5 // pred_fallthru
        _
      %p324 = scmp.le.s32.totalorder 1, %s12
      %p325 = scmp.lt.s32.totalorder %s12, 5
      %p326 = pnand %p324, %p325
      %p327 = pneg %p326
      // Predicated region
      $region104: #{_lambda_.18} parent=5 // pred_check
        _
      $region105: #{_lambda_.18} parent=5 // pred_check_branch
        %329 = sbr.rel (%p326) target = $region107
      $region106: #{_lambda_.18} parent=5 // pred_region
        %s330 = ssub.s32 %s12, 1
        %s331 = sand.u32 %s39, 1
        %s332 = sand.u32 %s39, 1
        %s333 = smul.addr %s332, 8
        %s334 = scalar_lea.vmem [#allocation3], %s333
        // Predicated region
        $region108: #{_lambda_.18} parent=106 // pred_check
          %p335 = pneg %p52
        $region109: #{_lambda_.18} parent=106 // pred_check_branch
          %337 = sbr.rel (%p335) target = $region111
        $region110: #{_lambda_.18} parent=106 // pred_region
          _
        $region111: #{_lambda_.18} parent=106 // pred_fallthru
          _
        %s338 = sand.u32 %s65, 1
        %s339 = sand.u32 %s65, 1
        %s340 = smul.addr %s339, 16
        %s341 = scalar_lea.vmem [#allocation4], %s340
        // Predicated region
        $region112: #{_lambda_.18} parent=106 // pred_check
          %p342 = pneg %p78
        $region113: #{_lambda_.18} parent=106 // pred_check_branch
          %344 = sbr.rel (%p342) target = $region115
        $region114: #{_lambda_.18} parent=106 // pred_region
          _
        $region115: #{_lambda_.18} parent=106 // pred_fallthru
          _
        %s345 = sand.u32 %s39, 1
        %s346 = sand.u32 %s39, 1
        %s347 = smul.addr %s346, 8
        %s348 = scalar_lea.vmem [#allocation3], %s347
        %p349 = pneg %p52
        %p350 = pneg %p49
        %s351 = sand.u32 %s65, 1
        %s352 = sand.u32 %s65, 1
        %s353 = smul.addr %s352, 16
        %s354 = scalar_lea.vmem [#allocation4], %s353
        %p355 = pneg %p78
        %p356 = pneg %p75
        %p357 = scmp.lt.s32.totalorder %s22, 1
        %s358 = scalar_select %p357, %s22, 1
        %s359 = scalar_lea.vmem %s2, %s358
        %p360 = pneg %p104
        %p361 = pneg %p101
        %p362 = scmp.lt.s32.totalorder %s22, 1
        %s363 = scalar_select %p362, %s22, 1
        %s364 = scalar_lea.vmem %s3, %s363
        %p365 = pneg %p130
        %p366 = pneg %p127
        %p367 = pneg %p158
        %p368 = pneg %p155
        %s369 = sand.u32 %s145, 1
        %s370 = sand.u32 %s145, 1
        %s371 = smul.addr %s370, 8
        %s372 = scalar_lea.vmem [#allocation5], %s371
        %p373 = pneg %p186
        %p374 = pneg %p183
        %p375 = scmp.lt.s32.totalorder %s21, 1
        %s376 = scalar_select %p375, %s21, 1
        %p377 = scmp.lt.s32.totalorder %s22, 1
        %s378 = scalar_select %p377, %s22, 1
        %s379 = smul.addr %s376, 2
        %s380 = sadd.s32 %s378, %s379
        %s381 = scalar_lea.vmem %s5, %s380
        %p382 = scmp.lt.s32.totalorder %s22, 1
        %s383 = scalar_select %p382, %s22, 1
        %s384 = scalar_lea.vmem %s2, %s383
        %p385 = scmp.lt.s32.totalorder %s22, 1
        %s386 = scalar_select %p385, %s22, 1
        %s387 = scalar_lea.vmem %s3, %s386
        %p388 = scmp.lt.s32.totalorder %s21, 1
        %s389 = scalar_select %p388, %s21, 1
        %p390 = scmp.lt.s32.totalorder %s22, 1
        %s391 = scalar_select %p390, %s22, 1
        %s392 = smul.addr %s389, 2
        %s393 = sadd.s32 %s391, %s392
        %s394 = scalar_lea.vmem %s5, %s393
        %396 = vst [vmem:[#allocation2] sm:$0x7] 0
        %397 = vst [vmem:[#allocation2 + $0x4] sm:$0x7] 0
        %398 = vst [vmem:[#allocation2 + $0x8] sm:$0x7] 0
        %399 = vst [vmem:[#allocation2 + $0xc] sm:$0x7] 0
        %400 = vst [vmem:[#allocation2 + $0x10] sm:$0x7] 0
        %401 = vst [vmem:[#allocation2 + $0x14] sm:$0x7] 0
        %v402 = vld [vmem:[%s334] sm:$0x3]
        %v403 = vld [vmem:[%s334 + $0x2] sm:$0x3]
        %v404 = vld [vmem:[%s334 + $0x4] sm:$0x3]
        %v405 = vld [vmem:[%s334 + $0x6] sm:$0x3]
        %v411 = vunpack.c.l.s4 1983009808
        %v412 = vunpack.c.0.s8 %v411
        %v413 = vlaneseq
        %v414 = vshrl.u32 %v413, 7
        %v415 = vsub.s32 %v412, %v414
        %v416 = vrot.slane %v402, %v415
        %v418 = vunpack.c.l.s4 1983009808
        %v419 = vunpack.c.0.s8 %v418
        %v420 = vlaneseq
        %v421 = vshrl.u32 %v420, 7
        %v422 = vsub.s32 %v419, %v421
        %v423 = vrot.slane %v403, %v422
        %v425 = vunpack.c.l.s4 1983009808
        %v426 = vunpack.c.0.s8 %v425
        %v427 = vlaneseq
        %v428 = vshrl.u32 %v427, 7
        %v429 = vsub.s32 %v426, %v428
        %v430 = vrot.slane %v404, %v429
        %v432 = vunpack.c.l.s4 1983009808
        %v433 = vunpack.c.0.s8 %v432
        %v434 = vlaneseq
        %v435 = vshrl.u32 %v434, 7
        %v436 = vsub.s32 %v433, %v435
        %v437 = vrot.slane %v405, %v436
        %v439 = vshrl.u32 %v416, 16
        %v441 = vrot.slane %v439, 7
        %v442 = vshll.u32 %v416, 16
        %v444 = vor.u32 %v441, %v442
        %v446 = vshrl.u32 %v423, 16
        %v448 = vrot.slane %v446, 7
        %v449 = vshll.u32 %v423, 16
        %v451 = vor.u32 %v448, %v449
        %v453 = vshrl.u32 %v430, 16
        %v455 = vrot.slane %v453, 7
        %v456 = vshll.u32 %v430, 16
        %v458 = vor.u32 %v455, %v456
        %v460 = vshrl.u32 %v437, 16
        %v462 = vrot.slane %v460, 7
        %v463 = vshll.u32 %v437, 16
        %v465 = vor.u32 %v462, %v463
        %s470 = scalar_lea.vmem [#allocation2], 4
        %vm471 = vcmask 1042432
        %vm472 = vsmask.f32 2306
        %vm473 = vmand %vm471, %vm472
        %v474 = vld [vmem:[%s470] sm:$0x7]
        %v475 = vsel %vm473, %v444, %v474
        %476 = vst [vmem:[%s470] sm:$0x7] %v475
        %v477 = vld [vmem:[%s470 + $0x4] sm:$0x7]
        %v478 = vsel %vm473, %v451, %v477
        %479 = vst [vmem:[%s470 + $0x4] sm:$0x7] %v478
        %v480 = vld [vmem:[%s470 + $0x8] sm:$0x7]
        %v481 = vsel %vm473, %v458, %v480
        %482 = vst [vmem:[%s470 + $0x8] sm:$0x7] %v481
        %v483 = vld [vmem:[%s470 + $0xc] sm:$0x7]
        %v484 = vsel %vm473, %v465, %v483
        %485 = vst [vmem:[%s470 + $0xc] sm:$0x7] %v484
        %v486 = vld [vmem:[#allocation2] sm:$0x3]
        %v487 = vld [vmem:[#allocation2 + $0x4] sm:$0x3]
        %v488 = vld [vmem:[#allocation2 + $0x8] sm:$0x3]
        %v489 = vld [vmem:[#allocation2 + $0xc] sm:$0x3]
        %v490 = vld [vmem:[#allocation2 + $0x10] sm:$0x3]
        %v491 = vld [vmem:[#allocation2 + $0x14] sm:$0x3]
        %v492 = vunpack.c.l.bf16 %v486
        %v493 = vunpack.c.l.bf16 %v487
        %v494 = vunpack.c.l.bf16 %v488
        %v495 = vunpack.c.l.bf16 %v489
        %v496 = vld [vmem:[%s341] sm:$0x1]
        %v497 = vlaneseq
        %v498 = vshrl.u32 %v497, 7
        %v499 = vsub.s32 0, %v498
        %v500 = vrot.slane %v496, %v499
        %v501 = vmul.f32 %v492, %v500
        %v502 = vmul.f32 %v493, %v500
        %v503 = vmul.f32 %v494, %v500
        %v504 = vmul.f32 %v495, %v500
        %v505 = vunpack.c.l.bf16 %v490
        %v506 = vld [vmem:[%s341 + $0x3] sm:$0x1]
        %v507 = vlaneseq
        %v508 = vshrl.u32 %v507, 7
        %v509 = vsub.s32 0, %v508
        %v510 = vrot.slane %v506, %v509
        %v511 = vmul.f32 %v493, %v510
        %v512 = vmul.f32 %v494, %v510
        %v513 = vmul.f32 %v495, %v510
        %v514 = vmul.f32 %v505, %v510
        %v515 = vadd.f32 %v501, %v511
        %v516 = vadd.f32 %v502, %v512
        %v517 = vadd.f32 %v503, %v513
        %v518 = vadd.f32 %v504, %v514
        %v519 = vunpack.c.l.bf16 %v491
        %v520 = vld [vmem:[%s341 + $0x6] sm:$0x1]
        %v521 = vlaneseq
        %v522 = vshrl.u32 %v521, 7
        %v523 = vsub.s32 0, %v522
        %v524 = vrot.slane %v520, %v523
        %v525 = vmul.f32 %v494, %v524
        %v526 = vmul.f32 %v495, %v524
        %v527 = vmul.f32 %v505, %v524
        %v528 = vmul.f32 %v519, %v524
        %v529 = vadd.f32 %v515, %v525
        %v530 = vadd.f32 %v516, %v526
        %v531 = vadd.f32 %v517, %v527
        %v532 = vadd.f32 %v518, %v528
        %v533 = vld [vmem:[#allocation2] sm:$0x7]
        %v534 = vld [vmem:[#allocation2 + $0x4] sm:$0x7]
        %v535 = vld [vmem:[#allocation2 + $0x8] sm:$0x7]
        %v536 = vld [vmem:[#allocation2 + $0xc] sm:$0x7]
        %v537 = vld [vmem:[#allocation2 + $0x10] sm:$0x7]
        %v538 = vld [vmem:[#allocation2 + $0x14] sm:$0x7]
        %v539 = vunpack.c.l.bf16 %v533
        %v540 = vunpack.c.l.bf16 %v534
        %v541 = vunpack.c.l.bf16 %v535
        %v542 = vunpack.c.l.bf16 %v536
        %v543 = vld [vmem:[%s341 + $0x1] sm:$0x1]
        %v544 = vlaneseq
        %v545 = vshrl.u32 %v544, 7
        %v546 = vsub.s32 0, %v545
        %v547 = vrot.slane %v543, %v546
        %v548 = vmul.f32 %v539, %v547
        %v549 = vmul.f32 %v540, %v547
        %v550 = vmul.f32 %v541, %v547
        %v551 = vmul.f32 %v542, %v547
        %v556 = vrot.slane %v548, 1
        %v557 = vrot.slane %v549, 1
        %v558 = vrot.slane %v550, 1
        %v559 = vrot.slane %v551, 1
        %v564 = vadd.f32 %v529, %v556
        %v565 = vadd.f32 %v530, %v557
        %v566 = vadd.f32 %v531, %v558
        %v567 = vadd.f32 %v532, %v559
        %v568 = vunpack.c.l.bf16 %v537
        %v569 = vld [vmem:[%s341 + $0x4] sm:$0x1]
        %v570 = vlaneseq
        %v571 = vshrl.u32 %v570, 7
        %v572 = vsub.s32 0, %v571
        %v573 = vrot.slane %v569, %v572
        %v574 = vmul.f32 %v540, %v573
        %v575 = vmul.f32 %v541, %v573
        %v576 = vmul.f32 %v542, %v573
        %v577 = vmul.f32 %v568, %v573
        %v582 = vrot.slane %v574, 1
        %v583 = vrot.slane %v575, 1
        %v584 = vrot.slane %v576, 1
        %v585 = vrot.slane %v577, 1
        %v590 = vadd.f32 %v564, %v582
        %v591 = vadd.f32 %v565, %v583
        %v592 = vadd.f32 %v566, %v584
        %v593 = vadd.f32 %v567, %v585
        %v594 = vunpack.c.l.bf16 %v538
        %v595 = vld [vmem:[%s341 + $0x7] sm:$0x1]
        %v596 = vlaneseq
        %v597 = vshrl.u32 %v596, 7
        %v598 = vsub.s32 0, %v597
        %v599 = vrot.slane %v595, %v598
        %v600 = vmul.f32 %v541, %v599
        %v601 = vmul.f32 %v542, %v599
        %v602 = vmul.f32 %v568, %v599
        %v603 = vmul.f32 %v594, %v599
        %v608 = vrot.slane %v600, 1
        %v609 = vrot.slane %v601, 1
        %v610 = vrot.slane %v602, 1
        %v611 = vrot.slane %v603, 1
        %v616 = vadd.f32 %v590, %v608
        %v617 = vadd.f32 %v591, %v609
        %v618 = vadd.f32 %v592, %v610
        %v619 = vadd.f32 %v593, %v611
        %v620 = vld [vmem:[#allocation2] sm:$0x6]
        %v621 = vld [vmem:[#allocation2 + $0x4] sm:$0x6]
        %v622 = vld [vmem:[#allocation2 + $0x8] sm:$0x6]
        %v623 = vld [vmem:[#allocation2 + $0xc] sm:$0x6]
        %v624 = vld [vmem:[#allocation2 + $0x10] sm:$0x6]
        %v625 = vld [vmem:[#allocation2 + $0x14] sm:$0x6]
        %v626 = vunpack.c.l.bf16 %v620
        %v627 = vunpack.c.l.bf16 %v621
        %v628 = vunpack.c.l.bf16 %v622
        %v629 = vunpack.c.l.bf16 %v623
        %v630 = vld [vmem:[%s341 + $0x2] sm:$0x1]
        %v631 = vlaneseq
        %v632 = vshrl.u32 %v631, 7
        %v633 = vsub.s32 0, %v632
        %v634 = vrot.slane %v630, %v633
        %v635 = vmul.f32 %v626, %v634
        %v636 = vmul.f32 %v627, %v634
        %v637 = vmul.f32 %v628, %v634
        %v638 = vmul.f32 %v629, %v634
        %v643 = vrot.slane %v635, 2
        %v644 = vrot.slane %v636, 2
        %v645 = vrot.slane %v637, 2
        %v646 = vrot.slane %v638, 2
        %v651 = vadd.f32 %v616, %v643
        %v652 = vadd.f32 %v617, %v644
        %v653 = vadd.f32 %v618, %v645
        %v654 = vadd.f32 %v619, %v646
        %v655 = vunpack.c.l.bf16 %v624
        %v656 = vld [vmem:[%s341 + $0x5] sm:$0x1]
        %v657 = vlaneseq
        %v658 = vshrl.u32 %v657, 7
        %v659 = vsub.s32 0, %v658
        %v660 = vrot.slane %v656, %v659
        %v661 = vmul.f32 %v627, %v660
        %v662 = vmul.f32 %v628, %v660
        %v663 = vmul.f32 %v629, %v660
        %v664 = vmul.f32 %v655, %v660
        %v669 = vrot.slane %v661, 2
        %v670 = vrot.slane %v662, 2
        %v671 = vrot.slane %v663, 2
        %v672 = vrot.slane %v664, 2
        %v677 = vadd.f32 %v651, %v669
        %v678 = vadd.f32 %v652, %v670
        %v679 = vadd.f32 %v653, %v671
        %v680 = vadd.f32 %v654, %v672
        %v681 = vunpack.c.l.bf16 %v625
        %v682 = vld [vmem:[%s341 + $0x8] sm:$0x1]
        %v683 = vlaneseq
        %v684 = vshrl.u32 %v683, 7
        %v685 = vsub.s32 0, %v684
        %v686 = vrot.slane %v682, %v685
        %v687 = vmul.f32 %v628, %v686
        %v688 = vmul.f32 %v629, %v686
        %v689 = vmul.f32 %v655, %v686
        %v690 = vmul.f32 %v681, %v686
        %v695 = vrot.slane %v687, 2
        %v696 = vrot.slane %v688, 2
        %v697 = vrot.slane %v689, 2
        %v698 = vrot.slane %v690, 2
        %v703 = vadd.f32 %v677, %v695
        %v704 = vadd.f32 %v678, %v696
        %v705 = vadd.f32 %v679, %v697
        %v706 = vadd.f32 %v680, %v698
        %v707 = vld [vmem:[%s384] sm:$0x1]
        %v709 = vlaneseq
        %v710 = vshrl.u32 %v709, 7
        %v711 = vsub.s32 0, %v710
        %v712 = vrot.slane %v707, %v711
        %v714 = vmul.f32 %v703, %v712
        %v715 = vmul.f32 %v704, %v712
        %v716 = vmul.f32 %v705, %v712
        %v717 = vmul.f32 %v706, %v712
        %v718 = vld [vmem:[%s387] sm:$0x1]
        %v720 = vlaneseq
        %v721 = vshrl.u32 %v720, 7
        %v722 = vsub.s32 0, %v721
        %v723 = vrot.slane %v718, %v722
        %v725 = vadd.f32 %v714, %v723
        %v726 = vadd.f32 %v715, %v723
        %v727 = vadd.f32 %v716, %v723
        %v728 = vadd.f32 %v717, %v723
        %v729 = vxor.u32 %v725, 2147483648
        %v730 = vxor.u32 %v726, 2147483648
        %v731 = vxor.u32 %v727, 2147483648
        %v732 = vxor.u32 %v728, 2147483648
        %v733 = vmul.f32 %v729, 1.442695
        %v734 = vpow.pop %v733
        %v735 = vmul.f32 %v730, 1.442695
        %v736 = vpow.pop %v735
        %v737 = vmul.f32 %v731, 1.442695
        %v738 = vpow.pop %v737
        %v739 = vmul.f32 %v732, 1.442695
        %v740 = vpow.pop %v739
        %v741 = vadd.f32 %v734, 1.0
        %v742 = vadd.f32 %v736, 1.0
        %v743 = vadd.f32 %v738, 1.0
        %v744 = vadd.f32 %v740, 1.0
        %v745 = vrcp.pop %v741
        %v746 = vmul.f32 1.0, %v745
        %v747 = vrcp.pop %v742
        %v748 = vmul.f32 1.0, %v747
        %v749 = vrcp.pop %v743
        %v750 = vmul.f32 1.0, %v749
        %v751 = vrcp.pop %v744
        %v752 = vmul.f32 1.0, %v751
        %v753 = vmul.f32 %v725, %v746
        %v754 = vmul.f32 %v726, %v748
        %v755 = vmul.f32 %v727, %v750
        %v756 = vmul.f32 %v728, %v752
        %v757 = vpack.c.bf16 %v753, %v753
        %v758 = vpack.c.bf16 %v754, %v754
        %v759 = vpack.c.bf16 %v755, %v755
        %v760 = vpack.c.bf16 %v756, %v756
        %761 = vst [vmem:[%s372] sm:$0x3] %v757
        %762 = vst [vmem:[%s372 + $0x2] sm:$0x3] %v758
        %763 = vst [vmem:[%s372 + $0x4] sm:$0x3] %v759
        %764 = vst [vmem:[%s372 + $0x6] sm:$0x3] %v760
        %vm765 = vcmask 1043456
        %v766 = vsel %vm765, %v753, 0.0
        %v767 = vsel %vm765, %v754, 0.0
        %v768 = vadd.f32 %v766, %v767
        %v769 = vsel %vm765, %v755, 0.0
        %v770 = vadd.f32 %v768, %v769
        %v771 = vsel %vm765, %v756, 0.0
        %v772 = vadd.f32 %v770, %v771
        %v773 = vrot.slane %v772, 4
        %v774 = vadd.f32 %v772, %v773
        %v775 = vrot.slane %v774, 2
        %v776 = vadd.f32 %v774, %v775
        %v777 = vrot.slane %v776, 1
        %v778 = vadd.f32 %v776, %v777
        %779 = vst [vmem:[%s394] sm:$0x1] %v778
        %s780 = sand.u32 %s145, 1
        %s781 = sand.u32 %s145, 1
        %s782 = smul.addr %s781, 8
        %s783 = scalar_lea.vmem [#allocation5], %s782
        %p784 = scmp.lt.s32.totalorder %s21, 1
        %s785 = scalar_select %p784, %s21, 1
        %p786 = scmp.lt.s32.totalorder %s22, 1
        %s787 = scalar_select %p786, %s22, 1
        %s788 = smul.addr %s785, 2
        %s789 = sadd.s32 %s787, %s788
        %s790 = scalar_lea.vmem %s5, %s789
        // Predicated region
        $region116: #{_lambda_.18} parent=106 // pred_check
          %p791 = pneg %p155
        $region117: #{_lambda_.18} parent=106 // pred_check_branch
          %793 = sbr.rel (%p791) target = $region119
        $region118: #{_lambda_.18} parent=106 // pred_region
          %s794 = smul.addr %s21, 8
          %s795 = sadd.s32 %s22, %s794
          %s796 = smul.addr %s795, 2
          %s797 = scalar_lea.vmem %s4, %s796
          // Predicated region
          $region120: #{_lambda_.18} parent=118 // pred_check
            _
          $region121: #{_lambda_.18} parent=118 // pred_check_branch
            %799 = sbr.rel (0) target = $region123
          $region122: #{_lambda_.18} parent=118 // pred_region
            // Predicated region
            $region124: #{_lambda_.18} parent=122 // pred_check
              _
            $region125: #{_lambda_.18} parent=122 // pred_check_branch
              %801 = sbr.rel target = $region127
            $region126: #{_lambda_.18} parent=122 // pred_region
              // Predicated region
              $region139: #{_lambda_.18} parent=126 // pred_check
                _
              $region140: #{_lambda_.18} parent=126 // pred_check_branch
                %822 = sbr.rel (0) target = $region142
              $region141: #{_lambda_.18} parent=126 // pred_region
                loop: start=0, step=1, limit=1
                $region143: #{_lambda_.18} parent=141 // loop_pre_header
                  _
                $region144: #{_lambda_.18} parent=141 // loop_header
                  %s824 = sphi 0, %s828
                  %p825 = scmp.ge.s32.totalorder %s824, 1
                  %s829 = sphi %s783, %s783
                  %s830 = sphi %s797, %s797
                $region145: #{_lambda_.18} parent=141 // loop_header_branch
                  %827 = sbr.rel (%p825) target = $region149
                $region146: #{_lambda_.18} parent=141 // loop_body
                  _
                $region147: #{_lambda_.18} parent=141 // loop_footer
                  %s828 = sadd.s32 1, %s824
                $region148: #{_lambda_.18} parent=141 // loop_footer_branch
                  %823 = sbr.rel target = $region144
                $region149: #{_lambda_.18} parent=141 // loop_exit
                  _
                loop: start=0, step=1, limit=1
                $region150: #{_lambda_.18} parent=141 // loop_pre_header
                  _
                $region151: #{_lambda_.18} parent=141 // loop_header
                  %s833 = sphi 0, %s837
                  %p834 = scmp.ge.s32.totalorder %s833, 1
                  %s838 = sphi %s783, %s783
                  %s839 = sphi %s797, %s797
                $region152: #{_lambda_.18} parent=141 // loop_header_branch
                  %836 = sbr.rel (%p834) target = $region156
                $region153: #{_lambda_.18} parent=141 // loop_body
                  %v840 = vld [vmem:[%s838] sm:$0x3]
                  %841 = vst [vmem:[%s839] sm:$0x3] %v840
                  %v842 = vld [vmem:[%s838 + $0x2] sm:$0x3]
                  %843 = vst [vmem:[%s839 + $0x4] sm:$0x3] %v842
                  %v844 = vld [vmem:[%s838 + $0x4] sm:$0x3]
                  %845 = vst [vmem:[%s839 + $0x8] sm:$0x3] %v844
                  %v846 = vld [vmem:[%s838 + $0x6] sm:$0x3]
                  %847 = vst [vmem:[%s839 + $0xc] sm:$0x3] %v846
                $region154: #{_lambda_.18} parent=141 // loop_footer
                  %s837 = sadd.s32 1, %s833
                $region155: #{_lambda_.18} parent=141 // loop_footer_branch
                  %832 = sbr.rel target = $region151
                $region156: #{_lambda_.18} parent=141 // loop_exit
                  _
              $region142: #{_lambda_.18} parent=126 // pred_fallthru
                _
            $region127: #{_lambda_.18} parent=122 // pred_fallthru
              _
            // Predicated region
            $region128: #{_lambda_.18} parent=122 // pred_check
              _
            $region129: #{_lambda_.18} parent=122 // pred_check_branch
              %803 = sbr.rel (0) target = $region131
            $region130: #{_lambda_.18} parent=122 // pred_region
              loop: start=0, step=1, limit=1
              $region132: #{_lambda_.18} parent=130 // loop_pre_header
                _
              $region133: #{_lambda_.18} parent=130 // loop_header
                %s806 = sphi 0, %s810
                %p807 = scmp.ge.s32.totalorder %s806, 1
                %s811 = sphi %s783, %s783
                %s812 = sphi %s797, %s797
              $region134: #{_lambda_.18} parent=130 // loop_header_branch
                %809 = sbr.rel (%p807) target = $region138
              $region135: #{_lambda_.18} parent=130 // loop_body
                %v813 = vld [vmem:[%s811] sm:$0x3]
                %814 = vst [vmem:[%s812] sm:$0x3] %v813
                %v815 = vld [vmem:[%s811 + $0x2] sm:$0x3]
                %816 = vst [vmem:[%s812 + $0x4] sm:$0x3] %v815
                %v817 = vld [vmem:[%s811 + $0x4] sm:$0x3]
                %818 = vst [vmem:[%s812 + $0x8] sm:$0x3] %v817
                %v819 = vld [vmem:[%s811 + $0x6] sm:$0x3]
                %820 = vst [vmem:[%s812 + $0xc] sm:$0x3] %v819
              $region136: #{_lambda_.18} parent=130 // loop_footer
                %s810 = sadd.s32 1, %s806
              $region137: #{_lambda_.18} parent=130 // loop_footer_branch
                %805 = sbr.rel target = $region133
              $region138: #{_lambda_.18} parent=130 // loop_exit
                _
            $region131: #{_lambda_.18} parent=122 // pred_fallthru
              _
          $region123: #{_lambda_.18} parent=118 // pred_fallthru
            _
          %848 = vnop
        $region119: #{_lambda_.18} parent=106 // pred_fallthru
          _
        // Predicated region
        $region157: #{_lambda_.18} parent=106 // pred_check
          %p849 = pneg %p183
        $region158: #{_lambda_.18} parent=106 // pred_check_branch
          %851 = sbr.rel (%p849) target = $region160
        $region159: #{_lambda_.18} parent=106 // pred_region
          _
        $region160: #{_lambda_.18} parent=106 // pred_fallthru
          _
      $region107: #{_lambda_.18} parent=5 // pred_fallthru
        _
      %p852 = scmp.le.s32.totalorder 2, %s12
      // Predicated region
      $region161: #{_lambda_.18} parent=5 // pred_check
        %p853 = pneg %p852
      $region162: #{_lambda_.18} parent=5 // pred_check_branch
        %855 = sbr.rel (%p853) target = $region164
      $region163: #{_lambda_.18} parent=5 // pred_region
        %s856 = ssub.s32 %s12, 2
        // Predicated region
        $region165: #{_lambda_.18} parent=163 // pred_check
          %p857 = pneg %p161
        $region166: #{_lambda_.18} parent=163 // pred_check_branch
          %859 = sbr.rel (%p857) target = $region168
        $region167: #{_lambda_.18} parent=163 // pred_region
          %s860 = sand.u32 %s146, 1
          %s861 = sand.u32 %s146, 1
          %s862 = smul.addr %s861, 8
          %s863 = scalar_lea.vmem [#allocation5], %s862
        $region168: #{_lambda_.18} parent=163 // pred_fallthru
          _
        // Predicated region
        $region169: #{_lambda_.18} parent=163 // pred_check
          %p864 = pneg %p189
        $region170: #{_lambda_.18} parent=163 // pred_check_branch
          %866 = sbr.rel (%p864) target = $region172
        $region171: #{_lambda_.18} parent=163 // pred_region
          %p867 = scmp.lt.s32.totalorder %s23, 1
          %s868 = scalar_select %p867, %s23, 1
          %p869 = scmp.lt.s32.totalorder %s24, 1
          %s870 = scalar_select %p869, %s24, 1
          %s871 = smul.addr %s868, 2
          %s872 = sadd.s32 %s870, %s871
          %s873 = scalar_lea.vmem %s5, %s872
        $region172: #{_lambda_.18} parent=163 // pred_fallthru
          _
      $region164: #{_lambda_.18} parent=5 // pred_fallthru
        _
    $region6: #{_lambda_.18} parent=1 // loop_footer
      %s16 = sadd.s32 1, %s12
    $region7: #{_lambda_.18} parent=1 // loop_footer_branch
      %11 = sbr.rel target = $region3
    $region8: #{_lambda_.18} parent=1 // loop_exit
      _

// kernel: _lambda_.19
$region0: #{_lambda_.19}
  #allocation0 [shape = 'u32[]', space=smem, size = 0x4, offset = 0x4, fixed_abs, tag = 'smem constant byte address 0x4 - core index']
  #allocation1 [shape = 'u32[144,128]{1,0:T(1,128)}', space=vmem, size = 0x12000, scoped, tag = 'internal scratch']
  %s0 = inlined_call_operand.vmem [shape: bf16[2,16,256], index: 0, kind: input, shape index: {}]
  %s1 = inlined_call_operand.vmem [shape: bf16[256,128], index: 1, kind: input, shape index: {}]
  %s2 = inlined_call_operand.vmem [shape: f32[1,128], index: 2, kind: input, shape index: {}]
  %s3 = inlined_call_operand.vmem [shape: f32[1,128], index: 3, kind: input, shape index: {}]
  %s4 = inlined_call_operand.vmem [shape: f32[2,1,256], index: 4, kind: input, shape index: {}]
  %s5 = inlined_call_operand.vmem [shape: bf16[2,16,128], index: 5, kind: input, shape index: {}]
  %s6 = inlined_call_operand.vmem [shape: bf16[2,16,128], index: 6, kind: output, shape index: {}]
  %s7 = sld [smem:[#allocation0]]
  $region57: #{_lambda_.19} parent=0
    _
  %s9 = ssub.s32 1, %s7
  %s10 = scalar_select 0, %s9, %s7
  loop: start=0, step=1, limit=4
  $region2: #{_lambda_.19} parent=0 // loop_pre_header
    _
  $region3: #{_lambda_.19} parent=0 // loop_header
    %s12 = sphi 0, %s16
    %p13 = scmp.ge.s32.totalorder %s12, 4
    %s19 = sphi 0, %s45
    %s20 = sphi 0, %s41
    %s21 = sphi 0, %s37
    %s22 = sphi 0, %s33
    %s23 = sphi 0, %s19
    %s24 = sphi 0, %s20
    %s25 = sphi 0, %s21
    %s26 = sphi 0, %s22
    %s27 = sphi 0, %s23
    %s28 = sphi 0, %s24
    %s29 = sphi 0, %s25
    %s30 = sphi 0, %s26
    %s52 = sphi 0, %s54
    %s55 = sphi 0, %s52
    %s56 = sphi 0, %s55
    %s72 = sphi 0, %s56
    %s80 = sphi 0, %s82
    %s83 = sphi 0, %s80
    %s84 = sphi 0, %s83
    %s100 = sphi 0, %s84
    %s106 = sphi 0, %s108
    %s109 = sphi 0, %s106
    %s110 = sphi 0, %s109
    %s126 = sphi 0, %s110
    %s132 = sphi 0, %s134
    %s135 = sphi 0, %s132
    %s136 = sphi 0, %s135
    %s152 = sphi 0, %s136
    %s160 = sphi 0, %s162
    %s163 = sphi 0, %s160
    %s164 = sphi 0, %s163
    %s180 = sphi 0, %s164
    %s190 = sphi 0, %s192
    %s193 = sphi 0, %s190
    %s194 = sphi 0, %s193
    %s210 = sphi 0, %s194
    %s220 = sphi 0, %s222
    %s223 = sphi 0, %s220
    %s224 = sphi 0, %s223
    %s240 = sphi 0, %s224
  $region4: #{_lambda_.19} parent=0 // loop_header_branch
    %15 = sbr.rel (%p13) target = $region8
  $region5: #{_lambda_.19} parent=0 // loop_body
    %s17 = ssub.s32 %s12, 1
    %s18 = ssub.s32 %s12, 2
    %s31 = sadd.s32 1, %s22
    %p32 = scmp.ge.s32.totalorder %s31, 1
    %s33 = scalar_select %p32, 0, %s31
    %s34 = sadd.s32 1, %s21
    %s35 = scalar_select %p32, %s34, %s21
    %p36 = scmp.ge.s32.totalorder %s35, 1
    %s37 = scalar_select %p36, 0, %s35
    %s38 = sadd.s32 1, %s20
    %s39 = scalar_select %p36, %s38, %s20
    %p40 = scmp.ge.s32.totalorder %s39, 1
    %s41 = scalar_select %p40, 0, %s39
    %s42 = sadd.s32 1, %s19
    %s43 = scalar_select %p40, %s42, %s19
    %p44 = scmp.ge.s32.totalorder %s43, 2
    %s45 = scalar_select %p44, 0, %s43
    %s46 = ssub.s32 %s19, %s45
    %s47 = ssub.s32 %s20, %s41
    %s48 = sor.u32 %s46, %s47
    %s49 = ssub.s32 %s22, %s33
    %s50 = sor.u32 %s48, %s49
    %p51 = scmp.eq.s32.totalorder %s50, 0
    %s53 = sadd.s32 %s52, 1
    %s54 = scalar_select %p51, %s52, %s53
    %p57 = pneg %p51
    %p58 = scmp.eq.s32.totalorder %s12, 1
    %p59 = por %p57, %p58
    %p60 = scmp.ne.s32.totalorder %s52, %s55
    %p61 = scmp.eq.s32.totalorder %s12, 0
    %p62 = por %p60, %p61
    %p63 = scmp.ne.s32.totalorder %s52, %s55
    %p64 = scmp.eq.s32.totalorder %s17, 1
    %p65 = por %p63, %p64
    %p66 = scmp.ne.s32.totalorder %s55, %s56
    %p67 = scmp.eq.s32.totalorder %s17, 0
    %p68 = por %p66, %p67
    %p69 = scmp.ne.s32.totalorder %s55, %s56
    %p70 = scmp.eq.s32.totalorder %s18, 1
    %p71 = por %p69, %p70
    %p73 = scmp.ne.s32.totalorder %s56, %s72
    %p74 = scmp.eq.s32.totalorder %s18, 0
    %p75 = por %p73, %p74
    %s76 = ssub.s32 %s22, %s33
    %s77 = ssub.s32 %s21, %s37
    %s78 = sor.u32 %s76, %s77
    %p79 = scmp.eq.s32.totalorder %s78, 0
    %s81 = sadd.s32 %s80, 1
    %s82 = scalar_select %p79, %s80, %s81
    %p85 = pneg %p79
    %p86 = scmp.eq.s32.totalorder %s12, 1
    %p87 = por %p85, %p86
    %p88 = scmp.ne.s32.totalorder %s80, %s83
    %p89 = scmp.eq.s32.totalorder %s12, 0
    %p90 = por %p88, %p89
    %p91 = scmp.ne.s32.totalorder %s80, %s83
    %p92 = scmp.eq.s32.totalorder %s17, 1
    %p93 = por %p91, %p92
    %p94 = scmp.ne.s32.totalorder %s83, %s84
    %p95 = scmp.eq.s32.totalorder %s17, 0
    %p96 = por %p94, %p95
    %p97 = scmp.ne.s32.totalorder %s83, %s84
    %p98 = scmp.eq.s32.totalorder %s18, 1
    %p99 = por %p97, %p98
    %p101 = scmp.ne.s32.totalorder %s84, %s100
    %p102 = scmp.eq.s32.totalorder %s18, 0
    %p103 = por %p101, %p102
    %s104 = ssub.s32 %s21, %s37
    %p105 = scmp.eq.s32.totalorder %s104, 0
    %s107 = sadd.s32 %s106, 1
    %s108 = scalar_select %p105, %s106, %s107
    %p111 = pneg %p105
    %p112 = scmp.eq.s32.totalorder %s12, 1
    %p113 = por %p111, %p112
    %p114 = scmp.ne.s32.totalorder %s106, %s109
    %p115 = scmp.eq.s32.totalorder %s12, 0
    %p116 = por %p114, %p115
    %p117 = scmp.ne.s32.totalorder %s106, %s109
    %p118 = scmp.eq.s32.totalorder %s17, 1
    %p119 = por %p117, %p118
    %p120 = scmp.ne.s32.totalorder %s109, %s110
    %p121 = scmp.eq.s32.totalorder %s17, 0
    %p122 = por %p120, %p121
    %p123 = scmp.ne.s32.totalorder %s109, %s110
    %p124 = scmp.eq.s32.totalorder %s18, 1
    %p125 = por %p123, %p124
    %p127 = scmp.ne.s32.totalorder %s110, %s126
    %p128 = scmp.eq.s32.totalorder %s18, 0
    %p129 = por %p127, %p128
    %s130 = ssub.s32 %s21, %s37
    %p131 = scmp.eq.s32.totalorder %s130, 0
    %s133 = sadd.s32 %s132, 1
    %s134 = scalar_select %p131, %s132, %s133
    %p137 = pneg %p131
    %p138 = scmp.eq.s32.totalorder %s12, 1
    %p139 = por %p137, %p138
    %p140 = scmp.ne.s32.totalorder %s132, %s135
    %p141 = scmp.eq.s32.totalorder %s12, 0
    %p142 = por %p140, %p141
    %p143 = scmp.ne.s32.totalorder %s132, %s135
    %p144 = scmp.eq.s32.totalorder %s17, 1
    %p145 = por %p143, %p144
    %p146 = scmp.ne.s32.totalorder %s135, %s136
    %p147 = scmp.eq.s32.totalorder %s17, 0
    %p148 = por %p146, %p147
    %p149 = scmp.ne.s32.totalorder %s135, %s136
    %p150 = scmp.eq.s32.totalorder %s18, 1
    %p151 = por %p149, %p150
    %p153 = scmp.ne.s32.totalorder %s136, %s152
    %p154 = scmp.eq.s32.totalorder %s18, 0
    %p155 = por %p153, %p154
    %s156 = ssub.s32 %s19, %s45
    %s157 = ssub.s32 %s22, %s33
    %s158 = sor.u32 %s156, %s157
    %p159 = scmp.eq.s32.totalorder %s158, 0
    %s161 = sadd.s32 %s160, 1
    %s162 = scalar_select %p159, %s160, %s161
    %p165 = pneg %p159
    %p166 = scmp.eq.s32.totalorder %s12, 1
    %p167 = por %p165, %p166
    %p168 = scmp.ne.s32.totalorder %s160, %s163
    %p169 = scmp.eq.s32.totalorder %s12, 0
    %p170 = por %p168, %p169
    %p171 = scmp.ne.s32.totalorder %s160, %s163
    %p172 = scmp.eq.s32.totalorder %s17, 1
    %p173 = por %p171, %p172
    %p174 = scmp.ne.s32.totalorder %s163, %s164
    %p175 = scmp.eq.s32.totalorder %s17, 0
    %p176 = por %p174, %p175
    %p177 = scmp.ne.s32.totalorder %s163, %s164
    %p178 = scmp.eq.s32.totalorder %s18, 1
    %p179 = por %p177, %p178
    %p181 = scmp.ne.s32.totalorder %s164, %s180
    %p182 = scmp.eq.s32.totalorder %s18, 0
    %p183 = por %p181, %p182
    %s184 = ssub.s32 %s19, %s45
    %s185 = ssub.s32 %s20, %s41
    %s186 = sor.u32 %s184, %s185
    %s187 = ssub.s32 %s21, %s37
    %s188 = sor.u32 %s186, %s187
    %p189 = scmp.eq.s32.totalorder %s188, 0
    %s191 = sadd.s32 %s190, 1
    %s192 = scalar_select %p189, %s190, %s191
    %p195 = pneg %p189
    %p196 = scmp.eq.s32.totalorder %s12, 1
    %p197 = por %p195, %p196
    %p198 = scmp.ne.s32.totalorder %s190, %s193
    %p199 = scmp.eq.s32.totalorder %s12, 0
    %p200 = por %p198, %p199
    %p201 = scmp.ne.s32.totalorder %s190, %s193
    %p202 = scmp.eq.s32.totalorder %s17, 1
    %p203 = por %p201, %p202
    %p204 = scmp.ne.s32.totalorder %s193, %s194
    %p205 = scmp.eq.s32.totalorder %s17, 0
    %p206 = por %p204, %p205
    %p207 = scmp.ne.s32.totalorder %s193, %s194
    %p208 = scmp.eq.s32.totalorder %s18, 1
    %p209 = por %p207, %p208
    %p211 = scmp.ne.s32.totalorder %s194, %s210
    %p212 = scmp.eq.s32.totalorder %s18, 0
    %p213 = por %p211, %p212
    %s214 = ssub.s32 %s19, %s45
    %s215 = ssub.s32 %s20, %s41
    %s216 = sor.u32 %s214, %s215
    %s217 = ssub.s32 %s21, %s37
    %s218 = sor.u32 %s216, %s217
    %p219 = scmp.eq.s32.totalorder %s218, 0
    %s221 = sadd.s32 %s220, 1
    %s222 = scalar_select %p219, %s220, %s221
    %p225 = pneg %p219
    %p226 = scmp.eq.s32.totalorder %s12, 1
    %p227 = por %p225, %p226
    %p228 = scmp.ne.s32.totalorder %s220, %s223
    %p229 = scmp.eq.s32.totalorder %s12, 0
    %p230 = por %p228, %p229
    %p231 = scmp.ne.s32.totalorder %s220, %s223
    %p232 = scmp.eq.s32.totalorder %s17, 1
    %p233 = por %p231, %p232
    %p234 = scmp.ne.s32.totalorder %s223, %s224
    %p235 = scmp.eq.s32.totalorder %s17, 0
    %p236 = por %p234, %p235
    %p237 = scmp.ne.s32.totalorder %s223, %s224
    %p238 = scmp.eq.s32.totalorder %s18, 1
    %p239 = por %p237, %p238
    %p241 = scmp.ne.s32.totalorder %s224, %s240
    %p242 = scmp.eq.s32.totalorder %s18, 0
    %p243 = por %p241, %p242
    %p244 = scmp.le.s32.totalorder 1, %s12
    %p245 = scmp.lt.s32.totalorder %s12, 3
    %p246 = pnand %p244, %p245
    %p247 = pneg %p246
    // Predicated region
    $region9: #{_lambda_.19} parent=5 // pred_check
      _
    $region10: #{_lambda_.19} parent=5 // pred_check_branch
      %249 = sbr.rel (%p246) target = $region12
    $region11: #{_lambda_.19} parent=5 // pred_region
      %s250 = ssub.s32 %s12, 1
      // Predicated region
      $region13: #{_lambda_.19} parent=11 // pred_check
        %p251 = pneg %p96
      $region14: #{_lambda_.19} parent=11 // pred_check_branch
        %253 = sbr.rel (%p251) target = $region16
      $region15: #{_lambda_.19} parent=11 // pred_region
        %s254 = smul.u32 32, %s26
        %p255 = scmp.lt.s32.totalorder %s254, 31
        %s256 = scalar_select %p255, %s254, 31
        %p257 = scmp.lt.s32.totalorder %s25, 0
        %s258 = scalar_select %p257, %s25, 0
        %s259 = sadd.s32 %s258, %s256
        %s260 = smul.addr %s259, 4
        %s261 = scalar_lea.vmem %s1, %s260
        %s262 = smul.u32 32, %s26
      $region16: #{_lambda_.19} parent=11 // pred_fallthru
        _
      // Predicated region
      $region17: #{_lambda_.19} parent=11 // pred_check
        %p263 = pneg %p122
      $region18: #{_lambda_.19} parent=11 // pred_check_branch
        %265 = sbr.rel (%p263) target = $region20
      $region19: #{_lambda_.19} parent=11 // pred_region
        %p266 = scmp.lt.s32.totalorder %s25, 0
        %s267 = scalar_select %p266, %s25, 0
        %s268 = scalar_lea.vmem %s2, %s267
      $region20: #{_lambda_.19} parent=11 // pred_fallthru
        _
      // Predicated region
      $region21: #{_lambda_.19} parent=11 // pred_check
        %p269 = pneg %p148
      $region22: #{_lambda_.19} parent=11 // pred_check_branch
        %271 = sbr.rel (%p269) target = $region24
      $region23: #{_lambda_.19} parent=11 // pred_region
        %p272 = scmp.lt.s32.totalorder %s25, 0
        %s273 = scalar_select %p272, %s25, 0
        %s274 = scalar_lea.vmem %s3, %s273
      $region24: #{_lambda_.19} parent=11 // pred_fallthru
        _
    $region12: #{_lambda_.19} parent=5 // pred_fallthru
      _
    %p275 = scmp.lt.s32.totalorder %s12, 2
    // Predicated region
    $region25: #{_lambda_.19} parent=5 // pred_check
      %p276 = pneg %p275
    $region26: #{_lambda_.19} parent=5 // pred_check_branch
      %278 = sbr.rel (%p276) target = $region28
    $region27: #{_lambda_.19} parent=5 // pred_region
      // Predicated region
      $region29: #{_lambda_.19} parent=27 // pred_check
        %p279 = pneg %p62
      $region30: #{_lambda_.19} parent=27 // pred_check_branch
        %281 = sbr.rel (%p279) target = $region32
      $region31: #{_lambda_.19} parent=27 // pred_region
        %s282 = smul.u32 2, %s20
        %s283 = smul.u32 2, %s22
        %p284 = scmp.lt.s32.totalorder %s19, 1
        %s285 = scalar_select %p284, %s19, 1
        %p286 = scmp.lt.s32.totalorder %s282, 1
        %s287 = scalar_select %p286, %s282, 1
        %p288 = scmp.lt.s32.totalorder %s283, 1
        %s289 = scalar_select %p288, %s283, 1
        %s290 = smul.addr %s287, 2
        %s291 = sadd.s32 %s289, %s290
        %s292 = smul.addr %s285, 4
        %s293 = sadd.s32 %s291, %s292
        %s294 = smul.addr %s293, 4
        %s295 = scalar_lea.vmem %s0, %s294
        %s296 = smul.u32 2, %s20
        %s297 = smul.u32 2, %s22
      $region32: #{_lambda_.19} parent=27 // pred_fallthru
        _
      // Predicated region
      $region33: #{_lambda_.19} parent=27 // pred_check
        %p298 = pneg %p170
      $region34: #{_lambda_.19} parent=27 // pred_check_branch
        %300 = sbr.rel (%p298) target = $region36
      $region35: #{_lambda_.19} parent=27 // pred_region
        %s301 = smul.u32 2, %s22
        %p302 = scmp.lt.s32.totalorder %s19, 1
        %s303 = scalar_select %p302, %s19, 1
        %p304 = scmp.lt.s32.totalorder %s301, 1
        %s305 = scalar_select %p304, %s301, 1
        %s306 = smul.addr %s303, 2
        %s307 = sadd.s32 %s305, %s306
        %s308 = scalar_lea.vmem %s4, %s307
        %s309 = smul.u32 2, %s22
      $region36: #{_lambda_.19} parent=27 // pred_fallthru
        _
      // Predicated region
      $region37: #{_lambda_.19} parent=27 // pred_check
        %p310 = pneg %p200
      $region38: #{_lambda_.19} parent=27 // pred_check_branch
        %312 = sbr.rel (%p310) target = $region40
      $region39: #{_lambda_.19} parent=27 // pred_region
        %s313 = smul.u32 2, %s20
        %p314 = scmp.lt.s32.totalorder %s19, 1
        %s315 = scalar_select %p314, %s19, 1
        %p316 = scmp.lt.s32.totalorder %s313, 1
        %s317 = scalar_select %p316, %s313, 1
        %p318 = scmp.lt.s32.totalorder %s21, 0
        %s319 = scalar_select %p318, %s21, 0
        %s320 = sadd.s32 %s319, %s317
        %s321 = smul.addr %s315, 2
        %s322 = sadd.s32 %s320, %s321
        %s323 = smul.addr %s322, 4
        %s324 = scalar_lea.vmem %s5, %s323
        %s325 = smul.u32 2, %s20
      $region40: #{_lambda_.19} parent=27 // pred_fallthru
        _
    $region28: #{_lambda_.19} parent=5 // pred_fallthru
      _
    %p326 = scmp.le.s32.totalorder 1, %s12
    %p327 = scmp.lt.s32.totalorder %s12, 3
    %p328 = pnand %p326, %p327
    %p329 = pneg %p328
    // Predicated region
    $region41: #{_lambda_.19} parent=5 // pred_check
      _
    $region42: #{_lambda_.19} parent=5 // pred_check_branch
      %331 = sbr.rel (%p328) target = $region44
    $region43: #{_lambda_.19} parent=5 // pred_region
      %s332 = ssub.s32 %s12, 1
      %s333 = smul.u32 2, %s24
      %s334 = smul.u32 2, %s26
      %p335 = scmp.lt.s32.totalorder %s23, 1
      %s336 = scalar_select %p335, %s23, 1
      %p337 = scmp.lt.s32.totalorder %s333, 1
      %s338 = scalar_select %p337, %s333, 1
      %p339 = scmp.lt.s32.totalorder %s334, 1
      %s340 = scalar_select %p339, %s334, 1
      %s341 = smul.addr %s338, 2
      %s342 = sadd.s32 %s340, %s341
      %s343 = smul.addr %s336, 4
      %s344 = sadd.s32 %s342, %s343
      %s345 = smul.addr %s344, 4
      %s346 = scalar_lea.vmem %s0, %s345
      %p347 = pneg %p68
      %p348 = pneg %p65
      %s349 = smul.u32 32, %s26
      %p350 = scmp.lt.s32.totalorder %s349, 31
      %s351 = scalar_select %p350, %s349, 31
      %p352 = scmp.lt.s32.totalorder %s25, 0
      %s353 = scalar_select %p352, %s25, 0
      %s354 = sadd.s32 %s353, %s351
      %s355 = smul.addr %s354, 4
      %s356 = scalar_lea.vmem %s1, %s355
      %p357 = pneg %p96
      %p358 = pneg %p93
      %p359 = scmp.lt.s32.totalorder %s25, 0
      %s360 = scalar_select %p359, %s25, 0
      %s361 = scalar_lea.vmem %s2, %s360
      %p362 = pneg %p122
      %p363 = pneg %p119
      %p364 = scmp.lt.s32.totalorder %s25, 0
      %s365 = scalar_select %p364, %s25, 0
      %s366 = scalar_lea.vmem %s3, %s365
      %p367 = pneg %p148
      %p368 = pneg %p145
      %s369 = smul.u32 2, %s26
      %p370 = scmp.lt.s32.totalorder %s23, 1
      %s371 = scalar_select %p370, %s23, 1
      %p372 = scmp.lt.s32.totalorder %s369, 1
      %s373 = scalar_select %p372, %s369, 1
      %s374 = smul.addr %s371, 2
      %s375 = sadd.s32 %s373, %s374
      %s376 = scalar_lea.vmem %s4, %s375
      %p377 = pneg %p176
      %p378 = pneg %p173
      %s379 = smul.u32 2, %s24
      %p380 = scmp.lt.s32.totalorder %s23, 1
      %s381 = scalar_select %p380, %s23, 1
      %p382 = scmp.lt.s32.totalorder %s379, 1
      %s383 = scalar_select %p382, %s379, 1
      %p384 = scmp.lt.s32.totalorder %s25, 0
      %s385 = scalar_select %p384, %s25, 0
      %s386 = sadd.s32 %s385, %s383
      %s387 = smul.addr %s381, 2
      %s388 = sadd.s32 %s386, %s387
      %s389 = smul.addr %s388, 4
      %s390 = scalar_lea.vmem %s5, %s389
      %p391 = pneg %p206
      %p392 = pneg %p203
      %p393 = pneg %p236
      %p394 = pneg %p233
      %s395 = smul.u32 2, %s24
      %p396 = scmp.lt.s32.totalorder %s23, 1
      %s397 = scalar_select %p396, %s23, 1
      %p398 = scmp.lt.s32.totalorder %s395, 1
      %s399 = scalar_select %p398, %s395, 1
      %p400 = scmp.lt.s32.totalorder %s25, 0
      %s401 = scalar_select %p400, %s25, 0
      %s402 = sadd.s32 %s401, %s399
      %s403 = smul.addr %s397, 2
      %s404 = sadd.s32 %s402, %s403
      %s405 = smul.addr %s404, 4
      %s406 = scalar_lea.vmem %s6, %s405
      %s407 = smul.u32 2, %s24
      %s408 = smul.u32 2, %s26
      %p409 = scmp.lt.s32.totalorder %s23, 1
      %s410 = scalar_select %p409, %s23, 1
      %p411 = scmp.lt.s32.totalorder %s407, 1
      %s412 = scalar_select %p411, %s407, 1
      %p413 = scmp.lt.s32.totalorder %s408, 1
      %s414 = scalar_select %p413, %s408, 1
      %s415 = smul.addr %s412, 2
      %s416 = sadd.s32 %s414, %s415
      %s417 = smul.addr %s410, 4
      %s418 = sadd.s32 %s416, %s417
      %s419 = smul.addr %s418, 4
      %s420 = scalar_lea.vmem %s0, %s419
      %s421 = smul.u32 2, %s24
      %s422 = smul.u32 2, %s26
      %s423 = smul.u32 32, %s26
      %p424 = scmp.lt.s32.totalorder %s423, 31
      %s425 = scalar_select %p424, %s423, 31
      %p426 = scmp.lt.s32.totalorder %s25, 0
      %s427 = scalar_select %p426, %s25, 0
      %s428 = sadd.s32 %s427, %s425
      %s429 = smul.addr %s428, 4
      %s430 = scalar_lea.vmem %s1, %s429
      %s431 = smul.u32 32, %s26
      %p432 = scmp.lt.s32.totalorder %s25, 0
      %s433 = scalar_select %p432, %s25, 0
      %s434 = scalar_lea.vmem %s2, %s433
      %p435 = scmp.lt.s32.totalorder %s25, 0
      %s436 = scalar_select %p435, %s25, 0
      %s437 = scalar_lea.vmem %s3, %s436
      %s438 = smul.u32 2, %s26
      %p439 = scmp.lt.s32.totalorder %s23, 1
      %s440 = scalar_select %p439, %s23, 1
      %p441 = scmp.lt.s32.totalorder %s438, 1
      %s442 = scalar_select %p441, %s438, 1
      %s443 = smul.addr %s440, 2
      %s444 = sadd.s32 %s442, %s443
      %s445 = scalar_lea.vmem %s4, %s444
      %s446 = smul.u32 2, %s26
      %s447 = smul.u32 2, %s24
      %p448 = scmp.lt.s32.totalorder %s23, 1
      %s449 = scalar_select %p448, %s23, 1
      %p450 = scmp.lt.s32.totalorder %s447, 1
      %s451 = scalar_select %p450, %s447, 1
      %p452 = scmp.lt.s32.totalorder %s25, 0
      %s453 = scalar_select %p452, %s25, 0
      %s454 = sadd.s32 %s453, %s451
      %s455 = smul.addr %s449, 2
      %s456 = sadd.s32 %s454, %s455
      %s457 = smul.addr %s456, 4
      %s458 = scalar_lea.vmem %s5, %s457
      %s459 = smul.u32 2, %s24
      %s460 = smul.u32 2, %s24
      %p461 = scmp.lt.s32.totalorder %s23, 1
      %s462 = scalar_select %p461, %s23, 1
      %p463 = scmp.lt.s32.totalorder %s460, 1
      %s464 = scalar_select %p463, %s460, 1
      %p465 = scmp.lt.s32.totalorder %s25, 0
      %s466 = scalar_select %p465, %s25, 0
      %s467 = sadd.s32 %s466, %s464
      %s468 = smul.addr %s462, 2
      %s469 = sadd.s32 %s467, %s468
      %s470 = smul.addr %s469, 4
      %s471 = scalar_lea.vmem %s6, %s470
      %s472 = smul.u32 2, %s24
      %v474 = vld [vmem:[%s420] sm:$0xff]
      %v475 = vld [vmem:[%s420 + $0x8] sm:$0xff]
      %v476 = vld [vmem:[%s445] sm:$0x3]
      %v478 = vlaneseq
      %v479 = vshrl.u32 %v478, 7
      %v480 = vsub.s32 0, %v479
      %v481 = vrot.slane %v476, %v480
      %v482 = vlaneseq
      %v483 = vshrl.u32 %v482, 7
      %v484 = vsub.s32 1, %v483
      %v485 = vrot.slane %v476, %v484
      %v488 = vpack.c.bf16 %v481, %v481
      %v489 = vpack.c.bf16 %v485, %v485
      %v491 = vpack.i.b16 %v488, %v488
      %v493 = vlaneseq
      %v494 = vshrl.u32 %v493, 7
      %v495 = vsub.s32 0, %v494
      %v496 = vrot.slane %v491, %v495
      %v498 = vpack.i.b16 %v489, %v489
      %v500 = vlaneseq
      %v501 = vshrl.u32 %v500, 7
      %v502 = vsub.s32 0, %v501
      %v503 = vrot.slane %v498, %v502
      %v506 = vunpack.c.l.b16 %v496
      %v507 = vunpack.c.l.b16 %v503
      %v508 = vpack.c.b16 %v507, %v506
      %v510 = vmul.bf16 %v474, %v508
      %v511 = vmul.bf16 %v475, %v508
      %v512 = vld [vmem:[%s430] sm:$0xf]
      %v513 = vld [vmem:[%s430 + $0x4] sm:$0xf]
      %v514 = vld [vmem:[%s430 + $0x8] sm:$0xf]
      %v515 = vld [vmem:[%s430 + $0xc] sm:$0xf]
      %v516 = vld [vmem:[%s430 + $0x10] sm:$0xf]
      %v517 = vld [vmem:[%s430 + $0x14] sm:$0xf]
      %v518 = vld [vmem:[%s430 + $0x18] sm:$0xf]
      %v519 = vld [vmem:[%s430 + $0x1c] sm:$0xf]
      %v520 = vld [vmem:[%s430 + $0x20] sm:$0xf]
      %v521 = vld [vmem:[%s430 + $0x24] sm:$0xf]
      %v522 = vld [vmem:[%s430 + $0x28] sm:$0xf]
      %v523 = vld [vmem:[%s430 + $0x2c] sm:$0xf]
      %v524 = vld [vmem:[%s430 + $0x30] sm:$0xf]
      %v525 = vld [vmem:[%s430 + $0x34] sm:$0xf]
      %v526 = vld [vmem:[%s430 + $0x38] sm:$0xf]
      %v527 = vld [vmem:[%s430 + $0x3c] sm:$0xf]
      %v528 = vld [vmem:[%s430 + $0x40] sm:$0xf]
      %v529 = vld [vmem:[%s430 + $0x44] sm:$0xf]
      %v530 = vld [vmem:[%s430 + $0x48] sm:$0xf]
      %v531 = vld [vmem:[%s430 + $0x4c] sm:$0xf]
      %v532 = vld [vmem:[%s430 + $0x50] sm:$0xf]
      %v533 = vld [vmem:[%s430 + $0x54] sm:$0xf]
      %v534 = vld [vmem:[%s430 + $0x58] sm:$0xf]
      %v535 = vld [vmem:[%s430 + $0x5c] sm:$0xf]
      %v536 = vld [vmem:[%s430 + $0x60] sm:$0xf]
      %v537 = vld [vmem:[%s430 + $0x64] sm:$0xf]
      %v538 = vld [vmem:[%s430 + $0x68] sm:$0xf]
      %v539 = vld [vmem:[%s430 + $0x6c] sm:$0xf]
      %v540 = vld [vmem:[%s430 + $0x70] sm:$0xf]
      %v541 = vld [vmem:[%s430 + $0x74] sm:$0xf]
      %v542 = vld [vmem:[%s430 + $0x78] sm:$0xf]
      %v543 = vld [vmem:[%s430 + $0x7c] sm:$0xf]
      %v546 = vunpack.c.l.b16 %v510
      %v547 = vunpack.c.h.b16 %v510
      %v548 = vunpack.c.l.b16 %v511
      %v549 = vunpack.c.h.b16 %v511
      %v550 = vpack.c.b16 %v548, %v546
      %v551 = vpack.c.b16 %v549, %v547
      %v586 = vunpack.c.l.b16 %v512
      %v587 = vunpack.c.l.b16 %v513
      %v588 = vunpack.c.l.b16 %v514
      %v589 = vunpack.c.l.b16 %v515
      %v590 = vunpack.c.l.b16 %v516
      %v591 = vunpack.c.l.b16 %v517
      %v592 = vunpack.c.l.b16 %v518
      %v593 = vunpack.c.l.b16 %v519
      %v594 = vunpack.c.l.b16 %v520
      %v595 = vunpack.c.l.b16 %v521
      %v596 = vunpack.c.l.b16 %v522
      %v597 = vunpack.c.l.b16 %v523
      %v598 = vunpack.c.l.b16 %v524
      %v599 = vunpack.c.l.b16 %v525
      %v600 = vunpack.c.l.b16 %v526
      %v601 = vunpack.c.l.b16 %v527
      %v602 = vunpack.c.l.b16 %v528
      %v603 = vunpack.c.l.b16 %v529
      %v604 = vunpack.c.l.b16 %v530
      %v605 = vunpack.c.l.b16 %v531
      %v606 = vunpack.c.l.b16 %v532
      %v607 = vunpack.c.l.b16 %v533
      %v608 = vunpack.c.l.b16 %v534
      %v609 = vunpack.c.l.b16 %v535
      %v610 = vunpack.c.l.b16 %v536
      %v611 = vunpack.c.l.b16 %v537
      %v612 = vunpack.c.l.b16 %v538
      %v613 = vunpack.c.l.b16 %v539
      %v614 = vunpack.c.l.b16 %v540
      %v615 = vunpack.c.l.b16 %v541
      %v616 = vunpack.c.l.b16 %v542
      %v617 = vunpack.c.l.b16 %v543
      %v618 = vpack.c.b16 %v587, %v586
      %v619 = vpack.c.b16 %v589, %v588
      %v620 = vpack.c.b16 %v591, %v590
      %v621 = vpack.c.b16 %v593, %v592
      %v622 = vpack.c.b16 %v595, %v594
      %v623 = vpack.c.b16 %v597, %v596
      %v624 = vpack.c.b16 %v599, %v598
      %v625 = vpack.c.b16 %v601, %v600
      %v626 = vpack.c.b16 %v603, %v602
      %v627 = vpack.c.b16 %v605, %v604
      %v628 = vpack.c.b16 %v607, %v606
      %v629 = vpack.c.b16 %v609, %v608
      %v630 = vpack.c.b16 %v611, %v610
      %v631 = vpack.c.b16 %v613, %v612
      %v632 = vpack.c.b16 %v615, %v614
      %v633 = vpack.c.b16 %v617, %v616
      %650 = vmatprep.subr.bf16.mxu0 0
      %651 = vmatpush1.bf16.msra.mxu0 %v618
      %652 = vmatprep.subr.bf16.mxu0 0
      %653 = vmatpush1.bf16.msra.mxu0 %v619
      %654 = vmatprep.subr.bf16.mxu0 0
      %655 = vmatpush1.bf16.msra.mxu0 %v620
      %656 = vmatprep.subr.bf16.mxu0 0
      %657 = vmatpush1.bf16.msra.mxu0 %v621
      %658 = vmatprep.subr.bf16.mxu0 0
      %659 = vmatpush1.bf16.msra.mxu0 %v622
      %660 = vmatprep.subr.bf16.mxu0 0
      %661 = vmatpush1.bf16.msra.mxu0 %v623
      %662 = vmatprep.subr.bf16.mxu0 0
      %663 = vmatpush1.bf16.msra.mxu0 %v624
      %664 = vmatprep.subr.bf16.mxu0 0
      %665 = vmatpush1.bf16.msra.mxu0 %v625
      %666 = vmatprep.subr.bf16.mxu0 0
      %667 = vmatpush1.bf16.msra.mxu0 %v626
      %668 = vmatprep.subr.bf16.mxu0 0
      %669 = vmatpush1.bf16.msra.mxu0 %v627
      %670 = vmatprep.subr.bf16.mxu0 0
      %671 = vmatpush1.bf16.msra.mxu0 %v628
      %672 = vmatprep.subr.bf16.mxu0 0
      %673 = vmatpush1.bf16.msra.mxu0 %v629
      %674 = vmatprep.subr.bf16.mxu0 0
      %675 = vmatpush1.bf16.msra.mxu0 %v630
      %676 = vmatprep.subr.bf16.mxu0 0
      %677 = vmatpush1.bf16.msra.mxu0 %v631
      %678 = vmatprep.subr.bf16.mxu0 0
      %679 = vmatpush1.bf16.msra.mxu0 %v632
      %680 = vmatprep.subr.bf16.mxu0 0
      %681 = vmatpush1.bf16.msra.mxu0 %v633
      %682 = vmatprep.mubr.bf16.mxu0 %v551
      %683 = vmatmul.mubr.bf16.gmra.mrb[0].mxu0 %v550
      %v684 = vpop.f32.mrb[0].mxu0
      %v685 = vadd.f32 0.0, %v684
      %v686 = vpop.f32.mrb[0].mxu0
      %v687 = vpop.f32.mrb[0].mxu0
      %v688 = vadd.f32 0.0, %v687
      %v689 = vpop.f32.mrb[0].mxu0
      %690 = vdwg.mxu0
      %v691 = vld [vmem:[%s434] sm:$0x1]
      %v693 = vlaneseq
      %v694 = vshrl.u32 %v693, 7
      %v695 = vsub.s32 0, %v694
      %v696 = vrot.slane %v691, %v695
      %v698 = vmul.f32 %v685, %v696
      %v699 = vmul.f32 %v688, %v696
      %v700 = vld [vmem:[%s437] sm:$0x1]
      %v702 = vlaneseq
      %v703 = vshrl.u32 %v702, 7
      %v704 = vsub.s32 0, %v703
      %v705 = vrot.slane %v700, %v704
      %v707 = vadd.f32 %v698, %v705
      %v708 = vadd.f32 %v699, %v705
      %v709 = vld [vmem:[%s458] sm:$0xf]
      %v710 = vld [vmem:[%s458 + $0x4] sm:$0xf]
      %v711 = vunpack.c.l.bf16 %v709
      %v712 = vunpack.c.l.bf16 %v710
      %v713 = vadd.f32 %v707, %v711
      %v714 = vadd.f32 %v708, %v712
      %v715 = vpack.c.bf16 %v714, %v713
      %v717 = vunpack.c.l.b16 %v715
      %v718 = vunpack.c.h.b16 %v715
      %v719 = vpack.c.b16 %v717, %v717
      %v720 = vpack.c.b16 %v718, %v718
      %723 = vst [vmem:[%s471] sm:$0xf] %v719
      %724 = vst [vmem:[%s471 + $0x4] sm:$0xf] %v720
      %s725 = smul.u32 2, %s24
      %p726 = scmp.lt.s32.totalorder %s23, 1
      %s727 = scalar_select %p726, %s23, 1
      %p728 = scmp.lt.s32.totalorder %s725, 1
      %s729 = scalar_select %p728, %s725, 1
      %p730 = scmp.lt.s32.totalorder %s25, 0
      %s731 = scalar_select %p730, %s25, 0
      %s732 = sadd.s32 %s731, %s729
      %s733 = smul.addr %s727, 2
      %s734 = sadd.s32 %s732, %s733
      %s735 = smul.addr %s734, 4
      %s736 = scalar_lea.vmem %s6, %s735
      // Predicated region
      $region45: #{_lambda_.19} parent=43 // pred_check
        %p737 = pneg %p233
      $region46: #{_lambda_.19} parent=43 // pred_check_branch
        %739 = sbr.rel (%p737) target = $region48
      $region47: #{_lambda_.19} parent=43 // pred_region
        %s740 = smul.u32 2, %s24
      $region48: #{_lambda_.19} parent=43 // pred_fallthru
        _
    $region44: #{_lambda_.19} parent=5 // pred_fallthru
      _
    %p741 = scmp.le.s32.totalorder 2, %s12
    // Predicated region
    $region49: #{_lambda_.19} parent=5 // pred_check
      %p742 = pneg %p741
    $region50: #{_lambda_.19} parent=5 // pred_check_branch
      %744 = sbr.rel (%p742) target = $region52
    $region51: #{_lambda_.19} parent=5 // pred_region
      %s745 = ssub.s32 %s12, 2
      // Predicated region
      $region53: #{_lambda_.19} parent=51 // pred_check
        %p746 = pneg %p239
      $region54: #{_lambda_.19} parent=51 // pred_check_branch
        %748 = sbr.rel (%p746) target = $region56
      $region55: #{_lambda_.19} parent=51 // pred_region
        %s749 = smul.u32 2, %s28
        %p750 = scmp.lt.s32.totalorder %s27, 1
        %s751 = scalar_select %p750, %s27, 1
        %p752 = scmp.lt.s32.totalorder %s749, 1
        %s753 = scalar_select %p752, %s749, 1
        %p754 = scmp.lt.s32.totalorder %s29, 0
        %s755 = scalar_select %p754, %s29, 0
        %s756 = sadd.s32 %s755, %s753
        %s757 = smul.addr %s751, 2
        %s758 = sadd.s32 %s756, %s757
        %s759 = smul.addr %s758, 4
        %s760 = scalar_lea.vmem %s6, %s759
      $region56: #{_lambda_.19} parent=51 // pred_fallthru
        _
    $region52: #{_lambda_.19} parent=5 // pred_fallthru
      _
  $region6: #{_lambda_.19} parent=0 // loop_footer
    %s16 = sadd.s32 1, %s12
  $region7: #{_lambda_.19} parent=0 // loop_footer_branch
    %11 = sbr.rel target = $region3
  $region8: #{_lambda_.19} parent=0 // loop_exit
    _

// kernel: _lambda_.22
$region0: #{_lambda_.22}
  #allocation0 [shape = 'u32[]', space=smem, size = 0x4, offset = 0x4, fixed_abs, tag = 'smem constant byte address 0x4 - core index']
  #allocation1 [shape = 'u32[144,128]{1,0:T(1,128)}', space=vmem, size = 0x12000, scoped, tag = 'internal scratch']
  %s0 = inlined_call_operand.vmem [shape: bf16[2,4,256], index: 0, kind: input, shape index: {}]
  %s1 = inlined_call_operand.vmem [shape: bf16[256,128], index: 1, kind: input, shape index: {}]
  %s2 = inlined_call_operand.vmem [shape: f32[1,128], index: 2, kind: input, shape index: {}]
  %s3 = inlined_call_operand.vmem [shape: f32[1,128], index: 3, kind: input, shape index: {}]
  %s4 = inlined_call_operand.vmem [shape: f32[2,1,256], index: 4, kind: input, shape index: {}]
  %s5 = inlined_call_operand.vmem [shape: bf16[2,4,128], index: 5, kind: output, shape index: {}]
  %s6 = sld [smem:[#allocation0]]
  $region53: #{_lambda_.22} parent=0
    _
  %s8 = ssub.s32 1, %s6
  %s9 = scalar_select 0, %s8, %s6
  loop: start=0, step=1, limit=4
  $region2: #{_lambda_.22} parent=0 // loop_pre_header
    _
  $region3: #{_lambda_.22} parent=0 // loop_header
    %s11 = sphi 0, %s15
    %p12 = scmp.ge.s32.totalorder %s11, 4
    %s18 = sphi 0, %s44
    %s19 = sphi 0, %s40
    %s20 = sphi 0, %s36
    %s21 = sphi 0, %s32
    %s22 = sphi 0, %s18
    %s23 = sphi 0, %s19
    %s24 = sphi 0, %s20
    %s25 = sphi 0, %s21
    %s26 = sphi 0, %s22
    %s27 = sphi 0, %s23
    %s28 = sphi 0, %s24
    %s29 = sphi 0, %s25
    %s51 = sphi 0, %s53
    %s54 = sphi 0, %s51
    %s55 = sphi 0, %s54
    %s71 = sphi 0, %s55
    %s79 = sphi 0, %s81
    %s82 = sphi 0, %s79
    %s83 = sphi 0, %s82
    %s99 = sphi 0, %s83
    %s105 = sphi 0, %s107
    %s108 = sphi 0, %s105
    %s109 = sphi 0, %s108
    %s125 = sphi 0, %s109
    %s131 = sphi 0, %s133
    %s134 = sphi 0, %s131
    %s135 = sphi 0, %s134
    %s151 = sphi 0, %s135
    %s159 = sphi 0, %s161
    %s162 = sphi 0, %s159
    %s163 = sphi 0, %s162
    %s179 = sphi 0, %s163
    %s189 = sphi 0, %s191
    %s192 = sphi 0, %s189
    %s193 = sphi 0, %s192
    %s209 = sphi 0, %s193
  $region4: #{_lambda_.22} parent=0 // loop_header_branch
    %14 = sbr.rel (%p12) target = $region8
  $region5: #{_lambda_.22} parent=0 // loop_body
    %s16 = ssub.s32 %s11, 1
    %s17 = ssub.s32 %s11, 2
    %s30 = sadd.s32 1, %s21
    %p31 = scmp.ge.s32.totalorder %s30, 1
    %s32 = scalar_select %p31, 0, %s30
    %s33 = sadd.s32 1, %s20
    %s34 = scalar_select %p31, %s33, %s20
    %p35 = scmp.ge.s32.totalorder %s34, 1
    %s36 = scalar_select %p35, 0, %s34
    %s37 = sadd.s32 1, %s19
    %s38 = scalar_select %p35, %s37, %s19
    %p39 = scmp.ge.s32.totalorder %s38, 1
    %s40 = scalar_select %p39, 0, %s38
    %s41 = sadd.s32 1, %s18
    %s42 = scalar_select %p39, %s41, %s18
    %p43 = scmp.ge.s32.totalorder %s42, 2
    %s44 = scalar_select %p43, 0, %s42
    %s45 = ssub.s32 %s18, %s44
    %s46 = ssub.s32 %s19, %s40
    %s47 = sor.u32 %s45, %s46
    %s48 = ssub.s32 %s21, %s32
    %s49 = sor.u32 %s47, %s48
    %p50 = scmp.eq.s32.totalorder %s49, 0
    %s52 = sadd.s32 %s51, 1
    %s53 = scalar_select %p50, %s51, %s52
    %p56 = pneg %p50
    %p57 = scmp.eq.s32.totalorder %s11, 1
    %p58 = por %p56, %p57
    %p59 = scmp.ne.s32.totalorder %s51, %s54
    %p60 = scmp.eq.s32.totalorder %s11, 0
    %p61 = por %p59, %p60
    %p62 = scmp.ne.s32.totalorder %s51, %s54
    %p63 = scmp.eq.s32.totalorder %s16, 1
    %p64 = por %p62, %p63
    %p65 = scmp.ne.s32.totalorder %s54, %s55
    %p66 = scmp.eq.s32.totalorder %s16, 0
    %p67 = por %p65, %p66
    %p68 = scmp.ne.s32.totalorder %s54, %s55
    %p69 = scmp.eq.s32.totalorder %s17, 1
    %p70 = por %p68, %p69
    %p72 = scmp.ne.s32.totalorder %s55, %s71
    %p73 = scmp.eq.s32.totalorder %s17, 0
    %p74 = por %p72, %p73
    %s75 = ssub.s32 %s21, %s32
    %s76 = ssub.s32 %s20, %s36
    %s77 = sor.u32 %s75, %s76
    %p78 = scmp.eq.s32.totalorder %s77, 0
    %s80 = sadd.s32 %s79, 1
    %s81 = scalar_select %p78, %s79, %s80
    %p84 = pneg %p78
    %p85 = scmp.eq.s32.totalorder %s11, 1
    %p86 = por %p84, %p85
    %p87 = scmp.ne.s32.totalorder %s79, %s82
    %p88 = scmp.eq.s32.totalorder %s11, 0
    %p89 = por %p87, %p88
    %p90 = scmp.ne.s32.totalorder %s79, %s82
    %p91 = scmp.eq.s32.totalorder %s16, 1
    %p92 = por %p90, %p91
    %p93 = scmp.ne.s32.totalorder %s82, %s83
    %p94 = scmp.eq.s32.totalorder %s16, 0
    %p95 = por %p93, %p94
    %p96 = scmp.ne.s32.totalorder %s82, %s83
    %p97 = scmp.eq.s32.totalorder %s17, 1
    %p98 = por %p96, %p97
    %p100 = scmp.ne.s32.totalorder %s83, %s99
    %p101 = scmp.eq.s32.totalorder %s17, 0
    %p102 = por %p100, %p101
    %s103 = ssub.s32 %s20, %s36
    %p104 = scmp.eq.s32.totalorder %s103, 0
    %s106 = sadd.s32 %s105, 1
    %s107 = scalar_select %p104, %s105, %s106
    %p110 = pneg %p104
    %p111 = scmp.eq.s32.totalorder %s11, 1
    %p112 = por %p110, %p111
    %p113 = scmp.ne.s32.totalorder %s105, %s108
    %p114 = scmp.eq.s32.totalorder %s11, 0
    %p115 = por %p113, %p114
    %p116 = scmp.ne.s32.totalorder %s105, %s108
    %p117 = scmp.eq.s32.totalorder %s16, 1
    %p118 = por %p116, %p117
    %p119 = scmp.ne.s32.totalorder %s108, %s109
    %p120 = scmp.eq.s32.totalorder %s16, 0
    %p121 = por %p119, %p120
    %p122 = scmp.ne.s32.totalorder %s108, %s109
    %p123 = scmp.eq.s32.totalorder %s17, 1
    %p124 = por %p122, %p123
    %p126 = scmp.ne.s32.totalorder %s109, %s125
    %p127 = scmp.eq.s32.totalorder %s17, 0
    %p128 = por %p126, %p127
    %s129 = ssub.s32 %s20, %s36
    %p130 = scmp.eq.s32.totalorder %s129, 0
    %s132 = sadd.s32 %s131, 1
    %s133 = scalar_select %p130, %s131, %s132
    %p136 = pneg %p130
    %p137 = scmp.eq.s32.totalorder %s11, 1
    %p138 = por %p136, %p137
    %p139 = scmp.ne.s32.totalorder %s131, %s134
    %p140 = scmp.eq.s32.totalorder %s11, 0
    %p141 = por %p139, %p140
    %p142 = scmp.ne.s32.totalorder %s131, %s134
    %p143 = scmp.eq.s32.totalorder %s16, 1
    %p144 = por %p142, %p143
    %p145 = scmp.ne.s32.totalorder %s134, %s135
    %p146 = scmp.eq.s32.totalorder %s16, 0
    %p147 = por %p145, %p146
    %p148 = scmp.ne.s32.totalorder %s134, %s135
    %p149 = scmp.eq.s32.totalorder %s17, 1
    %p150 = por %p148, %p149
    %p152 = scmp.ne.s32.totalorder %s135, %s151
    %p153 = scmp.eq.s32.totalorder %s17, 0
    %p154 = por %p152, %p153
    %s155 = ssub.s32 %s18, %s44
    %s156 = ssub.s32 %s21, %s32
    %s157 = sor.u32 %s155, %s156
    %p158 = scmp.eq.s32.totalorder %s157, 0
    %s160 = sadd.s32 %s159, 1
    %s161 = scalar_select %p158, %s159, %s160
    %p164 = pneg %p158
    %p165 = scmp.eq.s32.totalorder %s11, 1
    %p166 = por %p164, %p165
    %p167 = scmp.ne.s32.totalorder %s159, %s162
    %p168 = scmp.eq.s32.totalorder %s11, 0
    %p169 = por %p167, %p168
    %p170 = scmp.ne.s32.totalorder %s159, %s162
    %p171 = scmp.eq.s32.totalorder %s16, 1
    %p172 = por %p170, %p171
    %p173 = scmp.ne.s32.totalorder %s162, %s163
    %p174 = scmp.eq.s32.totalorder %s16, 0
    %p175 = por %p173, %p174
    %p176 = scmp.ne.s32.totalorder %s162, %s163
    %p177 = scmp.eq.s32.totalorder %s17, 1
    %p178 = por %p176, %p177
    %p180 = scmp.ne.s32.totalorder %s163, %s179
    %p181 = scmp.eq.s32.totalorder %s17, 0
    %p182 = por %p180, %p181
    %s183 = ssub.s32 %s18, %s44
    %s184 = ssub.s32 %s19, %s40
    %s185 = sor.u32 %s183, %s184
    %s186 = ssub.s32 %s20, %s36
    %s187 = sor.u32 %s185, %s186
    %p188 = scmp.eq.s32.totalorder %s187, 0
    %s190 = sadd.s32 %s189, 1
    %s191 = scalar_select %p188, %s189, %s190
    %p194 = pneg %p188
    %p195 = scmp.eq.s32.totalorder %s11, 1
    %p196 = por %p194, %p195
    %p197 = scmp.ne.s32.totalorder %s189, %s192
    %p198 = scmp.eq.s32.totalorder %s11, 0
    %p199 = por %p197, %p198
    %p200 = scmp.ne.s32.totalorder %s189, %s192
    %p201 = scmp.eq.s32.totalorder %s16, 1
    %p202 = por %p200, %p201
    %p203 = scmp.ne.s32.totalorder %s192, %s193
    %p204 = scmp.eq.s32.totalorder %s16, 0
    %p205 = por %p203, %p204
    %p206 = scmp.ne.s32.totalorder %s192, %s193
    %p207 = scmp.eq.s32.totalorder %s17, 1
    %p208 = por %p206, %p207
    %p210 = scmp.ne.s32.totalorder %s193, %s209
    %p211 = scmp.eq.s32.totalorder %s17, 0
    %p212 = por %p210, %p211
    %p213 = scmp.le.s32.totalorder 1, %s11
    %p214 = scmp.lt.s32.totalorder %s11, 3
    %p215 = pnand %p213, %p214
    %p216 = pneg %p215
    // Predicated region
    $region9: #{_lambda_.22} parent=5 // pred_check
      _
    $region10: #{_lambda_.22} parent=5 // pred_check_branch
      %218 = sbr.rel (%p215) target = $region12
    $region11: #{_lambda_.22} parent=5 // pred_region
      %s219 = ssub.s32 %s11, 1
      // Predicated region
      $region13: #{_lambda_.22} parent=11 // pred_check
        %p220 = pneg %p95
      $region14: #{_lambda_.22} parent=11 // pred_check_branch
        %222 = sbr.rel (%p220) target = $region16
      $region15: #{_lambda_.22} parent=11 // pred_region
        %s223 = smul.u32 32, %s25
        %p224 = scmp.lt.s32.totalorder %s223, 31
        %s225 = scalar_select %p224, %s223, 31
        %p226 = scmp.lt.s32.totalorder %s24, 0
        %s227 = scalar_select %p226, %s24, 0
        %s228 = sadd.s32 %s227, %s225
        %s229 = smul.addr %s228, 4
        %s230 = scalar_lea.vmem %s1, %s229
        %s231 = smul.u32 32, %s25
      $region16: #{_lambda_.22} parent=11 // pred_fallthru
        _
      // Predicated region
      $region17: #{_lambda_.22} parent=11 // pred_check
        %p232 = pneg %p121
      $region18: #{_lambda_.22} parent=11 // pred_check_branch
        %234 = sbr.rel (%p232) target = $region20
      $region19: #{_lambda_.22} parent=11 // pred_region
        %p235 = scmp.lt.s32.totalorder %s24, 0
        %s236 = scalar_select %p235, %s24, 0
        %s237 = scalar_lea.vmem %s2, %s236
      $region20: #{_lambda_.22} parent=11 // pred_fallthru
        _
      // Predicated region
      $region21: #{_lambda_.22} parent=11 // pred_check
        %p238 = pneg %p147
      $region22: #{_lambda_.22} parent=11 // pred_check_branch
        %240 = sbr.rel (%p238) target = $region24
      $region23: #{_lambda_.22} parent=11 // pred_region
        %p241 = scmp.lt.s32.totalorder %s24, 0
        %s242 = scalar_select %p241, %s24, 0
        %s243 = scalar_lea.vmem %s3, %s242
      $region24: #{_lambda_.22} parent=11 // pred_fallthru
        _
    $region12: #{_lambda_.22} parent=5 // pred_fallthru
      _
    %p244 = scmp.lt.s32.totalorder %s11, 2
    // Predicated region
    $region25: #{_lambda_.22} parent=5 // pred_check
      %p245 = pneg %p244
    $region26: #{_lambda_.22} parent=5 // pred_check_branch
      %247 = sbr.rel (%p245) target = $region28
    $region27: #{_lambda_.22} parent=5 // pred_region
      // Predicated region
      $region29: #{_lambda_.22} parent=27 // pred_check
        %p248 = pneg %p61
      $region30: #{_lambda_.22} parent=27 // pred_check_branch
        %250 = sbr.rel (%p248) target = $region32
      $region31: #{_lambda_.22} parent=27 // pred_region
        %s251 = smul.u32 2, %s21
        %p252 = scmp.lt.s32.totalorder %s18, 1
        %s253 = scalar_select %p252, %s18, 1
        %p254 = scmp.lt.s32.totalorder %s19, 0
        %s255 = scalar_select %p254, %s19, 0
        %p256 = scmp.lt.s32.totalorder %s251, 1
        %s257 = scalar_select %p256, %s251, 1
        %s258 = smul.addr %s255, 2
        %s259 = sadd.s32 %s257, %s258
        %s260 = smul.addr %s253, 2
        %s261 = sadd.s32 %s259, %s260
        %s262 = smul.addr %s261, 2
        %s263 = scalar_lea.vmem %s0, %s262
        %s264 = smul.u32 2, %s21
      $region32: #{_lambda_.22} parent=27 // pred_fallthru
        _
      // Predicated region
      $region33: #{_lambda_.22} parent=27 // pred_check
        %p265 = pneg %p169
      $region34: #{_lambda_.22} parent=27 // pred_check_branch
        %267 = sbr.rel (%p265) target = $region36
      $region35: #{_lambda_.22} parent=27 // pred_region
        %s268 = smul.u32 2, %s21
        %p269 = scmp.lt.s32.totalorder %s18, 1
        %s270 = scalar_select %p269, %s18, 1
        %p271 = scmp.lt.s32.totalorder %s268, 1
        %s272 = scalar_select %p271, %s268, 1
        %s273 = smul.addr %s270, 2
        %s274 = sadd.s32 %s272, %s273
        %s275 = scalar_lea.vmem %s4, %s274
        %s276 = smul.u32 2, %s21
      $region36: #{_lambda_.22} parent=27 // pred_fallthru
        _
    $region28: #{_lambda_.22} parent=5 // pred_fallthru
      _
    %p277 = scmp.le.s32.totalorder 1, %s11
    %p278 = scmp.lt.s32.totalorder %s11, 3
    %p279 = pnand %p277, %p278
    %p280 = pneg %p279
    // Predicated region
    $region37: #{_lambda_.22} parent=5 // pred_check
      _
    $region38: #{_lambda_.22} parent=5 // pred_check_branch
      %282 = sbr.rel (%p279) target = $region40
    $region39: #{_lambda_.22} parent=5 // pred_region
      %s283 = ssub.s32 %s11, 1
      %s284 = smul.u32 2, %s25
      %p285 = scmp.lt.s32.totalorder %s22, 1
      %s286 = scalar_select %p285, %s22, 1
      %p287 = scmp.lt.s32.totalorder %s23, 0
      %s288 = scalar_select %p287, %s23, 0
      %p289 = scmp.lt.s32.totalorder %s284, 1
      %s290 = scalar_select %p289, %s284, 1
      %s291 = smul.addr %s288, 2
      %s292 = sadd.s32 %s290, %s291
      %s293 = smul.addr %s286, 2
      %s294 = sadd.s32 %s292, %s293
      %s295 = smul.addr %s294, 2
      %s296 = scalar_lea.vmem %s0, %s295
      %p297 = pneg %p67
      %p298 = pneg %p64
      %s299 = smul.u32 32, %s25
      %p300 = scmp.lt.s32.totalorder %s299, 31
      %s301 = scalar_select %p300, %s299, 31
      %p302 = scmp.lt.s32.totalorder %s24, 0
      %s303 = scalar_select %p302, %s24, 0
      %s304 = sadd.s32 %s303, %s301
      %s305 = smul.addr %s304, 4
      %s306 = scalar_lea.vmem %s1, %s305
      %p307 = pneg %p95
      %p308 = pneg %p92
      %p309 = scmp.lt.s32.totalorder %s24, 0
      %s310 = scalar_select %p309, %s24, 0
      %s311 = scalar_lea.vmem %s2, %s310
      %p312 = pneg %p121
      %p313 = pneg %p118
      %p314 = scmp.lt.s32.totalorder %s24, 0
      %s315 = scalar_select %p314, %s24, 0
      %s316 = scalar_lea.vmem %s3, %s315
      %p317 = pneg %p147
      %p318 = pneg %p144
      %s319 = smul.u32 2, %s25
      %p320 = scmp.lt.s32.totalorder %s22, 1
      %s321 = scalar_select %p320, %s22, 1
      %p322 = scmp.lt.s32.totalorder %s319, 1
      %s323 = scalar_select %p322, %s319, 1
      %s324 = smul.addr %s321, 2
      %s325 = sadd.s32 %s323, %s324
      %s326 = scalar_lea.vmem %s4, %s325
      %p327 = pneg %p175
      %p328 = pneg %p172
      %p329 = pneg %p205
      %p330 = pneg %p202
      %p331 = scmp.lt.s32.totalorder %s22, 1
      %s332 = scalar_select %p331, %s22, 1
      %p333 = scmp.lt.s32.totalorder %s23, 0
      %s334 = scalar_select %p333, %s23, 0
      %p335 = scmp.lt.s32.totalorder %s24, 0
      %s336 = scalar_select %p335, %s24, 0
      %s337 = sadd.s32 %s336, %s334
      %s338 = sadd.s32 %s337, %s332
      %s339 = smul.addr %s338, 2
      %s340 = scalar_lea.vmem %s5, %s339
      %s341 = smul.u32 2, %s25
      %p342 = scmp.lt.s32.totalorder %s22, 1
      %s343 = scalar_select %p342, %s22, 1
      %p344 = scmp.lt.s32.totalorder %s23, 0
      %s345 = scalar_select %p344, %s23, 0
      %p346 = scmp.lt.s32.totalorder %s341, 1
      %s347 = scalar_select %p346, %s341, 1
      %s348 = smul.addr %s345, 2
      %s349 = sadd.s32 %s347, %s348
      %s350 = smul.addr %s343, 2
      %s351 = sadd.s32 %s349, %s350
      %s352 = smul.addr %s351, 2
      %s353 = scalar_lea.vmem %s0, %s352
      %s354 = smul.u32 2, %s25
      %s355 = smul.u32 32, %s25
      %p356 = scmp.lt.s32.totalorder %s355, 31
      %s357 = scalar_select %p356, %s355, 31
      %p358 = scmp.lt.s32.totalorder %s24, 0
      %s359 = scalar_select %p358, %s24, 0
      %s360 = sadd.s32 %s359, %s357
      %s361 = smul.addr %s360, 4
      %s362 = scalar_lea.vmem %s1, %s361
      %s363 = smul.u32 32, %s25
      %p364 = scmp.lt.s32.totalorder %s24, 0
      %s365 = scalar_select %p364, %s24, 0
      %s366 = scalar_lea.vmem %s2, %s365
      %p367 = scmp.lt.s32.totalorder %s24, 0
      %s368 = scalar_select %p367, %s24, 0
      %s369 = scalar_lea.vmem %s3, %s368
      %s370 = smul.u32 2, %s25
      %p371 = scmp.lt.s32.totalorder %s22, 1
      %s372 = scalar_select %p371, %s22, 1
      %p373 = scmp.lt.s32.totalorder %s370, 1
      %s374 = scalar_select %p373, %s370, 1
      %s375 = smul.addr %s372, 2
      %s376 = sadd.s32 %s374, %s375
      %s377 = scalar_lea.vmem %s4, %s376
      %s378 = smul.u32 2, %s25
      %p379 = scmp.lt.s32.totalorder %s22, 1
      %s380 = scalar_select %p379, %s22, 1
      %p381 = scmp.lt.s32.totalorder %s23, 0
      %s382 = scalar_select %p381, %s23, 0
      %p383 = scmp.lt.s32.totalorder %s24, 0
      %s384 = scalar_select %p383, %s24, 0
      %s385 = sadd.s32 %s384, %s382
      %s386 = sadd.s32 %s385, %s380
      %s387 = smul.addr %s386, 2
      %s388 = scalar_lea.vmem %s5, %s387
      %v390 = vld [vmem:[%s353] sm:$0xf]
      %v391 = vld [vmem:[%s377] sm:$0x3]
      %v393 = vlaneseq
      %v394 = vshrl.u32 %v393, 7
      %v395 = vsub.s32 0, %v394
      %v396 = vrot.slane %v391, %v395
      %v397 = vlaneseq
      %v398 = vshrl.u32 %v397, 7
      %v399 = vsub.s32 1, %v398
      %v400 = vrot.slane %v391, %v399
      %v403 = vpack.c.bf16 %v396, %v396
      %v404 = vpack.c.bf16 %v400, %v400
      %v406 = vpack.i.b16 %v403, %v403
      %v408 = vlaneseq
      %v409 = vshrl.u32 %v408, 7
      %v410 = vsub.s32 0, %v409
      %v411 = vrot.slane %v406, %v410
      %v413 = vpack.i.b16 %v404, %v404
      %v415 = vlaneseq
      %v416 = vshrl.u32 %v415, 7
      %v417 = vsub.s32 0, %v416
      %v418 = vrot.slane %v413, %v417
      %v421 = vcombine.low %v411, %v418
      %v423 = vunpack.c.l.s4 1983009808
      %v424 = vunpack.c.0.s8 %v423
      %v425 = vlaneseq
      %v426 = vshrl.u32 %v425, 7
      %v427 = vsub.s32 %v424, %v426
      %v428 = vrot.slane %v421, %v427
      %v430 = vmul.bf16 %v390, %v428
      %v431 = vld [vmem:[%s362] sm:$0xf]
      %v432 = vld [vmem:[%s362 + $0x4] sm:$0xf]
      %v433 = vld [vmem:[%s362 + $0x8] sm:$0xf]
      %v434 = vld [vmem:[%s362 + $0xc] sm:$0xf]
      %v435 = vld [vmem:[%s362 + $0x10] sm:$0xf]
      %v436 = vld [vmem:[%s362 + $0x14] sm:$0xf]
      %v437 = vld [vmem:[%s362 + $0x18] sm:$0xf]
      %v438 = vld [vmem:[%s362 + $0x1c] sm:$0xf]
      %v439 = vld [vmem:[%s362 + $0x20] sm:$0xf]
      %v440 = vld [vmem:[%s362 + $0x24] sm:$0xf]
      %v441 = vld [vmem:[%s362 + $0x28] sm:$0xf]
      %v442 = vld [vmem:[%s362 + $0x2c] sm:$0xf]
      %v443 = vld [vmem:[%s362 + $0x30] sm:$0xf]
      %v444 = vld [vmem:[%s362 + $0x34] sm:$0xf]
      %v445 = vld [vmem:[%s362 + $0x38] sm:$0xf]
      %v446 = vld [vmem:[%s362 + $0x3c] sm:$0xf]
      %v447 = vld [vmem:[%s362 + $0x40] sm:$0xf]
      %v448 = vld [vmem:[%s362 + $0x44] sm:$0xf]
      %v449 = vld [vmem:[%s362 + $0x48] sm:$0xf]
      %v450 = vld [vmem:[%s362 + $0x4c] sm:$0xf]
      %v451 = vld [vmem:[%s362 + $0x50] sm:$0xf]
      %v452 = vld [vmem:[%s362 + $0x54] sm:$0xf]
      %v453 = vld [vmem:[%s362 + $0x58] sm:$0xf]
      %v454 = vld [vmem:[%s362 + $0x5c] sm:$0xf]
      %v455 = vld [vmem:[%s362 + $0x60] sm:$0xf]
      %v456 = vld [vmem:[%s362 + $0x64] sm:$0xf]
      %v457 = vld [vmem:[%s362 + $0x68] sm:$0xf]
      %v458 = vld [vmem:[%s362 + $0x6c] sm:$0xf]
      %v459 = vld [vmem:[%s362 + $0x70] sm:$0xf]
      %v460 = vld [vmem:[%s362 + $0x74] sm:$0xf]
      %v461 = vld [vmem:[%s362 + $0x78] sm:$0xf]
      %v462 = vld [vmem:[%s362 + $0x7c] sm:$0xf]
      %v465 = vunpack.c.l.s4 1983009808
      %v466 = vunpack.c.0.s8 %v465
      %v467 = vlaneseq
      %v468 = vshrl.u32 %v467, 7
      %v469 = vsub.s32 %v466, %v468
      %v470 = vrot.slane %v430, %v469
      %v471 = vcombine.high %v470, %v470
      %v506 = vunpack.c.l.b16 %v431
      %v507 = vunpack.c.l.b16 %v432
      %v508 = vunpack.c.l.b16 %v433
      %v509 = vunpack.c.l.b16 %v434
      %v510 = vunpack.c.l.b16 %v435
      %v511 = vunpack.c.l.b16 %v436
      %v512 = vunpack.c.l.b16 %v437
      %v513 = vunpack.c.l.b16 %v438
      %v514 = vunpack.c.l.b16 %v439
      %v515 = vunpack.c.l.b16 %v440
      %v516 = vunpack.c.l.b16 %v441
      %v517 = vunpack.c.l.b16 %v442
      %v518 = vunpack.c.l.b16 %v443
      %v519 = vunpack.c.l.b16 %v444
      %v520 = vunpack.c.l.b16 %v445
      %v521 = vunpack.c.l.b16 %v446
      %v522 = vunpack.c.l.b16 %v447
      %v523 = vunpack.c.l.b16 %v448
      %v524 = vunpack.c.l.b16 %v449
      %v525 = vunpack.c.l.b16 %v450
      %v526 = vunpack.c.l.b16 %v451
      %v527 = vunpack.c.l.b16 %v452
      %v528 = vunpack.c.l.b16 %v453
      %v529 = vunpack.c.l.b16 %v454
      %v530 = vunpack.c.l.b16 %v455
      %v531 = vunpack.c.l.b16 %v456
      %v532 = vunpack.c.l.b16 %v457
      %v533 = vunpack.c.l.b16 %v458
      %v534 = vunpack.c.l.b16 %v459
      %v535 = vunpack.c.l.b16 %v460
      %v536 = vunpack.c.l.b16 %v461
      %v537 = vunpack.c.l.b16 %v462
      %v538 = vpack.c.b16 %v507, %v506
      %v539 = vpack.c.b16 %v509, %v508
      %v540 = vpack.c.b16 %v511, %v510
      %v541 = vpack.c.b16 %v513, %v512
      %v542 = vpack.c.b16 %v515, %v514
      %v543 = vpack.c.b16 %v517, %v516
      %v544 = vpack.c.b16 %v519, %v518
      %v545 = vpack.c.b16 %v521, %v520
      %v546 = vpack.c.b16 %v523, %v522
      %v547 = vpack.c.b16 %v525, %v524
      %v548 = vpack.c.b16 %v527, %v526
      %v549 = vpack.c.b16 %v529, %v528
      %v550 = vpack.c.b16 %v531, %v530
      %v551 = vpack.c.b16 %v533, %v532
      %v552 = vpack.c.b16 %v535, %v534
      %v553 = vpack.c.b16 %v537, %v536
      %570 = vmatprep.subr.bf16.mxu0 0
      %571 = vmatpush1.bf16.msra.mxu0 %v538
      %572 = vmatprep.subr.bf16.mxu0 0
      %573 = vmatpush1.bf16.msra.mxu0 %v539
      %574 = vmatprep.subr.bf16.mxu0 0
      %575 = vmatpush1.bf16.msra.mxu0 %v540
      %576 = vmatprep.subr.bf16.mxu0 0
      %577 = vmatpush1.bf16.msra.mxu0 %v541
      %578 = vmatprep.subr.bf16.mxu0 0
      %579 = vmatpush1.bf16.msra.mxu0 %v542
      %580 = vmatprep.subr.bf16.mxu0 0
      %581 = vmatpush1.bf16.msra.mxu0 %v543
      %582 = vmatprep.subr.bf16.mxu0 0
      %583 = vmatpush1.bf16.msra.mxu0 %v544
      %584 = vmatprep.subr.bf16.mxu0 0
      %585 = vmatpush1.bf16.msra.mxu0 %v545
      %586 = vmatprep.subr.bf16.mxu0 0
      %587 = vmatpush1.bf16.msra.mxu0 %v546
      %588 = vmatprep.subr.bf16.mxu0 0
      %589 = vmatpush1.bf16.msra.mxu0 %v547
      %590 = vmatprep.subr.bf16.mxu0 0
      %591 = vmatpush1.bf16.msra.mxu0 %v548
      %592 = vmatprep.subr.bf16.mxu0 0
      %593 = vmatpush1.bf16.msra.mxu0 %v549
      %594 = vmatprep.subr.bf16.mxu0 0
      %595 = vmatpush1.bf16.msra.mxu0 %v550
      %596 = vmatprep.subr.bf16.mxu0 0
      %597 = vmatpush1.bf16.msra.mxu0 %v551
      %598 = vmatprep.subr.bf16.mxu0 0
      %599 = vmatpush1.bf16.msra.mxu0 %v552
      %600 = vmatprep.subr.bf16.mxu0 0
      %601 = vmatpush1.bf16.msra.mxu0 %v553
      %602 = vmatprep.mubr.bf16.mxu0 %v471
      %603 = vmatmul.mubr.bf16.gmra.mrb[0].mxu0 %v470
      %v604 = vpop.f32.mrb[0].mxu0
      %v605 = vadd.f32 0.0, %v604
      %v606 = vpop.f32.mrb[0].mxu0
      %v607 = vpop.f32.mrb[0].mxu0
      %v608 = vpop.f32.mrb[0].mxu0
      %609 = vdwg.mxu0
      %v610 = vld [vmem:[%s366] sm:$0x1]
      %v612 = vlaneseq
      %v613 = vshrl.u32 %v612, 7
      %v614 = vsub.s32 0, %v613
      %v615 = vrot.slane %v610, %v614
      %v617 = vmul.f32 %v605, %v615
      %v618 = vld [vmem:[%s369] sm:$0x1]
      %v620 = vlaneseq
      %v621 = vshrl.u32 %v620, 7
      %v622 = vsub.s32 0, %v621
      %v623 = vrot.slane %v618, %v622
      %v625 = vadd.f32 %v617, %v623
      %v626 = vpack.c.bf16 %v625, %v625
      %627 = vst [vmem:[%s388] sm:$0x3] %v626
      %p628 = scmp.lt.s32.totalorder %s22, 1
      %s629 = scalar_select %p628, %s22, 1
      %p630 = scmp.lt.s32.totalorder %s23, 0
      %s631 = scalar_select %p630, %s23, 0
      %p632 = scmp.lt.s32.totalorder %s24, 0
      %s633 = scalar_select %p632, %s24, 0
      %s634 = sadd.s32 %s633, %s631
      %s635 = sadd.s32 %s634, %s629
      %s636 = smul.addr %s635, 2
      %s637 = scalar_lea.vmem %s5, %s636
      // Predicated region
      $region41: #{_lambda_.22} parent=39 // pred_check
        %p638 = pneg %p202
      $region42: #{_lambda_.22} parent=39 // pred_check_branch
        %640 = sbr.rel (%p638) target = $region44
      $region43: #{_lambda_.22} parent=39 // pred_region
        _
      $region44: #{_lambda_.22} parent=39 // pred_fallthru
        _
    $region40: #{_lambda_.22} parent=5 // pred_fallthru
      _
    %p641 = scmp.le.s32.totalorder 2, %s11
    // Predicated region
    $region45: #{_lambda_.22} parent=5 // pred_check
      %p642 = pneg %p641
    $region46: #{_lambda_.22} parent=5 // pred_check_branch
      %644 = sbr.rel (%p642) target = $region48
    $region47: #{_lambda_.22} parent=5 // pred_region
      %s645 = ssub.s32 %s11, 2
      // Predicated region
      $region49: #{_lambda_.22} parent=47 // pred_check
        %p646 = pneg %p208
      $region50: #{_lambda_.22} parent=47 // pred_check_branch
        %648 = sbr.rel (%p646) target = $region52
      $region51: #{_lambda_.22} parent=47 // pred_region
        %p649 = scmp.lt.s32.totalorder %s26, 1
        %s650 = scalar_select %p649, %s26, 1
        %p651 = scmp.lt.s32.totalorder %s27, 0
        %s652 = scalar_select %p651, %s27, 0
        %p653 = scmp.lt.s32.totalorder %s28, 0
        %s654 = scalar_select %p653, %s28, 0
        %s655 = sadd.s32 %s654, %s652
        %s656 = sadd.s32 %s655, %s650
        %s657 = smul.addr %s656, 2
        %s658 = scalar_lea.vmem %s5, %s657
      $region52: #{_lambda_.22} parent=47 // pred_fallthru
        _
    $region48: #{_lambda_.22} parent=5 // pred_fallthru
      _
  $region6: #{_lambda_.22} parent=0 // loop_footer
    %s15 = sadd.s32 1, %s11
  $region7: #{_lambda_.22} parent=0 // loop_footer_branch
    %10 = sbr.rel target = $region3
  $region8: #{_lambda_.22} parent=0 // loop_exit
    _

// kernel: _lambda_.23
$region0: #{_lambda_.23}
  #allocation0 [shape = 'u32[]', space=smem, size = 0x4, offset = 0x4, fixed_abs, tag = 'smem constant byte address 0x4 - core index']
  #allocation1 [shape = 'u32[144,128]{1,0:T(1,128)}', space=vmem, size = 0x12000, scoped, tag = 'internal scratch']
  %s0 = inlined_call_operand.vmem [shape: bf16[8,128], index: 0, kind: input, shape index: {}]
  %s1 = inlined_call_operand.vmem [shape: bf16[128,1280], index: 1, kind: input, shape index: {}]
  %s2 = inlined_call_operand.vmem [shape: f32[1,1280], index: 2, kind: input, shape index: {}]
  %s3 = inlined_call_operand.vmem [shape: f32[1,1280], index: 3, kind: input, shape index: {}]
  %s4 = inlined_call_operand.vmem [shape: bf16[8,1280], index: 4, kind: output, shape index: {}]
  %s5 = sld [smem:[#allocation0]]
  $region87: #{_lambda_.23} parent=0
    _
  %s7 = ssub.s32 1, %s5
  %s8 = scalar_select 0, %s7, %s5
  $region1: #{_lambda_.23} parent=0
    #allocation2 [shape = 'u8[131072]{0}', space=vmem, size = 0x20000, scoped, tag = 'input window, operand 1']
    loop: start=0, step=1, limit=7
    $region2: #{_lambda_.23} parent=1 // loop_pre_header
      _
    $region3: #{_lambda_.23} parent=1 // loop_header
      %s10 = sphi 0, %s14
      %p11 = scmp.ge.s32.totalorder %s10, 7
      %s17 = sphi 0, %s36
      %s18 = sphi 0, %s32
      %s19 = sphi 0, %s28
      %s20 = sphi 0, %s17
      %s21 = sphi 0, %s18
      %s22 = sphi 0, %s19
      %s23 = sphi 0, %s20
      %s24 = sphi 0, %s21
      %s25 = sphi 0, %s22
      %s41 = sphi 0, %s43
      %s44 = sphi 0, %s41
      %s45 = sphi 0, %s44
      %s61 = sphi 0, %s45
      %s69 = sphi 0, %s71
      %s72 = sphi 0, %s69
      %s73 = sphi 0, %s72
      %s89 = sphi 0, %s73
      %s95 = sphi 0, %s97
      %s98 = sphi 0, %s95
      %s99 = sphi 0, %s98
      %s115 = sphi 0, %s99
      %s121 = sphi 0, %s123
      %s124 = sphi 0, %s121
      %s125 = sphi 0, %s124
      %s141 = sphi 0, %s125
      %s149 = sphi 0, %s151
      %s152 = sphi 0, %s149
      %s153 = sphi 0, %s152
      %s169 = sphi 0, %s153
    $region4: #{_lambda_.23} parent=1 // loop_header_branch
      %13 = sbr.rel (%p11) target = $region8
    $region5: #{_lambda_.23} parent=1 // loop_body
      %s15 = ssub.s32 %s10, 1
      %s16 = ssub.s32 %s10, 2
      %s26 = sadd.s32 1, %s19
      %p27 = scmp.ge.s32.totalorder %s26, 1
      %s28 = scalar_select %p27, 0, %s26
      %s29 = sadd.s32 1, %s18
      %s30 = scalar_select %p27, %s29, %s18
      %p31 = scmp.ge.s32.totalorder %s30, 5
      %s32 = scalar_select %p31, 0, %s30
      %s33 = sadd.s32 1, %s17
      %s34 = scalar_select %p31, %s33, %s17
      %p35 = scmp.ge.s32.totalorder %s34, 1
      %s36 = scalar_select %p35, 0, %s34
      %s37 = ssub.s32 %s17, %s36
      %s38 = ssub.s32 %s19, %s28
      %s39 = sor.u32 %s37, %s38
      %p40 = scmp.eq.s32.totalorder %s39, 0
      %s42 = sadd.s32 %s41, 1
      %s43 = scalar_select %p40, %s41, %s42
      %p46 = pneg %p40
      %p47 = scmp.eq.s32.totalorder %s10, 4
      %p48 = por %p46, %p47
      %p49 = scmp.ne.s32.totalorder %s41, %s44
      %p50 = scmp.eq.s32.totalorder %s10, 0
      %p51 = por %p49, %p50
      %p52 = scmp.ne.s32.totalorder %s41, %s44
      %p53 = scmp.eq.s32.totalorder %s15, 4
      %p54 = por %p52, %p53
      %p55 = scmp.ne.s32.totalorder %s44, %s45
      %p56 = scmp.eq.s32.totalorder %s15, 0
      %p57 = por %p55, %p56
      %p58 = scmp.ne.s32.totalorder %s44, %s45
      %p59 = scmp.eq.s32.totalorder %s16, 4
      %p60 = por %p58, %p59
      %p62 = scmp.ne.s32.totalorder %s45, %s61
      %p63 = scmp.eq.s32.totalorder %s16, 0
      %p64 = por %p62, %p63
      %s65 = ssub.s32 %s19, %s28
      %s66 = ssub.s32 %s18, %s32
      %s67 = sor.u32 %s65, %s66
      %p68 = scmp.eq.s32.totalorder %s67, 0
      %s70 = sadd.s32 %s69, 1
      %s71 = scalar_select %p68, %s69, %s70
      %p74 = pneg %p68
      %p75 = scmp.eq.s32.totalorder %s10, 4
      %p76 = por %p74, %p75
      %p77 = scmp.ne.s32.totalorder %s69, %s72
      %p78 = scmp.eq.s32.totalorder %s10, 0
      %p79 = por %p77, %p78
      %p80 = scmp.ne.s32.totalorder %s69, %s72
      %p81 = scmp.eq.s32.totalorder %s15, 4
      %p82 = por %p80, %p81
      %p83 = scmp.ne.s32.totalorder %s72, %s73
      %p84 = scmp.eq.s32.totalorder %s15, 0
      %p85 = por %p83, %p84
      %p86 = scmp.ne.s32.totalorder %s72, %s73
      %p87 = scmp.eq.s32.totalorder %s16, 4
      %p88 = por %p86, %p87
      %p90 = scmp.ne.s32.totalorder %s73, %s89
      %p91 = scmp.eq.s32.totalorder %s16, 0
      %p92 = por %p90, %p91
      %s93 = ssub.s32 %s18, %s32
      %p94 = scmp.eq.s32.totalorder %s93, 0
      %s96 = sadd.s32 %s95, 1
      %s97 = scalar_select %p94, %s95, %s96
      %p100 = pneg %p94
      %p101 = scmp.eq.s32.totalorder %s10, 4
      %p102 = por %p100, %p101
      %p103 = scmp.ne.s32.totalorder %s95, %s98
      %p104 = scmp.eq.s32.totalorder %s10, 0
      %p105 = por %p103, %p104
      %p106 = scmp.ne.s32.totalorder %s95, %s98
      %p107 = scmp.eq.s32.totalorder %s15, 4
      %p108 = por %p106, %p107
      %p109 = scmp.ne.s32.totalorder %s98, %s99
      %p110 = scmp.eq.s32.totalorder %s15, 0
      %p111 = por %p109, %p110
      %p112 = scmp.ne.s32.totalorder %s98, %s99
      %p113 = scmp.eq.s32.totalorder %s16, 4
      %p114 = por %p112, %p113
      %p116 = scmp.ne.s32.totalorder %s99, %s115
      %p117 = scmp.eq.s32.totalorder %s16, 0
      %p118 = por %p116, %p117
      %s119 = ssub.s32 %s18, %s32
      %p120 = scmp.eq.s32.totalorder %s119, 0
      %s122 = sadd.s32 %s121, 1
      %s123 = scalar_select %p120, %s121, %s122
      %p126 = pneg %p120
      %p127 = scmp.eq.s32.totalorder %s10, 4
      %p128 = por %p126, %p127
      %p129 = scmp.ne.s32.totalorder %s121, %s124
      %p130 = scmp.eq.s32.totalorder %s10, 0
      %p131 = por %p129, %p130
      %p132 = scmp.ne.s32.totalorder %s121, %s124
      %p133 = scmp.eq.s32.totalorder %s15, 4
      %p134 = por %p132, %p133
      %p135 = scmp.ne.s32.totalorder %s124, %s125
      %p136 = scmp.eq.s32.totalorder %s15, 0
      %p137 = por %p135, %p136
      %p138 = scmp.ne.s32.totalorder %s124, %s125
      %p139 = scmp.eq.s32.totalorder %s16, 4
      %p140 = por %p138, %p139
      %p142 = scmp.ne.s32.totalorder %s125, %s141
      %p143 = scmp.eq.s32.totalorder %s16, 0
      %p144 = por %p142, %p143
      %s145 = ssub.s32 %s17, %s36
      %s146 = ssub.s32 %s18, %s32
      %s147 = sor.u32 %s145, %s146
      %p148 = scmp.eq.s32.totalorder %s147, 0
      %s150 = sadd.s32 %s149, 1
      %s151 = scalar_select %p148, %s149, %s150
      %p154 = pneg %p148
      %p155 = scmp.eq.s32.totalorder %s10, 4
      %p156 = por %p154, %p155
      %p157 = scmp.ne.s32.totalorder %s149, %s152
      %p158 = scmp.eq.s32.totalorder %s10, 0
      %p159 = por %p157, %p158
      %p160 = scmp.ne.s32.totalorder %s149, %s152
      %p161 = scmp.eq.s32.totalorder %s15, 4
      %p162 = por %p160, %p161
      %p163 = scmp.ne.s32.totalorder %s152, %s153
      %p164 = scmp.eq.s32.totalorder %s15, 0
      %p165 = por %p163, %p164
      %p166 = scmp.ne.s32.totalorder %s152, %s153
      %p167 = scmp.eq.s32.totalorder %s16, 4
      %p168 = por %p166, %p167
      %p170 = scmp.ne.s32.totalorder %s153, %s169
      %p171 = scmp.eq.s32.totalorder %s16, 0
      %p172 = por %p170, %p171
      %p173 = scmp.le.s32.totalorder 1, %s10
      %p174 = scmp.lt.s32.totalorder %s10, 6
      %p175 = pnand %p173, %p174
      %p176 = pneg %p175
      // Predicated region
      $region9: #{_lambda_.23} parent=5 // pred_check
        _
      $region10: #{_lambda_.23} parent=5 // pred_check_branch
        %178 = sbr.rel (%p175) target = $region12
      $region11: #{_lambda_.23} parent=5 // pred_region
        %s179 = ssub.s32 %s10, 1
        // Predicated region
        $region13: #{_lambda_.23} parent=11 // pred_check
          %p180 = pneg %p57
        $region14: #{_lambda_.23} parent=11 // pred_check_branch
          %182 = sbr.rel (%p180) target = $region16
        $region15: #{_lambda_.23} parent=11 // pred_region
          %p183 = scmp.lt.s32.totalorder %s20, 0
          %s184 = scalar_select %p183, %s20, 0
          %p185 = scmp.lt.s32.totalorder %s22, 0
          %s186 = scalar_select %p185, %s22, 0
          %s187 = sadd.s32 %s186, %s184
          %s188 = smul.addr %s187, 4
          %s189 = scalar_lea.vmem %s0, %s188
        $region16: #{_lambda_.23} parent=11 // pred_fallthru
          _
      $region12: #{_lambda_.23} parent=5 // pred_fallthru
        _
      %p190 = scmp.lt.s32.totalorder %s10, 5
      // Predicated region
      $region17: #{_lambda_.23} parent=5 // pred_check
        %p191 = pneg %p190
      $region18: #{_lambda_.23} parent=5 // pred_check_branch
        %193 = sbr.rel (%p191) target = $region20
      $region19: #{_lambda_.23} parent=5 // pred_region
        // Predicated region
        $region21: #{_lambda_.23} parent=19 // pred_check
          %p194 = pneg %p79
        $region22: #{_lambda_.23} parent=19 // pred_check_branch
          %196 = sbr.rel (%p194) target = $region24
        $region23: #{_lambda_.23} parent=19 // pred_region
          %s197 = sand.u32 %s69, 1
          %s198 = sand.u32 %s69, 1
          %s199 = smul.addr %s198, 128
          %s200 = scalar_lea.vmem [#allocation2], %s199
          %s201 = smul.u32 16, %s19
          %s202 = smul.u32 2, %s18
          %s203 = smul.addr %s201, 10
          %s204 = sadd.s32 %s202, %s203
          %s205 = smul.addr %s204, 4
          %s206 = scalar_lea.vmem %s1, %s205
          // Predicated region
          $region25: #{_lambda_.23} parent=23 // pred_check
            _
          $region26: #{_lambda_.23} parent=23 // pred_check_branch
            %208 = sbr.rel (0) target = $region28
          $region27: #{_lambda_.23} parent=23 // pred_region
            // Predicated region
            $region29: #{_lambda_.23} parent=27 // pred_check
              _
            $region30: #{_lambda_.23} parent=27 // pred_check_branch
              %210 = sbr.rel (0) target = $region32
            $region31: #{_lambda_.23} parent=27 // pred_region
              // Predicated region
              $region44: #{_lambda_.23} parent=31 // pred_check
                _
              $region45: #{_lambda_.23} parent=31 // pred_check_branch
                %255 = sbr.rel (0) target = $region47
              $region46: #{_lambda_.23} parent=31 // pred_region
                loop: start=0, step=1, limit=1
                $region48: #{_lambda_.23} parent=46 // loop_pre_header
                  _
                $region49: #{_lambda_.23} parent=46 // loop_header
                  %s257 = sphi 0, %s261
                  %p258 = scmp.ge.s32.totalorder %s257, 1
                  %s262 = sphi %s206, %s206
                  %s263 = sphi %s200, %s200
                $region50: #{_lambda_.23} parent=46 // loop_header_branch
                  %260 = sbr.rel (%p258) target = $region54
                $region51: #{_lambda_.23} parent=46 // loop_body
                  %v264 = vld [vmem:[%s262] sm:$0xff]
                  %265 = vst [vmem:[%s263] sm:$0xff] %v264
                  %v266 = vld [vmem:[%s262 + $0x28] sm:$0xff]
                  %267 = vst [vmem:[%s263 + $0x8] sm:$0xff] %v266
                  %v268 = vld [vmem:[%s262 + $0x50] sm:$0xff]
                  %269 = vst [vmem:[%s263 + $0x10] sm:$0xff] %v268
                  %v270 = vld [vmem:[%s262 + $0x78] sm:$0xff]
                  %271 = vst [vmem:[%s263 + $0x18] sm:$0xff] %v270
                  %v272 = vld [vmem:[%s262 + $0xa0] sm:$0xff]
                  %273 = vst [vmem:[%s263 + $0x20] sm:$0xff] %v272
                  %v274 = vld [vmem:[%s262 + $0xc8] sm:$0xff]
                  %275 = vst [vmem:[%s263 + $0x28] sm:$0xff] %v274
                  %v276 = vld [vmem:[%s262 + $0xf0] sm:$0xff]
                  %277 = vst [vmem:[%s263 + $0x30] sm:$0xff] %v276
                  %v278 = vld [vmem:[%s262 + $0x118] sm:$0xff]
                  %279 = vst [vmem:[%s263 + $0x38] sm:$0xff] %v278
                  %v280 = vld [vmem:[%s262 + $0x140] sm:$0xff]
                  %281 = vst [vmem:[%s263 + $0x40] sm:$0xff] %v280
                  %v282 = vld [vmem:[%s262 + $0x168] sm:$0xff]
                  %283 = vst [vmem:[%s263 + $0x48] sm:$0xff] %v282
                  %v284 = vld [vmem:[%s262 + $0x190] sm:$0xff]
                  %285 = vst [vmem:[%s263 + $0x50] sm:$0xff] %v284
                  %v286 = vld [vmem:[%s262 + $0x1b8] sm:$0xff]
                  %287 = vst [vmem:[%s263 + $0x58] sm:$0xff] %v286
                  %v288 = vld [vmem:[%s262 + $0x1e0] sm:$0xff]
                  %289 = vst [vmem:[%s263 + $0x60] sm:$0xff] %v288
                  %v290 = vld [vmem:[%s262 + $0x208] sm:$0xff]
                  %291 = vst [vmem:[%s263 + $0x68] sm:$0xff] %v290
                  %v292 = vld [vmem:[%s262 + $0x230] sm:$0xff]
                  %293 = vst [vmem:[%s263 + $0x70] sm:$0xff] %v292
                  %v294 = vld [vmem:[%s262 + $0x258] sm:$0xff]
                  %295 = vst [vmem:[%s263 + $0x78] sm:$0xff] %v294
                $region52: #{_lambda_.23} parent=46 // loop_footer
                  %s261 = sadd.s32 1, %s257
                $region53: #{_lambda_.23} parent=46 // loop_footer_branch
                  %256 = sbr.rel target = $region49
                $region54: #{_lambda_.23} parent=46 // loop_exit
                  _
              $region47: #{_lambda_.23} parent=31 // pred_fallthru
                _
              // Predicated region
              $region55: #{_lambda_.23} parent=31 // pred_check
                _
              $region56: #{_lambda_.23} parent=31 // pred_check_branch
                %297 = sbr.rel target = $region58
              $region57: #{_lambda_.23} parent=31 // pred_region
                _
              $region58: #{_lambda_.23} parent=31 // pred_fallthru
                _
            $region32: #{_lambda_.23} parent=27 // pred_fallthru
              _
            // Predicated region
            $region33: #{_lambda_.23} parent=27 // pred_check
              _
            $region34: #{_lambda_.23} parent=27 // pred_check_branch
              %212 = sbr.rel target = $region36
            $region35: #{_lambda_.23} parent=27 // pred_region
              loop: start=0, step=1, limit=1
              $region37: #{_lambda_.23} parent=35 // loop_pre_header
                _
              $region38: #{_lambda_.23} parent=35 // loop_header
                %s215 = sphi 0, %s219
                %p216 = scmp.ge.s32.totalorder %s215, 1
                %s220 = sphi %s206, %s206
                %s221 = sphi %s200, %s200
              $region39: #{_lambda_.23} parent=35 // loop_header_branch
                %218 = sbr.rel (%p216) target = $region43
              $region40: #{_lambda_.23} parent=35 // loop_body
                %v222 = vld [vmem:[%s220] sm:$0xff]
                %223 = vst [vmem:[%s221] sm:$0xff] %v222
                %v224 = vld [vmem:[%s220 + $0x28] sm:$0xff]
                %225 = vst [vmem:[%s221 + $0x8] sm:$0xff] %v224
                %v226 = vld [vmem:[%s220 + $0x50] sm:$0xff]
                %227 = vst [vmem:[%s221 + $0x10] sm:$0xff] %v226
                %v228 = vld [vmem:[%s220 + $0x78] sm:$0xff]
                %229 = vst [vmem:[%s221 + $0x18] sm:$0xff] %v228
                %v230 = vld [vmem:[%s220 + $0xa0] sm:$0xff]
                %231 = vst [vmem:[%s221 + $0x20] sm:$0xff] %v230
                %v232 = vld [vmem:[%s220 + $0xc8] sm:$0xff]
                %233 = vst [vmem:[%s221 + $0x28] sm:$0xff] %v232
                %v234 = vld [vmem:[%s220 + $0xf0] sm:$0xff]
                %235 = vst [vmem:[%s221 + $0x30] sm:$0xff] %v234
                %v236 = vld [vmem:[%s220 + $0x118] sm:$0xff]
                %237 = vst [vmem:[%s221 + $0x38] sm:$0xff] %v236
                %v238 = vld [vmem:[%s220 + $0x140] sm:$0xff]
                %239 = vst [vmem:[%s221 + $0x40] sm:$0xff] %v238
                %v240 = vld [vmem:[%s220 + $0x168] sm:$0xff]
                %241 = vst [vmem:[%s221 + $0x48] sm:$0xff] %v240
                %v242 = vld [vmem:[%s220 + $0x190] sm:$0xff]
                %243 = vst [vmem:[%s221 + $0x50] sm:$0xff] %v242
                %v244 = vld [vmem:[%s220 + $0x1b8] sm:$0xff]
                %245 = vst [vmem:[%s221 + $0x58] sm:$0xff] %v244
                %v246 = vld [vmem:[%s220 + $0x1e0] sm:$0xff]
                %247 = vst [vmem:[%s221 + $0x60] sm:$0xff] %v246
                %v248 = vld [vmem:[%s220 + $0x208] sm:$0xff]
                %249 = vst [vmem:[%s221 + $0x68] sm:$0xff] %v248
                %v250 = vld [vmem:[%s220 + $0x230] sm:$0xff]
                %251 = vst [vmem:[%s221 + $0x70] sm:$0xff] %v250
                %v252 = vld [vmem:[%s220 + $0x258] sm:$0xff]
                %253 = vst [vmem:[%s221 + $0x78] sm:$0xff] %v252
              $region41: #{_lambda_.23} parent=35 // loop_footer
                %s219 = sadd.s32 1, %s215
              $region42: #{_lambda_.23} parent=35 // loop_footer_branch
                %214 = sbr.rel target = $region38
              $region43: #{_lambda_.23} parent=35 // loop_exit
                _
            $region36: #{_lambda_.23} parent=27 // pred_fallthru
              _
          $region28: #{_lambda_.23} parent=23 // pred_fallthru
            _
          %298 = vnop
        $region24: #{_lambda_.23} parent=19 // pred_fallthru
          _
        // Predicated region
        $region59: #{_lambda_.23} parent=19 // pred_check
          %p299 = pneg %p105
        $region60: #{_lambda_.23} parent=19 // pred_check_branch
          %301 = sbr.rel (%p299) target = $region62
        $region61: #{_lambda_.23} parent=19 // pred_region
          %s302 = smul.u32 2, %s18
          %p303 = scmp.lt.s32.totalorder %s302, 9
          %s304 = scalar_select %p303, %s302, 9
          %s305 = scalar_lea.vmem %s2, %s304
          %s306 = smul.u32 2, %s18
        $region62: #{_lambda_.23} parent=19 // pred_fallthru
          _
        // Predicated region
        $region63: #{_lambda_.23} parent=19 // pred_check
          %p307 = pneg %p131
        $region64: #{_lambda_.23} parent=19 // pred_check_branch
          %309 = sbr.rel (%p307) target = $region66
        $region65: #{_lambda_.23} parent=19 // pred_region
          %s310 = smul.u32 2, %s18
          %p311 = scmp.lt.s32.totalorder %s310, 9
          %s312 = scalar_select %p311, %s310, 9
          %s313 = scalar_lea.vmem %s3, %s312
          %s314 = smul.u32 2, %s18
        $region66: #{_lambda_.23} parent=19 // pred_fallthru
          _
      $region20: #{_lambda_.23} parent=5 // pred_fallthru
        _
      %p315 = scmp.le.s32.totalorder 1, %s10
      %p316 = scmp.lt.s32.totalorder %s10, 6
      %p317 = pnand %p315, %p316
      %p318 = pneg %p317
      // Predicated region
      $region67: #{_lambda_.23} parent=5 // pred_check
        _
      $region68: #{_lambda_.23} parent=5 // pred_check_branch
        %320 = sbr.rel (%p317) target = $region70
      $region69: #{_lambda_.23} parent=5 // pred_region
        %s321 = ssub.s32 %s10, 1
        %s322 = sand.u32 %s72, 1
        %s323 = sand.u32 %s72, 1
        %s324 = smul.addr %s323, 128
        %s325 = scalar_lea.vmem [#allocation2], %s324
        // Predicated region
        $region71: #{_lambda_.23} parent=69 // pred_check
          %p326 = pneg %p85
        $region72: #{_lambda_.23} parent=69 // pred_check_branch
          %328 = sbr.rel (%p326) target = $region74
        $region73: #{_lambda_.23} parent=69 // pred_region
          _
        $region74: #{_lambda_.23} parent=69 // pred_fallthru
          _
        %p329 = scmp.lt.s32.totalorder %s20, 0
        %s330 = scalar_select %p329, %s20, 0
        %p331 = scmp.lt.s32.totalorder %s22, 0
        %s332 = scalar_select %p331, %s22, 0
        %s333 = sadd.s32 %s332, %s330
        %s334 = smul.addr %s333, 4
        %s335 = scalar_lea.vmem %s0, %s334
        %p336 = pneg %p57
        %p337 = pneg %p54
        %s338 = sand.u32 %s72, 1
        %s339 = sand.u32 %s72, 1
        %s340 = smul.addr %s339, 128
        %s341 = scalar_lea.vmem [#allocation2], %s340
        %p342 = pneg %p85
        %p343 = pneg %p82
        %s344 = smul.u32 2, %s21
        %p345 = scmp.lt.s32.totalorder %s344, 9
        %s346 = scalar_select %p345, %s344, 9
        %s347 = scalar_lea.vmem %s2, %s346
        %p348 = pneg %p111
        %p349 = pneg %p108
        %s350 = smul.u32 2, %s21
        %p351 = scmp.lt.s32.totalorder %s350, 9
        %s352 = scalar_select %p351, %s350, 9
        %s353 = scalar_lea.vmem %s3, %s352
        %p354 = pneg %p137
        %p355 = pneg %p134
        %p356 = pneg %p165
        %p357 = pneg %p162
        %s358 = smul.u32 2, %s21
        %p359 = scmp.lt.s32.totalorder %s20, 0
        %s360 = scalar_select %p359, %s20, 0
        %p361 = scmp.lt.s32.totalorder %s358, 9
        %s362 = scalar_select %p361, %s358, 9
        %s363 = smul.addr %s360, 10
        %s364 = sadd.s32 %s362, %s363
        %s365 = smul.addr %s364, 4
        %s366 = scalar_lea.vmem %s4, %s365
        %p367 = scmp.lt.s32.totalorder %s20, 0
        %s368 = scalar_select %p367, %s20, 0
        %p369 = scmp.lt.s32.totalorder %s22, 0
        %s370 = scalar_select %p369, %s22, 0
        %s371 = sadd.s32 %s370, %s368
        %s372 = smul.addr %s371, 4
        %s373 = scalar_lea.vmem %s0, %s372
        %s374 = smul.u32 16, %s22
        %s375 = smul.u32 2, %s21
        %s376 = smul.u32 2, %s21
        %p377 = scmp.lt.s32.totalorder %s376, 9
        %s378 = scalar_select %p377, %s376, 9
        %s379 = scalar_lea.vmem %s2, %s378
        %s380 = smul.u32 2, %s21
        %s381 = smul.u32 2, %s21
        %p382 = scmp.lt.s32.totalorder %s381, 9
        %s383 = scalar_select %p382, %s381, 9
        %s384 = scalar_lea.vmem %s3, %s383
        %s385 = smul.u32 2, %s21
        %s386 = smul.u32 2, %s21
        %p387 = scmp.lt.s32.totalorder %s20, 0
        %s388 = scalar_select %p387, %s20, 0
        %p389 = scmp.lt.s32.totalorder %s386, 9
        %s390 = scalar_select %p389, %s386, 9
        %s391 = smul.addr %s388, 10
        %s392 = sadd.s32 %s390, %s391
        %s393 = smul.addr %s392, 4
        %s394 = scalar_lea.vmem %s4, %s393
        %s395 = smul.u32 2, %s21
        %v397 = vld [vmem:[%s373] sm:$0xf]
        %v398 = vld [vmem:[%s325] sm:$0xff]
        %v399 = vld [vmem:[%s325 + $0x8] sm:$0xff]
        %v400 = vld [vmem:[%s325 + $0x10] sm:$0xff]
        %v401 = vld [vmem:[%s325 + $0x18] sm:$0xff]
        %v402 = vld [vmem:[%s325 + $0x20] sm:$0xff]
        %v403 = vld [vmem:[%s325 + $0x28] sm:$0xff]
        %v404 = vld [vmem:[%s325 + $0x30] sm:$0xff]
        %v405 = vld [vmem:[%s325 + $0x38] sm:$0xff]
        %v406 = vld [vmem:[%s325 + $0x40] sm:$0xff]
        %v407 = vld [vmem:[%s325 + $0x48] sm:$0xff]
        %v408 = vld [vmem:[%s325 + $0x50] sm:$0xff]
        %v409 = vld [vmem:[%s325 + $0x58] sm:$0xff]
        %v410 = vld [vmem:[%s325 + $0x60] sm:$0xff]
        %v411 = vld [vmem:[%s325 + $0x68] sm:$0xff]
        %v412 = vld [vmem:[%s325 + $0x70] sm:$0xff]
        %v413 = vld [vmem:[%s325 + $0x78] sm:$0xff]
        %v430 = vunpack.c.l.b16 %v398
        %v431 = vunpack.c.h.b16 %v398
        %v432 = vunpack.c.l.b16 %v399
        %v433 = vunpack.c.h.b16 %v399
        %v434 = vunpack.c.l.b16 %v400
        %v435 = vunpack.c.h.b16 %v400
        %v436 = vunpack.c.l.b16 %v401
        %v437 = vunpack.c.h.b16 %v401
        %v438 = vunpack.c.l.b16 %v402
        %v439 = vunpack.c.h.b16 %v402
        %v440 = vunpack.c.l.b16 %v403
        %v441 = vunpack.c.h.b16 %v403
        %v442 = vunpack.c.l.b16 %v404
        %v443 = vunpack.c.h.b16 %v404
        %v444 = vunpack.c.l.b16 %v405
        %v445 = vunpack.c.h.b16 %v405
        %v446 = vunpack.c.l.b16 %v406
        %v447 = vunpack.c.h.b16 %v406
        %v448 = vunpack.c.l.b16 %v407
        %v449 = vunpack.c.h.b16 %v407
        %v450 = vunpack.c.l.b16 %v408
        %v451 = vunpack.c.h.b16 %v408
        %v452 = vunpack.c.l.b16 %v409
        %v453 = vunpack.c.h.b16 %v409
        %v454 = vunpack.c.l.b16 %v410
        %v455 = vunpack.c.h.b16 %v410
        %v456 = vunpack.c.l.b16 %v411
        %v457 = vunpack.c.h.b16 %v411
        %v458 = vunpack.c.l.b16 %v412
        %v459 = vunpack.c.h.b16 %v412
        %v460 = vunpack.c.l.b16 %v413
        %v461 = vunpack.c.h.b16 %v413
        %v462 = vpack.c.b16 %v432, %v430
        %v463 = vpack.c.b16 %v433, %v431
        %v464 = vpack.c.b16 %v436, %v434
        %v465 = vpack.c.b16 %v437, %v435
        %v466 = vpack.c.b16 %v440, %v438
        %v467 = vpack.c.b16 %v441, %v439
        %v468 = vpack.c.b16 %v444, %v442
        %v469 = vpack.c.b16 %v445, %v443
        %v470 = vpack.c.b16 %v448, %v446
        %v471 = vpack.c.b16 %v449, %v447
        %v472 = vpack.c.b16 %v452, %v450
        %v473 = vpack.c.b16 %v453, %v451
        %v474 = vpack.c.b16 %v456, %v454
        %v475 = vpack.c.b16 %v457, %v455
        %v476 = vpack.c.b16 %v460, %v458
        %v477 = vpack.c.b16 %v461, %v459
        %494 = vmatprep.subr.bf16.mxu0 %v463
        %495 = vmatpush1.bf16.msra.mxu0 %v462
        %496 = vmatprep.subr.bf16.mxu0 %v465
        %497 = vmatpush1.bf16.msra.mxu0 %v464
        %498 = vmatprep.subr.bf16.mxu0 %v467
        %499 = vmatpush1.bf16.msra.mxu0 %v466
        %500 = vmatprep.subr.bf16.mxu0 %v469
        %501 = vmatpush1.bf16.msra.mxu0 %v468
        %502 = vmatprep.subr.bf16.mxu0 %v471
        %503 = vmatpush1.bf16.msra.mxu0 %v470
        %504 = vmatprep.subr.bf16.mxu0 %v473
        %505 = vmatpush1.bf16.msra.mxu0 %v472
        %506 = vmatprep.subr.bf16.mxu0 %v475
        %507 = vmatpush1.bf16.msra.mxu0 %v474
        %508 = vmatprep.subr.bf16.mxu0 %v477
        %509 = vmatpush1.bf16.msra.mxu0 %v476
        %510 = vmatprep.subr.bf16.mxu0 0
        %511 = vmatpush1.bf16.msra.mxu0 0
        %512 = vmatprep.subr.bf16.mxu0 0
        %513 = vmatpush1.bf16.msra.mxu0 0
        %514 = vmatprep.subr.bf16.mxu0 0
        %515 = vmatpush1.bf16.msra.mxu0 0
        %516 = vmatprep.subr.bf16.mxu0 0
        %517 = vmatpush1.bf16.msra.mxu0 0
        %518 = vmatprep.subr.bf16.mxu0 0
        %519 = vmatpush1.bf16.msra.mxu0 0
        %520 = vmatprep.subr.bf16.mxu0 0
        %521 = vmatpush1.bf16.msra.mxu0 0
        %522 = vmatprep.subr.bf16.mxu0 0
        %523 = vmatpush1.bf16.msra.mxu0 0
        %524 = vmatprep.subr.bf16.mxu0 0
        %525 = vmatpush1.bf16.msra.mxu0 0
        %526 = vmatprep.mubr.bf16.mxu0 0
        %527 = vmatmul.mubr.bf16.gmra.mrb[0].mxu0 %v397
        %v528 = vpop.f32.mrb[0].mxu0
        %v529 = vadd.f32 0.0, %v528
        %v530 = vpop.f32.mrb[0].mxu0
        %v531 = vadd.f32 0.0, %v530
        %v532 = vpop.f32.mrb[0].mxu0
        %v533 = vpop.f32.mrb[0].mxu0
        %534 = vdwg.mxu0
        %v535 = vld [vmem:[%s379] sm:$0x3]
        %v537 = vlaneseq
        %v538 = vshrl.u32 %v537, 7
        %v539 = vsub.s32 0, %v538
        %v540 = vrot.slane %v535, %v539
        %v541 = vlaneseq
        %v542 = vshrl.u32 %v541, 7
        %v543 = vsub.s32 1, %v542
        %v544 = vrot.slane %v535, %v543
        %v547 = vmul.f32 %v529, %v540
        %v548 = vmul.f32 %v531, %v544
        %v549 = vld [vmem:[%s384] sm:$0x3]
        %v551 = vlaneseq
        %v552 = vshrl.u32 %v551, 7
        %v553 = vsub.s32 0, %v552
        %v554 = vrot.slane %v549, %v553
        %v555 = vlaneseq
        %v556 = vshrl.u32 %v555, 7
        %v557 = vsub.s32 1, %v556
        %v558 = vrot.slane %v549, %v557
        %v561 = vadd.f32 %v547, %v554
        %v562 = vadd.f32 %v548, %v558
        %v563 = vxor.u32 %v561, 2147483648
        %v564 = vxor.u32 %v562, 2147483648
        %v565 = vmul.f32 %v563, 1.442695
        %v566 = vpow.pop %v565
        %v567 = vmul.f32 %v564, 1.442695
        %v568 = vpow.pop %v567
        %v569 = vadd.f32 %v566, 1.0
        %v570 = vadd.f32 %v568, 1.0
        %v571 = vrcp.pop %v569
        %v572 = vmul.f32 1.0, %v571
        %v573 = vrcp.pop %v570
        %v574 = vmul.f32 1.0, %v573
        %v575 = vmul.f32 %v561, %v572
        %v576 = vmul.f32 %v562, %v574
        %v577 = vpack.c.bf16 %v575, %v575
        %v578 = vpack.c.bf16 %v576, %v576
        %v581 = vunpack.c.l.b16 %v577
        %v582 = vunpack.c.l.b16 %v578
        %v583 = vpack.c.b16 %v582, %v581
        %585 = vst [vmem:[%s394] sm:$0xff] %v583
        %s586 = smul.u32 2, %s21
        %p587 = scmp.lt.s32.totalorder %s20, 0
        %s588 = scalar_select %p587, %s20, 0
        %p589 = scmp.lt.s32.totalorder %s586, 9
        %s590 = scalar_select %p589, %s586, 9
        %s591 = smul.addr %s588, 10
        %s592 = sadd.s32 %s590, %s591
        %s593 = smul.addr %s592, 4
        %s594 = scalar_lea.vmem %s4, %s593
        // Predicated region
        $region75: #{_lambda_.23} parent=69 // pred_check
          %p595 = pneg %p162
        $region76: #{_lambda_.23} parent=69 // pred_check_branch
          %597 = sbr.rel (%p595) target = $region78
        $region77: #{_lambda_.23} parent=69 // pred_region
          %s598 = smul.u32 2, %s21
        $region78: #{_lambda_.23} parent=69 // pred_fallthru
          _
      $region70: #{_lambda_.23} parent=5 // pred_fallthru
        _
      %p599 = scmp.le.s32.totalorder 2, %s10
      // Predicated region
      $region79: #{_lambda_.23} parent=5 // pred_check
        %p600 = pneg %p599
      $region80: #{_lambda_.23} parent=5 // pred_check_branch
        %602 = sbr.rel (%p600) target = $region82
      $region81: #{_lambda_.23} parent=5 // pred_region
        %s603 = ssub.s32 %s10, 2
        // Predicated region
        $region83: #{_lambda_.23} parent=81 // pred_check
          %p604 = pneg %p168
        $region84: #{_lambda_.23} parent=81 // pred_check_branch
          %606 = sbr.rel (%p604) target = $region86
        $region85: #{_lambda_.23} parent=81 // pred_region
          %s607 = smul.u32 2, %s24
          %p608 = scmp.lt.s32.totalorder %s23, 0
          %s609 = scalar_select %p608, %s23, 0
          %p610 = scmp.lt.s32.totalorder %s607, 9
          %s611 = scalar_select %p610, %s607, 9
          %s612 = smul.addr %s609, 10
          %s613 = sadd.s32 %s611, %s612
          %s614 = smul.addr %s613, 4
          %s615 = scalar_lea.vmem %s4, %s614
        $region86: #{_lambda_.23} parent=81 // pred_fallthru
          _
      $region82: #{_lambda_.23} parent=5 // pred_fallthru
        _
    $region6: #{_lambda_.23} parent=1 // loop_footer
      %s14 = sadd.s32 1, %s10
    $region7: #{_lambda_.23} parent=1 // loop_footer_branch
      %9 = sbr.rel target = $region3
    $region8: #{_lambda_.23} parent=1 // loop_exit
      _

// kernel: _lambda_.21
$region0: #{_lambda_.21}
  #allocation0 [shape = 'u32[]', space=smem, size = 0x4, offset = 0x4, fixed_abs, tag = 'smem constant byte address 0x4 - core index']
  #allocation1 [shape = 'u32[144,128]{1,0:T(1,128)}', space=vmem, size = 0x12000, scoped, tag = 'internal scratch']
  %s0 = inlined_call_operand.vmem [shape: bf16[4,2,4,4,256], index: 0, kind: input, shape index: {}]
  %s1 = inlined_call_operand.vmem [shape: f32[25,256], index: 1, kind: input, shape index: {}]
  %s2 = inlined_call_operand.vmem [shape: f32[1,256], index: 2, kind: input, shape index: {}]
  %s3 = inlined_call_operand.vmem [shape: f32[1,256], index: 3, kind: input, shape index: {}]
  %s4 = inlined_call_operand.vmem [shape: bf16[2,2,2,256], index: 4, kind: output, shape index: {0}]
  %s5 = inlined_call_operand.vmem [shape: f32[2,1,256], index: 5, kind: output, shape index: {1}]
  %6 = xla_tuple %s4, %s5
  %s7 = sld [smem:[#allocation0]]
  $region166: #{_lambda_.21} parent=0
    _
  %s9 = ssub.s32 1, %s7
  %s10 = scalar_select 0, %s9, %s7
  $region1: #{_lambda_.21} parent=0
    #allocation2 [shape = 'u8[32768]{0}', space=vmem, size = 0x8000, scoped, tag = 'input window, operand 0']
    #allocation3 [shape = 'u8[32768]{0}', space=vmem, size = 0x8000, scoped, tag = 'input window, operand 1']
    #allocation4 [shape = 'u8[2048]{0}', space=vmem, size = 0x800, scoped, tag = 'output window, operand 0']
    loop: start=0, step=1, limit=6
    $region2: #{_lambda_.21} parent=1 // loop_pre_header
      _
    $region3: #{_lambda_.21} parent=1 // loop_header
      %s12 = sphi 0, %s16
      %p13 = scmp.ge.s32.totalorder %s12, 6
      %s19 = sphi 0, %s31
      %s20 = sphi 0, %s27
      %s21 = sphi 0, %s19
      %s22 = sphi 0, %s20
      %s23 = sphi 0, %s21
      %s24 = sphi 0, %s22
      %s36 = sphi 0, %s38
      %s39 = sphi 0, %s36
      %s40 = sphi 0, %s39
      %s56 = sphi 0, %s40
      %s62 = sphi 0, %s64
      %s65 = sphi 0, %s62
      %s66 = sphi 0, %s65
      %s82 = sphi 0, %s66
      %s88 = sphi 0, %s90
      %s91 = sphi 0, %s88
      %s92 = sphi 0, %s91
      %s108 = sphi 0, %s92
      %s114 = sphi 0, %s116
      %s117 = sphi 0, %s114
      %s118 = sphi 0, %s117
      %s134 = sphi 0, %s118
      %s142 = sphi 0, %s144
      %s145 = sphi 0, %s142
      %s146 = sphi 0, %s145
      %s162 = sphi 0, %s146
      %s170 = sphi 0, %s172
      %s173 = sphi 0, %s170
      %s174 = sphi 0, %s173
      %s190 = sphi 0, %s174
    $region4: #{_lambda_.21} parent=1 // loop_header_branch
      %15 = sbr.rel (%p13) target = $region8
    $region5: #{_lambda_.21} parent=1 // loop_body
      %s17 = ssub.s32 %s12, 1
      %s18 = ssub.s32 %s12, 2
      %s25 = sadd.s32 1, %s20
      %p26 = scmp.ge.s32.totalorder %s25, 2
      %s27 = scalar_select %p26, 0, %s25
      %s28 = sadd.s32 1, %s19
      %s29 = scalar_select %p26, %s28, %s19
      %p30 = scmp.ge.s32.totalorder %s29, 2
      %s31 = scalar_select %p30, 0, %s29
      %s32 = ssub.s32 %s19, %s31
      %s33 = ssub.s32 %s20, %s27
      %s34 = sor.u32 %s32, %s33
      %p35 = scmp.eq.s32.totalorder %s34, 0
      %s37 = sadd.s32 %s36, 1
      %s38 = scalar_select %p35, %s36, %s37
      %p41 = pneg %p35
      %p42 = scmp.eq.s32.totalorder %s12, 3
      %p43 = por %p41, %p42
      %p44 = scmp.ne.s32.totalorder %s36, %s39
      %p45 = scmp.eq.s32.totalorder %s12, 0
      %p46 = por %p44, %p45
      %p47 = scmp.ne.s32.totalorder %s36, %s39
      %p48 = scmp.eq.s32.totalorder %s17, 3
      %p49 = por %p47, %p48
      %p50 = scmp.ne.s32.totalorder %s39, %s40
      %p51 = scmp.eq.s32.totalorder %s17, 0
      %p52 = por %p50, %p51
      %p53 = scmp.ne.s32.totalorder %s39, %s40
      %p54 = scmp.eq.s32.totalorder %s18, 3
      %p55 = por %p53, %p54
      %p57 = scmp.ne.s32.totalorder %s40, %s56
      %p58 = scmp.eq.s32.totalorder %s18, 0
      %p59 = por %p57, %p58
      %s60 = ssub.s32 %s20, %s27
      %p61 = scmp.eq.s32.totalorder %s60, 0
      %s63 = sadd.s32 %s62, 1
      %s64 = scalar_select %p61, %s62, %s63
      %p67 = pneg %p61
      %p68 = scmp.eq.s32.totalorder %s12, 3
      %p69 = por %p67, %p68
      %p70 = scmp.ne.s32.totalorder %s62, %s65
      %p71 = scmp.eq.s32.totalorder %s12, 0
      %p72 = por %p70, %p71
      %p73 = scmp.ne.s32.totalorder %s62, %s65
      %p74 = scmp.eq.s32.totalorder %s17, 3
      %p75 = por %p73, %p74
      %p76 = scmp.ne.s32.totalorder %s65, %s66
      %p77 = scmp.eq.s32.totalorder %s17, 0
      %p78 = por %p76, %p77
      %p79 = scmp.ne.s32.totalorder %s65, %s66
      %p80 = scmp.eq.s32.totalorder %s18, 3
      %p81 = por %p79, %p80
      %p83 = scmp.ne.s32.totalorder %s66, %s82
      %p84 = scmp.eq.s32.totalorder %s18, 0
      %p85 = por %p83, %p84
      %s86 = ssub.s32 %s20, %s27
      %p87 = scmp.eq.s32.totalorder %s86, 0
      %s89 = sadd.s32 %s88, 1
      %s90 = scalar_select %p87, %s88, %s89
      %p93 = pneg %p87
      %p94 = scmp.eq.s32.totalorder %s12, 3
      %p95 = por %p93, %p94
      %p96 = scmp.ne.s32.totalorder %s88, %s91
      %p97 = scmp.eq.s32.totalorder %s12, 0
      %p98 = por %p96, %p97
      %p99 = scmp.ne.s32.totalorder %s88, %s91
      %p100 = scmp.eq.s32.totalorder %s17, 3
      %p101 = por %p99, %p100
      %p102 = scmp.ne.s32.totalorder %s91, %s92
      %p103 = scmp.eq.s32.totalorder %s17, 0
      %p104 = por %p102, %p103
      %p105 = scmp.ne.s32.totalorder %s91, %s92
      %p106 = scmp.eq.s32.totalorder %s18, 3
      %p107 = por %p105, %p106
      %p109 = scmp.ne.s32.totalorder %s92, %s108
      %p110 = scmp.eq.s32.totalorder %s18, 0
      %p111 = por %p109, %p110
      %s112 = ssub.s32 %s20, %s27
      %p113 = scmp.eq.s32.totalorder %s112, 0
      %s115 = sadd.s32 %s114, 1
      %s116 = scalar_select %p113, %s114, %s115
      %p119 = pneg %p113
      %p120 = scmp.eq.s32.totalorder %s12, 3
      %p121 = por %p119, %p120
      %p122 = scmp.ne.s32.totalorder %s114, %s117
      %p123 = scmp.eq.s32.totalorder %s12, 0
      %p124 = por %p122, %p123
      %p125 = scmp.ne.s32.totalorder %s114, %s117
      %p126 = scmp.eq.s32.totalorder %s17, 3
      %p127 = por %p125, %p126
      %p128 = scmp.ne.s32.totalorder %s117, %s118
      %p129 = scmp.eq.s32.totalorder %s17, 0
      %p130 = por %p128, %p129
      %p131 = scmp.ne.s32.totalorder %s117, %s118
      %p132 = scmp.eq.s32.totalorder %s18, 3
      %p133 = por %p131, %p132
      %p135 = scmp.ne.s32.totalorder %s118, %s134
      %p136 = scmp.eq.s32.totalorder %s18, 0
      %p137 = por %p135, %p136
      %s138 = ssub.s32 %s19, %s31
      %s139 = ssub.s32 %s20, %s27
      %s140 = sor.u32 %s138, %s139
      %p141 = scmp.eq.s32.totalorder %s140, 0
      %s143 = sadd.s32 %s142, 1
      %s144 = scalar_select %p141, %s142, %s143
      %p147 = pneg %p141
      %p148 = scmp.eq.s32.totalorder %s12, 3
      %p149 = por %p147, %p148
      %p150 = scmp.ne.s32.totalorder %s142, %s145
      %p151 = scmp.eq.s32.totalorder %s12, 0
      %p152 = por %p150, %p151
      %p153 = scmp.ne.s32.totalorder %s142, %s145
      %p154 = scmp.eq.s32.totalorder %s17, 3
      %p155 = por %p153, %p154
      %p156 = scmp.ne.s32.totalorder %s145, %s146
      %p157 = scmp.eq.s32.totalorder %s17, 0
      %p158 = por %p156, %p157
      %p159 = scmp.ne.s32.totalorder %s145, %s146
      %p160 = scmp.eq.s32.totalorder %s18, 3
      %p161 = por %p159, %p160
      %p163 = scmp.ne.s32.totalorder %s146, %s162
      %p164 = scmp.eq.s32.totalorder %s18, 0
      %p165 = por %p163, %p164
      %s166 = ssub.s32 %s19, %s31
      %s167 = ssub.s32 %s20, %s27
      %s168 = sor.u32 %s166, %s167
      %p169 = scmp.eq.s32.totalorder %s168, 0
      %s171 = sadd.s32 %s170, 1
      %s172 = scalar_select %p169, %s170, %s171
      %p175 = pneg %p169
      %p176 = scmp.eq.s32.totalorder %s12, 3
      %p177 = por %p175, %p176
      %p178 = scmp.ne.s32.totalorder %s170, %s173
      %p179 = scmp.eq.s32.totalorder %s12, 0
      %p180 = por %p178, %p179
      %p181 = scmp.ne.s32.totalorder %s170, %s173
      %p182 = scmp.eq.s32.totalorder %s17, 3
      %p183 = por %p181, %p182
      %p184 = scmp.ne.s32.totalorder %s173, %s174
      %p185 = scmp.eq.s32.totalorder %s17, 0
      %p186 = por %p184, %p185
      %p187 = scmp.ne.s32.totalorder %s173, %s174
      %p188 = scmp.eq.s32.totalorder %s18, 3
      %p189 = por %p187, %p188
      %p191 = scmp.ne.s32.totalorder %s174, %s190
      %p192 = scmp.eq.s32.totalorder %s18, 0
      %p193 = por %p191, %p192
      %p194 = scmp.le.s32.totalorder 1, %s12
      %p195 = scmp.lt.s32.totalorder %s12, 5
      %p196 = pnand %p194, %p195
      %p197 = pneg %p196
      // Predicated region
      $region9: #{_lambda_.21} parent=5 // pred_check
        _
      $region10: #{_lambda_.21} parent=5 // pred_check_branch
        %199 = sbr.rel (%p196) target = $region12
      $region11: #{_lambda_.21} parent=5 // pred_region
        %s200 = ssub.s32 %s12, 1
      $region12: #{_lambda_.21} parent=5 // pred_fallthru
        _
      %p201 = scmp.lt.s32.totalorder %s12, 4
      // Predicated region
      $region13: #{_lambda_.21} parent=5 // pred_check
        %p202 = pneg %p201
      $region14: #{_lambda_.21} parent=5 // pred_check_branch
        %204 = sbr.rel (%p202) target = $region16
      $region15: #{_lambda_.21} parent=5 // pred_region
        // Predicated region
        $region17: #{_lambda_.21} parent=15 // pred_check
          %p205 = pneg %p46
        $region18: #{_lambda_.21} parent=15 // pred_check_branch
          %207 = sbr.rel (%p205) target = $region20
        $region19: #{_lambda_.21} parent=15 // pred_region
          %s208 = sand.u32 %s36, 1
          %s209 = sand.u32 %s36, 1
          %s210 = smul.addr %s209, 32
          %s211 = scalar_lea.vmem [#allocation2], %s210
          %s212 = smul.addr %s19, 8
          %s213 = sadd.s32 %s20, %s212
          %s214 = smul.addr %s213, 2
          %s215 = scalar_lea.vmem %s0, %s214
          // Predicated region
          $region21: #{_lambda_.21} parent=19 // pred_check
            _
          $region22: #{_lambda_.21} parent=19 // pred_check_branch
            %217 = sbr.rel (0) target = $region24
          $region23: #{_lambda_.21} parent=19 // pred_region
            // Predicated region
            $region25: #{_lambda_.21} parent=23 // pred_check
              _
            $region26: #{_lambda_.21} parent=23 // pred_check_branch
              %219 = sbr.rel target = $region28
            $region27: #{_lambda_.21} parent=23 // pred_region
              // Predicated region
              $region40: #{_lambda_.21} parent=27 // pred_check
                _
              $region41: #{_lambda_.21} parent=27 // pred_check_branch
                %264 = sbr.rel (0) target = $region43
              $region42: #{_lambda_.21} parent=27 // pred_region
                loop: start=0, step=1, limit=1
                $region44: #{_lambda_.21} parent=42 // loop_pre_header
                  _
                $region45: #{_lambda_.21} parent=42 // loop_header
                  %s266 = sphi 0, %s270
                  %p267 = scmp.ge.s32.totalorder %s266, 1
                  %s271 = sphi %s215, %s215
                  %s272 = sphi %s211, %s211
                $region46: #{_lambda_.21} parent=42 // loop_header_branch
                  %269 = sbr.rel (%p267) target = $region50
                $region47: #{_lambda_.21} parent=42 // loop_body
                  _
                $region48: #{_lambda_.21} parent=42 // loop_footer
                  %s270 = sadd.s32 1, %s266
                $region49: #{_lambda_.21} parent=42 // loop_footer_branch
                  %265 = sbr.rel target = $region45
                $region50: #{_lambda_.21} parent=42 // loop_exit
                  _
                loop: start=0, step=1, limit=1
                $region51: #{_lambda_.21} parent=42 // loop_pre_header
                  _
                $region52: #{_lambda_.21} parent=42 // loop_header
                  %s275 = sphi 0, %s279
                  %p276 = scmp.ge.s32.totalorder %s275, 1
                  %s280 = sphi %s215, %s215
                  %s281 = sphi %s211, %s211
                $region53: #{_lambda_.21} parent=42 // loop_header_branch
                  %278 = sbr.rel (%p276) target = $region57
                $region54: #{_lambda_.21} parent=42 // loop_body
                  %v282 = vld [vmem:[%s280] sm:$0x3]
                  %283 = vst [vmem:[%s281] sm:$0x3] %v282
                  %v284 = vld [vmem:[%s280 + $0x4] sm:$0x3]
                  %285 = vst [vmem:[%s281 + $0x2] sm:$0x3] %v284
                  %v286 = vld [vmem:[%s280 + $0x8] sm:$0x3]
                  %287 = vst [vmem:[%s281 + $0x4] sm:$0x3] %v286
                  %v288 = vld [vmem:[%s280 + $0xc] sm:$0x3]
                  %289 = vst [vmem:[%s281 + $0x6] sm:$0x3] %v288
                  %v290 = vld [vmem:[%s280 + $0x20] sm:$0x3]
                  %291 = vst [vmem:[%s281 + $0x8] sm:$0x3] %v290
                  %v292 = vld [vmem:[%s280 + $0x24] sm:$0x3]
                  %293 = vst [vmem:[%s281 + $0xa] sm:$0x3] %v292
                  %v294 = vld [vmem:[%s280 + $0x28] sm:$0x3]
                  %295 = vst [vmem:[%s281 + $0xc] sm:$0x3] %v294
                  %v296 = vld [vmem:[%s280 + $0x2c] sm:$0x3]
                  %297 = vst [vmem:[%s281 + $0xe] sm:$0x3] %v296
                  %v298 = vld [vmem:[%s280 + $0x40] sm:$0x3]
                  %299 = vst [vmem:[%s281 + $0x10] sm:$0x3] %v298
                  %v300 = vld [vmem:[%s280 + $0x44] sm:$0x3]
                  %301 = vst [vmem:[%s281 + $0x12] sm:$0x3] %v300
                  %v302 = vld [vmem:[%s280 + $0x48] sm:$0x3]
                  %303 = vst [vmem:[%s281 + $0x14] sm:$0x3] %v302
                  %v304 = vld [vmem:[%s280 + $0x4c] sm:$0x3]
                  %305 = vst [vmem:[%s281 + $0x16] sm:$0x3] %v304
                  %v306 = vld [vmem:[%s280 + $0x60] sm:$0x3]
                  %307 = vst [vmem:[%s281 + $0x18] sm:$0x3] %v306
                  %v308 = vld [vmem:[%s280 + $0x64] sm:$0x3]
                  %309 = vst [vmem:[%s281 + $0x1a] sm:$0x3] %v308
                  %v310 = vld [vmem:[%s280 + $0x68] sm:$0x3]
                  %311 = vst [vmem:[%s281 + $0x1c] sm:$0x3] %v310
                  %v312 = vld [vmem:[%s280 + $0x6c] sm:$0x3]
                  %313 = vst [vmem:[%s281 + $0x1e] sm:$0x3] %v312
                $region55: #{_lambda_.21} parent=42 // loop_footer
                  %s279 = sadd.s32 1, %s275
                $region56: #{_lambda_.21} parent=42 // loop_footer_branch
                  %274 = sbr.rel target = $region52
                $region57: #{_lambda_.21} parent=42 // loop_exit
                  _
              $region43: #{_lambda_.21} parent=27 // pred_fallthru
                _
            $region28: #{_lambda_.21} parent=23 // pred_fallthru
              _
            // Predicated region
            $region29: #{_lambda_.21} parent=23 // pred_check
              _
            $region30: #{_lambda_.21} parent=23 // pred_check_branch
              %221 = sbr.rel (0) target = $region32
            $region31: #{_lambda_.21} parent=23 // pred_region
              loop: start=0, step=1, limit=1
              $region33: #{_lambda_.21} parent=31 // loop_pre_header
                _
              $region34: #{_lambda_.21} parent=31 // loop_header
                %s224 = sphi 0, %s228
                %p225 = scmp.ge.s32.totalorder %s224, 1
                %s229 = sphi %s215, %s215
                %s230 = sphi %s211, %s211
              $region35: #{_lambda_.21} parent=31 // loop_header_branch
                %227 = sbr.rel (%p225) target = $region39
              $region36: #{_lambda_.21} parent=31 // loop_body
                %v231 = vld [vmem:[%s229] sm:$0x3]
                %232 = vst [vmem:[%s230] sm:$0x3] %v231
                %v233 = vld [vmem:[%s229 + $0x4] sm:$0x3]
                %234 = vst [vmem:[%s230 + $0x2] sm:$0x3] %v233
                %v235 = vld [vmem:[%s229 + $0x8] sm:$0x3]
                %236 = vst [vmem:[%s230 + $0x4] sm:$0x3] %v235
                %v237 = vld [vmem:[%s229 + $0xc] sm:$0x3]
                %238 = vst [vmem:[%s230 + $0x6] sm:$0x3] %v237
                %v239 = vld [vmem:[%s229 + $0x20] sm:$0x3]
                %240 = vst [vmem:[%s230 + $0x8] sm:$0x3] %v239
                %v241 = vld [vmem:[%s229 + $0x24] sm:$0x3]
                %242 = vst [vmem:[%s230 + $0xa] sm:$0x3] %v241
                %v243 = vld [vmem:[%s229 + $0x28] sm:$0x3]
                %244 = vst [vmem:[%s230 + $0xc] sm:$0x3] %v243
                %v245 = vld [vmem:[%s229 + $0x2c] sm:$0x3]
                %246 = vst [vmem:[%s230 + $0xe] sm:$0x3] %v245
                %v247 = vld [vmem:[%s229 + $0x40] sm:$0x3]
                %248 = vst [vmem:[%s230 + $0x10] sm:$0x3] %v247
                %v249 = vld [vmem:[%s229 + $0x44] sm:$0x3]
                %250 = vst [vmem:[%s230 + $0x12] sm:$0x3] %v249
                %v251 = vld [vmem:[%s229 + $0x48] sm:$0x3]
                %252 = vst [vmem:[%s230 + $0x14] sm:$0x3] %v251
                %v253 = vld [vmem:[%s229 + $0x4c] sm:$0x3]
                %254 = vst [vmem:[%s230 + $0x16] sm:$0x3] %v253
                %v255 = vld [vmem:[%s229 + $0x60] sm:$0x3]
                %256 = vst [vmem:[%s230 + $0x18] sm:$0x3] %v255
                %v257 = vld [vmem:[%s229 + $0x64] sm:$0x3]
                %258 = vst [vmem:[%s230 + $0x1a] sm:$0x3] %v257
                %v259 = vld [vmem:[%s229 + $0x68] sm:$0x3]
                %260 = vst [vmem:[%s230 + $0x1c] sm:$0x3] %v259
                %v261 = vld [vmem:[%s229 + $0x6c] sm:$0x3]
                %262 = vst [vmem:[%s230 + $0x1e] sm:$0x3] %v261
              $region37: #{_lambda_.21} parent=31 // loop_footer
                %s228 = sadd.s32 1, %s224
              $region38: #{_lambda_.21} parent=31 // loop_footer_branch
                %223 = sbr.rel target = $region34
              $region39: #{_lambda_.21} parent=31 // loop_exit
                _
            $region32: #{_lambda_.21} parent=23 // pred_fallthru
              _
          $region24: #{_lambda_.21} parent=19 // pred_fallthru
            _
          %314 = vnop
        $region20: #{_lambda_.21} parent=15 // pred_fallthru
          _
        // Predicated region
        $region58: #{_lambda_.21} parent=15 // pred_check
          %p315 = pneg %p72
        $region59: #{_lambda_.21} parent=15 // pred_check_branch
          %317 = sbr.rel (%p315) target = $region61
        $region60: #{_lambda_.21} parent=15 // pred_region
          %s318 = sand.u32 %s62, 1
          %s319 = sand.u32 %s62, 1
          %s320 = smul.addr %s319, 32
          %s321 = scalar_lea.vmem [#allocation3], %s320
          %s322 = smul.addr %s20, 8
          %s323 = scalar_lea.vmem %s1, %s322
          // Predicated region
          $region62: #{_lambda_.21} parent=60 // pred_check
            _
          $region63: #{_lambda_.21} parent=60 // pred_check_branch
            %325 = sbr.rel (0) target = $region65
          $region64: #{_lambda_.21} parent=60 // pred_region
            // Predicated region
            $region66: #{_lambda_.21} parent=64 // pred_check
              _
            $region67: #{_lambda_.21} parent=64 // pred_check_branch
              %327 = sbr.rel (0) target = $region69
            $region68: #{_lambda_.21} parent=64 // pred_region
              // Predicated region
              $region81: #{_lambda_.21} parent=68 // pred_check
                _
              $region82: #{_lambda_.21} parent=68 // pred_check_branch
                %348 = sbr.rel (0) target = $region84
              $region83: #{_lambda_.21} parent=68 // pred_region
                loop: start=0, step=1, limit=1
                $region85: #{_lambda_.21} parent=83 // loop_pre_header
                  _
                $region86: #{_lambda_.21} parent=83 // loop_header
                  %s350 = sphi 0, %s354
                  %p351 = scmp.ge.s32.totalorder %s350, 1
                  %s355 = sphi %s323, %s323
                  %s356 = sphi %s321, %s321
                $region87: #{_lambda_.21} parent=83 // loop_header_branch
                  %353 = sbr.rel (%p351) target = $region91
                $region88: #{_lambda_.21} parent=83 // loop_body
                  %v357 = vld [vmem:[%s355] sm:$0xff]
                  %358 = vst [vmem:[%s356] sm:$0xff] %v357
                  %v359 = vld [vmem:[%s355 + $0x10] sm:$0xff]
                  %360 = vst [vmem:[%s356 + $0x8] sm:$0xff] %v359
                  %v361 = vld [vmem:[%s355 + $0x20] sm:$0xff]
                  %362 = vst [vmem:[%s356 + $0x10] sm:$0xff] %v361
                  %v363 = vld [vmem:[%s355 + $0x30] sm:$0xff]
                  %364 = vst [vmem:[%s356 + $0x18] sm:$0xff] %v363
                $region89: #{_lambda_.21} parent=83 // loop_footer
                  %s354 = sadd.s32 1, %s350
                $region90: #{_lambda_.21} parent=83 // loop_footer_branch
                  %349 = sbr.rel target = $region86
                $region91: #{_lambda_.21} parent=83 // loop_exit
                  _
              $region84: #{_lambda_.21} parent=68 // pred_fallthru
                _
              // Predicated region
              $region92: #{_lambda_.21} parent=68 // pred_check
                _
              $region93: #{_lambda_.21} parent=68 // pred_check_branch
                %366 = sbr.rel target = $region95
              $region94: #{_lambda_.21} parent=68 // pred_region
                _
              $region95: #{_lambda_.21} parent=68 // pred_fallthru
                _
            $region69: #{_lambda_.21} parent=64 // pred_fallthru
              _
            // Predicated region
            $region70: #{_lambda_.21} parent=64 // pred_check
              _
            $region71: #{_lambda_.21} parent=64 // pred_check_branch
              %329 = sbr.rel target = $region73
            $region72: #{_lambda_.21} parent=64 // pred_region
              loop: start=0, step=1, limit=1
              $region74: #{_lambda_.21} parent=72 // loop_pre_header
                _
              $region75: #{_lambda_.21} parent=72 // loop_header
                %s332 = sphi 0, %s336
                %p333 = scmp.ge.s32.totalorder %s332, 1
                %s337 = sphi %s323, %s323
                %s338 = sphi %s321, %s321
              $region76: #{_lambda_.21} parent=72 // loop_header_branch
                %335 = sbr.rel (%p333) target = $region80
              $region77: #{_lambda_.21} parent=72 // loop_body
                %v339 = vld [vmem:[%s337] sm:$0xff]
                %340 = vst [vmem:[%s338] sm:$0xff] %v339
                %v341 = vld [vmem:[%s337 + $0x10] sm:$0xff]
                %342 = vst [vmem:[%s338 + $0x8] sm:$0xff] %v341
                %v343 = vld [vmem:[%s337 + $0x20] sm:$0xff]
                %344 = vst [vmem:[%s338 + $0x10] sm:$0xff] %v343
                %v345 = vld [vmem:[%s337 + $0x30] sm:$0xff]
                %346 = vst [vmem:[%s338 + $0x18] sm:$0xff] %v345
              $region78: #{_lambda_.21} parent=72 // loop_footer
                %s336 = sadd.s32 1, %s332
              $region79: #{_lambda_.21} parent=72 // loop_footer_branch
                %331 = sbr.rel target = $region75
              $region80: #{_lambda_.21} parent=72 // loop_exit
                _
            $region73: #{_lambda_.21} parent=64 // pred_fallthru
              _
          $region65: #{_lambda_.21} parent=60 // pred_fallthru
            _
          %367 = vnop
        $region61: #{_lambda_.21} parent=15 // pred_fallthru
          _
        // Predicated region
        $region96: #{_lambda_.21} parent=15 // pred_check
          %p368 = pneg %p98
        $region97: #{_lambda_.21} parent=15 // pred_check_branch
          %370 = sbr.rel (%p368) target = $region99
        $region98: #{_lambda_.21} parent=15 // pred_region
          %p371 = scmp.lt.s32.totalorder %s20, 1
          %s372 = scalar_select %p371, %s20, 1
          %s373 = scalar_lea.vmem %s2, %s372
        $region99: #{_lambda_.21} parent=15 // pred_fallthru
          _
        // Predicated region
        $region100: #{_lambda_.21} parent=15 // pred_check
          %p374 = pneg %p124
        $region101: #{_lambda_.21} parent=15 // pred_check_branch
          %376 = sbr.rel (%p374) target = $region103
        $region102: #{_lambda_.21} parent=15 // pred_region
          %p377 = scmp.lt.s32.totalorder %s20, 1
          %s378 = scalar_select %p377, %s20, 1
          %s379 = scalar_lea.vmem %s3, %s378
        $region103: #{_lambda_.21} parent=15 // pred_fallthru
          _
      $region16: #{_lambda_.21} parent=5 // pred_fallthru
        _
      %p380 = scmp.le.s32.totalorder 1, %s12
      %p381 = scmp.lt.s32.totalorder %s12, 5
      %p382 = pnand %p380, %p381
      %p383 = pneg %p382
      // Predicated region
      $region104: #{_lambda_.21} parent=5 // pred_check
        _
      $region105: #{_lambda_.21} parent=5 // pred_check_branch
        %385 = sbr.rel (%p382) target = $region107
      $region106: #{_lambda_.21} parent=5 // pred_region
        %s386 = ssub.s32 %s12, 1
        %s387 = sand.u32 %s39, 1
        %s388 = sand.u32 %s39, 1
        %s389 = smul.addr %s388, 32
        %s390 = scalar_lea.vmem [#allocation2], %s389
        // Predicated region
        $region108: #{_lambda_.21} parent=106 // pred_check
          %p391 = pneg %p52
        $region109: #{_lambda_.21} parent=106 // pred_check_branch
          %393 = sbr.rel (%p391) target = $region111
        $region110: #{_lambda_.21} parent=106 // pred_region
          _
        $region111: #{_lambda_.21} parent=106 // pred_fallthru
          _
        %s394 = sand.u32 %s65, 1
        %s395 = sand.u32 %s65, 1
        %s396 = smul.addr %s395, 32
        %s397 = scalar_lea.vmem [#allocation3], %s396
        // Predicated region
        $region112: #{_lambda_.21} parent=106 // pred_check
          %p398 = pneg %p78
        $region113: #{_lambda_.21} parent=106 // pred_check_branch
          %400 = sbr.rel (%p398) target = $region115
        $region114: #{_lambda_.21} parent=106 // pred_region
          _
        $region115: #{_lambda_.21} parent=106 // pred_fallthru
          _
        %s401 = sand.u32 %s39, 1
        %s402 = sand.u32 %s39, 1
        %s403 = smul.addr %s402, 32
        %s404 = scalar_lea.vmem [#allocation2], %s403
        %p405 = pneg %p52
        %p406 = pneg %p49
        %s407 = sand.u32 %s65, 1
        %s408 = sand.u32 %s65, 1
        %s409 = smul.addr %s408, 32
        %s410 = scalar_lea.vmem [#allocation3], %s409
        %p411 = pneg %p78
        %p412 = pneg %p75
        %p413 = scmp.lt.s32.totalorder %s22, 1
        %s414 = scalar_select %p413, %s22, 1
        %s415 = scalar_lea.vmem %s2, %s414
        %p416 = pneg %p104
        %p417 = pneg %p101
        %p418 = scmp.lt.s32.totalorder %s22, 1
        %s419 = scalar_select %p418, %s22, 1
        %s420 = scalar_lea.vmem %s3, %s419
        %p421 = pneg %p130
        %p422 = pneg %p127
        %p423 = pneg %p158
        %p424 = pneg %p155
        %s425 = sand.u32 %s145, 1
        %s426 = sand.u32 %s145, 1
        %s427 = smul.addr %s426, 2
        %s428 = scalar_lea.vmem [#allocation4], %s427
        %p429 = pneg %p186
        %p430 = pneg %p183
        %p431 = scmp.lt.s32.totalorder %s21, 1
        %s432 = scalar_select %p431, %s21, 1
        %p433 = scmp.lt.s32.totalorder %s22, 1
        %s434 = scalar_select %p433, %s22, 1
        %s435 = smul.addr %s432, 2
        %s436 = sadd.s32 %s434, %s435
        %s437 = scalar_lea.vmem %s5, %s436
        %p438 = scmp.lt.s32.totalorder %s22, 1
        %s439 = scalar_select %p438, %s22, 1
        %s440 = scalar_lea.vmem %s2, %s439
        %p441 = scmp.lt.s32.totalorder %s22, 1
        %s442 = scalar_select %p441, %s22, 1
        %s443 = scalar_lea.vmem %s3, %s442
        %p444 = scmp.lt.s32.totalorder %s21, 1
        %s445 = scalar_select %p444, %s21, 1
        %p446 = scmp.lt.s32.totalorder %s22, 1
        %s447 = scalar_select %p446, %s22, 1
        %s448 = smul.addr %s445, 2
        %s449 = sadd.s32 %s447, %s448
        %s450 = scalar_lea.vmem %s5, %s449
        %v451 = vld [vmem:[%s390] sm:$0x1]
        %v452 = vld [vmem:[%s390 + $0x2] sm:$0x1]
        %v453 = vld [vmem:[%s390 + $0x4] sm:$0x1]
        %v454 = vld [vmem:[%s390 + $0x6] sm:$0x1]
        %v455 = vunpack.c.l.bf16 %v451
        %v456 = vunpack.c.l.bf16 %v452
        %v457 = vld [vmem:[%s397] sm:$0x1]
        %v458 = vlaneseq
        %v459 = vshrl.u32 %v458, 7
        %v460 = vsub.s32 0, %v459
        %v461 = vrot.slane %v457, %v460
        %v462 = vmul.f32 %v455, %v461
        %v463 = vmul.f32 %v456, %v461
        %v464 = vunpack.c.l.bf16 %v453
        %v465 = vld [vmem:[%s397 + $0xa] sm:$0x1]
        %v466 = vlaneseq
        %v467 = vshrl.u32 %v466, 7
        %v468 = vsub.s32 0, %v467
        %v469 = vrot.slane %v465, %v468
        %v470 = vmul.f32 %v456, %v469
        %v471 = vmul.f32 %v464, %v469
        %v472 = vadd.f32 %v462, %v470
        %v473 = vadd.f32 %v463, %v471
        %v474 = vunpack.c.l.bf16 %v454
        %v475 = vld [vmem:[%s397 + $0x14] sm:$0x1]
        %v476 = vlaneseq
        %v477 = vshrl.u32 %v476, 7
        %v478 = vsub.s32 0, %v477
        %v479 = vrot.slane %v475, %v478
        %v480 = vmul.f32 %v464, %v479
        %v481 = vmul.f32 %v474, %v479
        %v482 = vadd.f32 %v472, %v480
        %v483 = vadd.f32 %v473, %v481
        %v484 = vld [vmem:[%s390] sm:$0x3]
        %v485 = vld [vmem:[%s390 + $0x2] sm:$0x3]
        %v486 = vld [vmem:[%s390 + $0x4] sm:$0x3]
        %v487 = vld [vmem:[%s390 + $0x6] sm:$0x3]
        %v488 = vunpack.c.l.bf16 %v484
        %v489 = vunpack.c.l.bf16 %v485
        %v490 = vld [vmem:[%s397 + $0x2] sm:$0x1]
        %v491 = vlaneseq
        %v492 = vshrl.u32 %v491, 7
        %v493 = vsub.s32 0, %v492
        %v494 = vrot.slane %v490, %v493
        %v495 = vmul.f32 %v488, %v494
        %v496 = vmul.f32 %v489, %v494
        %v499 = vrot.slane %v495, 5
        %v500 = vrot.slane %v499, 4
        %v501 = vrot.slane %v496, 5
        %v502 = vrot.slane %v501, 4
        %v505 = vadd.f32 %v482, %v500
        %v506 = vadd.f32 %v483, %v502
        %v507 = vunpack.c.l.bf16 %v486
        %v508 = vld [vmem:[%s397 + $0xc] sm:$0x1]
        %v509 = vlaneseq
        %v510 = vshrl.u32 %v509, 7
        %v511 = vsub.s32 0, %v510
        %v512 = vrot.slane %v508, %v511
        %v513 = vmul.f32 %v489, %v512
        %v514 = vmul.f32 %v507, %v512
        %v517 = vrot.slane %v513, 5
        %v518 = vrot.slane %v517, 4
        %v519 = vrot.slane %v514, 5
        %v520 = vrot.slane %v519, 4
        %v523 = vadd.f32 %v505, %v518
        %v524 = vadd.f32 %v506, %v520
        %v525 = vunpack.c.l.bf16 %v487
        %v526 = vld [vmem:[%s397 + $0x16] sm:$0x1]
        %v527 = vlaneseq
        %v528 = vshrl.u32 %v527, 7
        %v529 = vsub.s32 0, %v528
        %v530 = vrot.slane %v526, %v529
        %v531 = vmul.f32 %v507, %v530
        %v532 = vmul.f32 %v525, %v530
        %v535 = vrot.slane %v531, 5
        %v536 = vrot.slane %v535, 4
        %v537 = vrot.slane %v532, 5
        %v538 = vrot.slane %v537, 4
        %v541 = vadd.f32 %v523, %v536
        %v542 = vadd.f32 %v524, %v538
        %v543 = vld [vmem:[%s390] sm:$0x2]
        %v544 = vld [vmem:[%s390 + $0x2] sm:$0x2]
        %v545 = vld [vmem:[%s390 + $0x4] sm:$0x2]
        %v546 = vld [vmem:[%s390 + $0x6] sm:$0x2]
        %v547 = vunpack.c.l.bf16 %v543
        %v548 = vunpack.c.l.bf16 %v544
        %v549 = vld [vmem:[%s397 + $0x4] sm:$0x1]
        %v550 = vlaneseq
        %v551 = vshrl.u32 %v550, 7
        %v552 = vsub.s32 0, %v551
        %v553 = vrot.slane %v549, %v552
        %v554 = vmul.f32 %v547, %v553
        %v555 = vmul.f32 %v548, %v553
        %v558 = vrot.slane %v554, 6
        %v559 = vrot.slane %v558, 4
        %v560 = vrot.slane %v555, 6
        %v561 = vrot.slane %v560, 4
        %v564 = vadd.f32 %v541, %v559
        %v565 = vadd.f32 %v542, %v561
        %v566 = vunpack.c.l.bf16 %v545
        %v567 = vld [vmem:[%s397 + $0xe] sm:$0x1]
        %v568 = vlaneseq
        %v569 = vshrl.u32 %v568, 7
        %v570 = vsub.s32 0, %v569
        %v571 = vrot.slane %v567, %v570
        %v572 = vmul.f32 %v548, %v571
        %v573 = vmul.f32 %v566, %v571
        %v576 = vrot.slane %v572, 6
        %v577 = vrot.slane %v576, 4
        %v578 = vrot.slane %v573, 6
        %v579 = vrot.slane %v578, 4
        %v582 = vadd.f32 %v564, %v577
        %v583 = vadd.f32 %v565, %v579
        %v584 = vunpack.c.l.bf16 %v546
        %v585 = vld [vmem:[%s397 + $0x18] sm:$0x1]
        %v586 = vlaneseq
        %v587 = vshrl.u32 %v586, 7
        %v588 = vsub.s32 0, %v587
        %v589 = vrot.slane %v585, %v588
        %v590 = vmul.f32 %v566, %v589
        %v591 = vmul.f32 %v584, %v589
        %v594 = vrot.slane %v590, 6
        %v595 = vrot.slane %v594, 4
        %v596 = vrot.slane %v591, 6
        %v597 = vrot.slane %v596, 4
        %v600 = vadd.f32 %v582, %v595
        %v601 = vadd.f32 %v583, %v597
        %s602 = scalar_lea.vmem %s390, 8 [#allocation2]
        %v603 = vld [vmem:[%s602] sm:$0x1]
        %v604 = vld [vmem:[%s602 + $0x2] sm:$0x1]
        %v605 = vld [vmem:[%s602 + $0x4] sm:$0x1]
        %v606 = vld [vmem:[%s602 + $0x6] sm:$0x1]
        %v607 = vunpack.c.l.bf16 %v603
        %v608 = vunpack.c.l.bf16 %v604
        %v609 = vld [vmem:[%s397 + $0x1] sm:$0x1]
        %v610 = vlaneseq
        %v611 = vshrl.u32 %v610, 7
        %v612 = vsub.s32 0, %v611
        %v613 = vrot.slane %v609, %v612
        %v614 = vmul.f32 %v607, %v613
        %v615 = vmul.f32 %v608, %v613
        %v616 = vadd.f32 %v600, %v614
        %v617 = vadd.f32 %v601, %v615
        %v618 = vunpack.c.l.bf16 %v605
        %v619 = vld [vmem:[%s397 + $0xb] sm:$0x1]
        %v620 = vlaneseq
        %v621 = vshrl.u32 %v620, 7
        %v622 = vsub.s32 0, %v621
        %v623 = vrot.slane %v619, %v622
        %v624 = vmul.f32 %v608, %v623
        %v625 = vmul.f32 %v618, %v623
        %v626 = vadd.f32 %v616, %v624
        %v627 = vadd.f32 %v617, %v625
        %v628 = vunpack.c.l.bf16 %v606
        %v629 = vld [vmem:[%s397 + $0x15] sm:$0x1]
        %v630 = vlaneseq
        %v631 = vshrl.u32 %v630, 7
        %v632 = vsub.s32 0, %v631
        %v633 = vrot.slane %v629, %v632
        %v634 = vmul.f32 %v618, %v633
        %v635 = vmul.f32 %v628, %v633
        %v636 = vadd.f32 %v626, %v634
        %v637 = vadd.f32 %v627, %v635
        %v638 = vld [vmem:[%s602] sm:$0x3]
        %v639 = vld [vmem:[%s602 + $0x2] sm:$0x3]
        %v640 = vld [vmem:[%s602 + $0x4] sm:$0x3]
        %v641 = vld [vmem:[%s602 + $0x6] sm:$0x3]
        %v642 = vunpack.c.l.bf16 %v638
        %v643 = vunpack.c.l.bf16 %v639
        %v644 = vld [vmem:[%s397 + $0x3] sm:$0x1]
        %v645 = vlaneseq
        %v646 = vshrl.u32 %v645, 7
        %v647 = vsub.s32 0, %v646
        %v648 = vrot.slane %v644, %v647
        %v649 = vmul.f32 %v642, %v648
        %v650 = vmul.f32 %v643, %v648
        %v653 = vrot.slane %v649, 5
        %v654 = vrot.slane %v653, 4
        %v655 = vrot.slane %v650, 5
        %v656 = vrot.slane %v655, 4
        %v659 = vadd.f32 %v636, %v654
        %v660 = vadd.f32 %v637, %v656
        %v661 = vunpack.c.l.bf16 %v640
        %v662 = vld [vmem:[%s397 + $0xd] sm:$0x1]
        %v663 = vlaneseq
        %v664 = vshrl.u32 %v663, 7
        %v665 = vsub.s32 0, %v664
        %v666 = vrot.slane %v662, %v665
        %v667 = vmul.f32 %v643, %v666
        %v668 = vmul.f32 %v661, %v666
        %v671 = vrot.slane %v667, 5
        %v672 = vrot.slane %v671, 4
        %v673 = vrot.slane %v668, 5
        %v674 = vrot.slane %v673, 4
        %v677 = vadd.f32 %v659, %v672
        %v678 = vadd.f32 %v660, %v674
        %v679 = vunpack.c.l.bf16 %v641
        %v680 = vld [vmem:[%s397 + $0x17] sm:$0x1]
        %v681 = vlaneseq
        %v682 = vshrl.u32 %v681, 7
        %v683 = vsub.s32 0, %v682
        %v684 = vrot.slane %v680, %v683
        %v685 = vmul.f32 %v661, %v684
        %v686 = vmul.f32 %v679, %v684
        %v689 = vrot.slane %v685, 5
        %v690 = vrot.slane %v689, 4
        %v691 = vrot.slane %v686, 5
        %v692 = vrot.slane %v691, 4
        %v695 = vadd.f32 %v677, %v690
        %v696 = vadd.f32 %v678, %v692
        %s697 = scalar_lea.vmem %s390, 16 [#allocation2]
        %v698 = vld [vmem:[%s697] sm:$0x1]
        %v699 = vld [vmem:[%s697 + $0x2] sm:$0x1]
        %v700 = vld [vmem:[%s697 + $0x4] sm:$0x1]
        %v701 = vunpack.c.l.bf16 %v698
        %v702 = vunpack.c.l.bf16 %v699
        %v703 = vld [vmem:[%s397 + $0x5] sm:$0x1]
        %v704 = vlaneseq
        %v705 = vshrl.u32 %v704, 7
        %v706 = vsub.s32 0, %v705
        %v707 = vrot.slane %v703, %v706
        %v708 = vmul.f32 %v701, %v707
        %v709 = vmul.f32 %v702, %v707
        %v710 = vadd.f32 %v695, %v708
        %v711 = vadd.f32 %v696, %v709
        %v712 = vunpack.c.l.bf16 %v700
        %v713 = vld [vmem:[%s397 + $0xf] sm:$0x1]
        %v714 = vlaneseq
        %v715 = vshrl.u32 %v714, 7
        %v716 = vsub.s32 0, %v715
        %v717 = vrot.slane %v713, %v716
        %v718 = vmul.f32 %v702, %v717
        %v719 = vmul.f32 %v712, %v717
        %v720 = vadd.f32 %v710, %v718
        %v721 = vadd.f32 %v711, %v719
        %v722 = vld [vmem:[%s697] sm:$0x3]
        %v723 = vld [vmem:[%s697 + $0x2] sm:$0x3]
        %v724 = vld [vmem:[%s697 + $0x4] sm:$0x3]
        %v725 = vunpack.c.l.bf16 %v722
        %v726 = vunpack.c.l.bf16 %v723
        %v727 = vld [vmem:[%s397 + $0x7] sm:$0x1]
        %v728 = vlaneseq
        %v729 = vshrl.u32 %v728, 7
        %v730 = vsub.s32 0, %v729
        %v731 = vrot.slane %v727, %v730
        %v732 = vmul.f32 %v725, %v731
        %v733 = vmul.f32 %v726, %v731
        %v736 = vrot.slane %v732, 5
        %v737 = vrot.slane %v736, 4
        %v738 = vrot.slane %v733, 5
        %v739 = vrot.slane %v738, 4
        %v742 = vadd.f32 %v720, %v737
        %v743 = vadd.f32 %v721, %v739
        %v744 = vunpack.c.l.bf16 %v724
        %v745 = vld [vmem:[%s397 + $0x11] sm:$0x1]
        %v746 = vlaneseq
        %v747 = vshrl.u32 %v746, 7
        %v748 = vsub.s32 0, %v747
        %v749 = vrot.slane %v745, %v748
        %v750 = vmul.f32 %v726, %v749
        %v751 = vmul.f32 %v744, %v749
        %v754 = vrot.slane %v750, 5
        %v755 = vrot.slane %v754, 4
        %v756 = vrot.slane %v751, 5
        %v757 = vrot.slane %v756, 4
        %v760 = vadd.f32 %v742, %v755
        %v761 = vadd.f32 %v743, %v757
        %v762 = vld [vmem:[%s697] sm:$0x2]
        %v763 = vld [vmem:[%s697 + $0x2] sm:$0x2]
        %v764 = vld [vmem:[%s697 + $0x4] sm:$0x2]
        %v765 = vunpack.c.l.bf16 %v762
        %v766 = vunpack.c.l.bf16 %v763
        %v767 = vld [vmem:[%s397 + $0x9] sm:$0x1]
        %v768 = vlaneseq
        %v769 = vshrl.u32 %v768, 7
        %v770 = vsub.s32 0, %v769
        %v771 = vrot.slane %v767, %v770
        %v772 = vmul.f32 %v765, %v771
        %v773 = vmul.f32 %v766, %v771
        %v776 = vrot.slane %v772, 6
        %v777 = vrot.slane %v776, 4
        %v778 = vrot.slane %v773, 6
        %v779 = vrot.slane %v778, 4
        %v782 = vadd.f32 %v760, %v777
        %v783 = vadd.f32 %v761, %v779
        %v784 = vunpack.c.l.bf16 %v764
        %v785 = vld [vmem:[%s397 + $0x13] sm:$0x1]
        %v786 = vlaneseq
        %v787 = vshrl.u32 %v786, 7
        %v788 = vsub.s32 0, %v787
        %v789 = vrot.slane %v785, %v788
        %v790 = vmul.f32 %v766, %v789
        %v791 = vmul.f32 %v784, %v789
        %v794 = vrot.slane %v790, 6
        %v795 = vrot.slane %v794, 4
        %v796 = vrot.slane %v791, 6
        %v797 = vrot.slane %v796, 4
        %v800 = vadd.f32 %v782, %v795
        %v801 = vadd.f32 %v783, %v797
        %s802 = scalar_lea.vmem %s390, 24 [#allocation2]
        %v803 = vld [vmem:[%s802] sm:$0x1]
        %v804 = vld [vmem:[%s802 + $0x2] sm:$0x1]
        %v805 = vld [vmem:[%s802 + $0x4] sm:$0x1]
        %v806 = vunpack.c.l.bf16 %v803
        %v807 = vunpack.c.l.bf16 %v804
        %v808 = vld [vmem:[%s397 + $0x6] sm:$0x1]
        %v809 = vlaneseq
        %v810 = vshrl.u32 %v809, 7
        %v811 = vsub.s32 0, %v810
        %v812 = vrot.slane %v808, %v811
        %v813 = vmul.f32 %v806, %v812
        %v814 = vmul.f32 %v807, %v812
        %v815 = vadd.f32 %v800, %v813
        %v816 = vadd.f32 %v801, %v814
        %v817 = vunpack.c.l.bf16 %v805
        %v818 = vld [vmem:[%s397 + $0x10] sm:$0x1]
        %v819 = vlaneseq
        %v820 = vshrl.u32 %v819, 7
        %v821 = vsub.s32 0, %v820
        %v822 = vrot.slane %v818, %v821
        %v823 = vmul.f32 %v807, %v822
        %v824 = vmul.f32 %v817, %v822
        %v825 = vadd.f32 %v815, %v823
        %v826 = vadd.f32 %v816, %v824
        %v827 = vld [vmem:[%s802] sm:$0x3]
        %v828 = vld [vmem:[%s802 + $0x2] sm:$0x3]
        %v829 = vld [vmem:[%s802 + $0x4] sm:$0x3]
        %v830 = vunpack.c.l.bf16 %v827
        %v831 = vunpack.c.l.bf16 %v828
        %v832 = vld [vmem:[%s397 + $0x8] sm:$0x1]
        %v833 = vlaneseq
        %v834 = vshrl.u32 %v833, 7
        %v835 = vsub.s32 0, %v834
        %v836 = vrot.slane %v832, %v835
        %v837 = vmul.f32 %v830, %v836
        %v838 = vmul.f32 %v831, %v836
        %v841 = vrot.slane %v837, 5
        %v842 = vrot.slane %v841, 4
        %v843 = vrot.slane %v838, 5
        %v844 = vrot.slane %v843, 4
        %v847 = vadd.f32 %v825, %v842
        %v848 = vadd.f32 %v826, %v844
        %v849 = vunpack.c.l.bf16 %v829
        %v850 = vld [vmem:[%s397 + $0x12] sm:$0x1]
        %v851 = vlaneseq
        %v852 = vshrl.u32 %v851, 7
        %v853 = vsub.s32 0, %v852
        %v854 = vrot.slane %v850, %v853
        %v855 = vmul.f32 %v831, %v854
        %v856 = vmul.f32 %v849, %v854
        %v859 = vrot.slane %v855, 5
        %v860 = vrot.slane %v859, 4
        %v861 = vrot.slane %v856, 5
        %v862 = vrot.slane %v861, 4
        %v865 = vadd.f32 %v847, %v860
        %v866 = vadd.f32 %v848, %v862
        %v867 = vld [vmem:[%s440] sm:$0x1]
        %v869 = vlaneseq
        %v870 = vshrl.u32 %v869, 7
        %v871 = vsub.s32 0, %v870
        %v872 = vrot.slane %v867, %v871
        %v874 = vmul.f32 %v865, %v872
        %v875 = vmul.f32 %v866, %v872
        %v876 = vld [vmem:[%s443] sm:$0x1]
        %v878 = vlaneseq
        %v879 = vshrl.u32 %v878, 7
        %v880 = vsub.s32 0, %v879
        %v881 = vrot.slane %v876, %v880
        %v883 = vadd.f32 %v874, %v881
        %v884 = vadd.f32 %v875, %v881
        %v885 = vxor.u32 %v883, 2147483648
        %v886 = vxor.u32 %v884, 2147483648
        %v887 = vmul.f32 %v885, 1.442695
        %v888 = vpow.pop %v887
        %v889 = vmul.f32 %v886, 1.442695
        %v890 = vpow.pop %v889
        %v891 = vadd.f32 %v888, 1.0
        %v892 = vadd.f32 %v890, 1.0
        %v893 = vrcp.pop %v891
        %v894 = vmul.f32 1.0, %v893
        %v895 = vrcp.pop %v892
        %v896 = vmul.f32 1.0, %v895
        %v897 = vmul.f32 %v883, %v894
        %v898 = vmul.f32 %v884, %v896
        %v899 = vpack.c.bf16 %v897, %v897
        %v900 = vpack.c.bf16 %v898, %v898
        %901 = vst [vmem:[%s428] sm:$0x1] %v899
        %902 = vst [vmem:[%s428 + $0x1] sm:$0x1] %v900
        %vm903 = vcmask 1041408
        %v904 = vsel %vm903, %v897, 0.0
        %v905 = vsel %vm903, %v898, 0.0
        %v906 = vadd.f32 %v904, %v905
        %v907 = vrot.slane %v906, 4
        %v908 = vadd.f32 %v906, %v907
        %v909 = vrot.slane %v908, 2
        %v910 = vadd.f32 %v908, %v909
        %v911 = vrot.slane %v910, 1
        %v912 = vadd.f32 %v910, %v911
        %913 = vst [vmem:[%s450] sm:$0x1] %v912
        %s914 = sand.u32 %s145, 1
        %s915 = sand.u32 %s145, 1
        %s916 = smul.addr %s915, 2
        %s917 = scalar_lea.vmem [#allocation4], %s916
        %p918 = scmp.lt.s32.totalorder %s21, 1
        %s919 = scalar_select %p918, %s21, 1
        %p920 = scmp.lt.s32.totalorder %s22, 1
        %s921 = scalar_select %p920, %s22, 1
        %s922 = smul.addr %s919, 2
        %s923 = sadd.s32 %s921, %s922
        %s924 = scalar_lea.vmem %s5, %s923
        // Predicated region
        $region116: #{_lambda_.21} parent=106 // pred_check
          %p925 = pneg %p155
        $region117: #{_lambda_.21} parent=106 // pred_check_branch
          %927 = sbr.rel (%p925) target = $region119
        $region118: #{_lambda_.21} parent=106 // pred_region
          %s928 = smul.addr %s21, 4
          %s929 = sadd.s32 %s22, %s928
          %s930 = scalar_lea.vmem %s4, %s929
          // Predicated region
          $region120: #{_lambda_.21} parent=118 // pred_check
            _
          $region121: #{_lambda_.21} parent=118 // pred_check_branch
            %932 = sbr.rel (0) target = $region123
          $region122: #{_lambda_.21} parent=118 // pred_region
            // Predicated region
            $region124: #{_lambda_.21} parent=122 // pred_check
              _
            $region125: #{_lambda_.21} parent=122 // pred_check_branch
              %934 = sbr.rel target = $region127
            $region126: #{_lambda_.21} parent=122 // pred_region
              // Predicated region
              $region139: #{_lambda_.21} parent=126 // pred_check
                _
              $region140: #{_lambda_.21} parent=126 // pred_check_branch
                %951 = sbr.rel (0) target = $region142
              $region141: #{_lambda_.21} parent=126 // pred_region
                loop: start=0, step=1, limit=1
                $region143: #{_lambda_.21} parent=141 // loop_pre_header
                  _
                $region144: #{_lambda_.21} parent=141 // loop_header
                  %s954 = sphi 0, %s958
                  %p955 = scmp.ge.s32.totalorder %s954, 1
                  %s959 = sphi %s917, %s917
                  %s960 = sphi %s930, %s930
                $region145: #{_lambda_.21} parent=141 // loop_header_branch
                  %957 = sbr.rel (%p955) target = $region149
                $region146: #{_lambda_.21} parent=141 // loop_body
                  %v961 = vld [vmem:[%s959] sm:$0x1]
                  %962 = vst [vmem:[%s960] sm:$0x1] %v961
                  %v963 = vld [vmem:[%s959 + $0x1] sm:$0x1]
                  %964 = vst [vmem:[%s960 + $0x2] sm:$0x1] %v963
                $region147: #{_lambda_.21} parent=141 // loop_footer
                  %s958 = sadd.s32 1, %s954
                $region148: #{_lambda_.21} parent=141 // loop_footer_branch
                  %953 = sbr.rel target = $region144
                $region149: #{_lambda_.21} parent=141 // loop_exit
                  _
              $region142: #{_lambda_.21} parent=126 // pred_fallthru
                _
            $region127: #{_lambda_.21} parent=122 // pred_fallthru
              _
            // Predicated region
            $region128: #{_lambda_.21} parent=122 // pred_check
              _
            $region129: #{_lambda_.21} parent=122 // pred_check_branch
              %936 = sbr.rel (0) target = $region131
            $region130: #{_lambda_.21} parent=122 // pred_region
              loop: start=0, step=1, limit=1
              $region132: #{_lambda_.21} parent=130 // loop_pre_header
                _
              $region133: #{_lambda_.21} parent=130 // loop_header
                %s939 = sphi 0, %s943
                %p940 = scmp.ge.s32.totalorder %s939, 1
                %s944 = sphi %s917, %s917
                %s945 = sphi %s930, %s930
              $region134: #{_lambda_.21} parent=130 // loop_header_branch
                %942 = sbr.rel (%p940) target = $region138
              $region135: #{_lambda_.21} parent=130 // loop_body
                %v946 = vld [vmem:[%s944] sm:$0x1]
                %947 = vst [vmem:[%s945] sm:$0x1] %v946
                %v948 = vld [vmem:[%s944 + $0x1] sm:$0x1]
                %949 = vst [vmem:[%s945 + $0x2] sm:$0x1] %v948
              $region136: #{_lambda_.21} parent=130 // loop_footer
                %s943 = sadd.s32 1, %s939
              $region137: #{_lambda_.21} parent=130 // loop_footer_branch
                %938 = sbr.rel target = $region133
              $region138: #{_lambda_.21} parent=130 // loop_exit
                _
            $region131: #{_lambda_.21} parent=122 // pred_fallthru
              _
          $region123: #{_lambda_.21} parent=118 // pred_fallthru
            _
          %965 = vnop
        $region119: #{_lambda_.21} parent=106 // pred_fallthru
          _
        // Predicated region
        $region150: #{_lambda_.21} parent=106 // pred_check
          %p966 = pneg %p183
        $region151: #{_lambda_.21} parent=106 // pred_check_branch
          %968 = sbr.rel (%p966) target = $region153
        $region152: #{_lambda_.21} parent=106 // pred_region
          _
        $region153: #{_lambda_.21} parent=106 // pred_fallthru
          _
      $region107: #{_lambda_.21} parent=5 // pred_fallthru
        _
      %p969 = scmp.le.s32.totalorder 2, %s12
      // Predicated region
      $region154: #{_lambda_.21} parent=5 // pred_check
        %p970 = pneg %p969
      $region155: #{_lambda_.21} parent=5 // pred_check_branch
        %972 = sbr.rel (%p970) target = $region157
      $region156: #{_lambda_.21} parent=5 // pred_region
        %s973 = ssub.s32 %s12, 2
        // Predicated region
        $region158: #{_lambda_.21} parent=156 // pred_check
          %p974 = pneg %p161
        $region159: #{_lambda_.21} parent=156 // pred_check_branch
          %976 = sbr.rel (%p974) target = $region161
        $region160: #{_lambda_.21} parent=156 // pred_region
          %s977 = sand.u32 %s146, 1
          %s978 = sand.u32 %s146, 1
          %s979 = smul.addr %s978, 2
          %s980 = scalar_lea.vmem [#allocation4], %s979
        $region161: #{_lambda_.21} parent=156 // pred_fallthru
          _
        // Predicated region
        $region162: #{_lambda_.21} parent=156 // pred_check
          %p981 = pneg %p189
        $region163: #{_lambda_.21} parent=156 // pred_check_branch
          %983 = sbr.rel (%p981) target = $region165
        $region164: #{_lambda_.21} parent=156 // pred_region
          %p984 = scmp.lt.s32.totalorder %s23, 1
          %s985 = scalar_select %p984, %s23, 1
          %p986 = scmp.lt.s32.totalorder %s24, 1
          %s987 = scalar_select %p986, %s24, 1
          %s988 = smul.addr %s985, 2
          %s989 = sadd.s32 %s987, %s988
          %s990 = scalar_lea.vmem %s5, %s989
        $region165: #{_lambda_.21} parent=156 // pred_fallthru
          _
      $region157: #{_lambda_.21} parent=5 // pred_fallthru
        _
    $region6: #{_lambda_.21} parent=1 // loop_footer
      %s16 = sadd.s32 1, %s12
    $region7: #{_lambda_.21} parent=1 // loop_footer_branch
      %11 = sbr.rel target = $region3
    $region8: #{_lambda_.21} parent=1 // loop_exit
      _

</llo_original>
